<compile_context>
chip_gen: v7x
topology: tpu7x:2x2x1
jax: 0.10.0
libtpu: 0.0.40
codegen_flags: <defaults>
</compile_context>

<pallas_src>
import functools
import math

import jax
import jax.numpy as jnp
from jax import lax
from jax.experimental import pallas as pl
from jax.experimental.pallas import tpu as pltpu


def _round_up(x, m):
    return ((x + m - 1) // m) * m


# ----------------------------------------------------------------------------
# Fused Pallas kernel: L-layer LSTM recurrence + masked output projection
# ----------------------------------------------------------------------------
def _fused_lstm_kernel(x_ref, mask_ref, w_ih_ref, w_hh_ref, b_ref,
                       w_out_ref, b_out_ref, out_ref,
                       x_scr, gx_scr, h_scr, c_scr, *, num_layers):
    """All shapes are padded: Hp, Vp multiples of 128; B multiple of 8.

    x_ref:    (T, B, Hp)     time-major embeddings
    mask_ref: (T, B)         float attention mask (ones if None)
    w_ih_ref: (L, Hp, 4Hp)   input->gates weights (transposed, gate-padded)
    w_hh_ref: (L, Hp, 4Hp)   hidden->gates weights (transposed, gate-padded)
    b_ref:    (L, 1, 4Hp)    combined bias b_ih + b_hh (gate-padded)
    w_out_ref:(Hp, Vp)       output projection (transposed, zero-padded)
    b_out_ref:(1, Vp)
    out_ref:  (T, B, Vp)     time-major logits
    PyTorch gate order: i, f, g, o.
    """
    T, B, Hp = x_scr.shape
    Vp = out_ref.shape[-1]

    for l in range(num_layers):                       # static layer loop
        w_ih = w_ih_ref[l]                            # (Hp, 4Hp)
        w_hh = w_hh_ref[l]                            # (Hp, 4Hp)
        b = b_ref[l]                                  # (1, 4Hp), loaded once per layer

        # ---- Hoisted input projection: one big MXU matmul per layer (M = T*B),
        #      bias folded in here instead of being re-broadcast every time step.
        #      Layer 0 reads the kernel input directly (avoids a full VMEM copy);
        #      later layers read the previous layer's outputs from x_scr.
        src = x_ref if l == 0 else x_scr
        x_flat = src[...].reshape(T * B, Hp)
        gx = jnp.dot(x_flat, w_ih, preferred_element_type=jnp.float32) + b
        gx_scr[...] = gx.reshape(T, B, 4 * Hp)

        h_scr[...] = jnp.zeros_like(h_scr)
        c_scr[...] = jnp.zeros_like(c_scr)

        def step(t, carry):
            # Only the recurrent matmul remains on the serial critical path.
            gates = gx_scr[t] + jnp.dot(h_scr[...], w_hh,
                                        preferred_element_type=jnp.float32)
            # Hp is a multiple of 128 -> every gate slice is full-vreg aligned.
            i_g = jax.nn.sigmoid(gates[:, 0 * Hp:1 * Hp])
            f_g = jax.nn.sigmoid(gates[:, 1 * Hp:2 * Hp])
            g_g = jnp.tanh(gates[:, 2 * Hp:3 * Hp])
            o_g = jax.nn.sigmoid(gates[:, 3 * Hp:4 * Hp])
            c_new = f_g * c_scr[...] + i_g * g_g
            h_new = o_g * jnp.tanh(c_new)
            c_scr[...] = c_new
            h_scr[...] = h_new
            x_scr[t] = h_new                           # becomes next layer's input
            return carry

        # T is small & static -> fully unroll so gate VPU/EUP math of step t overlaps
        # the MXU drain of step t+1.
        lax.fori_loop(0, T, step, 0, unroll=True)

    # attention_mask applied multiplicatively after the recurrence (matches reference),
    # then one lane-dense output projection over all T*B rows.
    h_all = x_scr[...] * mask_ref[...][:, :, None]
    logits = (jnp.dot(h_all.reshape(T * B, Hp), w_out_ref[...],
                      preferred_element_type=jnp.float32) + b_out_ref[...])
    out_ref[...] = logits.reshape(T, B, Vp).astype(out_ref.dtype)


def _fused_lstm_call(emb_tm, mask_tm, w_ih, w_hh, b, w_out_t, b_out):
    T, Bp, Hp = emb_tm.shape
    L = w_ih.shape[0]
    Vp = w_out_t.shape[1]
    kernel = functools.partial(_fused_lstm_kernel, num_layers=L)
    return pl.pallas_call(
        kernel,
        out_shape=jax.ShapeDtypeStruct((T, Bp, Vp), jnp.float32),
        grid=(1,),
        in_specs=[
            pl.BlockSpec((T, Bp, Hp), lambda i: (0, 0, 0)),
            pl.BlockSpec((T, Bp), lambda i: (0, 0)),
            pl.BlockSpec((L, Hp, 4 * Hp), lambda i: (0, 0, 0)),
            pl.BlockSpec((L, Hp, 4 * Hp), lambda i: (0, 0, 0)),
            pl.BlockSpec((L, 1, 4 * Hp), lambda i: (0, 0, 0)),
            pl.BlockSpec((Hp, Vp), lambda i: (0, 0)),
            pl.BlockSpec((1, Vp), lambda i: (0, 0)),
        ],
        out_specs=pl.BlockSpec((T, Bp, Vp), lambda i: (0, 0, 0)),
        scratch_shapes=[
            pltpu.VMEM((T, Bp, Hp), jnp.float32),       # layer-to-layer activations
            pltpu.VMEM((T, Bp, 4 * Hp), jnp.float32),   # hoisted input-projection gates
            pltpu.VMEM((Bp, Hp), jnp.float32),          # h state
            pltpu.VMEM((Bp, Hp), jnp.float32),          # c state
        ],
        compiler_params=pltpu.CompilerParams(
            dimension_semantics=("arbitrary",)),
    )(emb_tm, mask_tm, w_ih, w_hh, b, w_out_t, b_out)


# ----------------------------------------------------------------------------
# Parameters: raw (PyTorch layout) + packed (padded / stacked, kernel-ready)
# ----------------------------------------------------------------------------
def init_raw_params(key, *, attribute_vocab_size, traffic_vocab_size,
                    spatial_vocab_size, vocab_size, hidden_size, num_layers):
    H = hidden_size
    k = 1.0 / math.sqrt(H)
    keys = jax.random.split(key, 7 + 4 * num_layers)
    ki = iter(keys)

    def unif(rng, shape):
        return jax.random.uniform(rng, shape, jnp.float32, minval=-k, maxval=k)

    raw = {
        "embeddings": jax.random.normal(next(ki), (vocab_size, H), jnp.float32),
        "position_embeddings": jax.random.normal(next(ki), (48, H), jnp.float32),
        "attribute_embeddings": jax.random.normal(
            next(ki), (attribute_vocab_size, H), jnp.float32),
        "traffic_embeddings": jax.random.normal(
            next(ki), (traffic_vocab_size, H), jnp.float32),
        "spatial_embeddings": jax.random.normal(
            next(ki), (spatial_vocab_size, H), jnp.float32),
        "w_out": unif(next(ki), (vocab_size, H)),      # nn.Linear weight (V, H)
        "b_out": unif(next(ki), (vocab_size,)),
    }
    w_ih, w_hh, b_ih, b_hh = [], [], [], []
    for _ in range(num_layers):
        w_ih.append(unif(next(ki), (4 * H, H)))
        w_hh.append(unif(next(ki), (4 * H, H)))
        b_ih.append(unif(next(ki), (4 * H,)))
        b_hh.append(unif(next(ki), (4 * H,)))
    raw["w_ih"], raw["w_hh"], raw["b_ih"], raw["b_hh"] = w_ih, w_hh, b_ih, b_hh
    return raw


def _pad_gate_cols(w_t, H, Hp):
    """(H, 4H) -> (Hp, 4Hp): gate g placed at columns [g*Hp, g*Hp+H), zeros elsewhere."""
    out = jnp.zeros((Hp, 4 * Hp), jnp.float32)
    for g in range(4):
        out = out.at[:H, g * Hp:g * Hp + H].set(w_t[:, g * H:(g + 1) * H])
    return out


def _pad_gate_bias(bvec, H, Hp):
    out = jnp.zeros((1, 4 * Hp), jnp.float32)
    for g in range(4):
        out = out.at[0, g * Hp:g * Hp + H].set(bvec[g * H:(g + 1) * H])
    return out


def pack_kernel_params(raw):
    H = raw["embeddings"].shape[1]
    V = raw["w_out"].shape[0]
    Hp = max(128, _round_up(H, 128))
    Vp = max(128, _round_up(V, 128))
    pad_h = lambda t: jnp.pad(t, ((0, 0), (0, Hp - H)))

    w_ih = jnp.stack([_pad_gate_cols(w.T, H, Hp) for w in raw["w_ih"]])
    w_hh = jnp.stack([_pad_gate_cols(w.T, H, Hp) for w in raw["w_hh"]])
    b = jnp.stack([_pad_gate_bias(bi + bh, H, Hp)
                   for bi, bh in zip(raw["b_ih"], raw["b_hh"])])
    w_out_t = jnp.zeros((Hp, Vp), jnp.float32).at[:H, :V].set(raw["w_out"].T)
    b_out = jnp.zeros((1, Vp), jnp.float32).at[0, :V].set(raw["b_out"])
    return {
        "embeddings": pad_h(raw["embeddings"]),
        "position_embeddings": pad_h(raw["position_embeddings"]),
        "attribute_embeddings": pad_h(raw["attribute_embeddings"]),
        "traffic_embeddings": pad_h(raw["traffic_embeddings"]),
        "spatial_embeddings": pad_h(raw["spatial_embeddings"]),
        "lstm_w_ih": w_ih, "lstm_w_hh": w_hh, "lstm_b": b,
        "w_out_t": w_out_t, "b_out": b_out,
    }


# ----------------------------------------------------------------------------
# Forward pass
# ----------------------------------------------------------------------------
@functools.partial(jax.jit, static_argnames=("vocab_size", "use_embeds"))
def custom_lstm_forward(params, input_ids, combined_attribute_indices,
                        combined_traffic_indices, combined_spatial_indices,
                        attention_mask=None, *, vocab_size, use_embeds=True):
    B, T = input_ids.shape
    Bp = max(8, _round_up(B, 8))

    # TODO(synk): like the PyTorch module, position_embeddings has 48 rows; requires T <= 48.

    # Batch-padded, time-major token ids (padding indexes row 0; padded batch rows
    # are independent in the recurrence and sliced away at the end).
    ids_tm = jnp.zeros((T, Bp), input_ids.dtype).at[:, :B].set(input_ids.T)
    emb = params["embeddings"][ids_tm]                                     # (T, Bp, Hp)
    emb = emb + params["position_embeddings"][jnp.arange(T)][:, None, :]
    if use_embeds:
        pad_b = lambda v: jnp.zeros((Bp,), v.dtype).at[:B].set(v)
        extra = (params["attribute_embeddings"][pad_b(combined_attribute_indices)]
                 + params["traffic_embeddings"][pad_b(combined_traffic_indices)]
                 + params["spatial_embeddings"][pad_b(combined_spatial_indices)])
        emb = emb + extra[None, :, :]

    if attention_mask is None:
        mask_tm = jnp.ones((T, Bp), jnp.float32)
    else:
        mask_tm = jnp.zeros((T, Bp), jnp.float32).at[:, :B].set(
            attention_mask.T.astype(jnp.float32))

    out_tm = _fused_lstm_call(emb, mask_tm, params["lstm_w_ih"],
                              params["lstm_w_hh"], params["lstm_b"],
                              params["w_out_t"], params["b_out"])          # (T, Bp, Vp)
    return jnp.transpose(out_tm, (1, 0, 2))[:B, :, :vocab_size]            # (B, T, V)


# ----------------------------------------------------------------------------
# Pure-JAX reference (unpadded, PyTorch semantics) for a correctness check
# ----------------------------------------------------------------------------
def reference_forward(raw, input_ids, attr_idx, traffic_idx, spatial_idx,
                      attention_mask=None, use_embeds=True):
    hp = lax.Precision.HIGHEST
    B, T = input_ids.shape
    H = raw["embeddings"].shape[1]
    emb = raw["embeddings"][input_ids] + raw["position_embeddings"][jnp.arange(T)][None]
    if use_embeds:
        emb = emb + (raw["attribute_embeddings"][attr_idx]
                     + raw["traffic_embeddings"][traffic_idx]
                     + raw["spatial_embeddings"][spatial_idx])[:, None, :]
    x = emb
    for l in range(len(raw["w_ih"])):
        w_ih, w_hh = raw["w_ih"][l], raw["w_hh"][l]
        b = raw["b_ih"][l] + raw["b_hh"][l]
        h = jnp.zeros((B, H), jnp.float32)
        c = jnp.zeros((B, H), jnp.float32)
        ys = []
        for t in range(T):
            g = (jnp.dot(x[:, t, :], w_ih.T, precision=hp)
                 + jnp.dot(h, w_hh.T, precision=hp) + b)
            i_g = jax.nn.sigmoid(g[:, 0 * H:1 * H])
            f_g = jax.nn.sigmoid(g[:, 1 * H:2 * H])
            g_g = jnp.tanh(g[:, 2 * H:3 * H])
            o_g = jax.nn.sigmoid(g[:, 3 * H:4 * H])
            c = f_g * c + i_g * g_g
            h = o_g * jnp.tanh(c)
            ys.append(h)
        x = jnp.stack(ys, axis=1)
    if attention_mask is not None:
        x = x * attention_mask[:, :, None].astype(x.dtype)
    return jnp.dot(x, raw["w_out"].T, precision=hp) + raw["b_out"]


# ----------------------------------------------------------------------------
if __name__ == "__main__":
    B, T = 2, 8
    HIDDEN = 32
    NUM_LAYERS = 4
    VOCAB = 33
    ATTR_VOCAB, TRAFFIC_VOCAB, SPATIAL_VOCAB = 608, 1024, 3125

    root = jax.random.PRNGKey(0)
    k_params, k_ids, k_attr, k_traf, k_spat = jax.random.split(root, 5)

    raw = init_raw_params(
        k_params,
        attribute_vocab_size=ATTR_VOCAB,
        traffic_vocab_size=TRAFFIC_VOCAB,
        spatial_vocab_size=SPATIAL_VOCAB,
        vocab_size=VOCAB,
        hidden_size=HIDDEN,
        num_layers=NUM_LAYERS,
    )
    params = pack_kernel_params(raw)

    input_ids = jax.random.randint(k_ids, (B, T), 0, VOCAB, dtype=jnp.int32)
    attr_idx = jax.random.randint(k_attr, (B,), 0, ATTR_VOCAB, dtype=jnp.int32)
    traffic_idx = jax.random.randint(k_traf, (B,), 0, TRAFFIC_VOCAB, dtype=jnp.int32)
    spatial_idx = jax.random.randint(k_spat, (B,), 0, SPATIAL_VOCAB, dtype=jnp.int32)

    logits = custom_lstm_forward(params, input_ids, attr_idx, traffic_idx,
                                 spatial_idx, attention_mask=None,
                                 vocab_size=VOCAB, use_embeds=True)
    logits = jax.block_until_ready(logits)
    assert logits.shape == (B, T, VOCAB), logits.shape

    ref = reference_forward(raw, input_ids, attr_idx, traffic_idx, spatial_idx,
                            attention_mask=None, use_embeds=True)
    max_err = float(jnp.max(jnp.abs(logits - ref)))
    assert max_err < 3e-3, f"kernel/reference mismatch: max abs err = {max_err}"
    print("KERNEL_OK")
</pallas_src>

<mosaic_0001>
module attributes {stable_mosaic.version = 11 : i64} {
  func.func @_fused_lstm_kernel(%arg0: i32, %arg1: memref<8x8x128xf32, #tpu.memory_space<vmem>>, %arg2: memref<8x8xf32, #tpu.memory_space<vmem>>, %arg3: memref<4x128x512xf32, #tpu.memory_space<vmem>>, %arg4: memref<4x128x512xf32, #tpu.memory_space<vmem>>, %arg5: memref<4x1x512xf32, #tpu.memory_space<vmem>>, %arg6: memref<128x128xf32, #tpu.memory_space<vmem>>, %arg7: memref<1x128xf32, #tpu.memory_space<vmem>>, %arg8: memref<8x8x128xf32, #tpu.memory_space<vmem>>, %arg9: memref<8x8x128xf32, #tpu.memory_space<vmem>>, %arg10: memref<8x8x512xf32, #tpu.memory_space<vmem>>, %arg11: memref<8x128xf32, #tpu.memory_space<vmem>>, %arg12: memref<8x128xf32, #tpu.memory_space<vmem>>) attributes {dimension_semantics = [#tpu.dimension_semantics<arbitrary>], iteration_bounds = array<i64: 1>, scalar_prefetch = 0 : i64, scratch_operands = 4 : i64, tpu.core_type = #tpu.core_type<tc>, window_params = [{pipeline_mode = #tpu.pipeline_mode<synchronous>, transform_indices = @transform_0, window_bounds = array<i64: 8, 8, 128>}, {pipeline_mode = #tpu.pipeline_mode<synchronous>, transform_indices = @transform_1, window_bounds = array<i64: 8, 8>}, {pipeline_mode = #tpu.pipeline_mode<synchronous>, transform_indices = @transform_2, window_bounds = array<i64: 4, 128, 512>}, {pipeline_mode = #tpu.pipeline_mode<synchronous>, transform_indices = @transform_3, window_bounds = array<i64: 4, 128, 512>}, {pipeline_mode = #tpu.pipeline_mode<synchronous>, transform_indices = @transform_4, window_bounds = array<i64: 4, 1, 512>}, {pipeline_mode = #tpu.pipeline_mode<synchronous>, transform_indices = @transform_5, window_bounds = array<i64: 128, 128>}, {pipeline_mode = #tpu.pipeline_mode<synchronous>, transform_indices = @transform_6, window_bounds = array<i64: 1, 128>}, {pipeline_mode = #tpu.pipeline_mode<synchronous>, transform_indices = @transform_7, window_bounds = array<i64: 8, 8, 128>}]} {
    %c0 = arith.constant 0 : index
    %c0_0 = arith.constant 0 : index
    %c0_1 = arith.constant 0 : index
    %0 = vector.load %arg3[%c0, %c0_0, %c0_1] : memref<4x128x512xf32, #tpu.memory_space<vmem>>, vector<1x128x512xf32>
    %1 = vector.shape_cast %0 : vector<1x128x512xf32> to vector<128x512xf32>
    %c0_2 = arith.constant 0 : index
    %c0_3 = arith.constant 0 : index
    %c0_4 = arith.constant 0 : index
    %2 = vector.load %arg4[%c0_2, %c0_3, %c0_4] : memref<4x128x512xf32, #tpu.memory_space<vmem>>, vector<1x128x512xf32>
    %3 = vector.shape_cast %2 : vector<1x128x512xf32> to vector<128x512xf32>
    %c0_5 = arith.constant 0 : index
    %c0_6 = arith.constant 0 : index
    %c0_7 = arith.constant 0 : index
    %4 = vector.load %arg5[%c0_5, %c0_6, %c0_7] : memref<4x1x512xf32, #tpu.memory_space<vmem>>, vector<1x1x512xf32>
    %5 = vector.shape_cast %4 : vector<1x1x512xf32> to vector<1x512xf32>
    %c0_8 = arith.constant 0 : index
    %c0_9 = arith.constant 0 : index
    %c0_10 = arith.constant 0 : index
    %6 = vector.load %arg1[%c0_8, %c0_9, %c0_10] : memref<8x8x128xf32, #tpu.memory_space<vmem>>, vector<8x8x128xf32>
    %7 = vector.shape_cast %6 : vector<8x8x128xf32> to vector<64x128xf32>
    %cst = arith.constant dense<0.000000e+00> : vector<64x512xf32>
    %8 = tpu.matmul %7, %1, %cst {dimension_numbers = #tpu.dot_dimension_numbers<[1], [0], [0], [1], [0, 0, 1, 1], [], []>} : vector<64x128xf32>, vector<128x512xf32>, vector<64x512xf32> -> vector<64x512xf32>
    %9 = vector.broadcast %5 : vector<1x512xf32> to vector<64x512xf32>
    %10 = arith.addf %8, %9 : vector<64x512xf32>
    %11 = vector.shape_cast %10 : vector<64x512xf32> to vector<8x8x512xf32>
    %c0_11 = arith.constant 0 : index
    %c0_12 = arith.constant 0 : index
    %c0_13 = arith.constant 0 : index
    %12 = vector.load %arg10[%c0_11, %c0_12, %c0_13] : memref<8x8x512xf32, #tpu.memory_space<vmem>>, vector<8x8x512xf32>
    tpu.vector_store %arg10[%c0_11, %c0_12, %c0_13], %11 {strides = array<i32>} : memref<8x8x512xf32, #tpu.memory_space<vmem>>, vector<8x8x512xf32>,
    %cst_14 = arith.constant 0.000000e+00 : f32
    %13 = vector.broadcast %cst_14 : f32 to vector<8x128xf32>
    %c0_15 = arith.constant 0 : index
    %c0_16 = arith.constant 0 : index
    %14 = vector.load %arg11[%c0_15, %c0_16] : memref<8x128xf32, #tpu.memory_space<vmem>>, vector<8x128xf32>
    tpu.vector_store %arg11[%c0_15, %c0_16], %13 {strides = array<i32>} : memref<8x128xf32, #tpu.memory_space<vmem>>, vector<8x128xf32>,
    %cst_17 = arith.constant 0.000000e+00 : f32
    %15 = vector.broadcast %cst_17 : f32 to vector<8x128xf32>
    %c0_18 = arith.constant 0 : index
    %c0_19 = arith.constant 0 : index
    %16 = vector.load %arg12[%c0_18, %c0_19] : memref<8x128xf32, #tpu.memory_space<vmem>>, vector<8x128xf32>
    tpu.vector_store %arg12[%c0_18, %c0_19], %15 {strides = array<i32>} : memref<8x128xf32, #tpu.memory_space<vmem>>, vector<8x128xf32>,
    %c0_i32 = arith.constant 0 : i32
    %17 = arith.index_cast %c0_i32 : i32 to index
    %c0_20 = arith.constant 0 : index
    %c0_21 = arith.constant 0 : index
    %18 = vector.load %arg10[%17, %c0_20, %c0_21] : memref<8x8x512xf32, #tpu.memory_space<vmem>>, vector<1x8x512xf32>
    %19 = vector.shape_cast %18 : vector<1x8x512xf32> to vector<8x512xf32>
    %c0_22 = arith.constant 0 : index
    %c0_23 = arith.constant 0 : index
    %20 = vector.load %arg11[%c0_22, %c0_23] : memref<8x128xf32, #tpu.memory_space<vmem>>, vector<8x128xf32>
    %cst_24 = arith.constant dense<0.000000e+00> : vector<8x512xf32>
    %21 = tpu.matmul %20, %3, %cst_24 {dimension_numbers = #tpu.dot_dimension_numbers<[1], [0], [0], [1], [0, 0, 1, 1], [], []>} : vector<8x128xf32>, vector<128x512xf32>, vector<8x512xf32> -> vector<8x512xf32>
    %22 = arith.addf %19, %21 : vector<8x512xf32>
    %23 = vector.extract_strided_slice %22 {offsets = [0, 0], sizes = [8, 128], strides = [1, 1]} : vector<8x512xf32> to vector<8x128xf32>
    %24 = arith.negf %23 : vector<8x128xf32>
    %25 = math.exp %24 : vector<8x128xf32>
    %cst_25 = arith.constant 1.000000e+00 : f32
    %26 = vector.broadcast %cst_25 : f32 to vector<8x128xf32>
    %27 = arith.addf %26, %25 : vector<8x128xf32>
    %28 = arith.divf %26, %27 : vector<8x128xf32>
    %29 = vector.extract_strided_slice %22 {offsets = [0, 128], sizes = [8, 128], strides = [1, 1]} : vector<8x512xf32> to vector<8x128xf32>
    %30 = arith.negf %29 : vector<8x128xf32>
    %31 = math.exp %30 : vector<8x128xf32>
    %cst_26 = arith.constant 1.000000e+00 : f32
    %32 = vector.broadcast %cst_26 : f32 to vector<8x128xf32>
    %33 = arith.addf %32, %31 : vector<8x128xf32>
    %34 = arith.divf %32, %33 : vector<8x128xf32>
    %35 = vector.extract_strided_slice %22 {offsets = [0, 256], sizes = [8, 128], strides = [1, 1]} : vector<8x512xf32> to vector<8x128xf32>
    %36 = math.tanh %35 : vector<8x128xf32>
    %37 = vector.extract_strided_slice %22 {offsets = [0, 384], sizes = [8, 128], strides = [1, 1]} : vector<8x512xf32> to vector<8x128xf32>
    %38 = arith.negf %37 : vector<8x128xf32>
    %39 = math.exp %38 : vector<8x128xf32>
    %cst_27 = arith.constant 1.000000e+00 : f32
    %40 = vector.broadcast %cst_27 : f32 to vector<8x128xf32>
    %41 = arith.addf %40, %39 : vector<8x128xf32>
    %42 = arith.divf %40, %41 : vector<8x128xf32>
    %c0_28 = arith.constant 0 : index
    %c0_29 = arith.constant 0 : index
    %43 = vector.load %arg12[%c0_28, %c0_29] : memref<8x128xf32, #tpu.memory_space<vmem>>, vector<8x128xf32>
    %44 = arith.mulf %34, %43 : vector<8x128xf32>
    %45 = arith.mulf %28, %36 : vector<8x128xf32>
    %46 = arith.addf %44, %45 : vector<8x128xf32>
    %47 = math.tanh %46 : vector<8x128xf32>
    %48 = arith.mulf %42, %47 : vector<8x128xf32>
    %c0_30 = arith.constant 0 : index
    %c0_31 = arith.constant 0 : index
    %49 = vector.load %arg12[%c0_30, %c0_31] : memref<8x128xf32, #tpu.memory_space<vmem>>, vector<8x128xf32>
    tpu.vector_store %arg12[%c0_30, %c0_31], %46 {strides = array<i32>} : memref<8x128xf32, #tpu.memory_space<vmem>>, vector<8x128xf32>,
    %c0_32 = arith.constant 0 : index
    %c0_33 = arith.constant 0 : index
    %50 = vector.load %arg11[%c0_32, %c0_33] : memref<8x128xf32, #tpu.memory_space<vmem>>, vector<8x128xf32>
    tpu.vector_store %arg11[%c0_32, %c0_33], %48 {strides = array<i32>} : memref<8x128xf32, #tpu.memory_space<vmem>>, vector<8x128xf32>,
    %51 = arith.index_cast %c0_i32 : i32 to index
    %c0_34 = arith.constant 0 : index
    %c0_35 = arith.constant 0 : index
    %52 = vector.load %arg9[%51, %c0_34, %c0_35] : memref<8x8x128xf32, #tpu.memory_space<vmem>>, vector<1x8x128xf32>
    %53 = vector.shape_cast %52 : vector<1x8x128xf32> to vector<8x128xf32>
    %54 = vector.shape_cast %48 : vector<8x128xf32> to vector<1x8x128xf32>
    tpu.vector_store %arg9[%51, %c0_34, %c0_35], %54 {strides = array<i32>} : memref<8x8x128xf32, #tpu.memory_space<vmem>>, vector<1x8x128xf32>,
    %c1_i32 = arith.constant 1 : i32
    %55 = arith.index_cast %c1_i32 : i32 to index
    %c0_36 = arith.constant 0 : index
    %c0_37 = arith.constant 0 : index
    %56 = vector.load %arg10[%55, %c0_36, %c0_37] : memref<8x8x512xf32, #tpu.memory_space<vmem>>, vector<1x8x512xf32>
    %57 = vector.shape_cast %56 : vector<1x8x512xf32> to vector<8x512xf32>
    %c0_38 = arith.constant 0 : index
    %c0_39 = arith.constant 0 : index
    %58 = vector.load %arg11[%c0_38, %c0_39] : memref<8x128xf32, #tpu.memory_space<vmem>>, vector<8x128xf32>
    %cst_40 = arith.constant dense<0.000000e+00> : vector<8x512xf32>
    %59 = tpu.matmul %58, %3, %cst_40 {dimension_numbers = #tpu.dot_dimension_numbers<[1], [0], [0], [1], [0, 0, 1, 1], [], []>} : vector<8x128xf32>, vector<128x512xf32>, vector<8x512xf32> -> vector<8x512xf32>
    %60 = arith.addf %57, %59 : vector<8x512xf32>
    %61 = vector.extract_strided_slice %60 {offsets = [0, 0], sizes = [8, 128], strides = [1, 1]} : vector<8x512xf32> to vector<8x128xf32>
    %62 = arith.negf %61 : vector<8x128xf32>
    %63 = math.exp %62 : vector<8x128xf32>
    %cst_41 = arith.constant 1.000000e+00 : f32
    %64 = vector.broadcast %cst_41 : f32 to vector<8x128xf32>
    %65 = arith.addf %64, %63 : vector<8x128xf32>
    %66 = arith.divf %64, %65 : vector<8x128xf32>
    %67 = vector.extract_strided_slice %60 {offsets = [0, 128], sizes = [8, 128], strides = [1, 1]} : vector<8x512xf32> to vector<8x128xf32>
    %68 = arith.negf %67 : vector<8x128xf32>
    %69 = math.exp %68 : vector<8x128xf32>
    %cst_42 = arith.constant 1.000000e+00 : f32
    %70 = vector.broadcast %cst_42 : f32 to vector<8x128xf32>
    %71 = arith.addf %70, %69 : vector<8x128xf32>
    %72 = arith.divf %70, %71 : vector<8x128xf32>
    %73 = vector.extract_strided_slice %60 {offsets = [0, 256], sizes = [8, 128], strides = [1, 1]} : vector<8x512xf32> to vector<8x128xf32>
    %74 = math.tanh %73 : vector<8x128xf32>
    %75 = vector.extract_strided_slice %60 {offsets = [0, 384], sizes = [8, 128], strides = [1, 1]} : vector<8x512xf32> to vector<8x128xf32>
    %76 = arith.negf %75 : vector<8x128xf32>
    %77 = math.exp %76 : vector<8x128xf32>
    %cst_43 = arith.constant 1.000000e+00 : f32
    %78 = vector.broadcast %cst_43 : f32 to vector<8x128xf32>
    %79 = arith.addf %78, %77 : vector<8x128xf32>
    %80 = arith.divf %78, %79 : vector<8x128xf32>
    %c0_44 = arith.constant 0 : index
    %c0_45 = arith.constant 0 : index
    %81 = vector.load %arg12[%c0_44, %c0_45] : memref<8x128xf32, #tpu.memory_space<vmem>>, vector<8x128xf32>
    %82 = arith.mulf %72, %81 : vector<8x128xf32>
    %83 = arith.mulf %66, %74 : vector<8x128xf32>
    %84 = arith.addf %82, %83 : vector<8x128xf32>
    %85 = math.tanh %84 : vector<8x128xf32>
    %86 = arith.mulf %80, %85 : vector<8x128xf32>
    %c0_46 = arith.constant 0 : index
    %c0_47 = arith.constant 0 : index
    %87 = vector.load %arg12[%c0_46, %c0_47] : memref<8x128xf32, #tpu.memory_space<vmem>>, vector<8x128xf32>
    tpu.vector_store %arg12[%c0_46, %c0_47], %84 {strides = array<i32>} : memref<8x128xf32, #tpu.memory_space<vmem>>, vector<8x128xf32>,
    %c0_48 = arith.constant 0 : index
    %c0_49 = arith.constant 0 : index
    %88 = vector.load %arg11[%c0_48, %c0_49] : memref<8x128xf32, #tpu.memory_space<vmem>>, vector<8x128xf32>
    tpu.vector_store %arg11[%c0_48, %c0_49], %86 {strides = array<i32>} : memref<8x128xf32, #tpu.memory_space<vmem>>, vector<8x128xf32>,
    %89 = arith.index_cast %c1_i32 : i32 to index
    %c0_50 = arith.constant 0 : index
    %c0_51 = arith.constant 0 : index
    %90 = vector.load %arg9[%89, %c0_50, %c0_51] : memref<8x8x128xf32, #tpu.memory_space<vmem>>, vector<1x8x128xf32>
    %91 = vector.shape_cast %90 : vector<1x8x128xf32> to vector<8x128xf32>
    %92 = vector.shape_cast %86 : vector<8x128xf32> to vector<1x8x128xf32>
    tpu.vector_store %arg9[%89, %c0_50, %c0_51], %92 {strides = array<i32>} : memref<8x8x128xf32, #tpu.memory_space<vmem>>, vector<1x8x128xf32>,
    %c2_i32 = arith.constant 2 : i32
    %93 = arith.index_cast %c2_i32 : i32 to index
    %c0_52 = arith.constant 0 : index
    %c0_53 = arith.constant 0 : index
    %94 = vector.load %arg10[%93, %c0_52, %c0_53] : memref<8x8x512xf32, #tpu.memory_space<vmem>>, vector<1x8x512xf32>
    %95 = vector.shape_cast %94 : vector<1x8x512xf32> to vector<8x512xf32>
    %c0_54 = arith.constant 0 : index
    %c0_55 = arith.constant 0 : index
    %96 = vector.load %arg11[%c0_54, %c0_55] : memref<8x128xf32, #tpu.memory_space<vmem>>, vector<8x128xf32>
    %cst_56 = arith.constant dense<0.000000e+00> : vector<8x512xf32>
    %97 = tpu.matmul %96, %3, %cst_56 {dimension_numbers = #tpu.dot_dimension_numbers<[1], [0], [0], [1], [0, 0, 1, 1], [], []>} : vector<8x128xf32>, vector<128x512xf32>, vector<8x512xf32> -> vector<8x512xf32>
    %98 = arith.addf %95, %97 : vector<8x512xf32>
    %99 = vector.extract_strided_slice %98 {offsets = [0, 0], sizes = [8, 128], strides = [1, 1]} : vector<8x512xf32> to vector<8x128xf32>
    %100 = arith.negf %99 : vector<8x128xf32>
    %101 = math.exp %100 : vector<8x128xf32>
    %cst_57 = arith.constant 1.000000e+00 : f32
    %102 = vector.broadcast %cst_57 : f32 to vector<8x128xf32>
    %103 = arith.addf %102, %101 : vector<8x128xf32>
    %104 = arith.divf %102, %103 : vector<8x128xf32>
    %105 = vector.extract_strided_slice %98 {offsets = [0, 128], sizes = [8, 128], strides = [1, 1]} : vector<8x512xf32> to vector<8x128xf32>
    %106 = arith.negf %105 : vector<8x128xf32>
    %107 = math.exp %106 : vector<8x128xf32>
    %cst_58 = arith.constant 1.000000e+00 : f32
    %108 = vector.broadcast %cst_58 : f32 to vector<8x128xf32>
    %109 = arith.addf %108, %107 : vector<8x128xf32>
    %110 = arith.divf %108, %109 : vector<8x128xf32>
    %111 = vector.extract_strided_slice %98 {offsets = [0, 256], sizes = [8, 128], strides = [1, 1]} : vector<8x512xf32> to vector<8x128xf32>
    %112 = math.tanh %111 : vector<8x128xf32>
    %113 = vector.extract_strided_slice %98 {offsets = [0, 384], sizes = [8, 128], strides = [1, 1]} : vector<8x512xf32> to vector<8x128xf32>
    %114 = arith.negf %113 : vector<8x128xf32>
    %115 = math.exp %114 : vector<8x128xf32>
    %cst_59 = arith.constant 1.000000e+00 : f32
    %116 = vector.broadcast %cst_59 : f32 to vector<8x128xf32>
    %117 = arith.addf %116, %115 : vector<8x128xf32>
    %118 = arith.divf %116, %117 : vector<8x128xf32>
    %c0_60 = arith.constant 0 : index
    %c0_61 = arith.constant 0 : index
    %119 = vector.load %arg12[%c0_60, %c0_61] : memref<8x128xf32, #tpu.memory_space<vmem>>, vector<8x128xf32>
    %120 = arith.mulf %110, %119 : vector<8x128xf32>
    %121 = arith.mulf %104, %112 : vector<8x128xf32>
    %122 = arith.addf %120, %121 : vector<8x128xf32>
    %123 = math.tanh %122 : vector<8x128xf32>
    %124 = arith.mulf %118, %123 : vector<8x128xf32>
    %c0_62 = arith.constant 0 : index
    %c0_63 = arith.constant 0 : index
    %125 = vector.load %arg12[%c0_62, %c0_63] : memref<8x128xf32, #tpu.memory_space<vmem>>, vector<8x128xf32>
    tpu.vector_store %arg12[%c0_62, %c0_63], %122 {strides = array<i32>} : memref<8x128xf32, #tpu.memory_space<vmem>>, vector<8x128xf32>,
    %c0_64 = arith.constant 0 : index
    %c0_65 = arith.constant 0 : index
    %126 = vector.load %arg11[%c0_64, %c0_65] : memref<8x128xf32, #tpu.memory_space<vmem>>, vector<8x128xf32>
    tpu.vector_store %arg11[%c0_64, %c0_65], %124 {strides = array<i32>} : memref<8x128xf32, #tpu.memory_space<vmem>>, vector<8x128xf32>,
    %127 = arith.index_cast %c2_i32 : i32 to index
    %c0_66 = arith.constant 0 : index
    %c0_67 = arith.constant 0 : index
    %128 = vector.load %arg9[%127, %c0_66, %c0_67] : memref<8x8x128xf32, #tpu.memory_space<vmem>>, vector<1x8x128xf32>
    %129 = vector.shape_cast %128 : vector<1x8x128xf32> to vector<8x128xf32>
    %130 = vector.shape_cast %124 : vector<8x128xf32> to vector<1x8x128xf32>
    tpu.vector_store %arg9[%127, %c0_66, %c0_67], %130 {strides = array<i32>} : memref<8x8x128xf32, #tpu.memory_space<vmem>>, vector<1x8x128xf32>,
    %c3_i32 = arith.constant 3 : i32
    %131 = arith.index_cast %c3_i32 : i32 to index
    %c0_68 = arith.constant 0 : index
    %c0_69 = arith.constant 0 : index
    %132 = vector.load %arg10[%131, %c0_68, %c0_69] : memref<8x8x512xf32, #tpu.memory_space<vmem>>, vector<1x8x512xf32>
    %133 = vector.shape_cast %132 : vector<1x8x512xf32> to vector<8x512xf32>
    %c0_70 = arith.constant 0 : index
    %c0_71 = arith.constant 0 : index
    %134 = vector.load %arg11[%c0_70, %c0_71] : memref<8x128xf32, #tpu.memory_space<vmem>>, vector<8x128xf32>
    %cst_72 = arith.constant dense<0.000000e+00> : vector<8x512xf32>
    %135 = tpu.matmul %134, %3, %cst_72 {dimension_numbers = #tpu.dot_dimension_numbers<[1], [0], [0], [1], [0, 0, 1, 1], [], []>} : vector<8x128xf32>, vector<128x512xf32>, vector<8x512xf32> -> vector<8x512xf32>
    %136 = arith.addf %133, %135 : vector<8x512xf32>
    %137 = vector.extract_strided_slice %136 {offsets = [0, 0], sizes = [8, 128], strides = [1, 1]} : vector<8x512xf32> to vector<8x128xf32>
    %138 = arith.negf %137 : vector<8x128xf32>
    %139 = math.exp %138 : vector<8x128xf32>
    %cst_73 = arith.constant 1.000000e+00 : f32
    %140 = vector.broadcast %cst_73 : f32 to vector<8x128xf32>
    %141 = arith.addf %140, %139 : vector<8x128xf32>
    %142 = arith.divf %140, %141 : vector<8x128xf32>
    %143 = vector.extract_strided_slice %136 {offsets = [0, 128], sizes = [8, 128], strides = [1, 1]} : vector<8x512xf32> to vector<8x128xf32>
    %144 = arith.negf %143 : vector<8x128xf32>
    %145 = math.exp %144 : vector<8x128xf32>
    %cst_74 = arith.constant 1.000000e+00 : f32
    %146 = vector.broadcast %cst_74 : f32 to vector<8x128xf32>
    %147 = arith.addf %146, %145 : vector<8x128xf32>
    %148 = arith.divf %146, %147 : vector<8x128xf32>
    %149 = vector.extract_strided_slice %136 {offsets = [0, 256], sizes = [8, 128], strides = [1, 1]} : vector<8x512xf32> to vector<8x128xf32>
    %150 = math.tanh %149 : vector<8x128xf32>
    %151 = vector.extract_strided_slice %136 {offsets = [0, 384], sizes = [8, 128], strides = [1, 1]} : vector<8x512xf32> to vector<8x128xf32>
    %152 = arith.negf %151 : vector<8x128xf32>
    %153 = math.exp %152 : vector<8x128xf32>
    %cst_75 = arith.constant 1.000000e+00 : f32
    %154 = vector.broadcast %cst_75 : f32 to vector<8x128xf32>
    %155 = arith.addf %154, %153 : vector<8x128xf32>
    %156 = arith.divf %154, %155 : vector<8x128xf32>
    %c0_76 = arith.constant 0 : index
    %c0_77 = arith.constant 0 : index
    %157 = vector.load %arg12[%c0_76, %c0_77] : memref<8x128xf32, #tpu.memory_space<vmem>>, vector<8x128xf32>
    %158 = arith.mulf %148, %157 : vector<8x128xf32>
    %159 = arith.mulf %142, %150 : vector<8x128xf32>
    %160 = arith.addf %158, %159 : vector<8x128xf32>
    %161 = math.tanh %160 : vector<8x128xf32>
    %162 = arith.mulf %156, %161 : vector<8x128xf32>
    %c0_78 = arith.constant 0 : index
    %c0_79 = arith.constant 0 : index
    %163 = vector.load %arg12[%c0_78, %c0_79] : memref<8x128xf32, #tpu.memory_space<vmem>>, vector<8x128xf32>
    tpu.vector_store %arg12[%c0_78, %c0_79], %160 {strides = array<i32>} : memref<8x128xf32, #tpu.memory_space<vmem>>, vector<8x128xf32>,
    %c0_80 = arith.constant 0 : index
    %c0_81 = arith.constant 0 : index
    %164 = vector.load %arg11[%c0_80, %c0_81] : memref<8x128xf32, #tpu.memory_space<vmem>>, vector<8x128xf32>
    tpu.vector_store %arg11[%c0_80, %c0_81], %162 {strides = array<i32>} : memref<8x128xf32, #tpu.memory_space<vmem>>, vector<8x128xf32>,
    %165 = arith.index_cast %c3_i32 : i32 to index
    %c0_82 = arith.constant 0 : index
    %c0_83 = arith.constant 0 : index
    %166 = vector.load %arg9[%165, %c0_82, %c0_83] : memref<8x8x128xf32, #tpu.memory_space<vmem>>, vector<1x8x128xf32>
    %167 = vector.shape_cast %166 : vector<1x8x128xf32> to vector<8x128xf32>
    %168 = vector.shape_cast %162 : vector<8x128xf32> to vector<1x8x128xf32>
    tpu.vector_store %arg9[%165, %c0_82, %c0_83], %168 {strides = array<i32>} : memref<8x8x128xf32, #tpu.memory_space<vmem>>, vector<1x8x128xf32>,
    %c4_i32 = arith.constant 4 : i32
    %169 = arith.index_cast %c4_i32 : i32 to index
    %c0_84 = arith.constant 0 : index
    %c0_85 = arith.constant 0 : index
    %170 = vector.load %arg10[%169, %c0_84, %c0_85] : memref<8x8x512xf32, #tpu.memory_space<vmem>>, vector<1x8x512xf32>
    %171 = vector.shape_cast %170 : vector<1x8x512xf32> to vector<8x512xf32>
    %c0_86 = arith.constant 0 : index
    %c0_87 = arith.constant 0 : index
    %172 = vector.load %arg11[%c0_86, %c0_87] : memref<8x128xf32, #tpu.memory_space<vmem>>, vector<8x128xf32>
    %cst_88 = arith.constant dense<0.000000e+00> : vector<8x512xf32>
    %173 = tpu.matmul %172, %3, %cst_88 {dimension_numbers = #tpu.dot_dimension_numbers<[1], [0], [0], [1], [0, 0, 1, 1], [], []>} : vector<8x128xf32>, vector<128x512xf32>, vector<8x512xf32> -> vector<8x512xf32>
    %174 = arith.addf %171, %173 : vector<8x512xf32>
    %175 = vector.extract_strided_slice %174 {offsets = [0, 0], sizes = [8, 128], strides = [1, 1]} : vector<8x512xf32> to vector<8x128xf32>
    %176 = arith.negf %175 : vector<8x128xf32>
    %177 = math.exp %176 : vector<8x128xf32>
    %cst_89 = arith.constant 1.000000e+00 : f32
    %178 = vector.broadcast %cst_89 : f32 to vector<8x128xf32>
    %179 = arith.addf %178, %177 : vector<8x128xf32>
    %180 = arith.divf %178, %179 : vector<8x128xf32>
    %181 = vector.extract_strided_slice %174 {offsets = [0, 128], sizes = [8, 128], strides = [1, 1]} : vector<8x512xf32> to vector<8x128xf32>
    %182 = arith.negf %181 : vector<8x128xf32>
    %183 = math.exp %182 : vector<8x128xf32>
    %cst_90 = arith.constant 1.000000e+00 : f32
    %184 = vector.broadcast %cst_90 : f32 to vector<8x128xf32>
    %185 = arith.addf %184, %183 : vector<8x128xf32>
    %186 = arith.divf %184, %185 : vector<8x128xf32>
    %187 = vector.extract_strided_slice %174 {offsets = [0, 256], sizes = [8, 128], strides = [1, 1]} : vector<8x512xf32> to vector<8x128xf32>
    %188 = math.tanh %187 : vector<8x128xf32>
    %189 = vector.extract_strided_slice %174 {offsets = [0, 384], sizes = [8, 128], strides = [1, 1]} : vector<8x512xf32> to vector<8x128xf32>
    %190 = arith.negf %189 : vector<8x128xf32>
    %191 = math.exp %190 : vector<8x128xf32>
    %cst_91 = arith.constant 1.000000e+00 : f32
    %192 = vector.broadcast %cst_91 : f32 to vector<8x128xf32>
    %193 = arith.addf %192, %191 : vector<8x128xf32>
    %194 = arith.divf %192, %193 : vector<8x128xf32>
    %c0_92 = arith.constant 0 : index
    %c0_93 = arith.constant 0 : index
    %195 = vector.load %arg12[%c0_92, %c0_93] : memref<8x128xf32, #tpu.memory_space<vmem>>, vector<8x128xf32>
    %196 = arith.mulf %186, %195 : vector<8x128xf32>
    %197 = arith.mulf %180, %188 : vector<8x128xf32>
    %198 = arith.addf %196, %197 : vector<8x128xf32>
    %199 = math.tanh %198 : vector<8x128xf32>
    %200 = arith.mulf %194, %199 : vector<8x128xf32>
    %c0_94 = arith.constant 0 : index
    %c0_95 = arith.constant 0 : index
    %201 = vector.load %arg12[%c0_94, %c0_95] : memref<8x128xf32, #tpu.memory_space<vmem>>, vector<8x128xf32>
    tpu.vector_store %arg12[%c0_94, %c0_95], %198 {strides = array<i32>} : memref<8x128xf32, #tpu.memory_space<vmem>>, vector<8x128xf32>,
    %c0_96 = arith.constant 0 : index
    %c0_97 = arith.constant 0 : index
    %202 = vector.load %arg11[%c0_96, %c0_97] : memref<8x128xf32, #tpu.memory_space<vmem>>, vector<8x128xf32>
    tpu.vector_store %arg11[%c0_96, %c0_97], %200 {strides = array<i32>} : memref<8x128xf32, #tpu.memory_space<vmem>>, vector<8x128xf32>,
    %203 = arith.index_cast %c4_i32 : i32 to index
    %c0_98 = arith.constant 0 : index
    %c0_99 = arith.constant 0 : index
    %204 = vector.load %arg9[%203, %c0_98, %c0_99] : memref<8x8x128xf32, #tpu.memory_space<vmem>>, vector<1x8x128xf32>
    %205 = vector.shape_cast %204 : vector<1x8x128xf32> to vector<8x128xf32>
    %206 = vector.shape_cast %200 : vector<8x128xf32> to vector<1x8x128xf32>
    tpu.vector_store %arg9[%203, %c0_98, %c0_99], %206 {strides = array<i32>} : memref<8x8x128xf32, #tpu.memory_space<vmem>>, vector<1x8x128xf32>,
    %c5_i32 = arith.constant 5 : i32
    %207 = arith.index_cast %c5_i32 : i32 to index
    %c0_100 = arith.constant 0 : index
    %c0_101 = arith.constant 0 : index
    %208 = vector.load %arg10[%207, %c0_100, %c0_101] : memref<8x8x512xf32, #tpu.memory_space<vmem>>, vector<1x8x512xf32>
    %209 = vector.shape_cast %208 : vector<1x8x512xf32> to vector<8x512xf32>
    %c0_102 = arith.constant 0 : index
    %c0_103 = arith.constant 0 : index
    %210 = vector.load %arg11[%c0_102, %c0_103] : memref<8x128xf32, #tpu.memory_space<vmem>>, vector<8x128xf32>
    %cst_104 = arith.constant dense<0.000000e+00> : vector<8x512xf32>
    %211 = tpu.matmul %210, %3, %cst_104 {dimension_numbers = #tpu.dot_dimension_numbers<[1], [0], [0], [1], [0, 0, 1, 1], [], []>} : vector<8x128xf32>, vector<128x512xf32>, vector<8x512xf32> -> vector<8x512xf32>
    %212 = arith.addf %209, %211 : vector<8x512xf32>
    %213 = vector.extract_strided_slice %212 {offsets = [0, 0], sizes = [8, 128], strides = [1, 1]} : vector<8x512xf32> to vector<8x128xf32>
    %214 = arith.negf %213 : vector<8x128xf32>
    %215 = math.exp %214 : vector<8x128xf32>
    %cst_105 = arith.constant 1.000000e+00 : f32
    %216 = vector.broadcast %cst_105 : f32 to vector<8x128xf32>
    %217 = arith.addf %216, %215 : vector<8x128xf32>
    %218 = arith.divf %216, %217 : vector<8x128xf32>
    %219 = vector.extract_strided_slice %212 {offsets = [0, 128], sizes = [8, 128], strides = [1, 1]} : vector<8x512xf32> to vector<8x128xf32>
    %220 = arith.negf %219 : vector<8x128xf32>
    %221 = math.exp %220 : vector<8x128xf32>
    %cst_106 = arith.constant 1.000000e+00 : f32
    %222 = vector.broadcast %cst_106 : f32 to vector<8x128xf32>
    %223 = arith.addf %222, %221 : vector<8x128xf32>
    %224 = arith.divf %222, %223 : vector<8x128xf32>
    %225 = vector.extract_strided_slice %212 {offsets = [0, 256], sizes = [8, 128], strides = [1, 1]} : vector<8x512xf32> to vector<8x128xf32>
    %226 = math.tanh %225 : vector<8x128xf32>
    %227 = vector.extract_strided_slice %212 {offsets = [0, 384], sizes = [8, 128], strides = [1, 1]} : vector<8x512xf32> to vector<8x128xf32>
    %228 = arith.negf %227 : vector<8x128xf32>
    %229 = math.exp %228 : vector<8x128xf32>
    %cst_107 = arith.constant 1.000000e+00 : f32
    %230 = vector.broadcast %cst_107 : f32 to vector<8x128xf32>
    %231 = arith.addf %230, %229 : vector<8x128xf32>
    %232 = arith.divf %230, %231 : vector<8x128xf32>
    %c0_108 = arith.constant 0 : index
    %c0_109 = arith.constant 0 : index
    %233 = vector.load %arg12[%c0_108, %c0_109] : memref<8x128xf32, #tpu.memory_space<vmem>>, vector<8x128xf32>
    %234 = arith.mulf %224, %233 : vector<8x128xf32>
    %235 = arith.mulf %218, %226 : vector<8x128xf32>
    %236 = arith.addf %234, %235 : vector<8x128xf32>
    %237 = math.tanh %236 : vector<8x128xf32>
    %238 = arith.mulf %232, %237 : vector<8x128xf32>
    %c0_110 = arith.constant 0 : index
    %c0_111 = arith.constant 0 : index
    %239 = vector.load %arg12[%c0_110, %c0_111] : memref<8x128xf32, #tpu.memory_space<vmem>>, vector<8x128xf32>
    tpu.vector_store %arg12[%c0_110, %c0_111], %236 {strides = array<i32>} : memref<8x128xf32, #tpu.memory_space<vmem>>, vector<8x128xf32>,
    %c0_112 = arith.constant 0 : index
    %c0_113 = arith.constant 0 : index
    %240 = vector.load %arg11[%c0_112, %c0_113] : memref<8x128xf32, #tpu.memory_space<vmem>>, vector<8x128xf32>
    tpu.vector_store %arg11[%c0_112, %c0_113], %238 {strides = array<i32>} : memref<8x128xf32, #tpu.memory_space<vmem>>, vector<8x128xf32>,
    %241 = arith.index_cast %c5_i32 : i32 to index
    %c0_114 = arith.constant 0 : index
    %c0_115 = arith.constant 0 : index
    %242 = vector.load %arg9[%241, %c0_114, %c0_115] : memref<8x8x128xf32, #tpu.memory_space<vmem>>, vector<1x8x128xf32>
    %243 = vector.shape_cast %242 : vector<1x8x128xf32> to vector<8x128xf32>
    %244 = vector.shape_cast %238 : vector<8x128xf32> to vector<1x8x128xf32>
    tpu.vector_store %arg9[%241, %c0_114, %c0_115], %244 {strides = array<i32>} : memref<8x8x128xf32, #tpu.memory_space<vmem>>, vector<1x8x128xf32>,
    %c6_i32 = arith.constant 6 : i32
    %245 = arith.index_cast %c6_i32 : i32 to index
    %c0_116 = arith.constant 0 : index
    %c0_117 = arith.constant 0 : index
    %246 = vector.load %arg10[%245, %c0_116, %c0_117] : memref<8x8x512xf32, #tpu.memory_space<vmem>>, vector<1x8x512xf32>
    %247 = vector.shape_cast %246 : vector<1x8x512xf32> to vector<8x512xf32>
    %c0_118 = arith.constant 0 : index
    %c0_119 = arith.constant 0 : index
    %248 = vector.load %arg11[%c0_118, %c0_119] : memref<8x128xf32, #tpu.memory_space<vmem>>, vector<8x128xf32>
    %cst_120 = arith.constant dense<0.000000e+00> : vector<8x512xf32>
    %249 = tpu.matmul %248, %3, %cst_120 {dimension_numbers = #tpu.dot_dimension_numbers<[1], [0], [0], [1], [0, 0, 1, 1], [], []>} : vector<8x128xf32>, vector<128x512xf32>, vector<8x512xf32> -> vector<8x512xf32>
    %250 = arith.addf %247, %249 : vector<8x512xf32>
    %251 = vector.extract_strided_slice %250 {offsets = [0, 0], sizes = [8, 128], strides = [1, 1]} : vector<8x512xf32> to vector<8x128xf32>
    %252 = arith.negf %251 : vector<8x128xf32>
    %253 = math.exp %252 : vector<8x128xf32>
    %cst_121 = arith.constant 1.000000e+00 : f32
    %254 = vector.broadcast %cst_121 : f32 to vector<8x128xf32>
    %255 = arith.addf %254, %253 : vector<8x128xf32>
    %256 = arith.divf %254, %255 : vector<8x128xf32>
    %257 = vector.extract_strided_slice %250 {offsets = [0, 128], sizes = [8, 128], strides = [1, 1]} : vector<8x512xf32> to vector<8x128xf32>
    %258 = arith.negf %257 : vector<8x128xf32>
    %259 = math.exp %258 : vector<8x128xf32>
    %cst_122 = arith.constant 1.000000e+00 : f32
    %260 = vector.broadcast %cst_122 : f32 to vector<8x128xf32>
    %261 = arith.addf %260, %259 : vector<8x128xf32>
    %262 = arith.divf %260, %261 : vector<8x128xf32>
    %263 = vector.extract_strided_slice %250 {offsets = [0, 256], sizes = [8, 128], strides = [1, 1]} : vector<8x512xf32> to vector<8x128xf32>
    %264 = math.tanh %263 : vector<8x128xf32>
    %265 = vector.extract_strided_slice %250 {offsets = [0, 384], sizes = [8, 128], strides = [1, 1]} : vector<8x512xf32> to vector<8x128xf32>
    %266 = arith.negf %265 : vector<8x128xf32>
    %267 = math.exp %266 : vector<8x128xf32>
    %cst_123 = arith.constant 1.000000e+00 : f32
    %268 = vector.broadcast %cst_123 : f32 to vector<8x128xf32>
    %269 = arith.addf %268, %267 : vector<8x128xf32>
    %270 = arith.divf %268, %269 : vector<8x128xf32>
    %c0_124 = arith.constant 0 : index
    %c0_125 = arith.constant 0 : index
    %271 = vector.load %arg12[%c0_124, %c0_125] : memref<8x128xf32, #tpu.memory_space<vmem>>, vector<8x128xf32>
    %272 = arith.mulf %262, %271 : vector<8x128xf32>
    %273 = arith.mulf %256, %264 : vector<8x128xf32>
    %274 = arith.addf %272, %273 : vector<8x128xf32>
    %275 = math.tanh %274 : vector<8x128xf32>
    %276 = arith.mulf %270, %275 : vector<8x128xf32>
    %c0_126 = arith.constant 0 : index
    %c0_127 = arith.constant 0 : index
    %277 = vector.load %arg12[%c0_126, %c0_127] : memref<8x128xf32, #tpu.memory_space<vmem>>, vector<8x128xf32>
    tpu.vector_store %arg12[%c0_126, %c0_127], %274 {strides = array<i32>} : memref<8x128xf32, #tpu.memory_space<vmem>>, vector<8x128xf32>,
    %c0_128 = arith.constant 0 : index
    %c0_129 = arith.constant 0 : index
    %278 = vector.load %arg11[%c0_128, %c0_129] : memref<8x128xf32, #tpu.memory_space<vmem>>, vector<8x128xf32>
    tpu.vector_store %arg11[%c0_128, %c0_129], %276 {strides = array<i32>} : memref<8x128xf32, #tpu.memory_space<vmem>>, vector<8x128xf32>,
    %279 = arith.index_cast %c6_i32 : i32 to index
    %c0_130 = arith.constant 0 : index
    %c0_131 = arith.constant 0 : index
    %280 = vector.load %arg9[%279, %c0_130, %c0_131] : memref<8x8x128xf32, #tpu.memory_space<vmem>>, vector<1x8x128xf32>
    %281 = vector.shape_cast %280 : vector<1x8x128xf32> to vector<8x128xf32>
    %282 = vector.shape_cast %276 : vector<8x128xf32> to vector<1x8x128xf32>
    tpu.vector_store %arg9[%279, %c0_130, %c0_131], %282 {strides = array<i32>} : memref<8x8x128xf32, #tpu.memory_space<vmem>>, vector<1x8x128xf32>,
    %c7_i32 = arith.constant 7 : i32
    %283 = arith.index_cast %c7_i32 : i32 to index
    %c0_132 = arith.constant 0 : index
    %c0_133 = arith.constant 0 : index
    %284 = vector.load %arg10[%283, %c0_132, %c0_133] : memref<8x8x512xf32, #tpu.memory_space<vmem>>, vector<1x8x512xf32>
    %285 = vector.shape_cast %284 : vector<1x8x512xf32> to vector<8x512xf32>
    %c0_134 = arith.constant 0 : index
    %c0_135 = arith.constant 0 : index
    %286 = vector.load %arg11[%c0_134, %c0_135] : memref<8x128xf32, #tpu.memory_space<vmem>>, vector<8x128xf32>
    %cst_136 = arith.constant dense<0.000000e+00> : vector<8x512xf32>
    %287 = tpu.matmul %286, %3, %cst_136 {dimension_numbers = #tpu.dot_dimension_numbers<[1], [0], [0], [1], [0, 0, 1, 1], [], []>} : vector<8x128xf32>, vector<128x512xf32>, vector<8x512xf32> -> vector<8x512xf32>
    %288 = arith.addf %285, %287 : vector<8x512xf32>
    %289 = vector.extract_strided_slice %288 {offsets = [0, 0], sizes = [8, 128], strides = [1, 1]} : vector<8x512xf32> to vector<8x128xf32>
    %290 = arith.negf %289 : vector<8x128xf32>
    %291 = math.exp %290 : vector<8x128xf32>
    %cst_137 = arith.constant 1.000000e+00 : f32
    %292 = vector.broadcast %cst_137 : f32 to vector<8x128xf32>
    %293 = arith.addf %292, %291 : vector<8x128xf32>
    %294 = arith.divf %292, %293 : vector<8x128xf32>
    %295 = vector.extract_strided_slice %288 {offsets = [0, 128], sizes = [8, 128], strides = [1, 1]} : vector<8x512xf32> to vector<8x128xf32>
    %296 = arith.negf %295 : vector<8x128xf32>
    %297 = math.exp %296 : vector<8x128xf32>
    %cst_138 = arith.constant 1.000000e+00 : f32
    %298 = vector.broadcast %cst_138 : f32 to vector<8x128xf32>
    %299 = arith.addf %298, %297 : vector<8x128xf32>
    %300 = arith.divf %298, %299 : vector<8x128xf32>
    %301 = vector.extract_strided_slice %288 {offsets = [0, 256], sizes = [8, 128], strides = [1, 1]} : vector<8x512xf32> to vector<8x128xf32>
    %302 = math.tanh %301 : vector<8x128xf32>
    %303 = vector.extract_strided_slice %288 {offsets = [0, 384], sizes = [8, 128], strides = [1, 1]} : vector<8x512xf32> to vector<8x128xf32>
    %304 = arith.negf %303 : vector<8x128xf32>
    %305 = math.exp %304 : vector<8x128xf32>
    %cst_139 = arith.constant 1.000000e+00 : f32
    %306 = vector.broadcast %cst_139 : f32 to vector<8x128xf32>
    %307 = arith.addf %306, %305 : vector<8x128xf32>
    %308 = arith.divf %306, %307 : vector<8x128xf32>
    %c0_140 = arith.constant 0 : index
    %c0_141 = arith.constant 0 : index
    %309 = vector.load %arg12[%c0_140, %c0_141] : memref<8x128xf32, #tpu.memory_space<vmem>>, vector<8x128xf32>
    %310 = arith.mulf %300, %309 : vector<8x128xf32>
    %311 = arith.mulf %294, %302 : vector<8x128xf32>
    %312 = arith.addf %310, %311 : vector<8x128xf32>
    %313 = math.tanh %312 : vector<8x128xf32>
    %314 = arith.mulf %308, %313 : vector<8x128xf32>
    %c0_142 = arith.constant 0 : index
    %c0_143 = arith.constant 0 : index
    %315 = vector.load %arg12[%c0_142, %c0_143] : memref<8x128xf32, #tpu.memory_space<vmem>>, vector<8x128xf32>
    tpu.vector_store %arg12[%c0_142, %c0_143], %312 {strides = array<i32>} : memref<8x128xf32, #tpu.memory_space<vmem>>, vector<8x128xf32>,
    %c0_144 = arith.constant 0 : index
    %c0_145 = arith.constant 0 : index
    %316 = vector.load %arg11[%c0_144, %c0_145] : memref<8x128xf32, #tpu.memory_space<vmem>>, vector<8x128xf32>
    tpu.vector_store %arg11[%c0_144, %c0_145], %314 {strides = array<i32>} : memref<8x128xf32, #tpu.memory_space<vmem>>, vector<8x128xf32>,
    %317 = arith.index_cast %c7_i32 : i32 to index
    %c0_146 = arith.constant 0 : index
    %c0_147 = arith.constant 0 : index
    %318 = vector.load %arg9[%317, %c0_146, %c0_147] : memref<8x8x128xf32, #tpu.memory_space<vmem>>, vector<1x8x128xf32>
    %319 = vector.shape_cast %318 : vector<1x8x128xf32> to vector<8x128xf32>
    %320 = vector.shape_cast %314 : vector<8x128xf32> to vector<1x8x128xf32>
    tpu.vector_store %arg9[%317, %c0_146, %c0_147], %320 {strides = array<i32>} : memref<8x8x128xf32, #tpu.memory_space<vmem>>, vector<1x8x128xf32>,
    %c8_i32 = arith.constant 8 : i32
    %c1 = arith.constant 1 : index
    %c0_148 = arith.constant 0 : index
    %c0_149 = arith.constant 0 : index
    %321 = vector.load %arg3[%c1, %c0_148, %c0_149] : memref<4x128x512xf32, #tpu.memory_space<vmem>>, vector<1x128x512xf32>
    %322 = vector.shape_cast %321 : vector<1x128x512xf32> to vector<128x512xf32>
    %c1_150 = arith.constant 1 : index
    %c0_151 = arith.constant 0 : index
    %c0_152 = arith.constant 0 : index
    %323 = vector.load %arg4[%c1_150, %c0_151, %c0_152] : memref<4x128x512xf32, #tpu.memory_space<vmem>>, vector<1x128x512xf32>
    %324 = vector.shape_cast %323 : vector<1x128x512xf32> to vector<128x512xf32>
    %c1_153 = arith.constant 1 : index
    %c0_154 = arith.constant 0 : index
    %c0_155 = arith.constant 0 : index
    %325 = vector.load %arg5[%c1_153, %c0_154, %c0_155] : memref<4x1x512xf32, #tpu.memory_space<vmem>>, vector<1x1x512xf32>
    %326 = vector.shape_cast %325 : vector<1x1x512xf32> to vector<1x512xf32>
    %c0_156 = arith.constant 0 : index
    %c0_157 = arith.constant 0 : index
    %c0_158 = arith.constant 0 : index
    %327 = vector.load %arg9[%c0_156, %c0_157, %c0_158] : memref<8x8x128xf32, #tpu.memory_space<vmem>>, vector<8x8x128xf32>
    %328 = vector.shape_cast %327 : vector<8x8x128xf32> to vector<64x128xf32>
    %cst_159 = arith.constant dense<0.000000e+00> : vector<64x512xf32>
    %329 = tpu.matmul %328, %322, %cst_159 {dimension_numbers = #tpu.dot_dimension_numbers<[1], [0], [0], [1], [0, 0, 1, 1], [], []>} : vector<64x128xf32>, vector<128x512xf32>, vector<64x512xf32> -> vector<64x512xf32>
    %330 = vector.broadcast %326 : vector<1x512xf32> to vector<64x512xf32>
    %331 = arith.addf %329, %330 : vector<64x512xf32>
    %332 = vector.shape_cast %331 : vector<64x512xf32> to vector<8x8x512xf32>
    %c0_160 = arith.constant 0 : index
    %c0_161 = arith.constant 0 : index
    %c0_162 = arith.constant 0 : index
    %333 = vector.load %arg10[%c0_160, %c0_161, %c0_162] : memref<8x8x512xf32, #tpu.memory_space<vmem>>, vector<8x8x512xf32>
    tpu.vector_store %arg10[%c0_160, %c0_161, %c0_162], %332 {strides = array<i32>} : memref<8x8x512xf32, #tpu.memory_space<vmem>>, vector<8x8x512xf32>,
    %cst_163 = arith.constant 0.000000e+00 : f32
    %334 = vector.broadcast %cst_163 : f32 to vector<8x128xf32>
    %c0_164 = arith.constant 0 : index
    %c0_165 = arith.constant 0 : index
    %335 = vector.load %arg11[%c0_164, %c0_165] : memref<8x128xf32, #tpu.memory_space<vmem>>, vector<8x128xf32>
    tpu.vector_store %arg11[%c0_164, %c0_165], %334 {strides = array<i32>} : memref<8x128xf32, #tpu.memory_space<vmem>>, vector<8x128xf32>,
    %cst_166 = arith.constant 0.000000e+00 : f32
    %336 = vector.broadcast %cst_166 : f32 to vector<8x128xf32>
    %c0_167 = arith.constant 0 : index
    %c0_168 = arith.constant 0 : index
    %337 = vector.load %arg12[%c0_167, %c0_168] : memref<8x128xf32, #tpu.memory_space<vmem>>, vector<8x128xf32>
    tpu.vector_store %arg12[%c0_167, %c0_168], %336 {strides = array<i32>} : memref<8x128xf32, #tpu.memory_space<vmem>>, vector<8x128xf32>,
    %c0_i32_169 = arith.constant 0 : i32
    %338 = arith.index_cast %c0_i32_169 : i32 to index
    %c0_170 = arith.constant 0 : index
    %c0_171 = arith.constant 0 : index
    %339 = vector.load %arg10[%338, %c0_170, %c0_171] : memref<8x8x512xf32, #tpu.memory_space<vmem>>, vector<1x8x512xf32>
    %340 = vector.shape_cast %339 : vector<1x8x512xf32> to vector<8x512xf32>
    %c0_172 = arith.constant 0 : index
    %c0_173 = arith.constant 0 : index
    %341 = vector.load %arg11[%c0_172, %c0_173] : memref<8x128xf32, #tpu.memory_space<vmem>>, vector<8x128xf32>
    %cst_174 = arith.constant dense<0.000000e+00> : vector<8x512xf32>
    %342 = tpu.matmul %341, %324, %cst_174 {dimension_numbers = #tpu.dot_dimension_numbers<[1], [0], [0], [1], [0, 0, 1, 1], [], []>} : vector<8x128xf32>, vector<128x512xf32>, vector<8x512xf32> -> vector<8x512xf32>
    %343 = arith.addf %340, %342 : vector<8x512xf32>
    %344 = vector.extract_strided_slice %343 {offsets = [0, 0], sizes = [8, 128], strides = [1, 1]} : vector<8x512xf32> to vector<8x128xf32>
    %345 = arith.negf %344 : vector<8x128xf32>
    %346 = math.exp %345 : vector<8x128xf32>
    %cst_175 = arith.constant 1.000000e+00 : f32
    %347 = vector.broadcast %cst_175 : f32 to vector<8x128xf32>
    %348 = arith.addf %347, %346 : vector<8x128xf32>
    %349 = arith.divf %347, %348 : vector<8x128xf32>
    %350 = vector.extract_strided_slice %343 {offsets = [0, 128], sizes = [8, 128], strides = [1, 1]} : vector<8x512xf32> to vector<8x128xf32>
    %351 = arith.negf %350 : vector<8x128xf32>
    %352 = math.exp %351 : vector<8x128xf32>
    %cst_176 = arith.constant 1.000000e+00 : f32
    %353 = vector.broadcast %cst_176 : f32 to vector<8x128xf32>
    %354 = arith.addf %353, %352 : vector<8x128xf32>
    %355 = arith.divf %353, %354 : vector<8x128xf32>
    %356 = vector.extract_strided_slice %343 {offsets = [0, 256], sizes = [8, 128], strides = [1, 1]} : vector<8x512xf32> to vector<8x128xf32>
    %357 = math.tanh %356 : vector<8x128xf32>
    %358 = vector.extract_strided_slice %343 {offsets = [0, 384], sizes = [8, 128], strides = [1, 1]} : vector<8x512xf32> to vector<8x128xf32>
    %359 = arith.negf %358 : vector<8x128xf32>
    %360 = math.exp %359 : vector<8x128xf32>
    %cst_177 = arith.constant 1.000000e+00 : f32
    %361 = vector.broadcast %cst_177 : f32 to vector<8x128xf32>
    %362 = arith.addf %361, %360 : vector<8x128xf32>
    %363 = arith.divf %361, %362 : vector<8x128xf32>
    %c0_178 = arith.constant 0 : index
    %c0_179 = arith.constant 0 : index
    %364 = vector.load %arg12[%c0_178, %c0_179] : memref<8x128xf32, #tpu.memory_space<vmem>>, vector<8x128xf32>
    %365 = arith.mulf %355, %364 : vector<8x128xf32>
    %366 = arith.mulf %349, %357 : vector<8x128xf32>
    %367 = arith.addf %365, %366 : vector<8x128xf32>
    %368 = math.tanh %367 : vector<8x128xf32>
    %369 = arith.mulf %363, %368 : vector<8x128xf32>
    %c0_180 = arith.constant 0 : index
    %c0_181 = arith.constant 0 : index
    %370 = vector.load %arg12[%c0_180, %c0_181] : memref<8x128xf32, #tpu.memory_space<vmem>>, vector<8x128xf32>
    tpu.vector_store %arg12[%c0_180, %c0_181], %367 {strides = array<i32>} : memref<8x128xf32, #tpu.memory_space<vmem>>, vector<8x128xf32>,
    %c0_182 = arith.constant 0 : index
    %c0_183 = arith.constant 0 : index
    %371 = vector.load %arg11[%c0_182, %c0_183] : memref<8x128xf32, #tpu.memory_space<vmem>>, vector<8x128xf32>
    tpu.vector_store %arg11[%c0_182, %c0_183], %369 {strides = array<i32>} : memref<8x128xf32, #tpu.memory_space<vmem>>, vector<8x128xf32>,
    %372 = arith.index_cast %c0_i32_169 : i32 to index
    %c0_184 = arith.constant 0 : index
    %c0_185 = arith.constant 0 : index
    %373 = vector.load %arg9[%372, %c0_184, %c0_185] : memref<8x8x128xf32, #tpu.memory_space<vmem>>, vector<1x8x128xf32>
    %374 = vector.shape_cast %373 : vector<1x8x128xf32> to vector<8x128xf32>
    %375 = vector.shape_cast %369 : vector<8x128xf32> to vector<1x8x128xf32>
    tpu.vector_store %arg9[%372, %c0_184, %c0_185], %375 {strides = array<i32>} : memref<8x8x128xf32, #tpu.memory_space<vmem>>, vector<1x8x128xf32>,
    %c1_i32_186 = arith.constant 1 : i32
    %376 = arith.index_cast %c1_i32_186 : i32 to index
    %c0_187 = arith.constant 0 : index
    %c0_188 = arith.constant 0 : index
    %377 = vector.load %arg10[%376, %c0_187, %c0_188] : memref<8x8x512xf32, #tpu.memory_space<vmem>>, vector<1x8x512xf32>
    %378 = vector.shape_cast %377 : vector<1x8x512xf32> to vector<8x512xf32>
    %c0_189 = arith.constant 0 : index
    %c0_190 = arith.constant 0 : index
    %379 = vector.load %arg11[%c0_189, %c0_190] : memref<8x128xf32, #tpu.memory_space<vmem>>, vector<8x128xf32>
    %cst_191 = arith.constant dense<0.000000e+00> : vector<8x512xf32>
    %380 = tpu.matmul %379, %324, %cst_191 {dimension_numbers = #tpu.dot_dimension_numbers<[1], [0], [0], [1], [0, 0, 1, 1], [], []>} : vector<8x128xf32>, vector<128x512xf32>, vector<8x512xf32> -> vector<8x512xf32>
    %381 = arith.addf %378, %380 : vector<8x512xf32>
    %382 = vector.extract_strided_slice %381 {offsets = [0, 0], sizes = [8, 128], strides = [1, 1]} : vector<8x512xf32> to vector<8x128xf32>
    %383 = arith.negf %382 : vector<8x128xf32>
    %384 = math.exp %383 : vector<8x128xf32>
    %cst_192 = arith.constant 1.000000e+00 : f32
    %385 = vector.broadcast %cst_192 : f32 to vector<8x128xf32>
    %386 = arith.addf %385, %384 : vector<8x128xf32>
    %387 = arith.divf %385, %386 : vector<8x128xf32>
    %388 = vector.extract_strided_slice %381 {offsets = [0, 128], sizes = [8, 128], strides = [1, 1]} : vector<8x512xf32> to vector<8x128xf32>
    %389 = arith.negf %388 : vector<8x128xf32>
    %390 = math.exp %389 : vector<8x128xf32>
    %cst_193 = arith.constant 1.000000e+00 : f32
    %391 = vector.broadcast %cst_193 : f32 to vector<8x128xf32>
    %392 = arith.addf %391, %390 : vector<8x128xf32>
    %393 = arith.divf %391, %392 : vector<8x128xf32>
    %394 = vector.extract_strided_slice %381 {offsets = [0, 256], sizes = [8, 128], strides = [1, 1]} : vector<8x512xf32> to vector<8x128xf32>
    %395 = math.tanh %394 : vector<8x128xf32>
    %396 = vector.extract_strided_slice %381 {offsets = [0, 384], sizes = [8, 128], strides = [1, 1]} : vector<8x512xf32> to vector<8x128xf32>
    %397 = arith.negf %396 : vector<8x128xf32>
    %398 = math.exp %397 : vector<8x128xf32>
    %cst_194 = arith.constant 1.000000e+00 : f32
    %399 = vector.broadcast %cst_194 : f32 to vector<8x128xf32>
    %400 = arith.addf %399, %398 : vector<8x128xf32>
    %401 = arith.divf %399, %400 : vector<8x128xf32>
    %c0_195 = arith.constant 0 : index
    %c0_196 = arith.constant 0 : index
    %402 = vector.load %arg12[%c0_195, %c0_196] : memref<8x128xf32, #tpu.memory_space<vmem>>, vector<8x128xf32>
    %403 = arith.mulf %393, %402 : vector<8x128xf32>
    %404 = arith.mulf %387, %395 : vector<8x128xf32>
    %405 = arith.addf %403, %404 : vector<8x128xf32>
    %406 = math.tanh %405 : vector<8x128xf32>
    %407 = arith.mulf %401, %406 : vector<8x128xf32>
    %c0_197 = arith.constant 0 : index
    %c0_198 = arith.constant 0 : index
    %408 = vector.load %arg12[%c0_197, %c0_198] : memref<8x128xf32, #tpu.memory_space<vmem>>, vector<8x128xf32>
    tpu.vector_store %arg12[%c0_197, %c0_198], %405 {strides = array<i32>} : memref<8x128xf32, #tpu.memory_space<vmem>>, vector<8x128xf32>,
    %c0_199 = arith.constant 0 : index
    %c0_200 = arith.constant 0 : index
    %409 = vector.load %arg11[%c0_199, %c0_200] : memref<8x128xf32, #tpu.memory_space<vmem>>, vector<8x128xf32>
    tpu.vector_store %arg11[%c0_199, %c0_200], %407 {strides = array<i32>} : memref<8x128xf32, #tpu.memory_space<vmem>>, vector<8x128xf32>,
    %410 = arith.index_cast %c1_i32_186 : i32 to index
    %c0_201 = arith.constant 0 : index
    %c0_202 = arith.constant 0 : index
    %411 = vector.load %arg9[%410, %c0_201, %c0_202] : memref<8x8x128xf32, #tpu.memory_space<vmem>>, vector<1x8x128xf32>
    %412 = vector.shape_cast %411 : vector<1x8x128xf32> to vector<8x128xf32>
    %413 = vector.shape_cast %407 : vector<8x128xf32> to vector<1x8x128xf32>
    tpu.vector_store %arg9[%410, %c0_201, %c0_202], %413 {strides = array<i32>} : memref<8x8x128xf32, #tpu.memory_space<vmem>>, vector<1x8x128xf32>,
    %c2_i32_203 = arith.constant 2 : i32
    %414 = arith.index_cast %c2_i32_203 : i32 to index
    %c0_204 = arith.constant 0 : index
    %c0_205 = arith.constant 0 : index
    %415 = vector.load %arg10[%414, %c0_204, %c0_205] : memref<8x8x512xf32, #tpu.memory_space<vmem>>, vector<1x8x512xf32>
    %416 = vector.shape_cast %415 : vector<1x8x512xf32> to vector<8x512xf32>
    %c0_206 = arith.constant 0 : index
    %c0_207 = arith.constant 0 : index
    %417 = vector.load %arg11[%c0_206, %c0_207] : memref<8x128xf32, #tpu.memory_space<vmem>>, vector<8x128xf32>
    %cst_208 = arith.constant dense<0.000000e+00> : vector<8x512xf32>
    %418 = tpu.matmul %417, %324, %cst_208 {dimension_numbers = #tpu.dot_dimension_numbers<[1], [0], [0], [1], [0, 0, 1, 1], [], []>} : vector<8x128xf32>, vector<128x512xf32>, vector<8x512xf32> -> vector<8x512xf32>
    %419 = arith.addf %416, %418 : vector<8x512xf32>
    %420 = vector.extract_strided_slice %419 {offsets = [0, 0], sizes = [8, 128], strides = [1, 1]} : vector<8x512xf32> to vector<8x128xf32>
    %421 = arith.negf %420 : vector<8x128xf32>
    %422 = math.exp %421 : vector<8x128xf32>
    %cst_209 = arith.constant 1.000000e+00 : f32
    %423 = vector.broadcast %cst_209 : f32 to vector<8x128xf32>
    %424 = arith.addf %423, %422 : vector<8x128xf32>
    %425 = arith.divf %423, %424 : vector<8x128xf32>
    %426 = vector.extract_strided_slice %419 {offsets = [0, 128], sizes = [8, 128], strides = [1, 1]} : vector<8x512xf32> to vector<8x128xf32>
    %427 = arith.negf %426 : vector<8x128xf32>
    %428 = math.exp %427 : vector<8x128xf32>
    %cst_210 = arith.constant 1.000000e+00 : f32
    %429 = vector.broadcast %cst_210 : f32 to vector<8x128xf32>
    %430 = arith.addf %429, %428 : vector<8x128xf32>
    %431 = arith.divf %429, %430 : vector<8x128xf32>
    %432 = vector.extract_strided_slice %419 {offsets = [0, 256], sizes = [8, 128], strides = [1, 1]} : vector<8x512xf32> to vector<8x128xf32>
    %433 = math.tanh %432 : vector<8x128xf32>
    %434 = vector.extract_strided_slice %419 {offsets = [0, 384], sizes = [8, 128], strides = [1, 1]} : vector<8x512xf32> to vector<8x128xf32>
    %435 = arith.negf %434 : vector<8x128xf32>
    %436 = math.exp %435 : vector<8x128xf32>
    %cst_211 = arith.constant 1.000000e+00 : f32
    %437 = vector.broadcast %cst_211 : f32 to vector<8x128xf32>
    %438 = arith.addf %437, %436 : vector<8x128xf32>
    %439 = arith.divf %437, %438 : vector<8x128xf32>
    %c0_212 = arith.constant 0 : index
    %c0_213 = arith.constant 0 : index
    %440 = vector.load %arg12[%c0_212, %c0_213] : memref<8x128xf32, #tpu.memory_space<vmem>>, vector<8x128xf32>
    %441 = arith.mulf %431, %440 : vector<8x128xf32>
    %442 = arith.mulf %425, %433 : vector<8x128xf32>
    %443 = arith.addf %441, %442 : vector<8x128xf32>
    %444 = math.tanh %443 : vector<8x128xf32>
    %445 = arith.mulf %439, %444 : vector<8x128xf32>
    %c0_214 = arith.constant 0 : index
    %c0_215 = arith.constant 0 : index
    %446 = vector.load %arg12[%c0_214, %c0_215] : memref<8x128xf32, #tpu.memory_space<vmem>>, vector<8x128xf32>
    tpu.vector_store %arg12[%c0_214, %c0_215], %443 {strides = array<i32>} : memref<8x128xf32, #tpu.memory_space<vmem>>, vector<8x128xf32>,
    %c0_216 = arith.constant 0 : index
    %c0_217 = arith.constant 0 : index
    %447 = vector.load %arg11[%c0_216, %c0_217] : memref<8x128xf32, #tpu.memory_space<vmem>>, vector<8x128xf32>
    tpu.vector_store %arg11[%c0_216, %c0_217], %445 {strides = array<i32>} : memref<8x128xf32, #tpu.memory_space<vmem>>, vector<8x128xf32>,
    %448 = arith.index_cast %c2_i32_203 : i32 to index
    %c0_218 = arith.constant 0 : index
    %c0_219 = arith.constant 0 : index
    %449 = vector.load %arg9[%448, %c0_218, %c0_219] : memref<8x8x128xf32, #tpu.memory_space<vmem>>, vector<1x8x128xf32>
    %450 = vector.shape_cast %449 : vector<1x8x128xf32> to vector<8x128xf32>
    %451 = vector.shape_cast %445 : vector<8x128xf32> to vector<1x8x128xf32>
    tpu.vector_store %arg9[%448, %c0_218, %c0_219], %451 {strides = array<i32>} : memref<8x8x128xf32, #tpu.memory_space<vmem>>, vector<1x8x128xf32>,
    %c3_i32_220 = arith.constant 3 : i32
    %452 = arith.index_cast %c3_i32_220 : i32 to index
    %c0_221 = arith.constant 0 : index
    %c0_222 = arith.constant 0 : index
    %453 = vector.load %arg10[%452, %c0_221, %c0_222] : memref<8x8x512xf32, #tpu.memory_space<vmem>>, vector<1x8x512xf32>
    %454 = vector.shape_cast %453 : vector<1x8x512xf32> to vector<8x512xf32>
    %c0_223 = arith.constant 0 : index
    %c0_224 = arith.constant 0 : index
    %455 = vector.load %arg11[%c0_223, %c0_224] : memref<8x128xf32, #tpu.memory_space<vmem>>, vector<8x128xf32>
    %cst_225 = arith.constant dense<0.000000e+00> : vector<8x512xf32>
    %456 = tpu.matmul %455, %324, %cst_225 {dimension_numbers = #tpu.dot_dimension_numbers<[1], [0], [0], [1], [0, 0, 1, 1], [], []>} : vector<8x128xf32>, vector<128x512xf32>, vector<8x512xf32> -> vector<8x512xf32>
    %457 = arith.addf %454, %456 : vector<8x512xf32>
    %458 = vector.extract_strided_slice %457 {offsets = [0, 0], sizes = [8, 128], strides = [1, 1]} : vector<8x512xf32> to vector<8x128xf32>
    %459 = arith.negf %458 : vector<8x128xf32>
    %460 = math.exp %459 : vector<8x128xf32>
    %cst_226 = arith.constant 1.000000e+00 : f32
    %461 = vector.broadcast %cst_226 : f32 to vector<8x128xf32>
    %462 = arith.addf %461, %460 : vector<8x128xf32>
    %463 = arith.divf %461, %462 : vector<8x128xf32>
    %464 = vector.extract_strided_slice %457 {offsets = [0, 128], sizes = [8, 128], strides = [1, 1]} : vector<8x512xf32> to vector<8x128xf32>
    %465 = arith.negf %464 : vector<8x128xf32>
    %466 = math.exp %465 : vector<8x128xf32>
    %cst_227 = arith.constant 1.000000e+00 : f32
    %467 = vector.broadcast %cst_227 : f32 to vector<8x128xf32>
    %468 = arith.addf %467, %466 : vector<8x128xf32>
    %469 = arith.divf %467, %468 : vector<8x128xf32>
    %470 = vector.extract_strided_slice %457 {offsets = [0, 256], sizes = [8, 128], strides = [1, 1]} : vector<8x512xf32> to vector<8x128xf32>
    %471 = math.tanh %470 : vector<8x128xf32>
    %472 = vector.extract_strided_slice %457 {offsets = [0, 384], sizes = [8, 128], strides = [1, 1]} : vector<8x512xf32> to vector<8x128xf32>
    %473 = arith.negf %472 : vector<8x128xf32>
    %474 = math.exp %473 : vector<8x128xf32>
    %cst_228 = arith.constant 1.000000e+00 : f32
    %475 = vector.broadcast %cst_228 : f32 to vector<8x128xf32>
    %476 = arith.addf %475, %474 : vector<8x128xf32>
    %477 = arith.divf %475, %476 : vector<8x128xf32>
    %c0_229 = arith.constant 0 : index
    %c0_230 = arith.constant 0 : index
    %478 = vector.load %arg12[%c0_229, %c0_230] : memref<8x128xf32, #tpu.memory_space<vmem>>, vector<8x128xf32>
    %479 = arith.mulf %469, %478 : vector<8x128xf32>
    %480 = arith.mulf %463, %471 : vector<8x128xf32>
    %481 = arith.addf %479, %480 : vector<8x128xf32>
    %482 = math.tanh %481 : vector<8x128xf32>
    %483 = arith.mulf %477, %482 : vector<8x128xf32>
    %c0_231 = arith.constant 0 : index
    %c0_232 = arith.constant 0 : index
    %484 = vector.load %arg12[%c0_231, %c0_232] : memref<8x128xf32, #tpu.memory_space<vmem>>, vector<8x128xf32>
    tpu.vector_store %arg12[%c0_231, %c0_232], %481 {strides = array<i32>} : memref<8x128xf32, #tpu.memory_space<vmem>>, vector<8x128xf32>,
    %c0_233 = arith.constant 0 : index
    %c0_234 = arith.constant 0 : index
    %485 = vector.load %arg11[%c0_233, %c0_234] : memref<8x128xf32, #tpu.memory_space<vmem>>, vector<8x128xf32>
    tpu.vector_store %arg11[%c0_233, %c0_234], %483 {strides = array<i32>} : memref<8x128xf32, #tpu.memory_space<vmem>>, vector<8x128xf32>,
    %486 = arith.index_cast %c3_i32_220 : i32 to index
    %c0_235 = arith.constant 0 : index
    %c0_236 = arith.constant 0 : index
    %487 = vector.load %arg9[%486, %c0_235, %c0_236] : memref<8x8x128xf32, #tpu.memory_space<vmem>>, vector<1x8x128xf32>
    %488 = vector.shape_cast %487 : vector<1x8x128xf32> to vector<8x128xf32>
    %489 = vector.shape_cast %483 : vector<8x128xf32> to vector<1x8x128xf32>
    tpu.vector_store %arg9[%486, %c0_235, %c0_236], %489 {strides = array<i32>} : memref<8x8x128xf32, #tpu.memory_space<vmem>>, vector<1x8x128xf32>,
    %c4_i32_237 = arith.constant 4 : i32
    %490 = arith.index_cast %c4_i32_237 : i32 to index
    %c0_238 = arith.constant 0 : index
    %c0_239 = arith.constant 0 : index
    %491 = vector.load %arg10[%490, %c0_238, %c0_239] : memref<8x8x512xf32, #tpu.memory_space<vmem>>, vector<1x8x512xf32>
    %492 = vector.shape_cast %491 : vector<1x8x512xf32> to vector<8x512xf32>
    %c0_240 = arith.constant 0 : index
    %c0_241 = arith.constant 0 : index
    %493 = vector.load %arg11[%c0_240, %c0_241] : memref<8x128xf32, #tpu.memory_space<vmem>>, vector<8x128xf32>
    %cst_242 = arith.constant dense<0.000000e+00> : vector<8x512xf32>
    %494 = tpu.matmul %493, %324, %cst_242 {dimension_numbers = #tpu.dot_dimension_numbers<[1], [0], [0], [1], [0, 0, 1, 1], [], []>} : vector<8x128xf32>, vector<128x512xf32>, vector<8x512xf32> -> vector<8x512xf32>
    %495 = arith.addf %492, %494 : vector<8x512xf32>
    %496 = vector.extract_strided_slice %495 {offsets = [0, 0], sizes = [8, 128], strides = [1, 1]} : vector<8x512xf32> to vector<8x128xf32>
    %497 = arith.negf %496 : vector<8x128xf32>
    %498 = math.exp %497 : vector<8x128xf32>
    %cst_243 = arith.constant 1.000000e+00 : f32
    %499 = vector.broadcast %cst_243 : f32 to vector<8x128xf32>
    %500 = arith.addf %499, %498 : vector<8x128xf32>
    %501 = arith.divf %499, %500 : vector<8x128xf32>
    %502 = vector.extract_strided_slice %495 {offsets = [0, 128], sizes = [8, 128], strides = [1, 1]} : vector<8x512xf32> to vector<8x128xf32>
    %503 = arith.negf %502 : vector<8x128xf32>
    %504 = math.exp %503 : vector<8x128xf32>
    %cst_244 = arith.constant 1.000000e+00 : f32
    %505 = vector.broadcast %cst_244 : f32 to vector<8x128xf32>
    %506 = arith.addf %505, %504 : vector<8x128xf32>
    %507 = arith.divf %505, %506 : vector<8x128xf32>
    %508 = vector.extract_strided_slice %495 {offsets = [0, 256], sizes = [8, 128], strides = [1, 1]} : vector<8x512xf32> to vector<8x128xf32>
    %509 = math.tanh %508 : vector<8x128xf32>
    %510 = vector.extract_strided_slice %495 {offsets = [0, 384], sizes = [8, 128], strides = [1, 1]} : vector<8x512xf32> to vector<8x128xf32>
    %511 = arith.negf %510 : vector<8x128xf32>
    %512 = math.exp %511 : vector<8x128xf32>
    %cst_245 = arith.constant 1.000000e+00 : f32
    %513 = vector.broadcast %cst_245 : f32 to vector<8x128xf32>
    %514 = arith.addf %513, %512 : vector<8x128xf32>
    %515 = arith.divf %513, %514 : vector<8x128xf32>
    %c0_246 = arith.constant 0 : index
    %c0_247 = arith.constant 0 : index
    %516 = vector.load %arg12[%c0_246, %c0_247] : memref<8x128xf32, #tpu.memory_space<vmem>>, vector<8x128xf32>
    %517 = arith.mulf %507, %516 : vector<8x128xf32>
    %518 = arith.mulf %501, %509 : vector<8x128xf32>
    %519 = arith.addf %517, %518 : vector<8x128xf32>
    %520 = math.tanh %519 : vector<8x128xf32>
    %521 = arith.mulf %515, %520 : vector<8x128xf32>
    %c0_248 = arith.constant 0 : index
    %c0_249 = arith.constant 0 : index
    %522 = vector.load %arg12[%c0_248, %c0_249] : memref<8x128xf32, #tpu.memory_space<vmem>>, vector<8x128xf32>
    tpu.vector_store %arg12[%c0_248, %c0_249], %519 {strides = array<i32>} : memref<8x128xf32, #tpu.memory_space<vmem>>, vector<8x128xf32>,
    %c0_250 = arith.constant 0 : index
    %c0_251 = arith.constant 0 : index
    %523 = vector.load %arg11[%c0_250, %c0_251] : memref<8x128xf32, #tpu.memory_space<vmem>>, vector<8x128xf32>
    tpu.vector_store %arg11[%c0_250, %c0_251], %521 {strides = array<i32>} : memref<8x128xf32, #tpu.memory_space<vmem>>, vector<8x128xf32>,
    %524 = arith.index_cast %c4_i32_237 : i32 to index
    %c0_252 = arith.constant 0 : index
    %c0_253 = arith.constant 0 : index
    %525 = vector.load %arg9[%524, %c0_252, %c0_253] : memref<8x8x128xf32, #tpu.memory_space<vmem>>, vector<1x8x128xf32>
    %526 = vector.shape_cast %525 : vector<1x8x128xf32> to vector<8x128xf32>
    %527 = vector.shape_cast %521 : vector<8x128xf32> to vector<1x8x128xf32>
    tpu.vector_store %arg9[%524, %c0_252, %c0_253], %527 {strides = array<i32>} : memref<8x8x128xf32, #tpu.memory_space<vmem>>, vector<1x8x128xf32>,
    %c5_i32_254 = arith.constant 5 : i32
    %528 = arith.index_cast %c5_i32_254 : i32 to index
    %c0_255 = arith.constant 0 : index
    %c0_256 = arith.constant 0 : index
    %529 = vector.load %arg10[%528, %c0_255, %c0_256] : memref<8x8x512xf32, #tpu.memory_space<vmem>>, vector<1x8x512xf32>
    %530 = vector.shape_cast %529 : vector<1x8x512xf32> to vector<8x512xf32>
    %c0_257 = arith.constant 0 : index
    %c0_258 = arith.constant 0 : index
    %531 = vector.load %arg11[%c0_257, %c0_258] : memref<8x128xf32, #tpu.memory_space<vmem>>, vector<8x128xf32>
    %cst_259 = arith.constant dense<0.000000e+00> : vector<8x512xf32>
    %532 = tpu.matmul %531, %324, %cst_259 {dimension_numbers = #tpu.dot_dimension_numbers<[1], [0], [0], [1], [0, 0, 1, 1], [], []>} : vector<8x128xf32>, vector<128x512xf32>, vector<8x512xf32> -> vector<8x512xf32>
    %533 = arith.addf %530, %532 : vector<8x512xf32>
    %534 = vector.extract_strided_slice %533 {offsets = [0, 0], sizes = [8, 128], strides = [1, 1]} : vector<8x512xf32> to vector<8x128xf32>
    %535 = arith.negf %534 : vector<8x128xf32>
    %536 = math.exp %535 : vector<8x128xf32>
    %cst_260 = arith.constant 1.000000e+00 : f32
    %537 = vector.broadcast %cst_260 : f32 to vector<8x128xf32>
    %538 = arith.addf %537, %536 : vector<8x128xf32>
    %539 = arith.divf %537, %538 : vector<8x128xf32>
    %540 = vector.extract_strided_slice %533 {offsets = [0, 128], sizes = [8, 128], strides = [1, 1]} : vector<8x512xf32> to vector<8x128xf32>
    %541 = arith.negf %540 : vector<8x128xf32>
    %542 = math.exp %541 : vector<8x128xf32>
    %cst_261 = arith.constant 1.000000e+00 : f32
    %543 = vector.broadcast %cst_261 : f32 to vector<8x128xf32>
    %544 = arith.addf %543, %542 : vector<8x128xf32>
    %545 = arith.divf %543, %544 : vector<8x128xf32>
    %546 = vector.extract_strided_slice %533 {offsets = [0, 256], sizes = [8, 128], strides = [1, 1]} : vector<8x512xf32> to vector<8x128xf32>
    %547 = math.tanh %546 : vector<8x128xf32>
    %548 = vector.extract_strided_slice %533 {offsets = [0, 384], sizes = [8, 128], strides = [1, 1]} : vector<8x512xf32> to vector<8x128xf32>
    %549 = arith.negf %548 : vector<8x128xf32>
    %550 = math.exp %549 : vector<8x128xf32>
    %cst_262 = arith.constant 1.000000e+00 : f32
    %551 = vector.broadcast %cst_262 : f32 to vector<8x128xf32>
    %552 = arith.addf %551, %550 : vector<8x128xf32>
    %553 = arith.divf %551, %552 : vector<8x128xf32>
    %c0_263 = arith.constant 0 : index
    %c0_264 = arith.constant 0 : index
    %554 = vector.load %arg12[%c0_263, %c0_264] : memref<8x128xf32, #tpu.memory_space<vmem>>, vector<8x128xf32>
    %555 = arith.mulf %545, %554 : vector<8x128xf32>
    %556 = arith.mulf %539, %547 : vector<8x128xf32>
    %557 = arith.addf %555, %556 : vector<8x128xf32>
    %558 = math.tanh %557 : vector<8x128xf32>
    %559 = arith.mulf %553, %558 : vector<8x128xf32>
    %c0_265 = arith.constant 0 : index
    %c0_266 = arith.constant 0 : index
    %560 = vector.load %arg12[%c0_265, %c0_266] : memref<8x128xf32, #tpu.memory_space<vmem>>, vector<8x128xf32>
    tpu.vector_store %arg12[%c0_265, %c0_266], %557 {strides = array<i32>} : memref<8x128xf32, #tpu.memory_space<vmem>>, vector<8x128xf32>,
    %c0_267 = arith.constant 0 : index
    %c0_268 = arith.constant 0 : index
    %561 = vector.load %arg11[%c0_267, %c0_268] : memref<8x128xf32, #tpu.memory_space<vmem>>, vector<8x128xf32>
    tpu.vector_store %arg11[%c0_267, %c0_268], %559 {strides = array<i32>} : memref<8x128xf32, #tpu.memory_space<vmem>>, vector<8x128xf32>,
    %562 = arith.index_cast %c5_i32_254 : i32 to index
    %c0_269 = arith.constant 0 : index
    %c0_270 = arith.constant 0 : index
    %563 = vector.load %arg9[%562, %c0_269, %c0_270] : memref<8x8x128xf32, #tpu.memory_space<vmem>>, vector<1x8x128xf32>
    %564 = vector.shape_cast %563 : vector<1x8x128xf32> to vector<8x128xf32>
    %565 = vector.shape_cast %559 : vector<8x128xf32> to vector<1x8x128xf32>
    tpu.vector_store %arg9[%562, %c0_269, %c0_270], %565 {strides = array<i32>} : memref<8x8x128xf32, #tpu.memory_space<vmem>>, vector<1x8x128xf32>,
    %c6_i32_271 = arith.constant 6 : i32
    %566 = arith.index_cast %c6_i32_271 : i32 to index
    %c0_272 = arith.constant 0 : index
    %c0_273 = arith.constant 0 : index
    %567 = vector.load %arg10[%566, %c0_272, %c0_273] : memref<8x8x512xf32, #tpu.memory_space<vmem>>, vector<1x8x512xf32>
    %568 = vector.shape_cast %567 : vector<1x8x512xf32> to vector<8x512xf32>
    %c0_274 = arith.constant 0 : index
    %c0_275 = arith.constant 0 : index
    %569 = vector.load %arg11[%c0_274, %c0_275] : memref<8x128xf32, #tpu.memory_space<vmem>>, vector<8x128xf32>
    %cst_276 = arith.constant dense<0.000000e+00> : vector<8x512xf32>
    %570 = tpu.matmul %569, %324, %cst_276 {dimension_numbers = #tpu.dot_dimension_numbers<[1], [0], [0], [1], [0, 0, 1, 1], [], []>} : vector<8x128xf32>, vector<128x512xf32>, vector<8x512xf32> -> vector<8x512xf32>
    %571 = arith.addf %568, %570 : vector<8x512xf32>
    %572 = vector.extract_strided_slice %571 {offsets = [0, 0], sizes = [8, 128], strides = [1, 1]} : vector<8x512xf32> to vector<8x128xf32>
    %573 = arith.negf %572 : vector<8x128xf32>
    %574 = math.exp %573 : vector<8x128xf32>
    %cst_277 = arith.constant 1.000000e+00 : f32
    %575 = vector.broadcast %cst_277 : f32 to vector<8x128xf32>
    %576 = arith.addf %575, %574 : vector<8x128xf32>
    %577 = arith.divf %575, %576 : vector<8x128xf32>
    %578 = vector.extract_strided_slice %571 {offsets = [0, 128], sizes = [8, 128], strides = [1, 1]} : vector<8x512xf32> to vector<8x128xf32>
    %579 = arith.negf %578 : vector<8x128xf32>
    %580 = math.exp %579 : vector<8x128xf32>
    %cst_278 = arith.constant 1.000000e+00 : f32
    %581 = vector.broadcast %cst_278 : f32 to vector<8x128xf32>
    %582 = arith.addf %581, %580 : vector<8x128xf32>
    %583 = arith.divf %581, %582 : vector<8x128xf32>
    %584 = vector.extract_strided_slice %571 {offsets = [0, 256], sizes = [8, 128], strides = [1, 1]} : vector<8x512xf32> to vector<8x128xf32>
    %585 = math.tanh %584 : vector<8x128xf32>
    %586 = vector.extract_strided_slice %571 {offsets = [0, 384], sizes = [8, 128], strides = [1, 1]} : vector<8x512xf32> to vector<8x128xf32>
    %587 = arith.negf %586 : vector<8x128xf32>
    %588 = math.exp %587 : vector<8x128xf32>
    %cst_279 = arith.constant 1.000000e+00 : f32
    %589 = vector.broadcast %cst_279 : f32 to vector<8x128xf32>
    %590 = arith.addf %589, %588 : vector<8x128xf32>
    %591 = arith.divf %589, %590 : vector<8x128xf32>
    %c0_280 = arith.constant 0 : index
    %c0_281 = arith.constant 0 : index
    %592 = vector.load %arg12[%c0_280, %c0_281] : memref<8x128xf32, #tpu.memory_space<vmem>>, vector<8x128xf32>
    %593 = arith.mulf %583, %592 : vector<8x128xf32>
    %594 = arith.mulf %577, %585 : vector<8x128xf32>
    %595 = arith.addf %593, %594 : vector<8x128xf32>
    %596 = math.tanh %595 : vector<8x128xf32>
    %597 = arith.mulf %591, %596 : vector<8x128xf32>
    %c0_282 = arith.constant 0 : index
    %c0_283 = arith.constant 0 : index
    %598 = vector.load %arg12[%c0_282, %c0_283] : memref<8x128xf32, #tpu.memory_space<vmem>>, vector<8x128xf32>
    tpu.vector_store %arg12[%c0_282, %c0_283], %595 {strides = array<i32>} : memref<8x128xf32, #tpu.memory_space<vmem>>, vector<8x128xf32>,
    %c0_284 = arith.constant 0 : index
    %c0_285 = arith.constant 0 : index
    %599 = vector.load %arg11[%c0_284, %c0_285] : memref<8x128xf32, #tpu.memory_space<vmem>>, vector<8x128xf32>
    tpu.vector_store %arg11[%c0_284, %c0_285], %597 {strides = array<i32>} : memref<8x128xf32, #tpu.memory_space<vmem>>, vector<8x128xf32>,
    %600 = arith.index_cast %c6_i32_271 : i32 to index
    %c0_286 = arith.constant 0 : index
    %c0_287 = arith.constant 0 : index
    %601 = vector.load %arg9[%600, %c0_286, %c0_287] : memref<8x8x128xf32, #tpu.memory_space<vmem>>, vector<1x8x128xf32>
    %602 = vector.shape_cast %601 : vector<1x8x128xf32> to vector<8x128xf32>
    %603 = vector.shape_cast %597 : vector<8x128xf32> to vector<1x8x128xf32>
    tpu.vector_store %arg9[%600, %c0_286, %c0_287], %603 {strides = array<i32>} : memref<8x8x128xf32, #tpu.memory_space<vmem>>, vector<1x8x128xf32>,
    %c7_i32_288 = arith.constant 7 : i32
    %604 = arith.index_cast %c7_i32_288 : i32 to index
    %c0_289 = arith.constant 0 : index
    %c0_290 = arith.constant 0 : index
    %605 = vector.load %arg10[%604, %c0_289, %c0_290] : memref<8x8x512xf32, #tpu.memory_space<vmem>>, vector<1x8x512xf32>
    %606 = vector.shape_cast %605 : vector<1x8x512xf32> to vector<8x512xf32>
    %c0_291 = arith.constant 0 : index
    %c0_292 = arith.constant 0 : index
    %607 = vector.load %arg11[%c0_291, %c0_292] : memref<8x128xf32, #tpu.memory_space<vmem>>, vector<8x128xf32>
    %cst_293 = arith.constant dense<0.000000e+00> : vector<8x512xf32>
    %608 = tpu.matmul %607, %324, %cst_293 {dimension_numbers = #tpu.dot_dimension_numbers<[1], [0], [0], [1], [0, 0, 1, 1], [], []>} : vector<8x128xf32>, vector<128x512xf32>, vector<8x512xf32> -> vector<8x512xf32>
    %609 = arith.addf %606, %608 : vector<8x512xf32>
    %610 = vector.extract_strided_slice %609 {offsets = [0, 0], sizes = [8, 128], strides = [1, 1]} : vector<8x512xf32> to vector<8x128xf32>
    %611 = arith.negf %610 : vector<8x128xf32>
    %612 = math.exp %611 : vector<8x128xf32>
    %cst_294 = arith.constant 1.000000e+00 : f32
    %613 = vector.broadcast %cst_294 : f32 to vector<8x128xf32>
    %614 = arith.addf %613, %612 : vector<8x128xf32>
    %615 = arith.divf %613, %614 : vector<8x128xf32>
    %616 = vector.extract_strided_slice %609 {offsets = [0, 128], sizes = [8, 128], strides = [1, 1]} : vector<8x512xf32> to vector<8x128xf32>
    %617 = arith.negf %616 : vector<8x128xf32>
    %618 = math.exp %617 : vector<8x128xf32>
    %cst_295 = arith.constant 1.000000e+00 : f32
    %619 = vector.broadcast %cst_295 : f32 to vector<8x128xf32>
    %620 = arith.addf %619, %618 : vector<8x128xf32>
    %621 = arith.divf %619, %620 : vector<8x128xf32>
    %622 = vector.extract_strided_slice %609 {offsets = [0, 256], sizes = [8, 128], strides = [1, 1]} : vector<8x512xf32> to vector<8x128xf32>
    %623 = math.tanh %622 : vector<8x128xf32>
    %624 = vector.extract_strided_slice %609 {offsets = [0, 384], sizes = [8, 128], strides = [1, 1]} : vector<8x512xf32> to vector<8x128xf32>
    %625 = arith.negf %624 : vector<8x128xf32>
    %626 = math.exp %625 : vector<8x128xf32>
    %cst_296 = arith.constant 1.000000e+00 : f32
    %627 = vector.broadcast %cst_296 : f32 to vector<8x128xf32>
    %628 = arith.addf %627, %626 : vector<8x128xf32>
    %629 = arith.divf %627, %628 : vector<8x128xf32>
    %c0_297 = arith.constant 0 : index
    %c0_298 = arith.constant 0 : index
    %630 = vector.load %arg12[%c0_297, %c0_298] : memref<8x128xf32, #tpu.memory_space<vmem>>, vector<8x128xf32>
    %631 = arith.mulf %621, %630 : vector<8x128xf32>
    %632 = arith.mulf %615, %623 : vector<8x128xf32>
    %633 = arith.addf %631, %632 : vector<8x128xf32>
    %634 = math.tanh %633 : vector<8x128xf32>
    %635 = arith.mulf %629, %634 : vector<8x128xf32>
    %c0_299 = arith.constant 0 : index
    %c0_300 = arith.constant 0 : index
    %636 = vector.load %arg12[%c0_299, %c0_300] : memref<8x128xf32, #tpu.memory_space<vmem>>, vector<8x128xf32>
    tpu.vector_store %arg12[%c0_299, %c0_300], %633 {strides = array<i32>} : memref<8x128xf32, #tpu.memory_space<vmem>>, vector<8x128xf32>,
    %c0_301 = arith.constant 0 : index
    %c0_302 = arith.constant 0 : index
    %637 = vector.load %arg11[%c0_301, %c0_302] : memref<8x128xf32, #tpu.memory_space<vmem>>, vector<8x128xf32>
    tpu.vector_store %arg11[%c0_301, %c0_302], %635 {strides = array<i32>} : memref<8x128xf32, #tpu.memory_space<vmem>>, vector<8x128xf32>,
    %638 = arith.index_cast %c7_i32_288 : i32 to index
    %c0_303 = arith.constant 0 : index
    %c0_304 = arith.constant 0 : index
    %639 = vector.load %arg9[%638, %c0_303, %c0_304] : memref<8x8x128xf32, #tpu.memory_space<vmem>>, vector<1x8x128xf32>
    %640 = vector.shape_cast %639 : vector<1x8x128xf32> to vector<8x128xf32>
    %641 = vector.shape_cast %635 : vector<8x128xf32> to vector<1x8x128xf32>
    tpu.vector_store %arg9[%638, %c0_303, %c0_304], %641 {strides = array<i32>} : memref<8x8x128xf32, #tpu.memory_space<vmem>>, vector<1x8x128xf32>,
    %c8_i32_305 = arith.constant 8 : i32
    %c2 = arith.constant 2 : index
    %c0_306 = arith.constant 0 : index
    %c0_307 = arith.constant 0 : index
    %642 = vector.load %arg3[%c2, %c0_306, %c0_307] : memref<4x128x512xf32, #tpu.memory_space<vmem>>, vector<1x128x512xf32>
    %643 = vector.shape_cast %642 : vector<1x128x512xf32> to vector<128x512xf32>
    %c2_308 = arith.constant 2 : index
    %c0_309 = arith.constant 0 : index
    %c0_310 = arith.constant 0 : index
    %644 = vector.load %arg4[%c2_308, %c0_309, %c0_310] : memref<4x128x512xf32, #tpu.memory_space<vmem>>, vector<1x128x512xf32>
    %645 = vector.shape_cast %644 : vector<1x128x512xf32> to vector<128x512xf32>
    %c2_311 = arith.constant 2 : index
    %c0_312 = arith.constant 0 : index
    %c0_313 = arith.constant 0 : index
    %646 = vector.load %arg5[%c2_311, %c0_312, %c0_313] : memref<4x1x512xf32, #tpu.memory_space<vmem>>, vector<1x1x512xf32>
    %647 = vector.shape_cast %646 : vector<1x1x512xf32> to vector<1x512xf32>
    %c0_314 = arith.constant 0 : index
    %c0_315 = arith.constant 0 : index
    %c0_316 = arith.constant 0 : index
    %648 = vector.load %arg9[%c0_314, %c0_315, %c0_316] : memref<8x8x128xf32, #tpu.memory_space<vmem>>, vector<8x8x128xf32>
    %649 = vector.shape_cast %648 : vector<8x8x128xf32> to vector<64x128xf32>
    %cst_317 = arith.constant dense<0.000000e+00> : vector<64x512xf32>
    %650 = tpu.matmul %649, %643, %cst_317 {dimension_numbers = #tpu.dot_dimension_numbers<[1], [0], [0], [1], [0, 0, 1, 1], [], []>} : vector<64x128xf32>, vector<128x512xf32>, vector<64x512xf32> -> vector<64x512xf32>
    %651 = vector.broadcast %647 : vector<1x512xf32> to vector<64x512xf32>
    %652 = arith.addf %650, %651 : vector<64x512xf32>
    %653 = vector.shape_cast %652 : vector<64x512xf32> to vector<8x8x512xf32>
    %c0_318 = arith.constant 0 : index
    %c0_319 = arith.constant 0 : index
    %c0_320 = arith.constant 0 : index
    %654 = vector.load %arg10[%c0_318, %c0_319, %c0_320] : memref<8x8x512xf32, #tpu.memory_space<vmem>>, vector<8x8x512xf32>
    tpu.vector_store %arg10[%c0_318, %c0_319, %c0_320], %653 {strides = array<i32>} : memref<8x8x512xf32, #tpu.memory_space<vmem>>, vector<8x8x512xf32>,
    %cst_321 = arith.constant 0.000000e+00 : f32
    %655 = vector.broadcast %cst_321 : f32 to vector<8x128xf32>
    %c0_322 = arith.constant 0 : index
    %c0_323 = arith.constant 0 : index
    %656 = vector.load %arg11[%c0_322, %c0_323] : memref<8x128xf32, #tpu.memory_space<vmem>>, vector<8x128xf32>
    tpu.vector_store %arg11[%c0_322, %c0_323], %655 {strides = array<i32>} : memref<8x128xf32, #tpu.memory_space<vmem>>, vector<8x128xf32>,
    %cst_324 = arith.constant 0.000000e+00 : f32
    %657 = vector.broadcast %cst_324 : f32 to vector<8x128xf32>
    %c0_325 = arith.constant 0 : index
    %c0_326 = arith.constant 0 : index
    %658 = vector.load %arg12[%c0_325, %c0_326] : memref<8x128xf32, #tpu.memory_space<vmem>>, vector<8x128xf32>
    tpu.vector_store %arg12[%c0_325, %c0_326], %657 {strides = array<i32>} : memref<8x128xf32, #tpu.memory_space<vmem>>, vector<8x128xf32>,
    %c0_i32_327 = arith.constant 0 : i32
    %659 = arith.index_cast %c0_i32_327 : i32 to index
    %c0_328 = arith.constant 0 : index
    %c0_329 = arith.constant 0 : index
    %660 = vector.load %arg10[%659, %c0_328, %c0_329] : memref<8x8x512xf32, #tpu.memory_space<vmem>>, vector<1x8x512xf32>
    %661 = vector.shape_cast %660 : vector<1x8x512xf32> to vector<8x512xf32>
    %c0_330 = arith.constant 0 : index
    %c0_331 = arith.constant 0 : index
    %662 = vector.load %arg11[%c0_330, %c0_331] : memref<8x128xf32, #tpu.memory_space<vmem>>, vector<8x128xf32>
    %cst_332 = arith.constant dense<0.000000e+00> : vector<8x512xf32>
    %663 = tpu.matmul %662, %645, %cst_332 {dimension_numbers = #tpu.dot_dimension_numbers<[1], [0], [0], [1], [0, 0, 1, 1], [], []>} : vector<8x128xf32>, vector<128x512xf32>, vector<8x512xf32> -> vector<8x512xf32>
    %664 = arith.addf %661, %663 : vector<8x512xf32>
    %665 = vector.extract_strided_slice %664 {offsets = [0, 0], sizes = [8, 128], strides = [1, 1]} : vector<8x512xf32> to vector<8x128xf32>
    %666 = arith.negf %665 : vector<8x128xf32>
    %667 = math.exp %666 : vector<8x128xf32>
    %cst_333 = arith.constant 1.000000e+00 : f32
    %668 = vector.broadcast %cst_333 : f32 to vector<8x128xf32>
    %669 = arith.addf %668, %667 : vector<8x128xf32>
    %670 = arith.divf %668, %669 : vector<8x128xf32>
    %671 = vector.extract_strided_slice %664 {offsets = [0, 128], sizes = [8, 128], strides = [1, 1]} : vector<8x512xf32> to vector<8x128xf32>
    %672 = arith.negf %671 : vector<8x128xf32>
    %673 = math.exp %672 : vector<8x128xf32>
    %cst_334 = arith.constant 1.000000e+00 : f32
    %674 = vector.broadcast %cst_334 : f32 to vector<8x128xf32>
    %675 = arith.addf %674, %673 : vector<8x128xf32>
    %676 = arith.divf %674, %675 : vector<8x128xf32>
    %677 = vector.extract_strided_slice %664 {offsets = [0, 256], sizes = [8, 128], strides = [1, 1]} : vector<8x512xf32> to vector<8x128xf32>
    %678 = math.tanh %677 : vector<8x128xf32>
    %679 = vector.extract_strided_slice %664 {offsets = [0, 384], sizes = [8, 128], strides = [1, 1]} : vector<8x512xf32> to vector<8x128xf32>
    %680 = arith.negf %679 : vector<8x128xf32>
    %681 = math.exp %680 : vector<8x128xf32>
    %cst_335 = arith.constant 1.000000e+00 : f32
    %682 = vector.broadcast %cst_335 : f32 to vector<8x128xf32>
    %683 = arith.addf %682, %681 : vector<8x128xf32>
    %684 = arith.divf %682, %683 : vector<8x128xf32>
    %c0_336 = arith.constant 0 : index
    %c0_337 = arith.constant 0 : index
    %685 = vector.load %arg12[%c0_336, %c0_337] : memref<8x128xf32, #tpu.memory_space<vmem>>, vector<8x128xf32>
    %686 = arith.mulf %676, %685 : vector<8x128xf32>
    %687 = arith.mulf %670, %678 : vector<8x128xf32>
    %688 = arith.addf %686, %687 : vector<8x128xf32>
    %689 = math.tanh %688 : vector<8x128xf32>
    %690 = arith.mulf %684, %689 : vector<8x128xf32>
    %c0_338 = arith.constant 0 : index
    %c0_339 = arith.constant 0 : index
    %691 = vector.load %arg12[%c0_338, %c0_339] : memref<8x128xf32, #tpu.memory_space<vmem>>, vector<8x128xf32>
    tpu.vector_store %arg12[%c0_338, %c0_339], %688 {strides = array<i32>} : memref<8x128xf32, #tpu.memory_space<vmem>>, vector<8x128xf32>,
    %c0_340 = arith.constant 0 : index
    %c0_341 = arith.constant 0 : index
    %692 = vector.load %arg11[%c0_340, %c0_341] : memref<8x128xf32, #tpu.memory_space<vmem>>, vector<8x128xf32>
    tpu.vector_store %arg11[%c0_340, %c0_341], %690 {strides = array<i32>} : memref<8x128xf32, #tpu.memory_space<vmem>>, vector<8x128xf32>,
    %693 = arith.index_cast %c0_i32_327 : i32 to index
    %c0_342 = arith.constant 0 : index
    %c0_343 = arith.constant 0 : index
    %694 = vector.load %arg9[%693, %c0_342, %c0_343] : memref<8x8x128xf32, #tpu.memory_space<vmem>>, vector<1x8x128xf32>
    %695 = vector.shape_cast %694 : vector<1x8x128xf32> to vector<8x128xf32>
    %696 = vector.shape_cast %690 : vector<8x128xf32> to vector<1x8x128xf32>
    tpu.vector_store %arg9[%693, %c0_342, %c0_343], %696 {strides = array<i32>} : memref<8x8x128xf32, #tpu.memory_space<vmem>>, vector<1x8x128xf32>,
    %c1_i32_344 = arith.constant 1 : i32
    %697 = arith.index_cast %c1_i32_344 : i32 to index
    %c0_345 = arith.constant 0 : index
    %c0_346 = arith.constant 0 : index
    %698 = vector.load %arg10[%697, %c0_345, %c0_346] : memref<8x8x512xf32, #tpu.memory_space<vmem>>, vector<1x8x512xf32>
    %699 = vector.shape_cast %698 : vector<1x8x512xf32> to vector<8x512xf32>
    %c0_347 = arith.constant 0 : index
    %c0_348 = arith.constant 0 : index
    %700 = vector.load %arg11[%c0_347, %c0_348] : memref<8x128xf32, #tpu.memory_space<vmem>>, vector<8x128xf32>
    %cst_349 = arith.constant dense<0.000000e+00> : vector<8x512xf32>
    %701 = tpu.matmul %700, %645, %cst_349 {dimension_numbers = #tpu.dot_dimension_numbers<[1], [0], [0], [1], [0, 0, 1, 1], [], []>} : vector<8x128xf32>, vector<128x512xf32>, vector<8x512xf32> -> vector<8x512xf32>
    %702 = arith.addf %699, %701 : vector<8x512xf32>
    %703 = vector.extract_strided_slice %702 {offsets = [0, 0], sizes = [8, 128], strides = [1, 1]} : vector<8x512xf32> to vector<8x128xf32>
    %704 = arith.negf %703 : vector<8x128xf32>
    %705 = math.exp %704 : vector<8x128xf32>
    %cst_350 = arith.constant 1.000000e+00 : f32
    %706 = vector.broadcast %cst_350 : f32 to vector<8x128xf32>
    %707 = arith.addf %706, %705 : vector<8x128xf32>
    %708 = arith.divf %706, %707 : vector<8x128xf32>
    %709 = vector.extract_strided_slice %702 {offsets = [0, 128], sizes = [8, 128], strides = [1, 1]} : vector<8x512xf32> to vector<8x128xf32>
    %710 = arith.negf %709 : vector<8x128xf32>
    %711 = math.exp %710 : vector<8x128xf32>
    %cst_351 = arith.constant 1.000000e+00 : f32
    %712 = vector.broadcast %cst_351 : f32 to vector<8x128xf32>
    %713 = arith.addf %712, %711 : vector<8x128xf32>
    %714 = arith.divf %712, %713 : vector<8x128xf32>
    %715 = vector.extract_strided_slice %702 {offsets = [0, 256], sizes = [8, 128], strides = [1, 1]} : vector<8x512xf32> to vector<8x128xf32>
    %716 = math.tanh %715 : vector<8x128xf32>
    %717 = vector.extract_strided_slice %702 {offsets = [0, 384], sizes = [8, 128], strides = [1, 1]} : vector<8x512xf32> to vector<8x128xf32>
    %718 = arith.negf %717 : vector<8x128xf32>
    %719 = math.exp %718 : vector<8x128xf32>
    %cst_352 = arith.constant 1.000000e+00 : f32
    %720 = vector.broadcast %cst_352 : f32 to vector<8x128xf32>
    %721 = arith.addf %720, %719 : vector<8x128xf32>
    %722 = arith.divf %720, %721 : vector<8x128xf32>
    %c0_353 = arith.constant 0 : index
    %c0_354 = arith.constant 0 : index
    %723 = vector.load %arg12[%c0_353, %c0_354] : memref<8x128xf32, #tpu.memory_space<vmem>>, vector<8x128xf32>
    %724 = arith.mulf %714, %723 : vector<8x128xf32>
    %725 = arith.mulf %708, %716 : vector<8x128xf32>
    %726 = arith.addf %724, %725 : vector<8x128xf32>
    %727 = math.tanh %726 : vector<8x128xf32>
    %728 = arith.mulf %722, %727 : vector<8x128xf32>
    %c0_355 = arith.constant 0 : index
    %c0_356 = arith.constant 0 : index
    %729 = vector.load %arg12[%c0_355, %c0_356] : memref<8x128xf32, #tpu.memory_space<vmem>>, vector<8x128xf32>
    tpu.vector_store %arg12[%c0_355, %c0_356], %726 {strides = array<i32>} : memref<8x128xf32, #tpu.memory_space<vmem>>, vector<8x128xf32>,
    %c0_357 = arith.constant 0 : index
    %c0_358 = arith.constant 0 : index
    %730 = vector.load %arg11[%c0_357, %c0_358] : memref<8x128xf32, #tpu.memory_space<vmem>>, vector<8x128xf32>
    tpu.vector_store %arg11[%c0_357, %c0_358], %728 {strides = array<i32>} : memref<8x128xf32, #tpu.memory_space<vmem>>, vector<8x128xf32>,
    %731 = arith.index_cast %c1_i32_344 : i32 to index
    %c0_359 = arith.constant 0 : index
    %c0_360 = arith.constant 0 : index
    %732 = vector.load %arg9[%731, %c0_359, %c0_360] : memref<8x8x128xf32, #tpu.memory_space<vmem>>, vector<1x8x128xf32>
    %733 = vector.shape_cast %732 : vector<1x8x128xf32> to vector<8x128xf32>
    %734 = vector.shape_cast %728 : vector<8x128xf32> to vector<1x8x128xf32>
    tpu.vector_store %arg9[%731, %c0_359, %c0_360], %734 {strides = array<i32>} : memref<8x8x128xf32, #tpu.memory_space<vmem>>, vector<1x8x128xf32>,
    %c2_i32_361 = arith.constant 2 : i32
    %735 = arith.index_cast %c2_i32_361 : i32 to index
    %c0_362 = arith.constant 0 : index
    %c0_363 = arith.constant 0 : index
    %736 = vector.load %arg10[%735, %c0_362, %c0_363] : memref<8x8x512xf32, #tpu.memory_space<vmem>>, vector<1x8x512xf32>
    %737 = vector.shape_cast %736 : vector<1x8x512xf32> to vector<8x512xf32>
    %c0_364 = arith.constant 0 : index
    %c0_365 = arith.constant 0 : index
    %738 = vector.load %arg11[%c0_364, %c0_365] : memref<8x128xf32, #tpu.memory_space<vmem>>, vector<8x128xf32>
    %cst_366 = arith.constant dense<0.000000e+00> : vector<8x512xf32>
    %739 = tpu.matmul %738, %645, %cst_366 {dimension_numbers = #tpu.dot_dimension_numbers<[1], [0], [0], [1], [0, 0, 1, 1], [], []>} : vector<8x128xf32>, vector<128x512xf32>, vector<8x512xf32> -> vector<8x512xf32>
    %740 = arith.addf %737, %739 : vector<8x512xf32>
    %741 = vector.extract_strided_slice %740 {offsets = [0, 0], sizes = [8, 128], strides = [1, 1]} : vector<8x512xf32> to vector<8x128xf32>
    %742 = arith.negf %741 : vector<8x128xf32>
    %743 = math.exp %742 : vector<8x128xf32>
    %cst_367 = arith.constant 1.000000e+00 : f32
    %744 = vector.broadcast %cst_367 : f32 to vector<8x128xf32>
    %745 = arith.addf %744, %743 : vector<8x128xf32>
    %746 = arith.divf %744, %745 : vector<8x128xf32>
    %747 = vector.extract_strided_slice %740 {offsets = [0, 128], sizes = [8, 128], strides = [1, 1]} : vector<8x512xf32> to vector<8x128xf32>
    %748 = arith.negf %747 : vector<8x128xf32>
    %749 = math.exp %748 : vector<8x128xf32>
    %cst_368 = arith.constant 1.000000e+00 : f32
    %750 = vector.broadcast %cst_368 : f32 to vector<8x128xf32>
    %751 = arith.addf %750, %749 : vector<8x128xf32>
    %752 = arith.divf %750, %751 : vector<8x128xf32>
    %753 = vector.extract_strided_slice %740 {offsets = [0, 256], sizes = [8, 128], strides = [1, 1]} : vector<8x512xf32> to vector<8x128xf32>
    %754 = math.tanh %753 : vector<8x128xf32>
    %755 = vector.extract_strided_slice %740 {offsets = [0, 384], sizes = [8, 128], strides = [1, 1]} : vector<8x512xf32> to vector<8x128xf32>
    %756 = arith.negf %755 : vector<8x128xf32>
    %757 = math.exp %756 : vector<8x128xf32>
    %cst_369 = arith.constant 1.000000e+00 : f32
    %758 = vector.broadcast %cst_369 : f32 to vector<8x128xf32>
    %759 = arith.addf %758, %757 : vector<8x128xf32>
    %760 = arith.divf %758, %759 : vector<8x128xf32>
    %c0_370 = arith.constant 0 : index
    %c0_371 = arith.constant 0 : index
    %761 = vector.load %arg12[%c0_370, %c0_371] : memref<8x128xf32, #tpu.memory_space<vmem>>, vector<8x128xf32>
    %762 = arith.mulf %752, %761 : vector<8x128xf32>
    %763 = arith.mulf %746, %754 : vector<8x128xf32>
    %764 = arith.addf %762, %763 : vector<8x128xf32>
    %765 = math.tanh %764 : vector<8x128xf32>
    %766 = arith.mulf %760, %765 : vector<8x128xf32>
    %c0_372 = arith.constant 0 : index
    %c0_373 = arith.constant 0 : index
    %767 = vector.load %arg12[%c0_372, %c0_373] : memref<8x128xf32, #tpu.memory_space<vmem>>, vector<8x128xf32>
    tpu.vector_store %arg12[%c0_372, %c0_373], %764 {strides = array<i32>} : memref<8x128xf32, #tpu.memory_space<vmem>>, vector<8x128xf32>,
    %c0_374 = arith.constant 0 : index
    %c0_375 = arith.constant 0 : index
    %768 = vector.load %arg11[%c0_374, %c0_375] : memref<8x128xf32, #tpu.memory_space<vmem>>, vector<8x128xf32>
    tpu.vector_store %arg11[%c0_374, %c0_375], %766 {strides = array<i32>} : memref<8x128xf32, #tpu.memory_space<vmem>>, vector<8x128xf32>,
    %769 = arith.index_cast %c2_i32_361 : i32 to index
    %c0_376 = arith.constant 0 : index
    %c0_377 = arith.constant 0 : index
    %770 = vector.load %arg9[%769, %c0_376, %c0_377] : memref<8x8x128xf32, #tpu.memory_space<vmem>>, vector<1x8x128xf32>
    %771 = vector.shape_cast %770 : vector<1x8x128xf32> to vector<8x128xf32>
    %772 = vector.shape_cast %766 : vector<8x128xf32> to vector<1x8x128xf32>
    tpu.vector_store %arg9[%769, %c0_376, %c0_377], %772 {strides = array<i32>} : memref<8x8x128xf32, #tpu.memory_space<vmem>>, vector<1x8x128xf32>,
    %c3_i32_378 = arith.constant 3 : i32
    %773 = arith.index_cast %c3_i32_378 : i32 to index
    %c0_379 = arith.constant 0 : index
    %c0_380 = arith.constant 0 : index
    %774 = vector.load %arg10[%773, %c0_379, %c0_380] : memref<8x8x512xf32, #tpu.memory_space<vmem>>, vector<1x8x512xf32>
    %775 = vector.shape_cast %774 : vector<1x8x512xf32> to vector<8x512xf32>
    %c0_381 = arith.constant 0 : index
    %c0_382 = arith.constant 0 : index
    %776 = vector.load %arg11[%c0_381, %c0_382] : memref<8x128xf32, #tpu.memory_space<vmem>>, vector<8x128xf32>
    %cst_383 = arith.constant dense<0.000000e+00> : vector<8x512xf32>
    %777 = tpu.matmul %776, %645, %cst_383 {dimension_numbers = #tpu.dot_dimension_numbers<[1], [0], [0], [1], [0, 0, 1, 1], [], []>} : vector<8x128xf32>, vector<128x512xf32>, vector<8x512xf32> -> vector<8x512xf32>
    %778 = arith.addf %775, %777 : vector<8x512xf32>
    %779 = vector.extract_strided_slice %778 {offsets = [0, 0], sizes = [8, 128], strides = [1, 1]} : vector<8x512xf32> to vector<8x128xf32>
    %780 = arith.negf %779 : vector<8x128xf32>
    %781 = math.exp %780 : vector<8x128xf32>
    %cst_384 = arith.constant 1.000000e+00 : f32
    %782 = vector.broadcast %cst_384 : f32 to vector<8x128xf32>
    %783 = arith.addf %782, %781 : vector<8x128xf32>
    %784 = arith.divf %782, %783 : vector<8x128xf32>
    %785 = vector.extract_strided_slice %778 {offsets = [0, 128], sizes = [8, 128], strides = [1, 1]} : vector<8x512xf32> to vector<8x128xf32>
    %786 = arith.negf %785 : vector<8x128xf32>
    %787 = math.exp %786 : vector<8x128xf32>
    %cst_385 = arith.constant 1.000000e+00 : f32
    %788 = vector.broadcast %cst_385 : f32 to vector<8x128xf32>
    %789 = arith.addf %788, %787 : vector<8x128xf32>
    %790 = arith.divf %788, %789 : vector<8x128xf32>
    %791 = vector.extract_strided_slice %778 {offsets = [0, 256], sizes = [8, 128], strides = [1, 1]} : vector<8x512xf32> to vector<8x128xf32>
    %792 = math.tanh %791 : vector<8x128xf32>
    %793 = vector.extract_strided_slice %778 {offsets = [0, 384], sizes = [8, 128], strides = [1, 1]} : vector<8x512xf32> to vector<8x128xf32>
    %794 = arith.negf %793 : vector<8x128xf32>
    %795 = math.exp %794 : vector<8x128xf32>
    %cst_386 = arith.constant 1.000000e+00 : f32
    %796 = vector.broadcast %cst_386 : f32 to vector<8x128xf32>
    %797 = arith.addf %796, %795 : vector<8x128xf32>
    %798 = arith.divf %796, %797 : vector<8x128xf32>
    %c0_387 = arith.constant 0 : index
    %c0_388 = arith.constant 0 : index
    %799 = vector.load %arg12[%c0_387, %c0_388] : memref<8x128xf32, #tpu.memory_space<vmem>>, vector<8x128xf32>
    %800 = arith.mulf %790, %799 : vector<8x128xf32>
    %801 = arith.mulf %784, %792 : vector<8x128xf32>
    %802 = arith.addf %800, %801 : vector<8x128xf32>
    %803 = math.tanh %802 : vector<8x128xf32>
    %804 = arith.mulf %798, %803 : vector<8x128xf32>
    %c0_389 = arith.constant 0 : index
    %c0_390 = arith.constant 0 : index
    %805 = vector.load %arg12[%c0_389, %c0_390] : memref<8x128xf32, #tpu.memory_space<vmem>>, vector<8x128xf32>
    tpu.vector_store %arg12[%c0_389, %c0_390], %802 {strides = array<i32>} : memref<8x128xf32, #tpu.memory_space<vmem>>, vector<8x128xf32>,
    %c0_391 = arith.constant 0 : index
    %c0_392 = arith.constant 0 : index
    %806 = vector.load %arg11[%c0_391, %c0_392] : memref<8x128xf32, #tpu.memory_space<vmem>>, vector<8x128xf32>
    tpu.vector_store %arg11[%c0_391, %c0_392], %804 {strides = array<i32>} : memref<8x128xf32, #tpu.memory_space<vmem>>, vector<8x128xf32>,
    %807 = arith.index_cast %c3_i32_378 : i32 to index
    %c0_393 = arith.constant 0 : index
    %c0_394 = arith.constant 0 : index
    %808 = vector.load %arg9[%807, %c0_393, %c0_394] : memref<8x8x128xf32, #tpu.memory_space<vmem>>, vector<1x8x128xf32>
    %809 = vector.shape_cast %808 : vector<1x8x128xf32> to vector<8x128xf32>
    %810 = vector.shape_cast %804 : vector<8x128xf32> to vector<1x8x128xf32>
    tpu.vector_store %arg9[%807, %c0_393, %c0_394], %810 {strides = array<i32>} : memref<8x8x128xf32, #tpu.memory_space<vmem>>, vector<1x8x128xf32>,
    %c4_i32_395 = arith.constant 4 : i32
    %811 = arith.index_cast %c4_i32_395 : i32 to index
    %c0_396 = arith.constant 0 : index
    %c0_397 = arith.constant 0 : index
    %812 = vector.load %arg10[%811, %c0_396, %c0_397] : memref<8x8x512xf32, #tpu.memory_space<vmem>>, vector<1x8x512xf32>
    %813 = vector.shape_cast %812 : vector<1x8x512xf32> to vector<8x512xf32>
    %c0_398 = arith.constant 0 : index
    %c0_399 = arith.constant 0 : index
    %814 = vector.load %arg11[%c0_398, %c0_399] : memref<8x128xf32, #tpu.memory_space<vmem>>, vector<8x128xf32>
    %cst_400 = arith.constant dense<0.000000e+00> : vector<8x512xf32>
    %815 = tpu.matmul %814, %645, %cst_400 {dimension_numbers = #tpu.dot_dimension_numbers<[1], [0], [0], [1], [0, 0, 1, 1], [], []>} : vector<8x128xf32>, vector<128x512xf32>, vector<8x512xf32> -> vector<8x512xf32>
    %816 = arith.addf %813, %815 : vector<8x512xf32>
    %817 = vector.extract_strided_slice %816 {offsets = [0, 0], sizes = [8, 128], strides = [1, 1]} : vector<8x512xf32> to vector<8x128xf32>
    %818 = arith.negf %817 : vector<8x128xf32>
    %819 = math.exp %818 : vector<8x128xf32>
    %cst_401 = arith.constant 1.000000e+00 : f32
    %820 = vector.broadcast %cst_401 : f32 to vector<8x128xf32>
    %821 = arith.addf %820, %819 : vector<8x128xf32>
    %822 = arith.divf %820, %821 : vector<8x128xf32>
    %823 = vector.extract_strided_slice %816 {offsets = [0, 128], sizes = [8, 128], strides = [1, 1]} : vector<8x512xf32> to vector<8x128xf32>
    %824 = arith.negf %823 : vector<8x128xf32>
    %825 = math.exp %824 : vector<8x128xf32>
    %cst_402 = arith.constant 1.000000e+00 : f32
    %826 = vector.broadcast %cst_402 : f32 to vector<8x128xf32>
    %827 = arith.addf %826, %825 : vector<8x128xf32>
    %828 = arith.divf %826, %827 : vector<8x128xf32>
    %829 = vector.extract_strided_slice %816 {offsets = [0, 256], sizes = [8, 128], strides = [1, 1]} : vector<8x512xf32> to vector<8x128xf32>
    %830 = math.tanh %829 : vector<8x128xf32>
    %831 = vector.extract_strided_slice %816 {offsets = [0, 384], sizes = [8, 128], strides = [1, 1]} : vector<8x512xf32> to vector<8x128xf32>
    %832 = arith.negf %831 : vector<8x128xf32>
    %833 = math.exp %832 : vector<8x128xf32>
    %cst_403 = arith.constant 1.000000e+00 : f32
    %834 = vector.broadcast %cst_403 : f32 to vector<8x128xf32>
    %835 = arith.addf %834, %833 : vector<8x128xf32>
    %836 = arith.divf %834, %835 : vector<8x128xf32>
    %c0_404 = arith.constant 0 : index
    %c0_405 = arith.constant 0 : index
    %837 = vector.load %arg12[%c0_404, %c0_405] : memref<8x128xf32, #tpu.memory_space<vmem>>, vector<8x128xf32>
    %838 = arith.mulf %828, %837 : vector<8x128xf32>
    %839 = arith.mulf %822, %830 : vector<8x128xf32>
    %840 = arith.addf %838, %839 : vector<8x128xf32>
    %841 = math.tanh %840 : vector<8x128xf32>
    %842 = arith.mulf %836, %841 : vector<8x128xf32>
    %c0_406 = arith.constant 0 : index
    %c0_407 = arith.constant 0 : index
    %843 = vector.load %arg12[%c0_406, %c0_407] : memref<8x128xf32, #tpu.memory_space<vmem>>, vector<8x128xf32>
    tpu.vector_store %arg12[%c0_406, %c0_407], %840 {strides = array<i32>} : memref<8x128xf32, #tpu.memory_space<vmem>>, vector<8x128xf32>,
    %c0_408 = arith.constant 0 : index
    %c0_409 = arith.constant 0 : index
    %844 = vector.load %arg11[%c0_408, %c0_409] : memref<8x128xf32, #tpu.memory_space<vmem>>, vector<8x128xf32>
    tpu.vector_store %arg11[%c0_408, %c0_409], %842 {strides = array<i32>} : memref<8x128xf32, #tpu.memory_space<vmem>>, vector<8x128xf32>,
    %845 = arith.index_cast %c4_i32_395 : i32 to index
    %c0_410 = arith.constant 0 : index
    %c0_411 = arith.constant 0 : index
    %846 = vector.load %arg9[%845, %c0_410, %c0_411] : memref<8x8x128xf32, #tpu.memory_space<vmem>>, vector<1x8x128xf32>
    %847 = vector.shape_cast %846 : vector<1x8x128xf32> to vector<8x128xf32>
    %848 = vector.shape_cast %842 : vector<8x128xf32> to vector<1x8x128xf32>
    tpu.vector_store %arg9[%845, %c0_410, %c0_411], %848 {strides = array<i32>} : memref<8x8x128xf32, #tpu.memory_space<vmem>>, vector<1x8x128xf32>,
    %c5_i32_412 = arith.constant 5 : i32
    %849 = arith.index_cast %c5_i32_412 : i32 to index
    %c0_413 = arith.constant 0 : index
    %c0_414 = arith.constant 0 : index
    %850 = vector.load %arg10[%849, %c0_413, %c0_414] : memref<8x8x512xf32, #tpu.memory_space<vmem>>, vector<1x8x512xf32>
    %851 = vector.shape_cast %850 : vector<1x8x512xf32> to vector<8x512xf32>
    %c0_415 = arith.constant 0 : index
    %c0_416 = arith.constant 0 : index
    %852 = vector.load %arg11[%c0_415, %c0_416] : memref<8x128xf32, #tpu.memory_space<vmem>>, vector<8x128xf32>
    %cst_417 = arith.constant dense<0.000000e+00> : vector<8x512xf32>
    %853 = tpu.matmul %852, %645, %cst_417 {dimension_numbers = #tpu.dot_dimension_numbers<[1], [0], [0], [1], [0, 0, 1, 1], [], []>} : vector<8x128xf32>, vector<128x512xf32>, vector<8x512xf32> -> vector<8x512xf32>
    %854 = arith.addf %851, %853 : vector<8x512xf32>
    %855 = vector.extract_strided_slice %854 {offsets = [0, 0], sizes = [8, 128], strides = [1, 1]} : vector<8x512xf32> to vector<8x128xf32>
    %856 = arith.negf %855 : vector<8x128xf32>
    %857 = math.exp %856 : vector<8x128xf32>
    %cst_418 = arith.constant 1.000000e+00 : f32
    %858 = vector.broadcast %cst_418 : f32 to vector<8x128xf32>
    %859 = arith.addf %858, %857 : vector<8x128xf32>
    %860 = arith.divf %858, %859 : vector<8x128xf32>
    %861 = vector.extract_strided_slice %854 {offsets = [0, 128], sizes = [8, 128], strides = [1, 1]} : vector<8x512xf32> to vector<8x128xf32>
    %862 = arith.negf %861 : vector<8x128xf32>
    %863 = math.exp %862 : vector<8x128xf32>
    %cst_419 = arith.constant 1.000000e+00 : f32
    %864 = vector.broadcast %cst_419 : f32 to vector<8x128xf32>
    %865 = arith.addf %864, %863 : vector<8x128xf32>
    %866 = arith.divf %864, %865 : vector<8x128xf32>
    %867 = vector.extract_strided_slice %854 {offsets = [0, 256], sizes = [8, 128], strides = [1, 1]} : vector<8x512xf32> to vector<8x128xf32>
    %868 = math.tanh %867 : vector<8x128xf32>
    %869 = vector.extract_strided_slice %854 {offsets = [0, 384], sizes = [8, 128], strides = [1, 1]} : vector<8x512xf32> to vector<8x128xf32>
    %870 = arith.negf %869 : vector<8x128xf32>
    %871 = math.exp %870 : vector<8x128xf32>
    %cst_420 = arith.constant 1.000000e+00 : f32
    %872 = vector.broadcast %cst_420 : f32 to vector<8x128xf32>
    %873 = arith.addf %872, %871 : vector<8x128xf32>
    %874 = arith.divf %872, %873 : vector<8x128xf32>
    %c0_421 = arith.constant 0 : index
    %c0_422 = arith.constant 0 : index
    %875 = vector.load %arg12[%c0_421, %c0_422] : memref<8x128xf32, #tpu.memory_space<vmem>>, vector<8x128xf32>
    %876 = arith.mulf %866, %875 : vector<8x128xf32>
    %877 = arith.mulf %860, %868 : vector<8x128xf32>
    %878 = arith.addf %876, %877 : vector<8x128xf32>
    %879 = math.tanh %878 : vector<8x128xf32>
    %880 = arith.mulf %874, %879 : vector<8x128xf32>
    %c0_423 = arith.constant 0 : index
    %c0_424 = arith.constant 0 : index
    %881 = vector.load %arg12[%c0_423, %c0_424] : memref<8x128xf32, #tpu.memory_space<vmem>>, vector<8x128xf32>
    tpu.vector_store %arg12[%c0_423, %c0_424], %878 {strides = array<i32>} : memref<8x128xf32, #tpu.memory_space<vmem>>, vector<8x128xf32>,
    %c0_425 = arith.constant 0 : index
    %c0_426 = arith.constant 0 : index
    %882 = vector.load %arg11[%c0_425, %c0_426] : memref<8x128xf32, #tpu.memory_space<vmem>>, vector<8x128xf32>
    tpu.vector_store %arg11[%c0_425, %c0_426], %880 {strides = array<i32>} : memref<8x128xf32, #tpu.memory_space<vmem>>, vector<8x128xf32>,
    %883 = arith.index_cast %c5_i32_412 : i32 to index
    %c0_427 = arith.constant 0 : index
    %c0_428 = arith.constant 0 : index
    %884 = vector.load %arg9[%883, %c0_427, %c0_428] : memref<8x8x128xf32, #tpu.memory_space<vmem>>, vector<1x8x128xf32>
    %885 = vector.shape_cast %884 : vector<1x8x128xf32> to vector<8x128xf32>
    %886 = vector.shape_cast %880 : vector<8x128xf32> to vector<1x8x128xf32>
    tpu.vector_store %arg9[%883, %c0_427, %c0_428], %886 {strides = array<i32>} : memref<8x8x128xf32, #tpu.memory_space<vmem>>, vector<1x8x128xf32>,
    %c6_i32_429 = arith.constant 6 : i32
    %887 = arith.index_cast %c6_i32_429 : i32 to index
    %c0_430 = arith.constant 0 : index
    %c0_431 = arith.constant 0 : index
    %888 = vector.load %arg10[%887, %c0_430, %c0_431] : memref<8x8x512xf32, #tpu.memory_space<vmem>>, vector<1x8x512xf32>
    %889 = vector.shape_cast %888 : vector<1x8x512xf32> to vector<8x512xf32>
    %c0_432 = arith.constant 0 : index
    %c0_433 = arith.constant 0 : index
    %890 = vector.load %arg11[%c0_432, %c0_433] : memref<8x128xf32, #tpu.memory_space<vmem>>, vector<8x128xf32>
    %cst_434 = arith.constant dense<0.000000e+00> : vector<8x512xf32>
    %891 = tpu.matmul %890, %645, %cst_434 {dimension_numbers = #tpu.dot_dimension_numbers<[1], [0], [0], [1], [0, 0, 1, 1], [], []>} : vector<8x128xf32>, vector<128x512xf32>, vector<8x512xf32> -> vector<8x512xf32>
    %892 = arith.addf %889, %891 : vector<8x512xf32>
    %893 = vector.extract_strided_slice %892 {offsets = [0, 0], sizes = [8, 128], strides = [1, 1]} : vector<8x512xf32> to vector<8x128xf32>
    %894 = arith.negf %893 : vector<8x128xf32>
    %895 = math.exp %894 : vector<8x128xf32>
    %cst_435 = arith.constant 1.000000e+00 : f32
    %896 = vector.broadcast %cst_435 : f32 to vector<8x128xf32>
    %897 = arith.addf %896, %895 : vector<8x128xf32>
    %898 = arith.divf %896, %897 : vector<8x128xf32>
    %899 = vector.extract_strided_slice %892 {offsets = [0, 128], sizes = [8, 128], strides = [1, 1]} : vector<8x512xf32> to vector<8x128xf32>
    %900 = arith.negf %899 : vector<8x128xf32>
    %901 = math.exp %900 : vector<8x128xf32>
    %cst_436 = arith.constant 1.000000e+00 : f32
    %902 = vector.broadcast %cst_436 : f32 to vector<8x128xf32>
    %903 = arith.addf %902, %901 : vector<8x128xf32>
    %904 = arith.divf %902, %903 : vector<8x128xf32>
    %905 = vector.extract_strided_slice %892 {offsets = [0, 256], sizes = [8, 128], strides = [1, 1]} : vector<8x512xf32> to vector<8x128xf32>
    %906 = math.tanh %905 : vector<8x128xf32>
    %907 = vector.extract_strided_slice %892 {offsets = [0, 384], sizes = [8, 128], strides = [1, 1]} : vector<8x512xf32> to vector<8x128xf32>
    %908 = arith.negf %907 : vector<8x128xf32>
    %909 = math.exp %908 : vector<8x128xf32>
    %cst_437 = arith.constant 1.000000e+00 : f32
    %910 = vector.broadcast %cst_437 : f32 to vector<8x128xf32>
    %911 = arith.addf %910, %909 : vector<8x128xf32>
    %912 = arith.divf %910, %911 : vector<8x128xf32>
    %c0_438 = arith.constant 0 : index
    %c0_439 = arith.constant 0 : index
    %913 = vector.load %arg12[%c0_438, %c0_439] : memref<8x128xf32, #tpu.memory_space<vmem>>, vector<8x128xf32>
    %914 = arith.mulf %904, %913 : vector<8x128xf32>
    %915 = arith.mulf %898, %906 : vector<8x128xf32>
    %916 = arith.addf %914, %915 : vector<8x128xf32>
    %917 = math.tanh %916 : vector<8x128xf32>
    %918 = arith.mulf %912, %917 : vector<8x128xf32>
    %c0_440 = arith.constant 0 : index
    %c0_441 = arith.constant 0 : index
    %919 = vector.load %arg12[%c0_440, %c0_441] : memref<8x128xf32, #tpu.memory_space<vmem>>, vector<8x128xf32>
    tpu.vector_store %arg12[%c0_440, %c0_441], %916 {strides = array<i32>} : memref<8x128xf32, #tpu.memory_space<vmem>>, vector<8x128xf32>,
    %c0_442 = arith.constant 0 : index
    %c0_443 = arith.constant 0 : index
    %920 = vector.load %arg11[%c0_442, %c0_443] : memref<8x128xf32, #tpu.memory_space<vmem>>, vector<8x128xf32>
    tpu.vector_store %arg11[%c0_442, %c0_443], %918 {strides = array<i32>} : memref<8x128xf32, #tpu.memory_space<vmem>>, vector<8x128xf32>,
    %921 = arith.index_cast %c6_i32_429 : i32 to index
    %c0_444 = arith.constant 0 : index
    %c0_445 = arith.constant 0 : index
    %922 = vector.load %arg9[%921, %c0_444, %c0_445] : memref<8x8x128xf32, #tpu.memory_space<vmem>>, vector<1x8x128xf32>
    %923 = vector.shape_cast %922 : vector<1x8x128xf32> to vector<8x128xf32>
    %924 = vector.shape_cast %918 : vector<8x128xf32> to vector<1x8x128xf32>
    tpu.vector_store %arg9[%921, %c0_444, %c0_445], %924 {strides = array<i32>} : memref<8x8x128xf32, #tpu.memory_space<vmem>>, vector<1x8x128xf32>,
    %c7_i32_446 = arith.constant 7 : i32
    %925 = arith.index_cast %c7_i32_446 : i32 to index
    %c0_447 = arith.constant 0 : index
    %c0_448 = arith.constant 0 : index
    %926 = vector.load %arg10[%925, %c0_447, %c0_448] : memref<8x8x512xf32, #tpu.memory_space<vmem>>, vector<1x8x512xf32>
    %927 = vector.shape_cast %926 : vector<1x8x512xf32> to vector<8x512xf32>
    %c0_449 = arith.constant 0 : index
    %c0_450 = arith.constant 0 : index
    %928 = vector.load %arg11[%c0_449, %c0_450] : memref<8x128xf32, #tpu.memory_space<vmem>>, vector<8x128xf32>
    %cst_451 = arith.constant dense<0.000000e+00> : vector<8x512xf32>
    %929 = tpu.matmul %928, %645, %cst_451 {dimension_numbers = #tpu.dot_dimension_numbers<[1], [0], [0], [1], [0, 0, 1, 1], [], []>} : vector<8x128xf32>, vector<128x512xf32>, vector<8x512xf32> -> vector<8x512xf32>
    %930 = arith.addf %927, %929 : vector<8x512xf32>
    %931 = vector.extract_strided_slice %930 {offsets = [0, 0], sizes = [8, 128], strides = [1, 1]} : vector<8x512xf32> to vector<8x128xf32>
    %932 = arith.negf %931 : vector<8x128xf32>
    %933 = math.exp %932 : vector<8x128xf32>
    %cst_452 = arith.constant 1.000000e+00 : f32
    %934 = vector.broadcast %cst_452 : f32 to vector<8x128xf32>
    %935 = arith.addf %934, %933 : vector<8x128xf32>
    %936 = arith.divf %934, %935 : vector<8x128xf32>
    %937 = vector.extract_strided_slice %930 {offsets = [0, 128], sizes = [8, 128], strides = [1, 1]} : vector<8x512xf32> to vector<8x128xf32>
    %938 = arith.negf %937 : vector<8x128xf32>
    %939 = math.exp %938 : vector<8x128xf32>
    %cst_453 = arith.constant 1.000000e+00 : f32
    %940 = vector.broadcast %cst_453 : f32 to vector<8x128xf32>
    %941 = arith.addf %940, %939 : vector<8x128xf32>
    %942 = arith.divf %940, %941 : vector<8x128xf32>
    %943 = vector.extract_strided_slice %930 {offsets = [0, 256], sizes = [8, 128], strides = [1, 1]} : vector<8x512xf32> to vector<8x128xf32>
    %944 = math.tanh %943 : vector<8x128xf32>
    %945 = vector.extract_strided_slice %930 {offsets = [0, 384], sizes = [8, 128], strides = [1, 1]} : vector<8x512xf32> to vector<8x128xf32>
    %946 = arith.negf %945 : vector<8x128xf32>
    %947 = math.exp %946 : vector<8x128xf32>
    %cst_454 = arith.constant 1.000000e+00 : f32
    %948 = vector.broadcast %cst_454 : f32 to vector<8x128xf32>
    %949 = arith.addf %948, %947 : vector<8x128xf32>
    %950 = arith.divf %948, %949 : vector<8x128xf32>
    %c0_455 = arith.constant 0 : index
    %c0_456 = arith.constant 0 : index
    %951 = vector.load %arg12[%c0_455, %c0_456] : memref<8x128xf32, #tpu.memory_space<vmem>>, vector<8x128xf32>
    %952 = arith.mulf %942, %951 : vector<8x128xf32>
    %953 = arith.mulf %936, %944 : vector<8x128xf32>
    %954 = arith.addf %952, %953 : vector<8x128xf32>
    %955 = math.tanh %954 : vector<8x128xf32>
    %956 = arith.mulf %950, %955 : vector<8x128xf32>
    %c0_457 = arith.constant 0 : index
    %c0_458 = arith.constant 0 : index
    %957 = vector.load %arg12[%c0_457, %c0_458] : memref<8x128xf32, #tpu.memory_space<vmem>>, vector<8x128xf32>
    tpu.vector_store %arg12[%c0_457, %c0_458], %954 {strides = array<i32>} : memref<8x128xf32, #tpu.memory_space<vmem>>, vector<8x128xf32>,
    %c0_459 = arith.constant 0 : index
    %c0_460 = arith.constant 0 : index
    %958 = vector.load %arg11[%c0_459, %c0_460] : memref<8x128xf32, #tpu.memory_space<vmem>>, vector<8x128xf32>
    tpu.vector_store %arg11[%c0_459, %c0_460], %956 {strides = array<i32>} : memref<8x128xf32, #tpu.memory_space<vmem>>, vector<8x128xf32>,
    %959 = arith.index_cast %c7_i32_446 : i32 to index
    %c0_461 = arith.constant 0 : index
    %c0_462 = arith.constant 0 : index
    %960 = vector.load %arg9[%959, %c0_461, %c0_462] : memref<8x8x128xf32, #tpu.memory_space<vmem>>, vector<1x8x128xf32>
    %961 = vector.shape_cast %960 : vector<1x8x128xf32> to vector<8x128xf32>
    %962 = vector.shape_cast %956 : vector<8x128xf32> to vector<1x8x128xf32>
    tpu.vector_store %arg9[%959, %c0_461, %c0_462], %962 {strides = array<i32>} : memref<8x8x128xf32, #tpu.memory_space<vmem>>, vector<1x8x128xf32>,
    %c8_i32_463 = arith.constant 8 : i32
    %c3 = arith.constant 3 : index
    %c0_464 = arith.constant 0 : index
    %c0_465 = arith.constant 0 : index
    %963 = vector.load %arg3[%c3, %c0_464, %c0_465] : memref<4x128x512xf32, #tpu.memory_space<vmem>>, vector<1x128x512xf32>
    %964 = vector.shape_cast %963 : vector<1x128x512xf32> to vector<128x512xf32>
    %c3_466 = arith.constant 3 : index
    %c0_467 = arith.constant 0 : index
    %c0_468 = arith.constant 0 : index
    %965 = vector.load %arg4[%c3_466, %c0_467, %c0_468] : memref<4x128x512xf32, #tpu.memory_space<vmem>>, vector<1x128x512xf32>
    %966 = vector.shape_cast %965 : vector<1x128x512xf32> to vector<128x512xf32>
    %c3_469 = arith.constant 3 : index
    %c0_470 = arith.constant 0 : index
    %c0_471 = arith.constant 0 : index
    %967 = vector.load %arg5[%c3_469, %c0_470, %c0_471] : memref<4x1x512xf32, #tpu.memory_space<vmem>>, vector<1x1x512xf32>
    %968 = vector.shape_cast %967 : vector<1x1x512xf32> to vector<1x512xf32>
    %c0_472 = arith.constant 0 : index
    %c0_473 = arith.constant 0 : index
    %c0_474 = arith.constant 0 : index
    %969 = vector.load %arg9[%c0_472, %c0_473, %c0_474] : memref<8x8x128xf32, #tpu.memory_space<vmem>>, vector<8x8x128xf32>
    %970 = vector.shape_cast %969 : vector<8x8x128xf32> to vector<64x128xf32>
    %cst_475 = arith.constant dense<0.000000e+00> : vector<64x512xf32>
    %971 = tpu.matmul %970, %964, %cst_475 {dimension_numbers = #tpu.dot_dimension_numbers<[1], [0], [0], [1], [0, 0, 1, 1], [], []>} : vector<64x128xf32>, vector<128x512xf32>, vector<64x512xf32> -> vector<64x512xf32>
    %972 = vector.broadcast %968 : vector<1x512xf32> to vector<64x512xf32>
    %973 = arith.addf %971, %972 : vector<64x512xf32>
    %974 = vector.shape_cast %973 : vector<64x512xf32> to vector<8x8x512xf32>
    %c0_476 = arith.constant 0 : index
    %c0_477 = arith.constant 0 : index
    %c0_478 = arith.constant 0 : index
    %975 = vector.load %arg10[%c0_476, %c0_477, %c0_478] : memref<8x8x512xf32, #tpu.memory_space<vmem>>, vector<8x8x512xf32>
    tpu.vector_store %arg10[%c0_476, %c0_477, %c0_478], %974 {strides = array<i32>} : memref<8x8x512xf32, #tpu.memory_space<vmem>>, vector<8x8x512xf32>,
    %cst_479 = arith.constant 0.000000e+00 : f32
    %976 = vector.broadcast %cst_479 : f32 to vector<8x128xf32>
    %c0_480 = arith.constant 0 : index
    %c0_481 = arith.constant 0 : index
    %977 = vector.load %arg11[%c0_480, %c0_481] : memref<8x128xf32, #tpu.memory_space<vmem>>, vector<8x128xf32>
    tpu.vector_store %arg11[%c0_480, %c0_481], %976 {strides = array<i32>} : memref<8x128xf32, #tpu.memory_space<vmem>>, vector<8x128xf32>,
    %cst_482 = arith.constant 0.000000e+00 : f32
    %978 = vector.broadcast %cst_482 : f32 to vector<8x128xf32>
    %c0_483 = arith.constant 0 : index
    %c0_484 = arith.constant 0 : index
    %979 = vector.load %arg12[%c0_483, %c0_484] : memref<8x128xf32, #tpu.memory_space<vmem>>, vector<8x128xf32>
    tpu.vector_store %arg12[%c0_483, %c0_484], %978 {strides = array<i32>} : memref<8x128xf32, #tpu.memory_space<vmem>>, vector<8x128xf32>,
    %c0_i32_485 = arith.constant 0 : i32
    %980 = arith.index_cast %c0_i32_485 : i32 to index
    %c0_486 = arith.constant 0 : index
    %c0_487 = arith.constant 0 : index
    %981 = vector.load %arg10[%980, %c0_486, %c0_487] : memref<8x8x512xf32, #tpu.memory_space<vmem>>, vector<1x8x512xf32>
    %982 = vector.shape_cast %981 : vector<1x8x512xf32> to vector<8x512xf32>
    %c0_488 = arith.constant 0 : index
    %c0_489 = arith.constant 0 : index
    %983 = vector.load %arg11[%c0_488, %c0_489] : memref<8x128xf32, #tpu.memory_space<vmem>>, vector<8x128xf32>
    %cst_490 = arith.constant dense<0.000000e+00> : vector<8x512xf32>
    %984 = tpu.matmul %983, %966, %cst_490 {dimension_numbers = #tpu.dot_dimension_numbers<[1], [0], [0], [1], [0, 0, 1, 1], [], []>} : vector<8x128xf32>, vector<128x512xf32>, vector<8x512xf32> -> vector<8x512xf32>
    %985 = arith.addf %982, %984 : vector<8x512xf32>
    %986 = vector.extract_strided_slice %985 {offsets = [0, 0], sizes = [8, 128], strides = [1, 1]} : vector<8x512xf32> to vector<8x128xf32>
    %987 = arith.negf %986 : vector<8x128xf32>
    %988 = math.exp %987 : vector<8x128xf32>
    %cst_491 = arith.constant 1.000000e+00 : f32
    %989 = vector.broadcast %cst_491 : f32 to vector<8x128xf32>
    %990 = arith.addf %989, %988 : vector<8x128xf32>
    %991 = arith.divf %989, %990 : vector<8x128xf32>
    %992 = vector.extract_strided_slice %985 {offsets = [0, 128], sizes = [8, 128], strides = [1, 1]} : vector<8x512xf32> to vector<8x128xf32>
    %993 = arith.negf %992 : vector<8x128xf32>
    %994 = math.exp %993 : vector<8x128xf32>
    %cst_492 = arith.constant 1.000000e+00 : f32
    %995 = vector.broadcast %cst_492 : f32 to vector<8x128xf32>
    %996 = arith.addf %995, %994 : vector<8x128xf32>
    %997 = arith.divf %995, %996 : vector<8x128xf32>
    %998 = vector.extract_strided_slice %985 {offsets = [0, 256], sizes = [8, 128], strides = [1, 1]} : vector<8x512xf32> to vector<8x128xf32>
    %999 = math.tanh %998 : vector<8x128xf32>
    %1000 = vector.extract_strided_slice %985 {offsets = [0, 384], sizes = [8, 128], strides = [1, 1]} : vector<8x512xf32> to vector<8x128xf32>
    %1001 = arith.negf %1000 : vector<8x128xf32>
    %1002 = math.exp %1001 : vector<8x128xf32>
    %cst_493 = arith.constant 1.000000e+00 : f32
    %1003 = vector.broadcast %cst_493 : f32 to vector<8x128xf32>
    %1004 = arith.addf %1003, %1002 : vector<8x128xf32>
    %1005 = arith.divf %1003, %1004 : vector<8x128xf32>
    %c0_494 = arith.constant 0 : index
    %c0_495 = arith.constant 0 : index
    %1006 = vector.load %arg12[%c0_494, %c0_495] : memref<8x128xf32, #tpu.memory_space<vmem>>, vector<8x128xf32>
    %1007 = arith.mulf %997, %1006 : vector<8x128xf32>
    %1008 = arith.mulf %991, %999 : vector<8x128xf32>
    %1009 = arith.addf %1007, %1008 : vector<8x128xf32>
    %1010 = math.tanh %1009 : vector<8x128xf32>
    %1011 = arith.mulf %1005, %1010 : vector<8x128xf32>
    %c0_496 = arith.constant 0 : index
    %c0_497 = arith.constant 0 : index
    %1012 = vector.load %arg12[%c0_496, %c0_497] : memref<8x128xf32, #tpu.memory_space<vmem>>, vector<8x128xf32>
    tpu.vector_store %arg12[%c0_496, %c0_497], %1009 {strides = array<i32>} : memref<8x128xf32, #tpu.memory_space<vmem>>, vector<8x128xf32>,
    %c0_498 = arith.constant 0 : index
    %c0_499 = arith.constant 0 : index
    %1013 = vector.load %arg11[%c0_498, %c0_499] : memref<8x128xf32, #tpu.memory_space<vmem>>, vector<8x128xf32>
    tpu.vector_store %arg11[%c0_498, %c0_499], %1011 {strides = array<i32>} : memref<8x128xf32, #tpu.memory_space<vmem>>, vector<8x128xf32>,
    %1014 = arith.index_cast %c0_i32_485 : i32 to index
    %c0_500 = arith.constant 0 : index
    %c0_501 = arith.constant 0 : index
    %1015 = vector.load %arg9[%1014, %c0_500, %c0_501] : memref<8x8x128xf32, #tpu.memory_space<vmem>>, vector<1x8x128xf32>
    %1016 = vector.shape_cast %1015 : vector<1x8x128xf32> to vector<8x128xf32>
    %1017 = vector.shape_cast %1011 : vector<8x128xf32> to vector<1x8x128xf32>
    tpu.vector_store %arg9[%1014, %c0_500, %c0_501], %1017 {strides = array<i32>} : memref<8x8x128xf32, #tpu.memory_space<vmem>>, vector<1x8x128xf32>,
    %c1_i32_502 = arith.constant 1 : i32
    %1018 = arith.index_cast %c1_i32_502 : i32 to index
    %c0_503 = arith.constant 0 : index
    %c0_504 = arith.constant 0 : index
    %1019 = vector.load %arg10[%1018, %c0_503, %c0_504] : memref<8x8x512xf32, #tpu.memory_space<vmem>>, vector<1x8x512xf32>
    %1020 = vector.shape_cast %1019 : vector<1x8x512xf32> to vector<8x512xf32>
    %c0_505 = arith.constant 0 : index
    %c0_506 = arith.constant 0 : index
    %1021 = vector.load %arg11[%c0_505, %c0_506] : memref<8x128xf32, #tpu.memory_space<vmem>>, vector<8x128xf32>
    %cst_507 = arith.constant dense<0.000000e+00> : vector<8x512xf32>
    %1022 = tpu.matmul %1021, %966, %cst_507 {dimension_numbers = #tpu.dot_dimension_numbers<[1], [0], [0], [1], [0, 0, 1, 1], [], []>} : vector<8x128xf32>, vector<128x512xf32>, vector<8x512xf32> -> vector<8x512xf32>
    %1023 = arith.addf %1020, %1022 : vector<8x512xf32>
    %1024 = vector.extract_strided_slice %1023 {offsets = [0, 0], sizes = [8, 128], strides = [1, 1]} : vector<8x512xf32> to vector<8x128xf32>
    %1025 = arith.negf %1024 : vector<8x128xf32>
    %1026 = math.exp %1025 : vector<8x128xf32>
    %cst_508 = arith.constant 1.000000e+00 : f32
    %1027 = vector.broadcast %cst_508 : f32 to vector<8x128xf32>
    %1028 = arith.addf %1027, %1026 : vector<8x128xf32>
    %1029 = arith.divf %1027, %1028 : vector<8x128xf32>
    %1030 = vector.extract_strided_slice %1023 {offsets = [0, 128], sizes = [8, 128], strides = [1, 1]} : vector<8x512xf32> to vector<8x128xf32>
    %1031 = arith.negf %1030 : vector<8x128xf32>
    %1032 = math.exp %1031 : vector<8x128xf32>
    %cst_509 = arith.constant 1.000000e+00 : f32
    %1033 = vector.broadcast %cst_509 : f32 to vector<8x128xf32>
    %1034 = arith.addf %1033, %1032 : vector<8x128xf32>
    %1035 = arith.divf %1033, %1034 : vector<8x128xf32>
    %1036 = vector.extract_strided_slice %1023 {offsets = [0, 256], sizes = [8, 128], strides = [1, 1]} : vector<8x512xf32> to vector<8x128xf32>
    %1037 = math.tanh %1036 : vector<8x128xf32>
    %1038 = vector.extract_strided_slice %1023 {offsets = [0, 384], sizes = [8, 128], strides = [1, 1]} : vector<8x512xf32> to vector<8x128xf32>
    %1039 = arith.negf %1038 : vector<8x128xf32>
    %1040 = math.exp %1039 : vector<8x128xf32>
    %cst_510 = arith.constant 1.000000e+00 : f32
    %1041 = vector.broadcast %cst_510 : f32 to vector<8x128xf32>
    %1042 = arith.addf %1041, %1040 : vector<8x128xf32>
    %1043 = arith.divf %1041, %1042 : vector<8x128xf32>
    %c0_511 = arith.constant 0 : index
    %c0_512 = arith.constant 0 : index
    %1044 = vector.load %arg12[%c0_511, %c0_512] : memref<8x128xf32, #tpu.memory_space<vmem>>, vector<8x128xf32>
    %1045 = arith.mulf %1035, %1044 : vector<8x128xf32>
    %1046 = arith.mulf %1029, %1037 : vector<8x128xf32>
    %1047 = arith.addf %1045, %1046 : vector<8x128xf32>
    %1048 = math.tanh %1047 : vector<8x128xf32>
    %1049 = arith.mulf %1043, %1048 : vector<8x128xf32>
    %c0_513 = arith.constant 0 : index
    %c0_514 = arith.constant 0 : index
    %1050 = vector.load %arg12[%c0_513, %c0_514] : memref<8x128xf32, #tpu.memory_space<vmem>>, vector<8x128xf32>
    tpu.vector_store %arg12[%c0_513, %c0_514], %1047 {strides = array<i32>} : memref<8x128xf32, #tpu.memory_space<vmem>>, vector<8x128xf32>,
    %c0_515 = arith.constant 0 : index
    %c0_516 = arith.constant 0 : index
    %1051 = vector.load %arg11[%c0_515, %c0_516] : memref<8x128xf32, #tpu.memory_space<vmem>>, vector<8x128xf32>
    tpu.vector_store %arg11[%c0_515, %c0_516], %1049 {strides = array<i32>} : memref<8x128xf32, #tpu.memory_space<vmem>>, vector<8x128xf32>,
    %1052 = arith.index_cast %c1_i32_502 : i32 to index
    %c0_517 = arith.constant 0 : index
    %c0_518 = arith.constant 0 : index
    %1053 = vector.load %arg9[%1052, %c0_517, %c0_518] : memref<8x8x128xf32, #tpu.memory_space<vmem>>, vector<1x8x128xf32>
    %1054 = vector.shape_cast %1053 : vector<1x8x128xf32> to vector<8x128xf32>
    %1055 = vector.shape_cast %1049 : vector<8x128xf32> to vector<1x8x128xf32>
    tpu.vector_store %arg9[%1052, %c0_517, %c0_518], %1055 {strides = array<i32>} : memref<8x8x128xf32, #tpu.memory_space<vmem>>, vector<1x8x128xf32>,
    %c2_i32_519 = arith.constant 2 : i32
    %1056 = arith.index_cast %c2_i32_519 : i32 to index
    %c0_520 = arith.constant 0 : index
    %c0_521 = arith.constant 0 : index
    %1057 = vector.load %arg10[%1056, %c0_520, %c0_521] : memref<8x8x512xf32, #tpu.memory_space<vmem>>, vector<1x8x512xf32>
    %1058 = vector.shape_cast %1057 : vector<1x8x512xf32> to vector<8x512xf32>
    %c0_522 = arith.constant 0 : index
    %c0_523 = arith.constant 0 : index
    %1059 = vector.load %arg11[%c0_522, %c0_523] : memref<8x128xf32, #tpu.memory_space<vmem>>, vector<8x128xf32>
    %cst_524 = arith.constant dense<0.000000e+00> : vector<8x512xf32>
    %1060 = tpu.matmul %1059, %966, %cst_524 {dimension_numbers = #tpu.dot_dimension_numbers<[1], [0], [0], [1], [0, 0, 1, 1], [], []>} : vector<8x128xf32>, vector<128x512xf32>, vector<8x512xf32> -> vector<8x512xf32>
    %1061 = arith.addf %1058, %1060 : vector<8x512xf32>
    %1062 = vector.extract_strided_slice %1061 {offsets = [0, 0], sizes = [8, 128], strides = [1, 1]} : vector<8x512xf32> to vector<8x128xf32>
    %1063 = arith.negf %1062 : vector<8x128xf32>
    %1064 = math.exp %1063 : vector<8x128xf32>
    %cst_525 = arith.constant 1.000000e+00 : f32
    %1065 = vector.broadcast %cst_525 : f32 to vector<8x128xf32>
    %1066 = arith.addf %1065, %1064 : vector<8x128xf32>
    %1067 = arith.divf %1065, %1066 : vector<8x128xf32>
    %1068 = vector.extract_strided_slice %1061 {offsets = [0, 128], sizes = [8, 128], strides = [1, 1]} : vector<8x512xf32> to vector<8x128xf32>
    %1069 = arith.negf %1068 : vector<8x128xf32>
    %1070 = math.exp %1069 : vector<8x128xf32>
    %cst_526 = arith.constant 1.000000e+00 : f32
    %1071 = vector.broadcast %cst_526 : f32 to vector<8x128xf32>
    %1072 = arith.addf %1071, %1070 : vector<8x128xf32>
    %1073 = arith.divf %1071, %1072 : vector<8x128xf32>
    %1074 = vector.extract_strided_slice %1061 {offsets = [0, 256], sizes = [8, 128], strides = [1, 1]} : vector<8x512xf32> to vector<8x128xf32>
    %1075 = math.tanh %1074 : vector<8x128xf32>
    %1076 = vector.extract_strided_slice %1061 {offsets = [0, 384], sizes = [8, 128], strides = [1, 1]} : vector<8x512xf32> to vector<8x128xf32>
    %1077 = arith.negf %1076 : vector<8x128xf32>
    %1078 = math.exp %1077 : vector<8x128xf32>
    %cst_527 = arith.constant 1.000000e+00 : f32
    %1079 = vector.broadcast %cst_527 : f32 to vector<8x128xf32>
    %1080 = arith.addf %1079, %1078 : vector<8x128xf32>
    %1081 = arith.divf %1079, %1080 : vector<8x128xf32>
    %c0_528 = arith.constant 0 : index
    %c0_529 = arith.constant 0 : index
    %1082 = vector.load %arg12[%c0_528, %c0_529] : memref<8x128xf32, #tpu.memory_space<vmem>>, vector<8x128xf32>
    %1083 = arith.mulf %1073, %1082 : vector<8x128xf32>
    %1084 = arith.mulf %1067, %1075 : vector<8x128xf32>
    %1085 = arith.addf %1083, %1084 : vector<8x128xf32>
    %1086 = math.tanh %1085 : vector<8x128xf32>
    %1087 = arith.mulf %1081, %1086 : vector<8x128xf32>
    %c0_530 = arith.constant 0 : index
    %c0_531 = arith.constant 0 : index
    %1088 = vector.load %arg12[%c0_530, %c0_531] : memref<8x128xf32, #tpu.memory_space<vmem>>, vector<8x128xf32>
    tpu.vector_store %arg12[%c0_530, %c0_531], %1085 {strides = array<i32>} : memref<8x128xf32, #tpu.memory_space<vmem>>, vector<8x128xf32>,
    %c0_532 = arith.constant 0 : index
    %c0_533 = arith.constant 0 : index
    %1089 = vector.load %arg11[%c0_532, %c0_533] : memref<8x128xf32, #tpu.memory_space<vmem>>, vector<8x128xf32>
    tpu.vector_store %arg11[%c0_532, %c0_533], %1087 {strides = array<i32>} : memref<8x128xf32, #tpu.memory_space<vmem>>, vector<8x128xf32>,
    %1090 = arith.index_cast %c2_i32_519 : i32 to index
    %c0_534 = arith.constant 0 : index
    %c0_535 = arith.constant 0 : index
    %1091 = vector.load %arg9[%1090, %c0_534, %c0_535] : memref<8x8x128xf32, #tpu.memory_space<vmem>>, vector<1x8x128xf32>
    %1092 = vector.shape_cast %1091 : vector<1x8x128xf32> to vector<8x128xf32>
    %1093 = vector.shape_cast %1087 : vector<8x128xf32> to vector<1x8x128xf32>
    tpu.vector_store %arg9[%1090, %c0_534, %c0_535], %1093 {strides = array<i32>} : memref<8x8x128xf32, #tpu.memory_space<vmem>>, vector<1x8x128xf32>,
    %c3_i32_536 = arith.constant 3 : i32
    %1094 = arith.index_cast %c3_i32_536 : i32 to index
    %c0_537 = arith.constant 0 : index
    %c0_538 = arith.constant 0 : index
    %1095 = vector.load %arg10[%1094, %c0_537, %c0_538] : memref<8x8x512xf32, #tpu.memory_space<vmem>>, vector<1x8x512xf32>
    %1096 = vector.shape_cast %1095 : vector<1x8x512xf32> to vector<8x512xf32>
    %c0_539 = arith.constant 0 : index
    %c0_540 = arith.constant 0 : index
    %1097 = vector.load %arg11[%c0_539, %c0_540] : memref<8x128xf32, #tpu.memory_space<vmem>>, vector<8x128xf32>
    %cst_541 = arith.constant dense<0.000000e+00> : vector<8x512xf32>
    %1098 = tpu.matmul %1097, %966, %cst_541 {dimension_numbers = #tpu.dot_dimension_numbers<[1], [0], [0], [1], [0, 0, 1, 1], [], []>} : vector<8x128xf32>, vector<128x512xf32>, vector<8x512xf32> -> vector<8x512xf32>
    %1099 = arith.addf %1096, %1098 : vector<8x512xf32>
    %1100 = vector.extract_strided_slice %1099 {offsets = [0, 0], sizes = [8, 128], strides = [1, 1]} : vector<8x512xf32> to vector<8x128xf32>
    %1101 = arith.negf %1100 : vector<8x128xf32>
    %1102 = math.exp %1101 : vector<8x128xf32>
    %cst_542 = arith.constant 1.000000e+00 : f32
    %1103 = vector.broadcast %cst_542 : f32 to vector<8x128xf32>
    %1104 = arith.addf %1103, %1102 : vector<8x128xf32>
    %1105 = arith.divf %1103, %1104 : vector<8x128xf32>
    %1106 = vector.extract_strided_slice %1099 {offsets = [0, 128], sizes = [8, 128], strides = [1, 1]} : vector<8x512xf32> to vector<8x128xf32>
    %1107 = arith.negf %1106 : vector<8x128xf32>
    %1108 = math.exp %1107 : vector<8x128xf32>
    %cst_543 = arith.constant 1.000000e+00 : f32
    %1109 = vector.broadcast %cst_543 : f32 to vector<8x128xf32>
    %1110 = arith.addf %1109, %1108 : vector<8x128xf32>
    %1111 = arith.divf %1109, %1110 : vector<8x128xf32>
    %1112 = vector.extract_strided_slice %1099 {offsets = [0, 256], sizes = [8, 128], strides = [1, 1]} : vector<8x512xf32> to vector<8x128xf32>
    %1113 = math.tanh %1112 : vector<8x128xf32>
    %1114 = vector.extract_strided_slice %1099 {offsets = [0, 384], sizes = [8, 128], strides = [1, 1]} : vector<8x512xf32> to vector<8x128xf32>
    %1115 = arith.negf %1114 : vector<8x128xf32>
    %1116 = math.exp %1115 : vector<8x128xf32>
    %cst_544 = arith.constant 1.000000e+00 : f32
    %1117 = vector.broadcast %cst_544 : f32 to vector<8x128xf32>
    %1118 = arith.addf %1117, %1116 : vector<8x128xf32>
    %1119 = arith.divf %1117, %1118 : vector<8x128xf32>
    %c0_545 = arith.constant 0 : index
    %c0_546 = arith.constant 0 : index
    %1120 = vector.load %arg12[%c0_545, %c0_546] : memref<8x128xf32, #tpu.memory_space<vmem>>, vector<8x128xf32>
    %1121 = arith.mulf %1111, %1120 : vector<8x128xf32>
    %1122 = arith.mulf %1105, %1113 : vector<8x128xf32>
    %1123 = arith.addf %1121, %1122 : vector<8x128xf32>
    %1124 = math.tanh %1123 : vector<8x128xf32>
    %1125 = arith.mulf %1119, %1124 : vector<8x128xf32>
    %c0_547 = arith.constant 0 : index
    %c0_548 = arith.constant 0 : index
    %1126 = vector.load %arg12[%c0_547, %c0_548] : memref<8x128xf32, #tpu.memory_space<vmem>>, vector<8x128xf32>
    tpu.vector_store %arg12[%c0_547, %c0_548], %1123 {strides = array<i32>} : memref<8x128xf32, #tpu.memory_space<vmem>>, vector<8x128xf32>,
    %c0_549 = arith.constant 0 : index
    %c0_550 = arith.constant 0 : index
    %1127 = vector.load %arg11[%c0_549, %c0_550] : memref<8x128xf32, #tpu.memory_space<vmem>>, vector<8x128xf32>
    tpu.vector_store %arg11[%c0_549, %c0_550], %1125 {strides = array<i32>} : memref<8x128xf32, #tpu.memory_space<vmem>>, vector<8x128xf32>,
    %1128 = arith.index_cast %c3_i32_536 : i32 to index
    %c0_551 = arith.constant 0 : index
    %c0_552 = arith.constant 0 : index
    %1129 = vector.load %arg9[%1128, %c0_551, %c0_552] : memref<8x8x128xf32, #tpu.memory_space<vmem>>, vector<1x8x128xf32>
    %1130 = vector.shape_cast %1129 : vector<1x8x128xf32> to vector<8x128xf32>
    %1131 = vector.shape_cast %1125 : vector<8x128xf32> to vector<1x8x128xf32>
    tpu.vector_store %arg9[%1128, %c0_551, %c0_552], %1131 {strides = array<i32>} : memref<8x8x128xf32, #tpu.memory_space<vmem>>, vector<1x8x128xf32>,
    %c4_i32_553 = arith.constant 4 : i32
    %1132 = arith.index_cast %c4_i32_553 : i32 to index
    %c0_554 = arith.constant 0 : index
    %c0_555 = arith.constant 0 : index
    %1133 = vector.load %arg10[%1132, %c0_554, %c0_555] : memref<8x8x512xf32, #tpu.memory_space<vmem>>, vector<1x8x512xf32>
    %1134 = vector.shape_cast %1133 : vector<1x8x512xf32> to vector<8x512xf32>
    %c0_556 = arith.constant 0 : index
    %c0_557 = arith.constant 0 : index
    %1135 = vector.load %arg11[%c0_556, %c0_557] : memref<8x128xf32, #tpu.memory_space<vmem>>, vector<8x128xf32>
    %cst_558 = arith.constant dense<0.000000e+00> : vector<8x512xf32>
    %1136 = tpu.matmul %1135, %966, %cst_558 {dimension_numbers = #tpu.dot_dimension_numbers<[1], [0], [0], [1], [0, 0, 1, 1], [], []>} : vector<8x128xf32>, vector<128x512xf32>, vector<8x512xf32> -> vector<8x512xf32>
    %1137 = arith.addf %1134, %1136 : vector<8x512xf32>
    %1138 = vector.extract_strided_slice %1137 {offsets = [0, 0], sizes = [8, 128], strides = [1, 1]} : vector<8x512xf32> to vector<8x128xf32>
    %1139 = arith.negf %1138 : vector<8x128xf32>
    %1140 = math.exp %1139 : vector<8x128xf32>
    %cst_559 = arith.constant 1.000000e+00 : f32
    %1141 = vector.broadcast %cst_559 : f32 to vector<8x128xf32>
    %1142 = arith.addf %1141, %1140 : vector<8x128xf32>
    %1143 = arith.divf %1141, %1142 : vector<8x128xf32>
    %1144 = vector.extract_strided_slice %1137 {offsets = [0, 128], sizes = [8, 128], strides = [1, 1]} : vector<8x512xf32> to vector<8x128xf32>
    %1145 = arith.negf %1144 : vector<8x128xf32>
    %1146 = math.exp %1145 : vector<8x128xf32>
    %cst_560 = arith.constant 1.000000e+00 : f32
    %1147 = vector.broadcast %cst_560 : f32 to vector<8x128xf32>
    %1148 = arith.addf %1147, %1146 : vector<8x128xf32>
    %1149 = arith.divf %1147, %1148 : vector<8x128xf32>
    %1150 = vector.extract_strided_slice %1137 {offsets = [0, 256], sizes = [8, 128], strides = [1, 1]} : vector<8x512xf32> to vector<8x128xf32>
    %1151 = math.tanh %1150 : vector<8x128xf32>
    %1152 = vector.extract_strided_slice %1137 {offsets = [0, 384], sizes = [8, 128], strides = [1, 1]} : vector<8x512xf32> to vector<8x128xf32>
    %1153 = arith.negf %1152 : vector<8x128xf32>
    %1154 = math.exp %1153 : vector<8x128xf32>
    %cst_561 = arith.constant 1.000000e+00 : f32
    %1155 = vector.broadcast %cst_561 : f32 to vector<8x128xf32>
    %1156 = arith.addf %1155, %1154 : vector<8x128xf32>
    %1157 = arith.divf %1155, %1156 : vector<8x128xf32>
    %c0_562 = arith.constant 0 : index
    %c0_563 = arith.constant 0 : index
    %1158 = vector.load %arg12[%c0_562, %c0_563] : memref<8x128xf32, #tpu.memory_space<vmem>>, vector<8x128xf32>
    %1159 = arith.mulf %1149, %1158 : vector<8x128xf32>
    %1160 = arith.mulf %1143, %1151 : vector<8x128xf32>
    %1161 = arith.addf %1159, %1160 : vector<8x128xf32>
    %1162 = math.tanh %1161 : vector<8x128xf32>
    %1163 = arith.mulf %1157, %1162 : vector<8x128xf32>
    %c0_564 = arith.constant 0 : index
    %c0_565 = arith.constant 0 : index
    %1164 = vector.load %arg12[%c0_564, %c0_565] : memref<8x128xf32, #tpu.memory_space<vmem>>, vector<8x128xf32>
    tpu.vector_store %arg12[%c0_564, %c0_565], %1161 {strides = array<i32>} : memref<8x128xf32, #tpu.memory_space<vmem>>, vector<8x128xf32>,
    %c0_566 = arith.constant 0 : index
    %c0_567 = arith.constant 0 : index
    %1165 = vector.load %arg11[%c0_566, %c0_567] : memref<8x128xf32, #tpu.memory_space<vmem>>, vector<8x128xf32>
    tpu.vector_store %arg11[%c0_566, %c0_567], %1163 {strides = array<i32>} : memref<8x128xf32, #tpu.memory_space<vmem>>, vector<8x128xf32>,
    %1166 = arith.index_cast %c4_i32_553 : i32 to index
    %c0_568 = arith.constant 0 : index
    %c0_569 = arith.constant 0 : index
    %1167 = vector.load %arg9[%1166, %c0_568, %c0_569] : memref<8x8x128xf32, #tpu.memory_space<vmem>>, vector<1x8x128xf32>
    %1168 = vector.shape_cast %1167 : vector<1x8x128xf32> to vector<8x128xf32>
    %1169 = vector.shape_cast %1163 : vector<8x128xf32> to vector<1x8x128xf32>
    tpu.vector_store %arg9[%1166, %c0_568, %c0_569], %1169 {strides = array<i32>} : memref<8x8x128xf32, #tpu.memory_space<vmem>>, vector<1x8x128xf32>,
    %c5_i32_570 = arith.constant 5 : i32
    %1170 = arith.index_cast %c5_i32_570 : i32 to index
    %c0_571 = arith.constant 0 : index
    %c0_572 = arith.constant 0 : index
    %1171 = vector.load %arg10[%1170, %c0_571, %c0_572] : memref<8x8x512xf32, #tpu.memory_space<vmem>>, vector<1x8x512xf32>
    %1172 = vector.shape_cast %1171 : vector<1x8x512xf32> to vector<8x512xf32>
    %c0_573 = arith.constant 0 : index
    %c0_574 = arith.constant 0 : index
    %1173 = vector.load %arg11[%c0_573, %c0_574] : memref<8x128xf32, #tpu.memory_space<vmem>>, vector<8x128xf32>
    %cst_575 = arith.constant dense<0.000000e+00> : vector<8x512xf32>
    %1174 = tpu.matmul %1173, %966, %cst_575 {dimension_numbers = #tpu.dot_dimension_numbers<[1], [0], [0], [1], [0, 0, 1, 1], [], []>} : vector<8x128xf32>, vector<128x512xf32>, vector<8x512xf32> -> vector<8x512xf32>
    %1175 = arith.addf %1172, %1174 : vector<8x512xf32>
    %1176 = vector.extract_strided_slice %1175 {offsets = [0, 0], sizes = [8, 128], strides = [1, 1]} : vector<8x512xf32> to vector<8x128xf32>
    %1177 = arith.negf %1176 : vector<8x128xf32>
    %1178 = math.exp %1177 : vector<8x128xf32>
    %cst_576 = arith.constant 1.000000e+00 : f32
    %1179 = vector.broadcast %cst_576 : f32 to vector<8x128xf32>
    %1180 = arith.addf %1179, %1178 : vector<8x128xf32>
    %1181 = arith.divf %1179, %1180 : vector<8x128xf32>
    %1182 = vector.extract_strided_slice %1175 {offsets = [0, 128], sizes = [8, 128], strides = [1, 1]} : vector<8x512xf32> to vector<8x128xf32>
    %1183 = arith.negf %1182 : vector<8x128xf32>
    %1184 = math.exp %1183 : vector<8x128xf32>
    %cst_577 = arith.constant 1.000000e+00 : f32
    %1185 = vector.broadcast %cst_577 : f32 to vector<8x128xf32>
    %1186 = arith.addf %1185, %1184 : vector<8x128xf32>
    %1187 = arith.divf %1185, %1186 : vector<8x128xf32>
    %1188 = vector.extract_strided_slice %1175 {offsets = [0, 256], sizes = [8, 128], strides = [1, 1]} : vector<8x512xf32> to vector<8x128xf32>
    %1189 = math.tanh %1188 : vector<8x128xf32>
    %1190 = vector.extract_strided_slice %1175 {offsets = [0, 384], sizes = [8, 128], strides = [1, 1]} : vector<8x512xf32> to vector<8x128xf32>
    %1191 = arith.negf %1190 : vector<8x128xf32>
    %1192 = math.exp %1191 : vector<8x128xf32>
    %cst_578 = arith.constant 1.000000e+00 : f32
    %1193 = vector.broadcast %cst_578 : f32 to vector<8x128xf32>
    %1194 = arith.addf %1193, %1192 : vector<8x128xf32>
    %1195 = arith.divf %1193, %1194 : vector<8x128xf32>
    %c0_579 = arith.constant 0 : index
    %c0_580 = arith.constant 0 : index
    %1196 = vector.load %arg12[%c0_579, %c0_580] : memref<8x128xf32, #tpu.memory_space<vmem>>, vector<8x128xf32>
    %1197 = arith.mulf %1187, %1196 : vector<8x128xf32>
    %1198 = arith.mulf %1181, %1189 : vector<8x128xf32>
    %1199 = arith.addf %1197, %1198 : vector<8x128xf32>
    %1200 = math.tanh %1199 : vector<8x128xf32>
    %1201 = arith.mulf %1195, %1200 : vector<8x128xf32>
    %c0_581 = arith.constant 0 : index
    %c0_582 = arith.constant 0 : index
    %1202 = vector.load %arg12[%c0_581, %c0_582] : memref<8x128xf32, #tpu.memory_space<vmem>>, vector<8x128xf32>
    tpu.vector_store %arg12[%c0_581, %c0_582], %1199 {strides = array<i32>} : memref<8x128xf32, #tpu.memory_space<vmem>>, vector<8x128xf32>,
    %c0_583 = arith.constant 0 : index
    %c0_584 = arith.constant 0 : index
    %1203 = vector.load %arg11[%c0_583, %c0_584] : memref<8x128xf32, #tpu.memory_space<vmem>>, vector<8x128xf32>
    tpu.vector_store %arg11[%c0_583, %c0_584], %1201 {strides = array<i32>} : memref<8x128xf32, #tpu.memory_space<vmem>>, vector<8x128xf32>,
    %1204 = arith.index_cast %c5_i32_570 : i32 to index
    %c0_585 = arith.constant 0 : index
    %c0_586 = arith.constant 0 : index
    %1205 = vector.load %arg9[%1204, %c0_585, %c0_586] : memref<8x8x128xf32, #tpu.memory_space<vmem>>, vector<1x8x128xf32>
    %1206 = vector.shape_cast %1205 : vector<1x8x128xf32> to vector<8x128xf32>
    %1207 = vector.shape_cast %1201 : vector<8x128xf32> to vector<1x8x128xf32>
    tpu.vector_store %arg9[%1204, %c0_585, %c0_586], %1207 {strides = array<i32>} : memref<8x8x128xf32, #tpu.memory_space<vmem>>, vector<1x8x128xf32>,
    %c6_i32_587 = arith.constant 6 : i32
    %1208 = arith.index_cast %c6_i32_587 : i32 to index
    %c0_588 = arith.constant 0 : index
    %c0_589 = arith.constant 0 : index
    %1209 = vector.load %arg10[%1208, %c0_588, %c0_589] : memref<8x8x512xf32, #tpu.memory_space<vmem>>, vector<1x8x512xf32>
    %1210 = vector.shape_cast %1209 : vector<1x8x512xf32> to vector<8x512xf32>
    %c0_590 = arith.constant 0 : index
    %c0_591 = arith.constant 0 : index
    %1211 = vector.load %arg11[%c0_590, %c0_591] : memref<8x128xf32, #tpu.memory_space<vmem>>, vector<8x128xf32>
    %cst_592 = arith.constant dense<0.000000e+00> : vector<8x512xf32>
    %1212 = tpu.matmul %1211, %966, %cst_592 {dimension_numbers = #tpu.dot_dimension_numbers<[1], [0], [0], [1], [0, 0, 1, 1], [], []>} : vector<8x128xf32>, vector<128x512xf32>, vector<8x512xf32> -> vector<8x512xf32>
    %1213 = arith.addf %1210, %1212 : vector<8x512xf32>
    %1214 = vector.extract_strided_slice %1213 {offsets = [0, 0], sizes = [8, 128], strides = [1, 1]} : vector<8x512xf32> to vector<8x128xf32>
    %1215 = arith.negf %1214 : vector<8x128xf32>
    %1216 = math.exp %1215 : vector<8x128xf32>
    %cst_593 = arith.constant 1.000000e+00 : f32
    %1217 = vector.broadcast %cst_593 : f32 to vector<8x128xf32>
    %1218 = arith.addf %1217, %1216 : vector<8x128xf32>
    %1219 = arith.divf %1217, %1218 : vector<8x128xf32>
    %1220 = vector.extract_strided_slice %1213 {offsets = [0, 128], sizes = [8, 128], strides = [1, 1]} : vector<8x512xf32> to vector<8x128xf32>
    %1221 = arith.negf %1220 : vector<8x128xf32>
    %1222 = math.exp %1221 : vector<8x128xf32>
    %cst_594 = arith.constant 1.000000e+00 : f32
    %1223 = vector.broadcast %cst_594 : f32 to vector<8x128xf32>
    %1224 = arith.addf %1223, %1222 : vector<8x128xf32>
    %1225 = arith.divf %1223, %1224 : vector<8x128xf32>
    %1226 = vector.extract_strided_slice %1213 {offsets = [0, 256], sizes = [8, 128], strides = [1, 1]} : vector<8x512xf32> to vector<8x128xf32>
    %1227 = math.tanh %1226 : vector<8x128xf32>
    %1228 = vector.extract_strided_slice %1213 {offsets = [0, 384], sizes = [8, 128], strides = [1, 1]} : vector<8x512xf32> to vector<8x128xf32>
    %1229 = arith.negf %1228 : vector<8x128xf32>
    %1230 = math.exp %1229 : vector<8x128xf32>
    %cst_595 = arith.constant 1.000000e+00 : f32
    %1231 = vector.broadcast %cst_595 : f32 to vector<8x128xf32>
    %1232 = arith.addf %1231, %1230 : vector<8x128xf32>
    %1233 = arith.divf %1231, %1232 : vector<8x128xf32>
    %c0_596 = arith.constant 0 : index
    %c0_597 = arith.constant 0 : index
    %1234 = vector.load %arg12[%c0_596, %c0_597] : memref<8x128xf32, #tpu.memory_space<vmem>>, vector<8x128xf32>
    %1235 = arith.mulf %1225, %1234 : vector<8x128xf32>
    %1236 = arith.mulf %1219, %1227 : vector<8x128xf32>
    %1237 = arith.addf %1235, %1236 : vector<8x128xf32>
    %1238 = math.tanh %1237 : vector<8x128xf32>
    %1239 = arith.mulf %1233, %1238 : vector<8x128xf32>
    %c0_598 = arith.constant 0 : index
    %c0_599 = arith.constant 0 : index
    %1240 = vector.load %arg12[%c0_598, %c0_599] : memref<8x128xf32, #tpu.memory_space<vmem>>, vector<8x128xf32>
    tpu.vector_store %arg12[%c0_598, %c0_599], %1237 {strides = array<i32>} : memref<8x128xf32, #tpu.memory_space<vmem>>, vector<8x128xf32>,
    %c0_600 = arith.constant 0 : index
    %c0_601 = arith.constant 0 : index
    %1241 = vector.load %arg11[%c0_600, %c0_601] : memref<8x128xf32, #tpu.memory_space<vmem>>, vector<8x128xf32>
    tpu.vector_store %arg11[%c0_600, %c0_601], %1239 {strides = array<i32>} : memref<8x128xf32, #tpu.memory_space<vmem>>, vector<8x128xf32>,
    %1242 = arith.index_cast %c6_i32_587 : i32 to index
    %c0_602 = arith.constant 0 : index
    %c0_603 = arith.constant 0 : index
    %1243 = vector.load %arg9[%1242, %c0_602, %c0_603] : memref<8x8x128xf32, #tpu.memory_space<vmem>>, vector<1x8x128xf32>
    %1244 = vector.shape_cast %1243 : vector<1x8x128xf32> to vector<8x128xf32>
    %1245 = vector.shape_cast %1239 : vector<8x128xf32> to vector<1x8x128xf32>
    tpu.vector_store %arg9[%1242, %c0_602, %c0_603], %1245 {strides = array<i32>} : memref<8x8x128xf32, #tpu.memory_space<vmem>>, vector<1x8x128xf32>,
    %c7_i32_604 = arith.constant 7 : i32
    %1246 = arith.index_cast %c7_i32_604 : i32 to index
    %c0_605 = arith.constant 0 : index
    %c0_606 = arith.constant 0 : index
    %1247 = vector.load %arg10[%1246, %c0_605, %c0_606] : memref<8x8x512xf32, #tpu.memory_space<vmem>>, vector<1x8x512xf32>
    %1248 = vector.shape_cast %1247 : vector<1x8x512xf32> to vector<8x512xf32>
    %c0_607 = arith.constant 0 : index
    %c0_608 = arith.constant 0 : index
    %1249 = vector.load %arg11[%c0_607, %c0_608] : memref<8x128xf32, #tpu.memory_space<vmem>>, vector<8x128xf32>
    %cst_609 = arith.constant dense<0.000000e+00> : vector<8x512xf32>
    %1250 = tpu.matmul %1249, %966, %cst_609 {dimension_numbers = #tpu.dot_dimension_numbers<[1], [0], [0], [1], [0, 0, 1, 1], [], []>} : vector<8x128xf32>, vector<128x512xf32>, vector<8x512xf32> -> vector<8x512xf32>
    %1251 = arith.addf %1248, %1250 : vector<8x512xf32>
    %1252 = vector.extract_strided_slice %1251 {offsets = [0, 0], sizes = [8, 128], strides = [1, 1]} : vector<8x512xf32> to vector<8x128xf32>
    %1253 = arith.negf %1252 : vector<8x128xf32>
    %1254 = math.exp %1253 : vector<8x128xf32>
    %cst_610 = arith.constant 1.000000e+00 : f32
    %1255 = vector.broadcast %cst_610 : f32 to vector<8x128xf32>
    %1256 = arith.addf %1255, %1254 : vector<8x128xf32>
    %1257 = arith.divf %1255, %1256 : vector<8x128xf32>
    %1258 = vector.extract_strided_slice %1251 {offsets = [0, 128], sizes = [8, 128], strides = [1, 1]} : vector<8x512xf32> to vector<8x128xf32>
    %1259 = arith.negf %1258 : vector<8x128xf32>
    %1260 = math.exp %1259 : vector<8x128xf32>
    %cst_611 = arith.constant 1.000000e+00 : f32
    %1261 = vector.broadcast %cst_611 : f32 to vector<8x128xf32>
    %1262 = arith.addf %1261, %1260 : vector<8x128xf32>
    %1263 = arith.divf %1261, %1262 : vector<8x128xf32>
    %1264 = vector.extract_strided_slice %1251 {offsets = [0, 256], sizes = [8, 128], strides = [1, 1]} : vector<8x512xf32> to vector<8x128xf32>
    %1265 = math.tanh %1264 : vector<8x128xf32>
    %1266 = vector.extract_strided_slice %1251 {offsets = [0, 384], sizes = [8, 128], strides = [1, 1]} : vector<8x512xf32> to vector<8x128xf32>
    %1267 = arith.negf %1266 : vector<8x128xf32>
    %1268 = math.exp %1267 : vector<8x128xf32>
    %cst_612 = arith.constant 1.000000e+00 : f32
    %1269 = vector.broadcast %cst_612 : f32 to vector<8x128xf32>
    %1270 = arith.addf %1269, %1268 : vector<8x128xf32>
    %1271 = arith.divf %1269, %1270 : vector<8x128xf32>
    %c0_613 = arith.constant 0 : index
    %c0_614 = arith.constant 0 : index
    %1272 = vector.load %arg12[%c0_613, %c0_614] : memref<8x128xf32, #tpu.memory_space<vmem>>, vector<8x128xf32>
    %1273 = arith.mulf %1263, %1272 : vector<8x128xf32>
    %1274 = arith.mulf %1257, %1265 : vector<8x128xf32>
    %1275 = arith.addf %1273, %1274 : vector<8x128xf32>
    %1276 = math.tanh %1275 : vector<8x128xf32>
    %1277 = arith.mulf %1271, %1276 : vector<8x128xf32>
    %c0_615 = arith.constant 0 : index
    %c0_616 = arith.constant 0 : index
    %1278 = vector.load %arg12[%c0_615, %c0_616] : memref<8x128xf32, #tpu.memory_space<vmem>>, vector<8x128xf32>
    tpu.vector_store %arg12[%c0_615, %c0_616], %1275 {strides = array<i32>} : memref<8x128xf32, #tpu.memory_space<vmem>>, vector<8x128xf32>,
    %c0_617 = arith.constant 0 : index
    %c0_618 = arith.constant 0 : index
    %1279 = vector.load %arg11[%c0_617, %c0_618] : memref<8x128xf32, #tpu.memory_space<vmem>>, vector<8x128xf32>
    tpu.vector_store %arg11[%c0_617, %c0_618], %1277 {strides = array<i32>} : memref<8x128xf32, #tpu.memory_space<vmem>>, vector<8x128xf32>,
    %1280 = arith.index_cast %c7_i32_604 : i32 to index
    %c0_619 = arith.constant 0 : index
    %c0_620 = arith.constant 0 : index
    %1281 = vector.load %arg9[%1280, %c0_619, %c0_620] : memref<8x8x128xf32, #tpu.memory_space<vmem>>, vector<1x8x128xf32>
    %1282 = vector.shape_cast %1281 : vector<1x8x128xf32> to vector<8x128xf32>
    %1283 = vector.shape_cast %1277 : vector<8x128xf32> to vector<1x8x128xf32>
    tpu.vector_store %arg9[%1280, %c0_619, %c0_620], %1283 {strides = array<i32>} : memref<8x8x128xf32, #tpu.memory_space<vmem>>, vector<1x8x128xf32>,
    %c8_i32_621 = arith.constant 8 : i32
    %c0_622 = arith.constant 0 : index
    %c0_623 = arith.constant 0 : index
    %c0_624 = arith.constant 0 : index
    %1284 = vector.load %arg9[%c0_622, %c0_623, %c0_624] : memref<8x8x128xf32, #tpu.memory_space<vmem>>, vector<8x8x128xf32>
    %c0_625 = arith.constant 0 : index
    %c0_626 = arith.constant 0 : index
    %1285 = vector.load %arg2[%c0_625, %c0_626] : memref<8x8xf32, #tpu.memory_space<vmem>>, vector<8x8xf32>
    %1286 = vector.shape_cast %1285 : vector<8x8xf32> to vector<8x8x1xf32>
    %1287 = vector.broadcast %1286 : vector<8x8x1xf32> to vector<8x8x128xf32>
    %1288 = arith.mulf %1284, %1287 : vector<8x8x128xf32>
    %1289 = vector.shape_cast %1288 : vector<8x8x128xf32> to vector<64x128xf32>
    %c0_627 = arith.constant 0 : index
    %c0_628 = arith.constant 0 : index
    %1290 = vector.load %arg6[%c0_627, %c0_628] : memref<128x128xf32, #tpu.memory_space<vmem>>, vector<128x128xf32>
    %cst_629 = arith.constant dense<0.000000e+00> : vector<64x128xf32>
    %1291 = tpu.matmul %1289, %1290, %cst_629 {dimension_numbers = #tpu.dot_dimension_numbers<[1], [0], [0], [1], [0, 0, 1, 1], [], []>} : vector<64x128xf32>, vector<128x128xf32>, vector<64x128xf32> -> vector<64x128xf32>
    %c0_630 = arith.constant 0 : index
    %c0_631 = arith.constant 0 : index
    %1292 = vector.load %arg7[%c0_630, %c0_631] : memref<1x128xf32, #tpu.memory_space<vmem>>, vector<1x128xf32>
    %1293 = vector.broadcast %1292 : vector<1x128xf32> to vector<64x128xf32>
    %1294 = arith.addf %1291, %1293 : vector<64x128xf32>
    %1295 = vector.shape_cast %1294 : vector<64x128xf32> to vector<8x8x128xf32>
    %c0_632 = arith.constant 0 : index
    %c0_633 = arith.constant 0 : index
    %c0_634 = arith.constant 0 : index
    %1296 = vector.load %arg8[%c0_632, %c0_633, %c0_634] : memref<8x8x128xf32, #tpu.memory_space<vmem>>, vector<8x8x128xf32>
    tpu.vector_store %arg8[%c0_632, %c0_633, %c0_634], %1295 {strides = array<i32>} : memref<8x8x128xf32, #tpu.memory_space<vmem>>, vector<8x8x128xf32>,
    return
  }
  func.func @transform_0(%arg0: i32) -> (i32, i32, i32) {
    %c0_i32 = arith.constant 0 : i32
    %c0_i32_0 = arith.constant 0 : i32
    %c0_i32_1 = arith.constant 0 : i32
    %c0_i32_2 = arith.constant 0 : i32
    return %c0_i32, %c0_i32_0, %c0_i32_1 : i32, i32, i32
  }
  func.func @transform_1(%arg0: i32) -> (i32, i32) {
    %c0_i32 = arith.constant 0 : i32
    %c0_i32_0 = arith.constant 0 : i32
    %c0_i32_1 = arith.constant 0 : i32
    return %c0_i32, %c0_i32_0 : i32, i32
  }
  func.func @transform_2(%arg0: i32) -> (i32, i32, i32) {
    %c0_i32 = arith.constant 0 : i32
    %c0_i32_0 = arith.constant 0 : i32
    %c0_i32_1 = arith.constant 0 : i32
    %c0_i32_2 = arith.constant 0 : i32
    return %c0_i32, %c0_i32_0, %c0_i32_1 : i32, i32, i32
  }
  func.func @transform_3(%arg0: i32) -> (i32, i32, i32) {
    %c0_i32 = arith.constant 0 : i32
    %c0_i32_0 = arith.constant 0 : i32
    %c0_i32_1 = arith.constant 0 : i32
    %c0_i32_2 = arith.constant 0 : i32
    return %c0_i32, %c0_i32_0, %c0_i32_1 : i32, i32, i32
  }
  func.func @transform_4(%arg0: i32) -> (i32, i32, i32) {
    %c0_i32 = arith.constant 0 : i32
    %c0_i32_0 = arith.constant 0 : i32
    %c0_i32_1 = arith.constant 0 : i32
    %c0_i32_2 = arith.constant 0 : i32
    return %c0_i32, %c0_i32_0, %c0_i32_1 : i32, i32, i32
  }
  func.func @transform_5(%arg0: i32) -> (i32, i32) {
    %c0_i32 = arith.constant 0 : i32
    %c0_i32_0 = arith.constant 0 : i32
    %c0_i32_1 = arith.constant 0 : i32
    return %c0_i32, %c0_i32_0 : i32, i32
  }
  func.func @transform_6(%arg0: i32) -> (i32, i32) {
    %c0_i32 = arith.constant 0 : i32
    %c0_i32_0 = arith.constant 0 : i32
    %c0_i32_1 = arith.constant 0 : i32
    return %c0_i32, %c0_i32_0 : i32, i32
  }
  func.func @transform_7(%arg0: i32) -> (i32, i32, i32) {
    %c0_i32 = arith.constant 0 : i32
    %c0_i32_0 = arith.constant 0 : i32
    %c0_i32_1 = arith.constant 0 : i32
    %c0_i32_2 = arith.constant 0 : i32
    return %c0_i32, %c0_i32_0, %c0_i32_1 : i32, i32, i32
  }
}

</mosaic_0001>

<llo_original>
// kernel: custom_lstm_forward.1
$region0: #{custom_lstm_forward.1}
  #allocation0 [shape = 'u32[]', space=smem, size = 0x4, offset = 0x4, fixed_abs, tag = 'smem constant byte address 0x4 - core index']
  #allocation1 [shape = 'u32[144,128]{1,0:T(1,128)}', space=vmem, size = 0x12000, scoped, tag = 'internal scratch']
  #allocation2 [shape = 'f32[8,8,128]{2,1,0:T(8,128)}', space=vmem, size = 0x8000, scoped, tag = 'scratch operand']
  #allocation3 [shape = 'f32[8,8,512]{2,1,0:T(8,128)}', space=vmem, size = 0x20000, scoped, tag = 'scratch operand']
  #allocation4 [shape = 'f32[8,128]{1,0:T(8,128)}', space=vmem, size = 0x1000, scoped, tag = 'scratch operand']
  #allocation5 [shape = 'f32[8,128]{1,0:T(8,128)}', space=vmem, size = 0x1000, scoped, tag = 'scratch operand']
  %s0 = inlined_call_operand.vmem [shape: f32[8,8,128], index: 0, kind: input, shape index: {}]
  %s1 = inlined_call_operand.vmem [shape: f32[8,8], index: 1, kind: input, shape index: {}]
  %s2 = inlined_call_operand.hbm [shape: f32[4,128,512], index: 2, kind: input, shape index: {}]
  %s3 = inlined_call_operand.hbm [shape: f32[4,128,512], index: 3, kind: input, shape index: {}]
  %s4 = inlined_call_operand.hbm [shape: f32[4,1,512], index: 4, kind: input, shape index: {}]
  %s5 = inlined_call_operand.hbm [shape: f32[128,128], index: 5, kind: input, shape index: {}]
  %s6 = inlined_call_operand.hbm [shape: f32[1,128], index: 6, kind: input, shape index: {}]
  %s7 = inlined_call_operand.vmem [shape: f32[8,8,128], index: 7, kind: output, shape index: {}]
  %s8 = sld [smem:[#allocation0]]
  $region58: #{custom_lstm_forward.1} parent=0
    _
  %s10 = ssub.s32 1, %s8
  %s11 = scalar_select 0, %s10, %s8
  $region1: #{custom_lstm_forward.1} parent=0
    #allocation6 [shape = 'u8[1048576]{0}', space=vmem, size = 0x100000, scoped, tag = 'input window, operand 2, single buffered']
    #allocation7 [shape = 's32[1]{0}', space=sflag, size = 0x4, scoped, tag = 'scoped memory for custom_lstm_forward.1']
    #allocation8 [shape = 'u8[1048576]{0}', space=vmem, size = 0x100000, scoped, tag = 'input window, operand 3, single buffered']
    #allocation9 [shape = 's32[1]{0}', space=sflag, size = 0x4, scoped, tag = 'scoped memory for custom_lstm_forward.1']
    #allocation10 [shape = 'u8[8192]{0}', space=vmem, size = 0x2000, scoped, tag = 'input window, operand 4, single buffered']
    #allocation11 [shape = 'u8[65536]{0}', space=vmem, size = 0x10000, scoped, tag = 'input window, operand 5, single buffered']
    #allocation12 [shape = 's32[1]{0}', space=sflag, size = 0x4, scoped, tag = 'scoped memory for custom_lstm_forward.1']
    #allocation13 [shape = 'u8[512]{0}', space=vmem, size = 0x400, scoped, tag = 'input window, operand 6, single buffered']
    %12 = vsyncpa [#allocation7], 0
    %13 = vsyncpa [#allocation9], 0
    %14 = vsyncpa [#allocation12], 0
    // Predicated region
    $region2: #{custom_lstm_forward.1} parent=1 // pred_check
      _
    $region3: #{custom_lstm_forward.1} parent=1 // pred_check_branch
      %16 = sbr.rel (0) target = $region5
    $region4: #{custom_lstm_forward.1} parent=1 // pred_region
      _
    $region5: #{custom_lstm_forward.1} parent=1 // pred_fallthru
      _
    // Predicated region
    $region6: #{custom_lstm_forward.1} parent=1 // pred_check
      _
    $region7: #{custom_lstm_forward.1} parent=1 // pred_check_branch
      %18 = sbr.rel (0) target = $region9
    $region8: #{custom_lstm_forward.1} parent=1 // pred_region
      _
    $region9: #{custom_lstm_forward.1} parent=1 // pred_fallthru
      _
    // Predicated region
    $region10: #{custom_lstm_forward.1} parent=1 // pred_check
      _
    $region11: #{custom_lstm_forward.1} parent=1 // pred_check_branch
      %20 = sbr.rel (0) target = $region13
    $region12: #{custom_lstm_forward.1} parent=1 // pred_region
      %s22 = ssub.s32 32768, 32768
      %23 = vsyncadd [#allocation7], %s22
      %s24 = sshll.u32 [#allocation6], 4
      %s25 = int_to_ptr.vmem [resolvable:$true] %s24
      %30 = dma.hbm_to_vmem [thread:$0]  %s2, 32768, %s25, [#allocation7], 512, 512, 32
    $region13: #{custom_lstm_forward.1} parent=1 // pred_fallthru
      _
    // Predicated region
    $region14: #{custom_lstm_forward.1} parent=1 // pred_check
      _
    $region15: #{custom_lstm_forward.1} parent=1 // pred_check_branch
      %32 = sbr.rel (0) target = $region17
    $region16: #{custom_lstm_forward.1} parent=1 // pred_region
      %s34 = ssub.s32 32768, 32768
      %35 = vsyncadd [#allocation9], %s34
      %s36 = sshll.u32 [#allocation8], 4
      %s37 = int_to_ptr.vmem [resolvable:$true] %s36
      %42 = dma.hbm_to_vmem [thread:$0]  %s3, 32768, %s37, [#allocation9], 512, 512, 32
    $region17: #{custom_lstm_forward.1} parent=1 // pred_fallthru
      _
    // Predicated region
    $region18: #{custom_lstm_forward.1} parent=1 // pred_check
      _
    $region19: #{custom_lstm_forward.1} parent=1 // pred_check_branch
      %44 = sbr.rel (0) target = $region21
    $region20: #{custom_lstm_forward.1} parent=1 // pred_region
      %s46 = ssub.s32 256, 256
      %47 = vsyncadd [#allocation9], %s46
      %s48 = sshll.u32 [#allocation10], 4
      %s49 = int_to_ptr.vmem [resolvable:$true] %s48
      %54 = dma.hbm_to_vmem [thread:$0]  %s4, 256, %s49, [#allocation9], 64, 64, 4
    $region21: #{custom_lstm_forward.1} parent=1 // pred_fallthru
      _
    // Predicated region
    $region22: #{custom_lstm_forward.1} parent=1 // pred_check
      _
    $region23: #{custom_lstm_forward.1} parent=1 // pred_check_branch
      %56 = sbr.rel (0) target = $region25
    $region24: #{custom_lstm_forward.1} parent=1 // pred_region
      %s58 = ssub.s32 2048, 2048
      %59 = vsyncadd [#allocation12], %s58
      %s60 = sshll.u32 [#allocation11], 4
      %s61 = int_to_ptr.vmem [resolvable:$true] %s60
      %66 = dma.hbm_to_vmem [thread:$0]  %s5, 2048, %s61, [#allocation12], 128, 128, 8
    $region25: #{custom_lstm_forward.1} parent=1 // pred_fallthru
      _
    // Predicated region
    $region26: #{custom_lstm_forward.1} parent=1 // pred_check
      _
    $region27: #{custom_lstm_forward.1} parent=1 // pred_check_branch
      %68 = sbr.rel (0) target = $region29
    $region28: #{custom_lstm_forward.1} parent=1 // pred_region
      %s70 = ssub.s32 16, 16
      %71 = vsyncadd [#allocation12], %s70
      %s73 = sshll.u32 [#allocation13], 4
      %s74 = int_to_ptr.vmem [resolvable:$true] %s73
      %76 = dma.hbm_to_vmem [thread:$0]  %s6, 16, %s74, [#allocation12]
    $region29: #{custom_lstm_forward.1} parent=1 // pred_fallthru
      _
    // Predicated region
    $region30: #{custom_lstm_forward.1} parent=1 // pred_check
      _
    $region31: #{custom_lstm_forward.1} parent=1 // pred_check_branch
      %78 = sbr.rel (0) target = $region33
    $region32: #{custom_lstm_forward.1} parent=1 // pred_region
      %79 = dma.done [#allocation7], 32768
    $region33: #{custom_lstm_forward.1} parent=1 // pred_fallthru
      _
    // Predicated region
    $region34: #{custom_lstm_forward.1} parent=1 // pred_check
      _
    $region35: #{custom_lstm_forward.1} parent=1 // pred_check_branch
      %81 = sbr.rel (0) target = $region37
    $region36: #{custom_lstm_forward.1} parent=1 // pred_region
      %82 = dma.done [#allocation9], 32768
    $region37: #{custom_lstm_forward.1} parent=1 // pred_fallthru
      _
    // Predicated region
    $region38: #{custom_lstm_forward.1} parent=1 // pred_check
      _
    $region39: #{custom_lstm_forward.1} parent=1 // pred_check_branch
      %84 = sbr.rel (0) target = $region41
    $region40: #{custom_lstm_forward.1} parent=1 // pred_region
      %85 = dma.done [#allocation9], 256
    $region41: #{custom_lstm_forward.1} parent=1 // pred_fallthru
      _
    // Predicated region
    $region42: #{custom_lstm_forward.1} parent=1 // pred_check
      _
    $region43: #{custom_lstm_forward.1} parent=1 // pred_check_branch
      %87 = sbr.rel (0) target = $region45
    $region44: #{custom_lstm_forward.1} parent=1 // pred_region
      %88 = dma.done [#allocation12], 2048
    $region45: #{custom_lstm_forward.1} parent=1 // pred_fallthru
      _
    // Predicated region
    $region46: #{custom_lstm_forward.1} parent=1 // pred_check
      _
    $region47: #{custom_lstm_forward.1} parent=1 // pred_check_branch
      %90 = sbr.rel (0) target = $region49
    $region48: #{custom_lstm_forward.1} parent=1 // pred_region
      %91 = dma.done [#allocation12], 16
    $region49: #{custom_lstm_forward.1} parent=1 // pred_fallthru
      _
    %v92 = vld [vmem:[#allocation6] sm:$0xff]
    %v93 = vld [vmem:[#allocation6 + $0x8] sm:$0xff]
    %v94 = vld [vmem:[#allocation6 + $0x10] sm:$0xff]
    %v95 = vld [vmem:[#allocation6 + $0x18] sm:$0xff]
    %v96 = vld [vmem:[#allocation6 + $0x20] sm:$0xff]
    %v97 = vld [vmem:[#allocation6 + $0x28] sm:$0xff]
    %v98 = vld [vmem:[#allocation6 + $0x30] sm:$0xff]
    %v99 = vld [vmem:[#allocation6 + $0x38] sm:$0xff]
    %v100 = vld [vmem:[#allocation6 + $0x40] sm:$0xff]
    %v101 = vld [vmem:[#allocation6 + $0x48] sm:$0xff]
    %v102 = vld [vmem:[#allocation6 + $0x50] sm:$0xff]
    %v103 = vld [vmem:[#allocation6 + $0x58] sm:$0xff]
    %v104 = vld [vmem:[#allocation6 + $0x60] sm:$0xff]
    %v105 = vld [vmem:[#allocation6 + $0x68] sm:$0xff]
    %v106 = vld [vmem:[#allocation6 + $0x70] sm:$0xff]
    %v107 = vld [vmem:[#allocation6 + $0x78] sm:$0xff]
    %v108 = vld [vmem:[#allocation6 + $0x80] sm:$0xff]
    %v109 = vld [vmem:[#allocation6 + $0x88] sm:$0xff]
    %v110 = vld [vmem:[#allocation6 + $0x90] sm:$0xff]
    %v111 = vld [vmem:[#allocation6 + $0x98] sm:$0xff]
    %v112 = vld [vmem:[#allocation6 + $0xa0] sm:$0xff]
    %v113 = vld [vmem:[#allocation6 + $0xa8] sm:$0xff]
    %v114 = vld [vmem:[#allocation6 + $0xb0] sm:$0xff]
    %v115 = vld [vmem:[#allocation6 + $0xb8] sm:$0xff]
    %v116 = vld [vmem:[#allocation6 + $0xc0] sm:$0xff]
    %v117 = vld [vmem:[#allocation6 + $0xc8] sm:$0xff]
    %v118 = vld [vmem:[#allocation6 + $0xd0] sm:$0xff]
    %v119 = vld [vmem:[#allocation6 + $0xd8] sm:$0xff]
    %v120 = vld [vmem:[#allocation6 + $0xe0] sm:$0xff]
    %v121 = vld [vmem:[#allocation6 + $0xe8] sm:$0xff]
    %v122 = vld [vmem:[#allocation6 + $0xf0] sm:$0xff]
    %v123 = vld [vmem:[#allocation6 + $0xf8] sm:$0xff]
    %v124 = vld [vmem:[#allocation6 + $0x100] sm:$0xff]
    %v125 = vld [vmem:[#allocation6 + $0x108] sm:$0xff]
    %v126 = vld [vmem:[#allocation6 + $0x110] sm:$0xff]
    %v127 = vld [vmem:[#allocation6 + $0x118] sm:$0xff]
    %v128 = vld [vmem:[#allocation6 + $0x120] sm:$0xff]
    %v129 = vld [vmem:[#allocation6 + $0x128] sm:$0xff]
    %v130 = vld [vmem:[#allocation6 + $0x130] sm:$0xff]
    %v131 = vld [vmem:[#allocation6 + $0x138] sm:$0xff]
    %v132 = vld [vmem:[#allocation6 + $0x140] sm:$0xff]
    %v133 = vld [vmem:[#allocation6 + $0x148] sm:$0xff]
    %v134 = vld [vmem:[#allocation6 + $0x150] sm:$0xff]
    %v135 = vld [vmem:[#allocation6 + $0x158] sm:$0xff]
    %v136 = vld [vmem:[#allocation6 + $0x160] sm:$0xff]
    %v137 = vld [vmem:[#allocation6 + $0x168] sm:$0xff]
    %v138 = vld [vmem:[#allocation6 + $0x170] sm:$0xff]
    %v139 = vld [vmem:[#allocation6 + $0x178] sm:$0xff]
    %v140 = vld [vmem:[#allocation6 + $0x180] sm:$0xff]
    %v141 = vld [vmem:[#allocation6 + $0x188] sm:$0xff]
    %v142 = vld [vmem:[#allocation6 + $0x190] sm:$0xff]
    %v143 = vld [vmem:[#allocation6 + $0x198] sm:$0xff]
    %v144 = vld [vmem:[#allocation6 + $0x1a0] sm:$0xff]
    %v145 = vld [vmem:[#allocation6 + $0x1a8] sm:$0xff]
    %v146 = vld [vmem:[#allocation6 + $0x1b0] sm:$0xff]
    %v147 = vld [vmem:[#allocation6 + $0x1b8] sm:$0xff]
    %v148 = vld [vmem:[#allocation6 + $0x1c0] sm:$0xff]
    %v149 = vld [vmem:[#allocation6 + $0x1c8] sm:$0xff]
    %v150 = vld [vmem:[#allocation6 + $0x1d0] sm:$0xff]
    %v151 = vld [vmem:[#allocation6 + $0x1d8] sm:$0xff]
    %v152 = vld [vmem:[#allocation6 + $0x1e0] sm:$0xff]
    %v153 = vld [vmem:[#allocation6 + $0x1e8] sm:$0xff]
    %v154 = vld [vmem:[#allocation6 + $0x1f0] sm:$0xff]
    %v155 = vld [vmem:[#allocation6 + $0x1f8] sm:$0xff]
    %v156 = vld [vmem:[#allocation8] sm:$0xff]
    %v157 = vld [vmem:[#allocation8 + $0x8] sm:$0xff]
    %v158 = vld [vmem:[#allocation8 + $0x10] sm:$0xff]
    %v159 = vld [vmem:[#allocation8 + $0x18] sm:$0xff]
    %v160 = vld [vmem:[#allocation8 + $0x20] sm:$0xff]
    %v161 = vld [vmem:[#allocation8 + $0x28] sm:$0xff]
    %v162 = vld [vmem:[#allocation8 + $0x30] sm:$0xff]
    %v163 = vld [vmem:[#allocation8 + $0x38] sm:$0xff]
    %v164 = vld [vmem:[#allocation8 + $0x40] sm:$0xff]
    %v165 = vld [vmem:[#allocation8 + $0x48] sm:$0xff]
    %v166 = vld [vmem:[#allocation8 + $0x50] sm:$0xff]
    %v167 = vld [vmem:[#allocation8 + $0x58] sm:$0xff]
    %v168 = vld [vmem:[#allocation8 + $0x60] sm:$0xff]
    %v169 = vld [vmem:[#allocation8 + $0x68] sm:$0xff]
    %v170 = vld [vmem:[#allocation8 + $0x70] sm:$0xff]
    %v171 = vld [vmem:[#allocation8 + $0x78] sm:$0xff]
    %v172 = vld [vmem:[#allocation8 + $0x80] sm:$0xff]
    %v173 = vld [vmem:[#allocation8 + $0x88] sm:$0xff]
    %v174 = vld [vmem:[#allocation8 + $0x90] sm:$0xff]
    %v175 = vld [vmem:[#allocation8 + $0x98] sm:$0xff]
    %v176 = vld [vmem:[#allocation8 + $0xa0] sm:$0xff]
    %v177 = vld [vmem:[#allocation8 + $0xa8] sm:$0xff]
    %v178 = vld [vmem:[#allocation8 + $0xb0] sm:$0xff]
    %v179 = vld [vmem:[#allocation8 + $0xb8] sm:$0xff]
    %v180 = vld [vmem:[#allocation8 + $0xc0] sm:$0xff]
    %v181 = vld [vmem:[#allocation8 + $0xc8] sm:$0xff]
    %v182 = vld [vmem:[#allocation8 + $0xd0] sm:$0xff]
    %v183 = vld [vmem:[#allocation8 + $0xd8] sm:$0xff]
    %v184 = vld [vmem:[#allocation8 + $0xe0] sm:$0xff]
    %v185 = vld [vmem:[#allocation8 + $0xe8] sm:$0xff]
    %v186 = vld [vmem:[#allocation8 + $0xf0] sm:$0xff]
    %v187 = vld [vmem:[#allocation8 + $0xf8] sm:$0xff]
    %v188 = vld [vmem:[#allocation8 + $0x100] sm:$0xff]
    %v189 = vld [vmem:[#allocation8 + $0x108] sm:$0xff]
    %v190 = vld [vmem:[#allocation8 + $0x110] sm:$0xff]
    %v191 = vld [vmem:[#allocation8 + $0x118] sm:$0xff]
    %v192 = vld [vmem:[#allocation8 + $0x120] sm:$0xff]
    %v193 = vld [vmem:[#allocation8 + $0x128] sm:$0xff]
    %v194 = vld [vmem:[#allocation8 + $0x130] sm:$0xff]
    %v195 = vld [vmem:[#allocation8 + $0x138] sm:$0xff]
    %v196 = vld [vmem:[#allocation8 + $0x140] sm:$0xff]
    %v197 = vld [vmem:[#allocation8 + $0x148] sm:$0xff]
    %v198 = vld [vmem:[#allocation8 + $0x150] sm:$0xff]
    %v199 = vld [vmem:[#allocation8 + $0x158] sm:$0xff]
    %v200 = vld [vmem:[#allocation8 + $0x160] sm:$0xff]
    %v201 = vld [vmem:[#allocation8 + $0x168] sm:$0xff]
    %v202 = vld [vmem:[#allocation8 + $0x170] sm:$0xff]
    %v203 = vld [vmem:[#allocation8 + $0x178] sm:$0xff]
    %v204 = vld [vmem:[#allocation8 + $0x180] sm:$0xff]
    %v205 = vld [vmem:[#allocation8 + $0x188] sm:$0xff]
    %v206 = vld [vmem:[#allocation8 + $0x190] sm:$0xff]
    %v207 = vld [vmem:[#allocation8 + $0x198] sm:$0xff]
    %v208 = vld [vmem:[#allocation8 + $0x1a0] sm:$0xff]
    %v209 = vld [vmem:[#allocation8 + $0x1a8] sm:$0xff]
    %v210 = vld [vmem:[#allocation8 + $0x1b0] sm:$0xff]
    %v211 = vld [vmem:[#allocation8 + $0x1b8] sm:$0xff]
    %v212 = vld [vmem:[#allocation8 + $0x1c0] sm:$0xff]
    %v213 = vld [vmem:[#allocation8 + $0x1c8] sm:$0xff]
    %v214 = vld [vmem:[#allocation8 + $0x1d0] sm:$0xff]
    %v215 = vld [vmem:[#allocation8 + $0x1d8] sm:$0xff]
    %v216 = vld [vmem:[#allocation8 + $0x1e0] sm:$0xff]
    %v217 = vld [vmem:[#allocation8 + $0x1e8] sm:$0xff]
    %v218 = vld [vmem:[#allocation8 + $0x1f0] sm:$0xff]
    %v219 = vld [vmem:[#allocation8 + $0x1f8] sm:$0xff]
    %v220 = vld [vmem:[#allocation10] sm:$0xf]
    %v221 = vld [vmem:[%s0] sm:$0xff]
    %v222 = vld [vmem:[%s0 + $0x8] sm:$0xff]
    %v223 = vld [vmem:[%s0 + $0x10] sm:$0xff]
    %v224 = vld [vmem:[%s0 + $0x18] sm:$0xff]
    %v225 = vld [vmem:[%s0 + $0x20] sm:$0xff]
    %v226 = vld [vmem:[%s0 + $0x28] sm:$0xff]
    %v227 = vld [vmem:[%s0 + $0x30] sm:$0xff]
    %v228 = vld [vmem:[%s0 + $0x38] sm:$0xff]
    %v230 = vlaneseq
    %v231 = vshrl.u32 %v230, 7
    %v232 = vsub.s32 0, %v231
    %v233 = vrot.slane %v220, %v232
    %v234 = vlaneseq
    %v235 = vshrl.u32 %v234, 7
    %v236 = vsub.s32 1, %v235
    %v237 = vrot.slane %v220, %v236
    %v238 = vlaneseq
    %v239 = vshrl.u32 %v238, 7
    %v240 = vsub.s32 2, %v239
    %v241 = vrot.slane %v220, %v240
    %v242 = vlaneseq
    %v243 = vshrl.u32 %v242, 7
    %v244 = vsub.s32 3, %v243
    %v245 = vrot.slane %v220, %v244
    %250 = vmatprep.subr.mxu0 %v93
    %251 = vmatpush1.msra.mxu0 %v92
    %252 = vmatprep.subr.mxu0 %v97
    %253 = vmatpush1.msra.mxu0 %v96
    %254 = vmatprep.subr.mxu0 %v101
    %255 = vmatpush1.msra.mxu0 %v100
    %256 = vmatprep.subr.mxu0 %v105
    %257 = vmatpush1.msra.mxu0 %v104
    %258 = vmatprep.subr.mxu0 %v109
    %259 = vmatpush1.msra.mxu0 %v108
    %260 = vmatprep.subr.mxu0 %v113
    %261 = vmatpush1.msra.mxu0 %v112
    %262 = vmatprep.subr.mxu0 %v117
    %263 = vmatpush1.msra.mxu0 %v116
    %264 = vmatprep.subr.mxu0 %v121
    %265 = vmatpush1.msra.mxu0 %v120
    %266 = vmatprep.subr.mxu0 %v125
    %267 = vmatpush1.msra.mxu0 %v124
    %268 = vmatprep.subr.mxu0 %v129
    %269 = vmatpush1.msra.mxu0 %v128
    %270 = vmatprep.subr.mxu0 %v133
    %271 = vmatpush1.msra.mxu0 %v132
    %272 = vmatprep.subr.mxu0 %v137
    %273 = vmatpush1.msra.mxu0 %v136
    %274 = vmatprep.subr.mxu0 %v141
    %275 = vmatpush1.msra.mxu0 %v140
    %276 = vmatprep.subr.mxu0 %v145
    %277 = vmatpush1.msra.mxu0 %v144
    %278 = vmatprep.subr.mxu0 %v149
    %279 = vmatpush1.msra.mxu0 %v148
    %280 = vmatprep.subr.mxu0 %v153
    %281 = vmatpush1.msra.mxu0 %v152
    %282 = vmatprep.subr.mxu0 0.0
    %283 = vmatpush1.msra.mxu0 0.0
    %284 = vmatprep.subr.mxu0 0.0
    %285 = vmatpush1.msra.mxu0 0.0
    %286 = vmatprep.subr.mxu0 0.0
    %287 = vmatpush1.msra.mxu0 0.0
    %288 = vmatprep.subr.mxu0 0.0
    %289 = vmatpush1.msra.mxu0 0.0
    %290 = vmatprep.subr.mxu0 0.0
    %291 = vmatpush1.msra.mxu0 0.0
    %292 = vmatprep.subr.mxu0 0.0
    %293 = vmatpush1.msra.mxu0 0.0
    %294 = vmatprep.subr.mxu0 0.0
    %295 = vmatpush1.msra.mxu0 0.0
    %296 = vmatprep.subr.mxu0 0.0
    %297 = vmatpush1.msra.mxu0 0.0
    %298 = vmatprep.subr.mxu0 0.0
    %299 = vmatpush1.msra.mxu0 0.0
    %300 = vmatprep.subr.mxu0 0.0
    %301 = vmatpush1.msra.mxu0 0.0
    %302 = vmatprep.subr.mxu0 0.0
    %303 = vmatpush1.msra.mxu0 0.0
    %304 = vmatprep.subr.mxu0 0.0
    %305 = vmatpush1.msra.mxu0 0.0
    %306 = vmatprep.subr.mxu0 0.0
    %307 = vmatpush1.msra.mxu0 0.0
    %308 = vmatprep.subr.mxu0 0.0
    %309 = vmatpush1.msra.mxu0 0.0
    %310 = vmatprep.subr.mxu0 0.0
    %311 = vmatpush1.msra.mxu0 0.0
    %312 = vmatprep.subr.mxu0 0.0
    %313 = vmatpush1.msra.mxu0 0.0
    %314 = vmatprep.mubr.f32.mxu0 0.0
    %315 = vmatmul.mubr.f32.gmra.mrb[0].mxu0 %v221
    %v316 = vpop.f32.mrb[0].mxu0
    %v317 = vadd.f32 %v233, %v316
    %v318 = vpop.f32.mrb[0].mxu0
    %v319 = vadd.f32 %v237, %v318
    %320 = vmatprep.mubr.f32.mxu0 0.0
    %321 = vmatmul.mubr.f32.gmra.mrb[0].mxu0 %v222
    %v322 = vpop.f32.mrb[0].mxu0
    %v323 = vadd.f32 %v233, %v322
    %v324 = vpop.f32.mrb[0].mxu0
    %v325 = vadd.f32 %v237, %v324
    %326 = vmatprep.mubr.f32.mxu0 0.0
    %327 = vmatmul.mubr.f32.gmra.mrb[0].mxu0 %v223
    %v328 = vpop.f32.mrb[0].mxu0
    %v329 = vadd.f32 %v233, %v328
    %v330 = vpop.f32.mrb[0].mxu0
    %v331 = vadd.f32 %v237, %v330
    %332 = vmatprep.mubr.f32.mxu0 0.0
    %333 = vmatmul.mubr.f32.gmra.mrb[0].mxu0 %v224
    %v334 = vpop.f32.mrb[0].mxu0
    %v335 = vadd.f32 %v233, %v334
    %v336 = vpop.f32.mrb[0].mxu0
    %v337 = vadd.f32 %v237, %v336
    %338 = vmatprep.mubr.f32.mxu0 0.0
    %339 = vmatmul.mubr.f32.gmra.mrb[0].mxu0 %v225
    %v340 = vpop.f32.mrb[0].mxu0
    %v341 = vadd.f32 %v233, %v340
    %v342 = vpop.f32.mrb[0].mxu0
    %v343 = vadd.f32 %v237, %v342
    %344 = vmatprep.mubr.f32.mxu0 0.0
    %345 = vmatmul.mubr.f32.gmra.mrb[0].mxu0 %v226
    %v346 = vpop.f32.mrb[0].mxu0
    %v347 = vadd.f32 %v233, %v346
    %v348 = vpop.f32.mrb[0].mxu0
    %v349 = vadd.f32 %v237, %v348
    %350 = vmatprep.mubr.f32.mxu0 0.0
    %351 = vmatmul.mubr.f32.gmra.mrb[0].mxu0 %v227
    %v352 = vpop.f32.mrb[0].mxu0
    %v353 = vadd.f32 %v233, %v352
    %v354 = vpop.f32.mrb[0].mxu0
    %v355 = vadd.f32 %v237, %v354
    %356 = vmatprep.mubr.f32.mxu0 0.0
    %357 = vmatmul.mubr.f32.gmra.mrb[0].mxu0 %v228
    %v358 = vpop.f32.mrb[0].mxu0
    %v359 = vadd.f32 %v233, %v358
    %v360 = vpop.f32.mrb[0].mxu0
    %v361 = vadd.f32 %v237, %v360
    %362 = vdwg.mxu0
    %363 = vmatprep.subr.mxu0 %v95
    %364 = vmatpush1.msra.mxu0 %v94
    %365 = vmatprep.subr.mxu0 %v99
    %366 = vmatpush1.msra.mxu0 %v98
    %367 = vmatprep.subr.mxu0 %v103
    %368 = vmatpush1.msra.mxu0 %v102
    %369 = vmatprep.subr.mxu0 %v107
    %370 = vmatpush1.msra.mxu0 %v106
    %371 = vmatprep.subr.mxu0 %v111
    %372 = vmatpush1.msra.mxu0 %v110
    %373 = vmatprep.subr.mxu0 %v115
    %374 = vmatpush1.msra.mxu0 %v114
    %375 = vmatprep.subr.mxu0 %v119
    %376 = vmatpush1.msra.mxu0 %v118
    %377 = vmatprep.subr.mxu0 %v123
    %378 = vmatpush1.msra.mxu0 %v122
    %379 = vmatprep.subr.mxu0 %v127
    %380 = vmatpush1.msra.mxu0 %v126
    %381 = vmatprep.subr.mxu0 %v131
    %382 = vmatpush1.msra.mxu0 %v130
    %383 = vmatprep.subr.mxu0 %v135
    %384 = vmatpush1.msra.mxu0 %v134
    %385 = vmatprep.subr.mxu0 %v139
    %386 = vmatpush1.msra.mxu0 %v138
    %387 = vmatprep.subr.mxu0 %v143
    %388 = vmatpush1.msra.mxu0 %v142
    %389 = vmatprep.subr.mxu0 %v147
    %390 = vmatpush1.msra.mxu0 %v146
    %391 = vmatprep.subr.mxu0 %v151
    %392 = vmatpush1.msra.mxu0 %v150
    %393 = vmatprep.subr.mxu0 %v155
    %394 = vmatpush1.msra.mxu0 %v154
    %395 = vmatprep.subr.mxu0 0.0
    %396 = vmatpush1.msra.mxu0 0.0
    %397 = vmatprep.subr.mxu0 0.0
    %398 = vmatpush1.msra.mxu0 0.0
    %399 = vmatprep.subr.mxu0 0.0
    %400 = vmatpush1.msra.mxu0 0.0
    %401 = vmatprep.subr.mxu0 0.0
    %402 = vmatpush1.msra.mxu0 0.0
    %403 = vmatprep.subr.mxu0 0.0
    %404 = vmatpush1.msra.mxu0 0.0
    %405 = vmatprep.subr.mxu0 0.0
    %406 = vmatpush1.msra.mxu0 0.0
    %407 = vmatprep.subr.mxu0 0.0
    %408 = vmatpush1.msra.mxu0 0.0
    %409 = vmatprep.subr.mxu0 0.0
    %410 = vmatpush1.msra.mxu0 0.0
    %411 = vmatprep.subr.mxu0 0.0
    %412 = vmatpush1.msra.mxu0 0.0
    %413 = vmatprep.subr.mxu0 0.0
    %414 = vmatpush1.msra.mxu0 0.0
    %415 = vmatprep.subr.mxu0 0.0
    %416 = vmatpush1.msra.mxu0 0.0
    %417 = vmatprep.subr.mxu0 0.0
    %418 = vmatpush1.msra.mxu0 0.0
    %419 = vmatprep.subr.mxu0 0.0
    %420 = vmatpush1.msra.mxu0 0.0
    %421 = vmatprep.subr.mxu0 0.0
    %422 = vmatpush1.msra.mxu0 0.0
    %423 = vmatprep.subr.mxu0 0.0
    %424 = vmatpush1.msra.mxu0 0.0
    %425 = vmatprep.subr.mxu0 0.0
    %426 = vmatpush1.msra.mxu0 0.0
    %427 = vmatprep.mubr.f32.mxu0 0.0
    %428 = vmatmul.mubr.f32.gmra.mrb[0].mxu0 %v221
    %v429 = vpop.f32.mrb[0].mxu0
    %v430 = vadd.f32 %v241, %v429
    %v431 = vpop.f32.mrb[0].mxu0
    %v432 = vadd.f32 %v245, %v431
    %433 = vmatprep.mubr.f32.mxu0 0.0
    %434 = vmatmul.mubr.f32.gmra.mrb[0].mxu0 %v222
    %v435 = vpop.f32.mrb[0].mxu0
    %v436 = vadd.f32 %v241, %v435
    %v437 = vpop.f32.mrb[0].mxu0
    %v438 = vadd.f32 %v245, %v437
    %439 = vmatprep.mubr.f32.mxu0 0.0
    %440 = vmatmul.mubr.f32.gmra.mrb[0].mxu0 %v223
    %v441 = vpop.f32.mrb[0].mxu0
    %v442 = vadd.f32 %v241, %v441
    %v443 = vpop.f32.mrb[0].mxu0
    %v444 = vadd.f32 %v245, %v443
    %445 = vmatprep.mubr.f32.mxu0 0.0
    %446 = vmatmul.mubr.f32.gmra.mrb[0].mxu0 %v224
    %v447 = vpop.f32.mrb[0].mxu0
    %v448 = vadd.f32 %v241, %v447
    %v449 = vpop.f32.mrb[0].mxu0
    %v450 = vadd.f32 %v245, %v449
    %451 = vmatprep.mubr.f32.mxu0 0.0
    %452 = vmatmul.mubr.f32.gmra.mrb[0].mxu0 %v225
    %v453 = vpop.f32.mrb[0].mxu0
    %v454 = vadd.f32 %v241, %v453
    %v455 = vpop.f32.mrb[0].mxu0
    %v456 = vadd.f32 %v245, %v455
    %457 = vmatprep.mubr.f32.mxu0 0.0
    %458 = vmatmul.mubr.f32.gmra.mrb[0].mxu0 %v226
    %v459 = vpop.f32.mrb[0].mxu0
    %v460 = vadd.f32 %v241, %v459
    %v461 = vpop.f32.mrb[0].mxu0
    %v462 = vadd.f32 %v245, %v461
    %463 = vmatprep.mubr.f32.mxu0 0.0
    %464 = vmatmul.mubr.f32.gmra.mrb[0].mxu0 %v227
    %v465 = vpop.f32.mrb[0].mxu0
    %v466 = vadd.f32 %v241, %v465
    %v467 = vpop.f32.mrb[0].mxu0
    %v468 = vadd.f32 %v245, %v467
    %469 = vmatprep.mubr.f32.mxu0 0.0
    %470 = vmatmul.mubr.f32.gmra.mrb[0].mxu0 %v228
    %v471 = vpop.f32.mrb[0].mxu0
    %v472 = vadd.f32 %v241, %v471
    %v473 = vpop.f32.mrb[0].mxu0
    %v474 = vadd.f32 %v245, %v473
    %475 = vdwg.mxu0
    %476 = vst [vmem:[#allocation3] sm:$0xff] %v317
    %477 = vst [vmem:[#allocation3 + $0x8] sm:$0xff] %v319
    %478 = vst [vmem:[#allocation3 + $0x10] sm:$0xff] %v430
    %479 = vst [vmem:[#allocation3 + $0x18] sm:$0xff] %v432
    %480 = vst [vmem:[#allocation3 + $0x20] sm:$0xff] %v323
    %481 = vst [vmem:[#allocation3 + $0x28] sm:$0xff] %v325
    %482 = vst [vmem:[#allocation3 + $0x30] sm:$0xff] %v436
    %483 = vst [vmem:[#allocation3 + $0x38] sm:$0xff] %v438
    %484 = vst [vmem:[#allocation3 + $0x40] sm:$0xff] %v329
    %485 = vst [vmem:[#allocation3 + $0x48] sm:$0xff] %v331
    %486 = vst [vmem:[#allocation3 + $0x50] sm:$0xff] %v442
    %487 = vst [vmem:[#allocation3 + $0x58] sm:$0xff] %v444
    %488 = vst [vmem:[#allocation3 + $0x60] sm:$0xff] %v335
    %489 = vst [vmem:[#allocation3 + $0x68] sm:$0xff] %v337
    %490 = vst [vmem:[#allocation3 + $0x70] sm:$0xff] %v448
    %491 = vst [vmem:[#allocation3 + $0x78] sm:$0xff] %v450
    %492 = vst [vmem:[#allocation3 + $0x80] sm:$0xff] %v341
    %493 = vst [vmem:[#allocation3 + $0x88] sm:$0xff] %v343
    %494 = vst [vmem:[#allocation3 + $0x90] sm:$0xff] %v454
    %495 = vst [vmem:[#allocation3 + $0x98] sm:$0xff] %v456
    %496 = vst [vmem:[#allocation3 + $0xa0] sm:$0xff] %v347
    %497 = vst [vmem:[#allocation3 + $0xa8] sm:$0xff] %v349
    %498 = vst [vmem:[#allocation3 + $0xb0] sm:$0xff] %v460
    %499 = vst [vmem:[#allocation3 + $0xb8] sm:$0xff] %v462
    %500 = vst [vmem:[#allocation3 + $0xc0] sm:$0xff] %v353
    %501 = vst [vmem:[#allocation3 + $0xc8] sm:$0xff] %v355
    %502 = vst [vmem:[#allocation3 + $0xd0] sm:$0xff] %v466
    %503 = vst [vmem:[#allocation3 + $0xd8] sm:$0xff] %v468
    %504 = vst [vmem:[#allocation3 + $0xe0] sm:$0xff] %v359
    %505 = vst [vmem:[#allocation3 + $0xe8] sm:$0xff] %v361
    %506 = vst [vmem:[#allocation3 + $0xf0] sm:$0xff] %v472
    %507 = vst [vmem:[#allocation3 + $0xf8] sm:$0xff] %v474
    %508 = vst [vmem:[#allocation4] sm:$0xff] 0.0
    %509 = vst [vmem:[#allocation5] sm:$0xff] 0.0
    %v510 = vld [vmem:[#allocation3] sm:$0xff]
    %v511 = vld [vmem:[#allocation3 + $0x8] sm:$0xff]
    %v512 = vld [vmem:[#allocation3 + $0x10] sm:$0xff]
    %v513 = vld [vmem:[#allocation3 + $0x18] sm:$0xff]
    %v514 = vld [vmem:[#allocation4] sm:$0xff]
    %515 = vmatprep.subr.mxu0 %v157
    %516 = vmatpush1.msra.mxu0 %v156
    %517 = vmatprep.subr.mxu0 %v161
    %518 = vmatpush1.msra.mxu0 %v160
    %519 = vmatprep.subr.mxu0 %v165
    %520 = vmatpush1.msra.mxu0 %v164
    %521 = vmatprep.subr.mxu0 %v169
    %522 = vmatpush1.msra.mxu0 %v168
    %523 = vmatprep.subr.mxu0 %v173
    %524 = vmatpush1.msra.mxu0 %v172
    %525 = vmatprep.subr.mxu0 %v177
    %526 = vmatpush1.msra.mxu0 %v176
    %527 = vmatprep.subr.mxu0 %v181
    %528 = vmatpush1.msra.mxu0 %v180
    %529 = vmatprep.subr.mxu0 %v185
    %530 = vmatpush1.msra.mxu0 %v184
    %531 = vmatprep.subr.mxu0 %v189
    %532 = vmatpush1.msra.mxu0 %v188
    %533 = vmatprep.subr.mxu0 %v193
    %534 = vmatpush1.msra.mxu0 %v192
    %535 = vmatprep.subr.mxu0 %v197
    %536 = vmatpush1.msra.mxu0 %v196
    %537 = vmatprep.subr.mxu0 %v201
    %538 = vmatpush1.msra.mxu0 %v200
    %539 = vmatprep.subr.mxu0 %v205
    %540 = vmatpush1.msra.mxu0 %v204
    %541 = vmatprep.subr.mxu0 %v209
    %542 = vmatpush1.msra.mxu0 %v208
    %543 = vmatprep.subr.mxu0 %v213
    %544 = vmatpush1.msra.mxu0 %v212
    %545 = vmatprep.subr.mxu0 %v217
    %546 = vmatpush1.msra.mxu0 %v216
    %547 = vmatprep.subr.mxu0 0.0
    %548 = vmatpush1.msra.mxu0 0.0
    %549 = vmatprep.subr.mxu0 0.0
    %550 = vmatpush1.msra.mxu0 0.0
    %551 = vmatprep.subr.mxu0 0.0
    %552 = vmatpush1.msra.mxu0 0.0
    %553 = vmatprep.subr.mxu0 0.0
    %554 = vmatpush1.msra.mxu0 0.0
    %555 = vmatprep.subr.mxu0 0.0
    %556 = vmatpush1.msra.mxu0 0.0
    %557 = vmatprep.subr.mxu0 0.0
    %558 = vmatpush1.msra.mxu0 0.0
    %559 = vmatprep.subr.mxu0 0.0
    %560 = vmatpush1.msra.mxu0 0.0
    %561 = vmatprep.subr.mxu0 0.0
    %562 = vmatpush1.msra.mxu0 0.0
    %563 = vmatprep.subr.mxu0 0.0
    %564 = vmatpush1.msra.mxu0 0.0
    %565 = vmatprep.subr.mxu0 0.0
    %566 = vmatpush1.msra.mxu0 0.0
    %567 = vmatprep.subr.mxu0 0.0
    %568 = vmatpush1.msra.mxu0 0.0
    %569 = vmatprep.subr.mxu0 0.0
    %570 = vmatpush1.msra.mxu0 0.0
    %571 = vmatprep.subr.mxu0 0.0
    %572 = vmatpush1.msra.mxu0 0.0
    %573 = vmatprep.subr.mxu0 0.0
    %574 = vmatpush1.msra.mxu0 0.0
    %575 = vmatprep.subr.mxu0 0.0
    %576 = vmatpush1.msra.mxu0 0.0
    %577 = vmatprep.subr.mxu0 0.0
    %578 = vmatpush1.msra.mxu0 0.0
    %579 = vmatprep.mubr.f32.mxu0 0.0
    %580 = vmatmul.mubr.f32.gmra.mrb[0].mxu0 %v514
    %v581 = vpop.f32.mrb[0].mxu0
    %v582 = vadd.f32 0.0, %v581
    %v583 = vpop.f32.mrb[0].mxu0
    %v584 = vadd.f32 0.0, %v583
    %585 = vdwg.mxu0
    %586 = vmatprep.subr.mxu0 %v159
    %587 = vmatpush1.msra.mxu0 %v158
    %588 = vmatprep.subr.mxu0 %v163
    %589 = vmatpush1.msra.mxu0 %v162
    %590 = vmatprep.subr.mxu0 %v167
    %591 = vmatpush1.msra.mxu0 %v166
    %592 = vmatprep.subr.mxu0 %v171
    %593 = vmatpush1.msra.mxu0 %v170
    %594 = vmatprep.subr.mxu0 %v175
    %595 = vmatpush1.msra.mxu0 %v174
    %596 = vmatprep.subr.mxu0 %v179
    %597 = vmatpush1.msra.mxu0 %v178
    %598 = vmatprep.subr.mxu0 %v183
    %599 = vmatpush1.msra.mxu0 %v182
    %600 = vmatprep.subr.mxu0 %v187
    %601 = vmatpush1.msra.mxu0 %v186
    %602 = vmatprep.subr.mxu0 %v191
    %603 = vmatpush1.msra.mxu0 %v190
    %604 = vmatprep.subr.mxu0 %v195
    %605 = vmatpush1.msra.mxu0 %v194
    %606 = vmatprep.subr.mxu0 %v199
    %607 = vmatpush1.msra.mxu0 %v198
    %608 = vmatprep.subr.mxu0 %v203
    %609 = vmatpush1.msra.mxu0 %v202
    %610 = vmatprep.subr.mxu0 %v207
    %611 = vmatpush1.msra.mxu0 %v206
    %612 = vmatprep.subr.mxu0 %v211
    %613 = vmatpush1.msra.mxu0 %v210
    %614 = vmatprep.subr.mxu0 %v215
    %615 = vmatpush1.msra.mxu0 %v214
    %616 = vmatprep.subr.mxu0 %v219
    %617 = vmatpush1.msra.mxu0 %v218
    %618 = vmatprep.subr.mxu0 0.0
    %619 = vmatpush1.msra.mxu0 0.0
    %620 = vmatprep.subr.mxu0 0.0
    %621 = vmatpush1.msra.mxu0 0.0
    %622 = vmatprep.subr.mxu0 0.0
    %623 = vmatpush1.msra.mxu0 0.0
    %624 = vmatprep.subr.mxu0 0.0
    %625 = vmatpush1.msra.mxu0 0.0
    %626 = vmatprep.subr.mxu0 0.0
    %627 = vmatpush1.msra.mxu0 0.0
    %628 = vmatprep.subr.mxu0 0.0
    %629 = vmatpush1.msra.mxu0 0.0
    %630 = vmatprep.subr.mxu0 0.0
    %631 = vmatpush1.msra.mxu0 0.0
    %632 = vmatprep.subr.mxu0 0.0
    %633 = vmatpush1.msra.mxu0 0.0
    %634 = vmatprep.subr.mxu0 0.0
    %635 = vmatpush1.msra.mxu0 0.0
    %636 = vmatprep.subr.mxu0 0.0
    %637 = vmatpush1.msra.mxu0 0.0
    %638 = vmatprep.subr.mxu0 0.0
    %639 = vmatpush1.msra.mxu0 0.0
    %640 = vmatprep.subr.mxu0 0.0
    %641 = vmatpush1.msra.mxu0 0.0
    %642 = vmatprep.subr.mxu0 0.0
    %643 = vmatpush1.msra.mxu0 0.0
    %644 = vmatprep.subr.mxu0 0.0
    %645 = vmatpush1.msra.mxu0 0.0
    %646 = vmatprep.subr.mxu0 0.0
    %647 = vmatpush1.msra.mxu0 0.0
    %648 = vmatprep.subr.mxu0 0.0
    %649 = vmatpush1.msra.mxu0 0.0
    %650 = vmatprep.mubr.f32.mxu0 0.0
    %651 = vmatmul.mubr.f32.gmra.mrb[0].mxu0 %v514
    %v652 = vpop.f32.mrb[0].mxu0
    %v653 = vadd.f32 0.0, %v652
    %v654 = vpop.f32.mrb[0].mxu0
    %v655 = vadd.f32 0.0, %v654
    %656 = vdwg.mxu0
    %v657 = vadd.f32 %v510, %v582
    %v658 = vadd.f32 %v511, %v584
    %v659 = vadd.f32 %v512, %v653
    %v660 = vadd.f32 %v513, %v655
    %v661 = vxor.u32 %v657, 2147483648
    %v662 = vmul.f32 %v661, 1.442695
    %v663 = vpow.pop %v662
    %v664 = vadd.f32 %v663, 1.0
    %v665 = vrcp.pop %v664
    %v666 = vmul.f32 1.0, %v665
    %v667 = vxor.u32 %v658, 2147483648
    %v668 = vmul.f32 %v667, 1.442695
    %v669 = vpow.pop %v668
    %v670 = vadd.f32 %v669, 1.0
    %v671 = vrcp.pop %v670
    %v672 = vmul.f32 1.0, %v671
    %v673 = vtanh.pop %v659
    %v674 = vxor.u32 %v660, 2147483648
    %v675 = vmul.f32 %v674, 1.442695
    %v676 = vpow.pop %v675
    %v677 = vadd.f32 %v676, 1.0
    %v678 = vrcp.pop %v677
    %v679 = vmul.f32 1.0, %v678
    %v680 = vld [vmem:[#allocation5] sm:$0xff]
    %v681 = vmul.f32 %v672, %v680
    %v682 = vmul.f32 %v666, %v673
    %v683 = vadd.f32 %v681, %v682
    %v684 = vtanh.pop %v683
    %v685 = vmul.f32 %v679, %v684
    %686 = vst [vmem:[#allocation5] sm:$0xff] %v683
    %687 = vst [vmem:[#allocation4] sm:$0xff] %v685
    %688 = vst [vmem:[#allocation2] sm:$0xff] %v685
    %s689 = scalar_lea.vmem [#allocation3], 32
    %v690 = vld [vmem:[%s689] sm:$0xff]
    %v691 = vld [vmem:[%s689 + $0x8] sm:$0xff]
    %v692 = vld [vmem:[%s689 + $0x10] sm:$0xff]
    %v693 = vld [vmem:[%s689 + $0x18] sm:$0xff]
    %v694 = vld [vmem:[#allocation4] sm:$0xff]
    %695 = vmatprep.subr.mxu0 %v157
    %696 = vmatpush1.msra.mxu0 %v156
    %697 = vmatprep.subr.mxu0 %v161
    %698 = vmatpush1.msra.mxu0 %v160
    %699 = vmatprep.subr.mxu0 %v165
    %700 = vmatpush1.msra.mxu0 %v164
    %701 = vmatprep.subr.mxu0 %v169
    %702 = vmatpush1.msra.mxu0 %v168
    %703 = vmatprep.subr.mxu0 %v173
    %704 = vmatpush1.msra.mxu0 %v172
    %705 = vmatprep.subr.mxu0 %v177
    %706 = vmatpush1.msra.mxu0 %v176
    %707 = vmatprep.subr.mxu0 %v181
    %708 = vmatpush1.msra.mxu0 %v180
    %709 = vmatprep.subr.mxu0 %v185
    %710 = vmatpush1.msra.mxu0 %v184
    %711 = vmatprep.subr.mxu0 %v189
    %712 = vmatpush1.msra.mxu0 %v188
    %713 = vmatprep.subr.mxu0 %v193
    %714 = vmatpush1.msra.mxu0 %v192
    %715 = vmatprep.subr.mxu0 %v197
    %716 = vmatpush1.msra.mxu0 %v196
    %717 = vmatprep.subr.mxu0 %v201
    %718 = vmatpush1.msra.mxu0 %v200
    %719 = vmatprep.subr.mxu0 %v205
    %720 = vmatpush1.msra.mxu0 %v204
    %721 = vmatprep.subr.mxu0 %v209
    %722 = vmatpush1.msra.mxu0 %v208
    %723 = vmatprep.subr.mxu0 %v213
    %724 = vmatpush1.msra.mxu0 %v212
    %725 = vmatprep.subr.mxu0 %v217
    %726 = vmatpush1.msra.mxu0 %v216
    %727 = vmatprep.subr.mxu0 0.0
    %728 = vmatpush1.msra.mxu0 0.0
    %729 = vmatprep.subr.mxu0 0.0
    %730 = vmatpush1.msra.mxu0 0.0
    %731 = vmatprep.subr.mxu0 0.0
    %732 = vmatpush1.msra.mxu0 0.0
    %733 = vmatprep.subr.mxu0 0.0
    %734 = vmatpush1.msra.mxu0 0.0
    %735 = vmatprep.subr.mxu0 0.0
    %736 = vmatpush1.msra.mxu0 0.0
    %737 = vmatprep.subr.mxu0 0.0
    %738 = vmatpush1.msra.mxu0 0.0
    %739 = vmatprep.subr.mxu0 0.0
    %740 = vmatpush1.msra.mxu0 0.0
    %741 = vmatprep.subr.mxu0 0.0
    %742 = vmatpush1.msra.mxu0 0.0
    %743 = vmatprep.subr.mxu0 0.0
    %744 = vmatpush1.msra.mxu0 0.0
    %745 = vmatprep.subr.mxu0 0.0
    %746 = vmatpush1.msra.mxu0 0.0
    %747 = vmatprep.subr.mxu0 0.0
    %748 = vmatpush1.msra.mxu0 0.0
    %749 = vmatprep.subr.mxu0 0.0
    %750 = vmatpush1.msra.mxu0 0.0
    %751 = vmatprep.subr.mxu0 0.0
    %752 = vmatpush1.msra.mxu0 0.0
    %753 = vmatprep.subr.mxu0 0.0
    %754 = vmatpush1.msra.mxu0 0.0
    %755 = vmatprep.subr.mxu0 0.0
    %756 = vmatpush1.msra.mxu0 0.0
    %757 = vmatprep.subr.mxu0 0.0
    %758 = vmatpush1.msra.mxu0 0.0
    %759 = vmatprep.mubr.f32.mxu0 0.0
    %760 = vmatmul.mubr.f32.gmra.mrb[0].mxu0 %v694
    %v761 = vpop.f32.mrb[0].mxu0
    %v762 = vadd.f32 0.0, %v761
    %v763 = vpop.f32.mrb[0].mxu0
    %v764 = vadd.f32 0.0, %v763
    %765 = vdwg.mxu0
    %766 = vmatprep.subr.mxu0 %v159
    %767 = vmatpush1.msra.mxu0 %v158
    %768 = vmatprep.subr.mxu0 %v163
    %769 = vmatpush1.msra.mxu0 %v162
    %770 = vmatprep.subr.mxu0 %v167
    %771 = vmatpush1.msra.mxu0 %v166
    %772 = vmatprep.subr.mxu0 %v171
    %773 = vmatpush1.msra.mxu0 %v170
    %774 = vmatprep.subr.mxu0 %v175
    %775 = vmatpush1.msra.mxu0 %v174
    %776 = vmatprep.subr.mxu0 %v179
    %777 = vmatpush1.msra.mxu0 %v178
    %778 = vmatprep.subr.mxu0 %v183
    %779 = vmatpush1.msra.mxu0 %v182
    %780 = vmatprep.subr.mxu0 %v187
    %781 = vmatpush1.msra.mxu0 %v186
    %782 = vmatprep.subr.mxu0 %v191
    %783 = vmatpush1.msra.mxu0 %v190
    %784 = vmatprep.subr.mxu0 %v195
    %785 = vmatpush1.msra.mxu0 %v194
    %786 = vmatprep.subr.mxu0 %v199
    %787 = vmatpush1.msra.mxu0 %v198
    %788 = vmatprep.subr.mxu0 %v203
    %789 = vmatpush1.msra.mxu0 %v202
    %790 = vmatprep.subr.mxu0 %v207
    %791 = vmatpush1.msra.mxu0 %v206
    %792 = vmatprep.subr.mxu0 %v211
    %793 = vmatpush1.msra.mxu0 %v210
    %794 = vmatprep.subr.mxu0 %v215
    %795 = vmatpush1.msra.mxu0 %v214
    %796 = vmatprep.subr.mxu0 %v219
    %797 = vmatpush1.msra.mxu0 %v218
    %798 = vmatprep.subr.mxu0 0.0
    %799 = vmatpush1.msra.mxu0 0.0
    %800 = vmatprep.subr.mxu0 0.0
    %801 = vmatpush1.msra.mxu0 0.0
    %802 = vmatprep.subr.mxu0 0.0
    %803 = vmatpush1.msra.mxu0 0.0
    %804 = vmatprep.subr.mxu0 0.0
    %805 = vmatpush1.msra.mxu0 0.0
    %806 = vmatprep.subr.mxu0 0.0
    %807 = vmatpush1.msra.mxu0 0.0
    %808 = vmatprep.subr.mxu0 0.0
    %809 = vmatpush1.msra.mxu0 0.0
    %810 = vmatprep.subr.mxu0 0.0
    %811 = vmatpush1.msra.mxu0 0.0
    %812 = vmatprep.subr.mxu0 0.0
    %813 = vmatpush1.msra.mxu0 0.0
    %814 = vmatprep.subr.mxu0 0.0
    %815 = vmatpush1.msra.mxu0 0.0
    %816 = vmatprep.subr.mxu0 0.0
    %817 = vmatpush1.msra.mxu0 0.0
    %818 = vmatprep.subr.mxu0 0.0
    %819 = vmatpush1.msra.mxu0 0.0
    %820 = vmatprep.subr.mxu0 0.0
    %821 = vmatpush1.msra.mxu0 0.0
    %822 = vmatprep.subr.mxu0 0.0
    %823 = vmatpush1.msra.mxu0 0.0
    %824 = vmatprep.subr.mxu0 0.0
    %825 = vmatpush1.msra.mxu0 0.0
    %826 = vmatprep.subr.mxu0 0.0
    %827 = vmatpush1.msra.mxu0 0.0
    %828 = vmatprep.subr.mxu0 0.0
    %829 = vmatpush1.msra.mxu0 0.0
    %830 = vmatprep.mubr.f32.mxu0 0.0
    %831 = vmatmul.mubr.f32.gmra.mrb[0].mxu0 %v694
    %v832 = vpop.f32.mrb[0].mxu0
    %v833 = vadd.f32 0.0, %v832
    %v834 = vpop.f32.mrb[0].mxu0
    %v835 = vadd.f32 0.0, %v834
    %836 = vdwg.mxu0
    %v837 = vadd.f32 %v690, %v762
    %v838 = vadd.f32 %v691, %v764
    %v839 = vadd.f32 %v692, %v833
    %v840 = vadd.f32 %v693, %v835
    %v841 = vxor.u32 %v837, 2147483648
    %v842 = vmul.f32 %v841, 1.442695
    %v843 = vpow.pop %v842
    %v844 = vadd.f32 %v843, 1.0
    %v845 = vrcp.pop %v844
    %v846 = vmul.f32 1.0, %v845
    %v847 = vxor.u32 %v838, 2147483648
    %v848 = vmul.f32 %v847, 1.442695
    %v849 = vpow.pop %v848
    %v850 = vadd.f32 %v849, 1.0
    %v851 = vrcp.pop %v850
    %v852 = vmul.f32 1.0, %v851
    %v853 = vtanh.pop %v839
    %v854 = vxor.u32 %v840, 2147483648
    %v855 = vmul.f32 %v854, 1.442695
    %v856 = vpow.pop %v855
    %v857 = vadd.f32 %v856, 1.0
    %v858 = vrcp.pop %v857
    %v859 = vmul.f32 1.0, %v858
    %v860 = vld [vmem:[#allocation5] sm:$0xff]
    %v861 = vmul.f32 %v852, %v860
    %v862 = vmul.f32 %v846, %v853
    %v863 = vadd.f32 %v861, %v862
    %v864 = vtanh.pop %v863
    %v865 = vmul.f32 %v859, %v864
    %866 = vst [vmem:[#allocation5] sm:$0xff] %v863
    %867 = vst [vmem:[#allocation4] sm:$0xff] %v865
    %s868 = scalar_lea.vmem [#allocation2], 8
    %869 = vst [vmem:[%s868] sm:$0xff] %v865
    %s870 = scalar_lea.vmem [#allocation3], 64
    %v871 = vld [vmem:[%s870] sm:$0xff]
    %v872 = vld [vmem:[%s870 + $0x8] sm:$0xff]
    %v873 = vld [vmem:[%s870 + $0x10] sm:$0xff]
    %v874 = vld [vmem:[%s870 + $0x18] sm:$0xff]
    %v875 = vld [vmem:[#allocation4] sm:$0xff]
    %876 = vmatprep.subr.mxu0 %v157
    %877 = vmatpush1.msra.mxu0 %v156
    %878 = vmatprep.subr.mxu0 %v161
    %879 = vmatpush1.msra.mxu0 %v160
    %880 = vmatprep.subr.mxu0 %v165
    %881 = vmatpush1.msra.mxu0 %v164
    %882 = vmatprep.subr.mxu0 %v169
    %883 = vmatpush1.msra.mxu0 %v168
    %884 = vmatprep.subr.mxu0 %v173
    %885 = vmatpush1.msra.mxu0 %v172
    %886 = vmatprep.subr.mxu0 %v177
    %887 = vmatpush1.msra.mxu0 %v176
    %888 = vmatprep.subr.mxu0 %v181
    %889 = vmatpush1.msra.mxu0 %v180
    %890 = vmatprep.subr.mxu0 %v185
    %891 = vmatpush1.msra.mxu0 %v184
    %892 = vmatprep.subr.mxu0 %v189
    %893 = vmatpush1.msra.mxu0 %v188
    %894 = vmatprep.subr.mxu0 %v193
    %895 = vmatpush1.msra.mxu0 %v192
    %896 = vmatprep.subr.mxu0 %v197
    %897 = vmatpush1.msra.mxu0 %v196
    %898 = vmatprep.subr.mxu0 %v201
    %899 = vmatpush1.msra.mxu0 %v200
    %900 = vmatprep.subr.mxu0 %v205
    %901 = vmatpush1.msra.mxu0 %v204
    %902 = vmatprep.subr.mxu0 %v209
    %903 = vmatpush1.msra.mxu0 %v208
    %904 = vmatprep.subr.mxu0 %v213
    %905 = vmatpush1.msra.mxu0 %v212
    %906 = vmatprep.subr.mxu0 %v217
    %907 = vmatpush1.msra.mxu0 %v216
    %908 = vmatprep.subr.mxu0 0.0
    %909 = vmatpush1.msra.mxu0 0.0
    %910 = vmatprep.subr.mxu0 0.0
    %911 = vmatpush1.msra.mxu0 0.0
    %912 = vmatprep.subr.mxu0 0.0
    %913 = vmatpush1.msra.mxu0 0.0
    %914 = vmatprep.subr.mxu0 0.0
    %915 = vmatpush1.msra.mxu0 0.0
    %916 = vmatprep.subr.mxu0 0.0
    %917 = vmatpush1.msra.mxu0 0.0
    %918 = vmatprep.subr.mxu0 0.0
    %919 = vmatpush1.msra.mxu0 0.0
    %920 = vmatprep.subr.mxu0 0.0
    %921 = vmatpush1.msra.mxu0 0.0
    %922 = vmatprep.subr.mxu0 0.0
    %923 = vmatpush1.msra.mxu0 0.0
    %924 = vmatprep.subr.mxu0 0.0
    %925 = vmatpush1.msra.mxu0 0.0
    %926 = vmatprep.subr.mxu0 0.0
    %927 = vmatpush1.msra.mxu0 0.0
    %928 = vmatprep.subr.mxu0 0.0
    %929 = vmatpush1.msra.mxu0 0.0
    %930 = vmatprep.subr.mxu0 0.0
    %931 = vmatpush1.msra.mxu0 0.0
    %932 = vmatprep.subr.mxu0 0.0
    %933 = vmatpush1.msra.mxu0 0.0
    %934 = vmatprep.subr.mxu0 0.0
    %935 = vmatpush1.msra.mxu0 0.0
    %936 = vmatprep.subr.mxu0 0.0
    %937 = vmatpush1.msra.mxu0 0.0
    %938 = vmatprep.subr.mxu0 0.0
    %939 = vmatpush1.msra.mxu0 0.0
    %940 = vmatprep.mubr.f32.mxu0 0.0
    %941 = vmatmul.mubr.f32.gmra.mrb[0].mxu0 %v875
    %v942 = vpop.f32.mrb[0].mxu0
    %v943 = vadd.f32 0.0, %v942
    %v944 = vpop.f32.mrb[0].mxu0
    %v945 = vadd.f32 0.0, %v944
    %946 = vdwg.mxu0
    %947 = vmatprep.subr.mxu0 %v159
    %948 = vmatpush1.msra.mxu0 %v158
    %949 = vmatprep.subr.mxu0 %v163
    %950 = vmatpush1.msra.mxu0 %v162
    %951 = vmatprep.subr.mxu0 %v167
    %952 = vmatpush1.msra.mxu0 %v166
    %953 = vmatprep.subr.mxu0 %v171
    %954 = vmatpush1.msra.mxu0 %v170
    %955 = vmatprep.subr.mxu0 %v175
    %956 = vmatpush1.msra.mxu0 %v174
    %957 = vmatprep.subr.mxu0 %v179
    %958 = vmatpush1.msra.mxu0 %v178
    %959 = vmatprep.subr.mxu0 %v183
    %960 = vmatpush1.msra.mxu0 %v182
    %961 = vmatprep.subr.mxu0 %v187
    %962 = vmatpush1.msra.mxu0 %v186
    %963 = vmatprep.subr.mxu0 %v191
    %964 = vmatpush1.msra.mxu0 %v190
    %965 = vmatprep.subr.mxu0 %v195
    %966 = vmatpush1.msra.mxu0 %v194
    %967 = vmatprep.subr.mxu0 %v199
    %968 = vmatpush1.msra.mxu0 %v198
    %969 = vmatprep.subr.mxu0 %v203
    %970 = vmatpush1.msra.mxu0 %v202
    %971 = vmatprep.subr.mxu0 %v207
    %972 = vmatpush1.msra.mxu0 %v206
    %973 = vmatprep.subr.mxu0 %v211
    %974 = vmatpush1.msra.mxu0 %v210
    %975 = vmatprep.subr.mxu0 %v215
    %976 = vmatpush1.msra.mxu0 %v214
    %977 = vmatprep.subr.mxu0 %v219
    %978 = vmatpush1.msra.mxu0 %v218
    %979 = vmatprep.subr.mxu0 0.0
    %980 = vmatpush1.msra.mxu0 0.0
    %981 = vmatprep.subr.mxu0 0.0
    %982 = vmatpush1.msra.mxu0 0.0
    %983 = vmatprep.subr.mxu0 0.0
    %984 = vmatpush1.msra.mxu0 0.0
    %985 = vmatprep.subr.mxu0 0.0
    %986 = vmatpush1.msra.mxu0 0.0
    %987 = vmatprep.subr.mxu0 0.0
    %988 = vmatpush1.msra.mxu0 0.0
    %989 = vmatprep.subr.mxu0 0.0
    %990 = vmatpush1.msra.mxu0 0.0
    %991 = vmatprep.subr.mxu0 0.0
    %992 = vmatpush1.msra.mxu0 0.0
    %993 = vmatprep.subr.mxu0 0.0
    %994 = vmatpush1.msra.mxu0 0.0
    %995 = vmatprep.subr.mxu0 0.0
    %996 = vmatpush1.msra.mxu0 0.0
    %997 = vmatprep.subr.mxu0 0.0
    %998 = vmatpush1.msra.mxu0 0.0
    %999 = vmatprep.subr.mxu0 0.0
    %1000 = vmatpush1.msra.mxu0 0.0
    %1001 = vmatprep.subr.mxu0 0.0
    %1002 = vmatpush1.msra.mxu0 0.0
    %1003 = vmatprep.subr.mxu0 0.0
    %1004 = vmatpush1.msra.mxu0 0.0
    %1005 = vmatprep.subr.mxu0 0.0
    %1006 = vmatpush1.msra.mxu0 0.0
    %1007 = vmatprep.subr.mxu0 0.0
    %1008 = vmatpush1.msra.mxu0 0.0
    %1009 = vmatprep.subr.mxu0 0.0
    %1010 = vmatpush1.msra.mxu0 0.0
    %1011 = vmatprep.mubr.f32.mxu0 0.0
    %1012 = vmatmul.mubr.f32.gmra.mrb[0].mxu0 %v875
    %v1013 = vpop.f32.mrb[0].mxu0
    %v1014 = vadd.f32 0.0, %v1013
    %v1015 = vpop.f32.mrb[0].mxu0
    %v1016 = vadd.f32 0.0, %v1015
    %1017 = vdwg.mxu0
    %v1018 = vadd.f32 %v871, %v943
    %v1019 = vadd.f32 %v872, %v945
    %v1020 = vadd.f32 %v873, %v1014
    %v1021 = vadd.f32 %v874, %v1016
    %v1022 = vxor.u32 %v1018, 2147483648
    %v1023 = vmul.f32 %v1022, 1.442695
    %v1024 = vpow.pop %v1023
    %v1025 = vadd.f32 %v1024, 1.0
    %v1026 = vrcp.pop %v1025
    %v1027 = vmul.f32 1.0, %v1026
    %v1028 = vxor.u32 %v1019, 2147483648
    %v1029 = vmul.f32 %v1028, 1.442695
    %v1030 = vpow.pop %v1029
    %v1031 = vadd.f32 %v1030, 1.0
    %v1032 = vrcp.pop %v1031
    %v1033 = vmul.f32 1.0, %v1032
    %v1034 = vtanh.pop %v1020
    %v1035 = vxor.u32 %v1021, 2147483648
    %v1036 = vmul.f32 %v1035, 1.442695
    %v1037 = vpow.pop %v1036
    %v1038 = vadd.f32 %v1037, 1.0
    %v1039 = vrcp.pop %v1038
    %v1040 = vmul.f32 1.0, %v1039
    %v1041 = vld [vmem:[#allocation5] sm:$0xff]
    %v1042 = vmul.f32 %v1033, %v1041
    %v1043 = vmul.f32 %v1027, %v1034
    %v1044 = vadd.f32 %v1042, %v1043
    %v1045 = vtanh.pop %v1044
    %v1046 = vmul.f32 %v1040, %v1045
    %1047 = vst [vmem:[#allocation5] sm:$0xff] %v1044
    %1048 = vst [vmem:[#allocation4] sm:$0xff] %v1046
    %s1049 = scalar_lea.vmem [#allocation2], 16
    %1050 = vst [vmem:[%s1049] sm:$0xff] %v1046
    %s1051 = scalar_lea.vmem [#allocation3], 96
    %v1052 = vld [vmem:[%s1051] sm:$0xff]
    %v1053 = vld [vmem:[%s1051 + $0x8] sm:$0xff]
    %v1054 = vld [vmem:[%s1051 + $0x10] sm:$0xff]
    %v1055 = vld [vmem:[%s1051 + $0x18] sm:$0xff]
    %v1056 = vld [vmem:[#allocation4] sm:$0xff]
    %1057 = vmatprep.subr.mxu0 %v157
    %1058 = vmatpush1.msra.mxu0 %v156
    %1059 = vmatprep.subr.mxu0 %v161
    %1060 = vmatpush1.msra.mxu0 %v160
    %1061 = vmatprep.subr.mxu0 %v165
    %1062 = vmatpush1.msra.mxu0 %v164
    %1063 = vmatprep.subr.mxu0 %v169
    %1064 = vmatpush1.msra.mxu0 %v168
    %1065 = vmatprep.subr.mxu0 %v173
    %1066 = vmatpush1.msra.mxu0 %v172
    %1067 = vmatprep.subr.mxu0 %v177
    %1068 = vmatpush1.msra.mxu0 %v176
    %1069 = vmatprep.subr.mxu0 %v181
    %1070 = vmatpush1.msra.mxu0 %v180
    %1071 = vmatprep.subr.mxu0 %v185
    %1072 = vmatpush1.msra.mxu0 %v184
    %1073 = vmatprep.subr.mxu0 %v189
    %1074 = vmatpush1.msra.mxu0 %v188
    %1075 = vmatprep.subr.mxu0 %v193
    %1076 = vmatpush1.msra.mxu0 %v192
    %1077 = vmatprep.subr.mxu0 %v197
    %1078 = vmatpush1.msra.mxu0 %v196
    %1079 = vmatprep.subr.mxu0 %v201
    %1080 = vmatpush1.msra.mxu0 %v200
    %1081 = vmatprep.subr.mxu0 %v205
    %1082 = vmatpush1.msra.mxu0 %v204
    %1083 = vmatprep.subr.mxu0 %v209
    %1084 = vmatpush1.msra.mxu0 %v208
    %1085 = vmatprep.subr.mxu0 %v213
    %1086 = vmatpush1.msra.mxu0 %v212
    %1087 = vmatprep.subr.mxu0 %v217
    %1088 = vmatpush1.msra.mxu0 %v216
    %1089 = vmatprep.subr.mxu0 0.0
    %1090 = vmatpush1.msra.mxu0 0.0
    %1091 = vmatprep.subr.mxu0 0.0
    %1092 = vmatpush1.msra.mxu0 0.0
    %1093 = vmatprep.subr.mxu0 0.0
    %1094 = vmatpush1.msra.mxu0 0.0
    %1095 = vmatprep.subr.mxu0 0.0
    %1096 = vmatpush1.msra.mxu0 0.0
    %1097 = vmatprep.subr.mxu0 0.0
    %1098 = vmatpush1.msra.mxu0 0.0
    %1099 = vmatprep.subr.mxu0 0.0
    %1100 = vmatpush1.msra.mxu0 0.0
    %1101 = vmatprep.subr.mxu0 0.0
    %1102 = vmatpush1.msra.mxu0 0.0
    %1103 = vmatprep.subr.mxu0 0.0
    %1104 = vmatpush1.msra.mxu0 0.0
    %1105 = vmatprep.subr.mxu0 0.0
    %1106 = vmatpush1.msra.mxu0 0.0
    %1107 = vmatprep.subr.mxu0 0.0
    %1108 = vmatpush1.msra.mxu0 0.0
    %1109 = vmatprep.subr.mxu0 0.0
    %1110 = vmatpush1.msra.mxu0 0.0
    %1111 = vmatprep.subr.mxu0 0.0
    %1112 = vmatpush1.msra.mxu0 0.0
    %1113 = vmatprep.subr.mxu0 0.0
    %1114 = vmatpush1.msra.mxu0 0.0
    %1115 = vmatprep.subr.mxu0 0.0
    %1116 = vmatpush1.msra.mxu0 0.0
    %1117 = vmatprep.subr.mxu0 0.0
    %1118 = vmatpush1.msra.mxu0 0.0
    %1119 = vmatprep.subr.mxu0 0.0
    %1120 = vmatpush1.msra.mxu0 0.0
    %1121 = vmatprep.mubr.f32.mxu0 0.0
    %1122 = vmatmul.mubr.f32.gmra.mrb[0].mxu0 %v1056
    %v1123 = vpop.f32.mrb[0].mxu0
    %v1124 = vadd.f32 0.0, %v1123
    %v1125 = vpop.f32.mrb[0].mxu0
    %v1126 = vadd.f32 0.0, %v1125
    %1127 = vdwg.mxu0
    %1128 = vmatprep.subr.mxu0 %v159
    %1129 = vmatpush1.msra.mxu0 %v158
    %1130 = vmatprep.subr.mxu0 %v163
    %1131 = vmatpush1.msra.mxu0 %v162
    %1132 = vmatprep.subr.mxu0 %v167
    %1133 = vmatpush1.msra.mxu0 %v166
    %1134 = vmatprep.subr.mxu0 %v171
    %1135 = vmatpush1.msra.mxu0 %v170
    %1136 = vmatprep.subr.mxu0 %v175
    %1137 = vmatpush1.msra.mxu0 %v174
    %1138 = vmatprep.subr.mxu0 %v179
    %1139 = vmatpush1.msra.mxu0 %v178
    %1140 = vmatprep.subr.mxu0 %v183
    %1141 = vmatpush1.msra.mxu0 %v182
    %1142 = vmatprep.subr.mxu0 %v187
    %1143 = vmatpush1.msra.mxu0 %v186
    %1144 = vmatprep.subr.mxu0 %v191
    %1145 = vmatpush1.msra.mxu0 %v190
    %1146 = vmatprep.subr.mxu0 %v195
    %1147 = vmatpush1.msra.mxu0 %v194
    %1148 = vmatprep.subr.mxu0 %v199
    %1149 = vmatpush1.msra.mxu0 %v198
    %1150 = vmatprep.subr.mxu0 %v203
    %1151 = vmatpush1.msra.mxu0 %v202
    %1152 = vmatprep.subr.mxu0 %v207
    %1153 = vmatpush1.msra.mxu0 %v206
    %1154 = vmatprep.subr.mxu0 %v211
    %1155 = vmatpush1.msra.mxu0 %v210
    %1156 = vmatprep.subr.mxu0 %v215
    %1157 = vmatpush1.msra.mxu0 %v214
    %1158 = vmatprep.subr.mxu0 %v219
    %1159 = vmatpush1.msra.mxu0 %v218
    %1160 = vmatprep.subr.mxu0 0.0
    %1161 = vmatpush1.msra.mxu0 0.0
    %1162 = vmatprep.subr.mxu0 0.0
    %1163 = vmatpush1.msra.mxu0 0.0
    %1164 = vmatprep.subr.mxu0 0.0
    %1165 = vmatpush1.msra.mxu0 0.0
    %1166 = vmatprep.subr.mxu0 0.0
    %1167 = vmatpush1.msra.mxu0 0.0
    %1168 = vmatprep.subr.mxu0 0.0
    %1169 = vmatpush1.msra.mxu0 0.0
    %1170 = vmatprep.subr.mxu0 0.0
    %1171 = vmatpush1.msra.mxu0 0.0
    %1172 = vmatprep.subr.mxu0 0.0
    %1173 = vmatpush1.msra.mxu0 0.0
    %1174 = vmatprep.subr.mxu0 0.0
    %1175 = vmatpush1.msra.mxu0 0.0
    %1176 = vmatprep.subr.mxu0 0.0
    %1177 = vmatpush1.msra.mxu0 0.0
    %1178 = vmatprep.subr.mxu0 0.0
    %1179 = vmatpush1.msra.mxu0 0.0
    %1180 = vmatprep.subr.mxu0 0.0
    %1181 = vmatpush1.msra.mxu0 0.0
    %1182 = vmatprep.subr.mxu0 0.0
    %1183 = vmatpush1.msra.mxu0 0.0
    %1184 = vmatprep.subr.mxu0 0.0
    %1185 = vmatpush1.msra.mxu0 0.0
    %1186 = vmatprep.subr.mxu0 0.0
    %1187 = vmatpush1.msra.mxu0 0.0
    %1188 = vmatprep.subr.mxu0 0.0
    %1189 = vmatpush1.msra.mxu0 0.0
    %1190 = vmatprep.subr.mxu0 0.0
    %1191 = vmatpush1.msra.mxu0 0.0
    %1192 = vmatprep.mubr.f32.mxu0 0.0
    %1193 = vmatmul.mubr.f32.gmra.mrb[0].mxu0 %v1056
    %v1194 = vpop.f32.mrb[0].mxu0
    %v1195 = vadd.f32 0.0, %v1194
    %v1196 = vpop.f32.mrb[0].mxu0
    %v1197 = vadd.f32 0.0, %v1196
    %1198 = vdwg.mxu0
    %v1199 = vadd.f32 %v1052, %v1124
    %v1200 = vadd.f32 %v1053, %v1126
    %v1201 = vadd.f32 %v1054, %v1195
    %v1202 = vadd.f32 %v1055, %v1197
    %v1203 = vxor.u32 %v1199, 2147483648
    %v1204 = vmul.f32 %v1203, 1.442695
    %v1205 = vpow.pop %v1204
    %v1206 = vadd.f32 %v1205, 1.0
    %v1207 = vrcp.pop %v1206
    %v1208 = vmul.f32 1.0, %v1207
    %v1209 = vxor.u32 %v1200, 2147483648
    %v1210 = vmul.f32 %v1209, 1.442695
    %v1211 = vpow.pop %v1210
    %v1212 = vadd.f32 %v1211, 1.0
    %v1213 = vrcp.pop %v1212
    %v1214 = vmul.f32 1.0, %v1213
    %v1215 = vtanh.pop %v1201
    %v1216 = vxor.u32 %v1202, 2147483648
    %v1217 = vmul.f32 %v1216, 1.442695
    %v1218 = vpow.pop %v1217
    %v1219 = vadd.f32 %v1218, 1.0
    %v1220 = vrcp.pop %v1219
    %v1221 = vmul.f32 1.0, %v1220
    %v1222 = vld [vmem:[#allocation5] sm:$0xff]
    %v1223 = vmul.f32 %v1214, %v1222
    %v1224 = vmul.f32 %v1208, %v1215
    %v1225 = vadd.f32 %v1223, %v1224
    %v1226 = vtanh.pop %v1225
    %v1227 = vmul.f32 %v1221, %v1226
    %1228 = vst [vmem:[#allocation5] sm:$0xff] %v1225
    %1229 = vst [vmem:[#allocation4] sm:$0xff] %v1227
    %s1230 = scalar_lea.vmem [#allocation2], 24
    %1231 = vst [vmem:[%s1230] sm:$0xff] %v1227
    %s1232 = scalar_lea.vmem [#allocation3], 128
    %v1233 = vld [vmem:[%s1232] sm:$0xff]
    %v1234 = vld [vmem:[%s1232 + $0x8] sm:$0xff]
    %v1235 = vld [vmem:[%s1232 + $0x10] sm:$0xff]
    %v1236 = vld [vmem:[%s1232 + $0x18] sm:$0xff]
    %v1237 = vld [vmem:[#allocation4] sm:$0xff]
    %1238 = vmatprep.subr.mxu0 %v157
    %1239 = vmatpush1.msra.mxu0 %v156
    %1240 = vmatprep.subr.mxu0 %v161
    %1241 = vmatpush1.msra.mxu0 %v160
    %1242 = vmatprep.subr.mxu0 %v165
    %1243 = vmatpush1.msra.mxu0 %v164
    %1244 = vmatprep.subr.mxu0 %v169
    %1245 = vmatpush1.msra.mxu0 %v168
    %1246 = vmatprep.subr.mxu0 %v173
    %1247 = vmatpush1.msra.mxu0 %v172
    %1248 = vmatprep.subr.mxu0 %v177
    %1249 = vmatpush1.msra.mxu0 %v176
    %1250 = vmatprep.subr.mxu0 %v181
    %1251 = vmatpush1.msra.mxu0 %v180
    %1252 = vmatprep.subr.mxu0 %v185
    %1253 = vmatpush1.msra.mxu0 %v184
    %1254 = vmatprep.subr.mxu0 %v189
    %1255 = vmatpush1.msra.mxu0 %v188
    %1256 = vmatprep.subr.mxu0 %v193
    %1257 = vmatpush1.msra.mxu0 %v192
    %1258 = vmatprep.subr.mxu0 %v197
    %1259 = vmatpush1.msra.mxu0 %v196
    %1260 = vmatprep.subr.mxu0 %v201
    %1261 = vmatpush1.msra.mxu0 %v200
    %1262 = vmatprep.subr.mxu0 %v205
    %1263 = vmatpush1.msra.mxu0 %v204
    %1264 = vmatprep.subr.mxu0 %v209
    %1265 = vmatpush1.msra.mxu0 %v208
    %1266 = vmatprep.subr.mxu0 %v213
    %1267 = vmatpush1.msra.mxu0 %v212
    %1268 = vmatprep.subr.mxu0 %v217
    %1269 = vmatpush1.msra.mxu0 %v216
    %1270 = vmatprep.subr.mxu0 0.0
    %1271 = vmatpush1.msra.mxu0 0.0
    %1272 = vmatprep.subr.mxu0 0.0
    %1273 = vmatpush1.msra.mxu0 0.0
    %1274 = vmatprep.subr.mxu0 0.0
    %1275 = vmatpush1.msra.mxu0 0.0
    %1276 = vmatprep.subr.mxu0 0.0
    %1277 = vmatpush1.msra.mxu0 0.0
    %1278 = vmatprep.subr.mxu0 0.0
    %1279 = vmatpush1.msra.mxu0 0.0
    %1280 = vmatprep.subr.mxu0 0.0
    %1281 = vmatpush1.msra.mxu0 0.0
    %1282 = vmatprep.subr.mxu0 0.0
    %1283 = vmatpush1.msra.mxu0 0.0
    %1284 = vmatprep.subr.mxu0 0.0
    %1285 = vmatpush1.msra.mxu0 0.0
    %1286 = vmatprep.subr.mxu0 0.0
    %1287 = vmatpush1.msra.mxu0 0.0
    %1288 = vmatprep.subr.mxu0 0.0
    %1289 = vmatpush1.msra.mxu0 0.0
    %1290 = vmatprep.subr.mxu0 0.0
    %1291 = vmatpush1.msra.mxu0 0.0
    %1292 = vmatprep.subr.mxu0 0.0
    %1293 = vmatpush1.msra.mxu0 0.0
    %1294 = vmatprep.subr.mxu0 0.0
    %1295 = vmatpush1.msra.mxu0 0.0
    %1296 = vmatprep.subr.mxu0 0.0
    %1297 = vmatpush1.msra.mxu0 0.0
    %1298 = vmatprep.subr.mxu0 0.0
    %1299 = vmatpush1.msra.mxu0 0.0
    %1300 = vmatprep.subr.mxu0 0.0
    %1301 = vmatpush1.msra.mxu0 0.0
    %1302 = vmatprep.mubr.f32.mxu0 0.0
    %1303 = vmatmul.mubr.f32.gmra.mrb[0].mxu0 %v1237
    %v1304 = vpop.f32.mrb[0].mxu0
    %v1305 = vadd.f32 0.0, %v1304
    %v1306 = vpop.f32.mrb[0].mxu0
    %v1307 = vadd.f32 0.0, %v1306
    %1308 = vdwg.mxu0
    %1309 = vmatprep.subr.mxu0 %v159
    %1310 = vmatpush1.msra.mxu0 %v158
    %1311 = vmatprep.subr.mxu0 %v163
    %1312 = vmatpush1.msra.mxu0 %v162
    %1313 = vmatprep.subr.mxu0 %v167
    %1314 = vmatpush1.msra.mxu0 %v166
    %1315 = vmatprep.subr.mxu0 %v171
    %1316 = vmatpush1.msra.mxu0 %v170
    %1317 = vmatprep.subr.mxu0 %v175
    %1318 = vmatpush1.msra.mxu0 %v174
    %1319 = vmatprep.subr.mxu0 %v179
    %1320 = vmatpush1.msra.mxu0 %v178
    %1321 = vmatprep.subr.mxu0 %v183
    %1322 = vmatpush1.msra.mxu0 %v182
    %1323 = vmatprep.subr.mxu0 %v187
    %1324 = vmatpush1.msra.mxu0 %v186
    %1325 = vmatprep.subr.mxu0 %v191
    %1326 = vmatpush1.msra.mxu0 %v190
    %1327 = vmatprep.subr.mxu0 %v195
    %1328 = vmatpush1.msra.mxu0 %v194
    %1329 = vmatprep.subr.mxu0 %v199
    %1330 = vmatpush1.msra.mxu0 %v198
    %1331 = vmatprep.subr.mxu0 %v203
    %1332 = vmatpush1.msra.mxu0 %v202
    %1333 = vmatprep.subr.mxu0 %v207
    %1334 = vmatpush1.msra.mxu0 %v206
    %1335 = vmatprep.subr.mxu0 %v211
    %1336 = vmatpush1.msra.mxu0 %v210
    %1337 = vmatprep.subr.mxu0 %v215
    %1338 = vmatpush1.msra.mxu0 %v214
    %1339 = vmatprep.subr.mxu0 %v219
    %1340 = vmatpush1.msra.mxu0 %v218
    %1341 = vmatprep.subr.mxu0 0.0
    %1342 = vmatpush1.msra.mxu0 0.0
    %1343 = vmatprep.subr.mxu0 0.0
    %1344 = vmatpush1.msra.mxu0 0.0
    %1345 = vmatprep.subr.mxu0 0.0
    %1346 = vmatpush1.msra.mxu0 0.0
    %1347 = vmatprep.subr.mxu0 0.0
    %1348 = vmatpush1.msra.mxu0 0.0
    %1349 = vmatprep.subr.mxu0 0.0
    %1350 = vmatpush1.msra.mxu0 0.0
    %1351 = vmatprep.subr.mxu0 0.0
    %1352 = vmatpush1.msra.mxu0 0.0
    %1353 = vmatprep.subr.mxu0 0.0
    %1354 = vmatpush1.msra.mxu0 0.0
    %1355 = vmatprep.subr.mxu0 0.0
    %1356 = vmatpush1.msra.mxu0 0.0
    %1357 = vmatprep.subr.mxu0 0.0
    %1358 = vmatpush1.msra.mxu0 0.0
    %1359 = vmatprep.subr.mxu0 0.0
    %1360 = vmatpush1.msra.mxu0 0.0
    %1361 = vmatprep.subr.mxu0 0.0
    %1362 = vmatpush1.msra.mxu0 0.0
    %1363 = vmatprep.subr.mxu0 0.0
    %1364 = vmatpush1.msra.mxu0 0.0
    %1365 = vmatprep.subr.mxu0 0.0
    %1366 = vmatpush1.msra.mxu0 0.0
    %1367 = vmatprep.subr.mxu0 0.0
    %1368 = vmatpush1.msra.mxu0 0.0
    %1369 = vmatprep.subr.mxu0 0.0
    %1370 = vmatpush1.msra.mxu0 0.0
    %1371 = vmatprep.subr.mxu0 0.0
    %1372 = vmatpush1.msra.mxu0 0.0
    %1373 = vmatprep.mubr.f32.mxu0 0.0
    %1374 = vmatmul.mubr.f32.gmra.mrb[0].mxu0 %v1237
    %v1375 = vpop.f32.mrb[0].mxu0
    %v1376 = vadd.f32 0.0, %v1375
    %v1377 = vpop.f32.mrb[0].mxu0
    %v1378 = vadd.f32 0.0, %v1377
    %1379 = vdwg.mxu0
    %v1380 = vadd.f32 %v1233, %v1305
    %v1381 = vadd.f32 %v1234, %v1307
    %v1382 = vadd.f32 %v1235, %v1376
    %v1383 = vadd.f32 %v1236, %v1378
    %v1384 = vxor.u32 %v1380, 2147483648
    %v1385 = vmul.f32 %v1384, 1.442695
    %v1386 = vpow.pop %v1385
    %v1387 = vadd.f32 %v1386, 1.0
    %v1388 = vrcp.pop %v1387
    %v1389 = vmul.f32 1.0, %v1388
    %v1390 = vxor.u32 %v1381, 2147483648
    %v1391 = vmul.f32 %v1390, 1.442695
    %v1392 = vpow.pop %v1391
    %v1393 = vadd.f32 %v1392, 1.0
    %v1394 = vrcp.pop %v1393
    %v1395 = vmul.f32 1.0, %v1394
    %v1396 = vtanh.pop %v1382
    %v1397 = vxor.u32 %v1383, 2147483648
    %v1398 = vmul.f32 %v1397, 1.442695
    %v1399 = vpow.pop %v1398
    %v1400 = vadd.f32 %v1399, 1.0
    %v1401 = vrcp.pop %v1400
    %v1402 = vmul.f32 1.0, %v1401
    %v1403 = vld [vmem:[#allocation5] sm:$0xff]
    %v1404 = vmul.f32 %v1395, %v1403
    %v1405 = vmul.f32 %v1389, %v1396
    %v1406 = vadd.f32 %v1404, %v1405
    %v1407 = vtanh.pop %v1406
    %v1408 = vmul.f32 %v1402, %v1407
    %1409 = vst [vmem:[#allocation5] sm:$0xff] %v1406
    %1410 = vst [vmem:[#allocation4] sm:$0xff] %v1408
    %s1411 = scalar_lea.vmem [#allocation2], 32
    %1412 = vst [vmem:[%s1411] sm:$0xff] %v1408
    %s1413 = scalar_lea.vmem [#allocation3], 160
    %v1414 = vld [vmem:[%s1413] sm:$0xff]
    %v1415 = vld [vmem:[%s1413 + $0x8] sm:$0xff]
    %v1416 = vld [vmem:[%s1413 + $0x10] sm:$0xff]
    %v1417 = vld [vmem:[%s1413 + $0x18] sm:$0xff]
    %v1418 = vld [vmem:[#allocation4] sm:$0xff]
    %1419 = vmatprep.subr.mxu0 %v157
    %1420 = vmatpush1.msra.mxu0 %v156
    %1421 = vmatprep.subr.mxu0 %v161
    %1422 = vmatpush1.msra.mxu0 %v160
    %1423 = vmatprep.subr.mxu0 %v165
    %1424 = vmatpush1.msra.mxu0 %v164
    %1425 = vmatprep.subr.mxu0 %v169
    %1426 = vmatpush1.msra.mxu0 %v168
    %1427 = vmatprep.subr.mxu0 %v173
    %1428 = vmatpush1.msra.mxu0 %v172
    %1429 = vmatprep.subr.mxu0 %v177
    %1430 = vmatpush1.msra.mxu0 %v176
    %1431 = vmatprep.subr.mxu0 %v181
    %1432 = vmatpush1.msra.mxu0 %v180
    %1433 = vmatprep.subr.mxu0 %v185
    %1434 = vmatpush1.msra.mxu0 %v184
    %1435 = vmatprep.subr.mxu0 %v189
    %1436 = vmatpush1.msra.mxu0 %v188
    %1437 = vmatprep.subr.mxu0 %v193
    %1438 = vmatpush1.msra.mxu0 %v192
    %1439 = vmatprep.subr.mxu0 %v197
    %1440 = vmatpush1.msra.mxu0 %v196
    %1441 = vmatprep.subr.mxu0 %v201
    %1442 = vmatpush1.msra.mxu0 %v200
    %1443 = vmatprep.subr.mxu0 %v205
    %1444 = vmatpush1.msra.mxu0 %v204
    %1445 = vmatprep.subr.mxu0 %v209
    %1446 = vmatpush1.msra.mxu0 %v208
    %1447 = vmatprep.subr.mxu0 %v213
    %1448 = vmatpush1.msra.mxu0 %v212
    %1449 = vmatprep.subr.mxu0 %v217
    %1450 = vmatpush1.msra.mxu0 %v216
    %1451 = vmatprep.subr.mxu0 0.0
    %1452 = vmatpush1.msra.mxu0 0.0
    %1453 = vmatprep.subr.mxu0 0.0
    %1454 = vmatpush1.msra.mxu0 0.0
    %1455 = vmatprep.subr.mxu0 0.0
    %1456 = vmatpush1.msra.mxu0 0.0
    %1457 = vmatprep.subr.mxu0 0.0
    %1458 = vmatpush1.msra.mxu0 0.0
    %1459 = vmatprep.subr.mxu0 0.0
    %1460 = vmatpush1.msra.mxu0 0.0
    %1461 = vmatprep.subr.mxu0 0.0
    %1462 = vmatpush1.msra.mxu0 0.0
    %1463 = vmatprep.subr.mxu0 0.0
    %1464 = vmatpush1.msra.mxu0 0.0
    %1465 = vmatprep.subr.mxu0 0.0
    %1466 = vmatpush1.msra.mxu0 0.0
    %1467 = vmatprep.subr.mxu0 0.0
    %1468 = vmatpush1.msra.mxu0 0.0
    %1469 = vmatprep.subr.mxu0 0.0
    %1470 = vmatpush1.msra.mxu0 0.0
    %1471 = vmatprep.subr.mxu0 0.0
    %1472 = vmatpush1.msra.mxu0 0.0
    %1473 = vmatprep.subr.mxu0 0.0
    %1474 = vmatpush1.msra.mxu0 0.0
    %1475 = vmatprep.subr.mxu0 0.0
    %1476 = vmatpush1.msra.mxu0 0.0
    %1477 = vmatprep.subr.mxu0 0.0
    %1478 = vmatpush1.msra.mxu0 0.0
    %1479 = vmatprep.subr.mxu0 0.0
    %1480 = vmatpush1.msra.mxu0 0.0
    %1481 = vmatprep.subr.mxu0 0.0
    %1482 = vmatpush1.msra.mxu0 0.0
    %1483 = vmatprep.mubr.f32.mxu0 0.0
    %1484 = vmatmul.mubr.f32.gmra.mrb[0].mxu0 %v1418
    %v1485 = vpop.f32.mrb[0].mxu0
    %v1486 = vadd.f32 0.0, %v1485
    %v1487 = vpop.f32.mrb[0].mxu0
    %v1488 = vadd.f32 0.0, %v1487
    %1489 = vdwg.mxu0
    %1490 = vmatprep.subr.mxu0 %v159
    %1491 = vmatpush1.msra.mxu0 %v158
    %1492 = vmatprep.subr.mxu0 %v163
    %1493 = vmatpush1.msra.mxu0 %v162
    %1494 = vmatprep.subr.mxu0 %v167
    %1495 = vmatpush1.msra.mxu0 %v166
    %1496 = vmatprep.subr.mxu0 %v171
    %1497 = vmatpush1.msra.mxu0 %v170
    %1498 = vmatprep.subr.mxu0 %v175
    %1499 = vmatpush1.msra.mxu0 %v174
    %1500 = vmatprep.subr.mxu0 %v179
    %1501 = vmatpush1.msra.mxu0 %v178
    %1502 = vmatprep.subr.mxu0 %v183
    %1503 = vmatpush1.msra.mxu0 %v182
    %1504 = vmatprep.subr.mxu0 %v187
    %1505 = vmatpush1.msra.mxu0 %v186
    %1506 = vmatprep.subr.mxu0 %v191
    %1507 = vmatpush1.msra.mxu0 %v190
    %1508 = vmatprep.subr.mxu0 %v195
    %1509 = vmatpush1.msra.mxu0 %v194
    %1510 = vmatprep.subr.mxu0 %v199
    %1511 = vmatpush1.msra.mxu0 %v198
    %1512 = vmatprep.subr.mxu0 %v203
    %1513 = vmatpush1.msra.mxu0 %v202
    %1514 = vmatprep.subr.mxu0 %v207
    %1515 = vmatpush1.msra.mxu0 %v206
    %1516 = vmatprep.subr.mxu0 %v211
    %1517 = vmatpush1.msra.mxu0 %v210
    %1518 = vmatprep.subr.mxu0 %v215
    %1519 = vmatpush1.msra.mxu0 %v214
    %1520 = vmatprep.subr.mxu0 %v219
    %1521 = vmatpush1.msra.mxu0 %v218
    %1522 = vmatprep.subr.mxu0 0.0
    %1523 = vmatpush1.msra.mxu0 0.0
    %1524 = vmatprep.subr.mxu0 0.0
    %1525 = vmatpush1.msra.mxu0 0.0
    %1526 = vmatprep.subr.mxu0 0.0
    %1527 = vmatpush1.msra.mxu0 0.0
    %1528 = vmatprep.subr.mxu0 0.0
    %1529 = vmatpush1.msra.mxu0 0.0
    %1530 = vmatprep.subr.mxu0 0.0
    %1531 = vmatpush1.msra.mxu0 0.0
    %1532 = vmatprep.subr.mxu0 0.0
    %1533 = vmatpush1.msra.mxu0 0.0
    %1534 = vmatprep.subr.mxu0 0.0
    %1535 = vmatpush1.msra.mxu0 0.0
    %1536 = vmatprep.subr.mxu0 0.0
    %1537 = vmatpush1.msra.mxu0 0.0
    %1538 = vmatprep.subr.mxu0 0.0
    %1539 = vmatpush1.msra.mxu0 0.0
    %1540 = vmatprep.subr.mxu0 0.0
    %1541 = vmatpush1.msra.mxu0 0.0
    %1542 = vmatprep.subr.mxu0 0.0
    %1543 = vmatpush1.msra.mxu0 0.0
    %1544 = vmatprep.subr.mxu0 0.0
    %1545 = vmatpush1.msra.mxu0 0.0
    %1546 = vmatprep.subr.mxu0 0.0
    %1547 = vmatpush1.msra.mxu0 0.0
    %1548 = vmatprep.subr.mxu0 0.0
    %1549 = vmatpush1.msra.mxu0 0.0
    %1550 = vmatprep.subr.mxu0 0.0
    %1551 = vmatpush1.msra.mxu0 0.0
    %1552 = vmatprep.subr.mxu0 0.0
    %1553 = vmatpush1.msra.mxu0 0.0
    %1554 = vmatprep.mubr.f32.mxu0 0.0
    %1555 = vmatmul.mubr.f32.gmra.mrb[0].mxu0 %v1418
    %v1556 = vpop.f32.mrb[0].mxu0
    %v1557 = vadd.f32 0.0, %v1556
    %v1558 = vpop.f32.mrb[0].mxu0
    %v1559 = vadd.f32 0.0, %v1558
    %1560 = vdwg.mxu0
    %v1561 = vadd.f32 %v1414, %v1486
    %v1562 = vadd.f32 %v1415, %v1488
    %v1563 = vadd.f32 %v1416, %v1557
    %v1564 = vadd.f32 %v1417, %v1559
    %v1565 = vxor.u32 %v1561, 2147483648
    %v1566 = vmul.f32 %v1565, 1.442695
    %v1567 = vpow.pop %v1566
    %v1568 = vadd.f32 %v1567, 1.0
    %v1569 = vrcp.pop %v1568
    %v1570 = vmul.f32 1.0, %v1569
    %v1571 = vxor.u32 %v1562, 2147483648
    %v1572 = vmul.f32 %v1571, 1.442695
    %v1573 = vpow.pop %v1572
    %v1574 = vadd.f32 %v1573, 1.0
    %v1575 = vrcp.pop %v1574
    %v1576 = vmul.f32 1.0, %v1575
    %v1577 = vtanh.pop %v1563
    %v1578 = vxor.u32 %v1564, 2147483648
    %v1579 = vmul.f32 %v1578, 1.442695
    %v1580 = vpow.pop %v1579
    %v1581 = vadd.f32 %v1580, 1.0
    %v1582 = vrcp.pop %v1581
    %v1583 = vmul.f32 1.0, %v1582
    %v1584 = vld [vmem:[#allocation5] sm:$0xff]
    %v1585 = vmul.f32 %v1576, %v1584
    %v1586 = vmul.f32 %v1570, %v1577
    %v1587 = vadd.f32 %v1585, %v1586
    %v1588 = vtanh.pop %v1587
    %v1589 = vmul.f32 %v1583, %v1588
    %1590 = vst [vmem:[#allocation5] sm:$0xff] %v1587
    %1591 = vst [vmem:[#allocation4] sm:$0xff] %v1589
    %s1592 = scalar_lea.vmem [#allocation2], 40
    %1593 = vst [vmem:[%s1592] sm:$0xff] %v1589
    %s1594 = scalar_lea.vmem [#allocation3], 192
    %v1595 = vld [vmem:[%s1594] sm:$0xff]
    %v1596 = vld [vmem:[%s1594 + $0x8] sm:$0xff]
    %v1597 = vld [vmem:[%s1594 + $0x10] sm:$0xff]
    %v1598 = vld [vmem:[%s1594 + $0x18] sm:$0xff]
    %v1599 = vld [vmem:[#allocation4] sm:$0xff]
    %1600 = vmatprep.subr.mxu0 %v157
    %1601 = vmatpush1.msra.mxu0 %v156
    %1602 = vmatprep.subr.mxu0 %v161
    %1603 = vmatpush1.msra.mxu0 %v160
    %1604 = vmatprep.subr.mxu0 %v165
    %1605 = vmatpush1.msra.mxu0 %v164
    %1606 = vmatprep.subr.mxu0 %v169
    %1607 = vmatpush1.msra.mxu0 %v168
    %1608 = vmatprep.subr.mxu0 %v173
    %1609 = vmatpush1.msra.mxu0 %v172
    %1610 = vmatprep.subr.mxu0 %v177
    %1611 = vmatpush1.msra.mxu0 %v176
    %1612 = vmatprep.subr.mxu0 %v181
    %1613 = vmatpush1.msra.mxu0 %v180
    %1614 = vmatprep.subr.mxu0 %v185
    %1615 = vmatpush1.msra.mxu0 %v184
    %1616 = vmatprep.subr.mxu0 %v189
    %1617 = vmatpush1.msra.mxu0 %v188
    %1618 = vmatprep.subr.mxu0 %v193
    %1619 = vmatpush1.msra.mxu0 %v192
    %1620 = vmatprep.subr.mxu0 %v197
    %1621 = vmatpush1.msra.mxu0 %v196
    %1622 = vmatprep.subr.mxu0 %v201
    %1623 = vmatpush1.msra.mxu0 %v200
    %1624 = vmatprep.subr.mxu0 %v205
    %1625 = vmatpush1.msra.mxu0 %v204
    %1626 = vmatprep.subr.mxu0 %v209
    %1627 = vmatpush1.msra.mxu0 %v208
    %1628 = vmatprep.subr.mxu0 %v213
    %1629 = vmatpush1.msra.mxu0 %v212
    %1630 = vmatprep.subr.mxu0 %v217
    %1631 = vmatpush1.msra.mxu0 %v216
    %1632 = vmatprep.subr.mxu0 0.0
    %1633 = vmatpush1.msra.mxu0 0.0
    %1634 = vmatprep.subr.mxu0 0.0
    %1635 = vmatpush1.msra.mxu0 0.0
    %1636 = vmatprep.subr.mxu0 0.0
    %1637 = vmatpush1.msra.mxu0 0.0
    %1638 = vmatprep.subr.mxu0 0.0
    %1639 = vmatpush1.msra.mxu0 0.0
    %1640 = vmatprep.subr.mxu0 0.0
    %1641 = vmatpush1.msra.mxu0 0.0
    %1642 = vmatprep.subr.mxu0 0.0
    %1643 = vmatpush1.msra.mxu0 0.0
    %1644 = vmatprep.subr.mxu0 0.0
    %1645 = vmatpush1.msra.mxu0 0.0
    %1646 = vmatprep.subr.mxu0 0.0
    %1647 = vmatpush1.msra.mxu0 0.0
    %1648 = vmatprep.subr.mxu0 0.0
    %1649 = vmatpush1.msra.mxu0 0.0
    %1650 = vmatprep.subr.mxu0 0.0
    %1651 = vmatpush1.msra.mxu0 0.0
    %1652 = vmatprep.subr.mxu0 0.0
    %1653 = vmatpush1.msra.mxu0 0.0
    %1654 = vmatprep.subr.mxu0 0.0
    %1655 = vmatpush1.msra.mxu0 0.0
    %1656 = vmatprep.subr.mxu0 0.0
    %1657 = vmatpush1.msra.mxu0 0.0
    %1658 = vmatprep.subr.mxu0 0.0
    %1659 = vmatpush1.msra.mxu0 0.0
    %1660 = vmatprep.subr.mxu0 0.0
    %1661 = vmatpush1.msra.mxu0 0.0
    %1662 = vmatprep.subr.mxu0 0.0
    %1663 = vmatpush1.msra.mxu0 0.0
    %1664 = vmatprep.mubr.f32.mxu0 0.0
    %1665 = vmatmul.mubr.f32.gmra.mrb[0].mxu0 %v1599
    %v1666 = vpop.f32.mrb[0].mxu0
    %v1667 = vadd.f32 0.0, %v1666
    %v1668 = vpop.f32.mrb[0].mxu0
    %v1669 = vadd.f32 0.0, %v1668
    %1670 = vdwg.mxu0
    %1671 = vmatprep.subr.mxu0 %v159
    %1672 = vmatpush1.msra.mxu0 %v158
    %1673 = vmatprep.subr.mxu0 %v163
    %1674 = vmatpush1.msra.mxu0 %v162
    %1675 = vmatprep.subr.mxu0 %v167
    %1676 = vmatpush1.msra.mxu0 %v166
    %1677 = vmatprep.subr.mxu0 %v171
    %1678 = vmatpush1.msra.mxu0 %v170
    %1679 = vmatprep.subr.mxu0 %v175
    %1680 = vmatpush1.msra.mxu0 %v174
    %1681 = vmatprep.subr.mxu0 %v179
    %1682 = vmatpush1.msra.mxu0 %v178
    %1683 = vmatprep.subr.mxu0 %v183
    %1684 = vmatpush1.msra.mxu0 %v182
    %1685 = vmatprep.subr.mxu0 %v187
    %1686 = vmatpush1.msra.mxu0 %v186
    %1687 = vmatprep.subr.mxu0 %v191
    %1688 = vmatpush1.msra.mxu0 %v190
    %1689 = vmatprep.subr.mxu0 %v195
    %1690 = vmatpush1.msra.mxu0 %v194
    %1691 = vmatprep.subr.mxu0 %v199
    %1692 = vmatpush1.msra.mxu0 %v198
    %1693 = vmatprep.subr.mxu0 %v203
    %1694 = vmatpush1.msra.mxu0 %v202
    %1695 = vmatprep.subr.mxu0 %v207
    %1696 = vmatpush1.msra.mxu0 %v206
    %1697 = vmatprep.subr.mxu0 %v211
    %1698 = vmatpush1.msra.mxu0 %v210
    %1699 = vmatprep.subr.mxu0 %v215
    %1700 = vmatpush1.msra.mxu0 %v214
    %1701 = vmatprep.subr.mxu0 %v219
    %1702 = vmatpush1.msra.mxu0 %v218
    %1703 = vmatprep.subr.mxu0 0.0
    %1704 = vmatpush1.msra.mxu0 0.0
    %1705 = vmatprep.subr.mxu0 0.0
    %1706 = vmatpush1.msra.mxu0 0.0
    %1707 = vmatprep.subr.mxu0 0.0
    %1708 = vmatpush1.msra.mxu0 0.0
    %1709 = vmatprep.subr.mxu0 0.0
    %1710 = vmatpush1.msra.mxu0 0.0
    %1711 = vmatprep.subr.mxu0 0.0
    %1712 = vmatpush1.msra.mxu0 0.0
    %1713 = vmatprep.subr.mxu0 0.0
    %1714 = vmatpush1.msra.mxu0 0.0
    %1715 = vmatprep.subr.mxu0 0.0
    %1716 = vmatpush1.msra.mxu0 0.0
    %1717 = vmatprep.subr.mxu0 0.0
    %1718 = vmatpush1.msra.mxu0 0.0
    %1719 = vmatprep.subr.mxu0 0.0
    %1720 = vmatpush1.msra.mxu0 0.0
    %1721 = vmatprep.subr.mxu0 0.0
    %1722 = vmatpush1.msra.mxu0 0.0
    %1723 = vmatprep.subr.mxu0 0.0
    %1724 = vmatpush1.msra.mxu0 0.0
    %1725 = vmatprep.subr.mxu0 0.0
    %1726 = vmatpush1.msra.mxu0 0.0
    %1727 = vmatprep.subr.mxu0 0.0
    %1728 = vmatpush1.msra.mxu0 0.0
    %1729 = vmatprep.subr.mxu0 0.0
    %1730 = vmatpush1.msra.mxu0 0.0
    %1731 = vmatprep.subr.mxu0 0.0
    %1732 = vmatpush1.msra.mxu0 0.0
    %1733 = vmatprep.subr.mxu0 0.0
    %1734 = vmatpush1.msra.mxu0 0.0
    %1735 = vmatprep.mubr.f32.mxu0 0.0
    %1736 = vmatmul.mubr.f32.gmra.mrb[0].mxu0 %v1599
    %v1737 = vpop.f32.mrb[0].mxu0
    %v1738 = vadd.f32 0.0, %v1737
    %v1739 = vpop.f32.mrb[0].mxu0
    %v1740 = vadd.f32 0.0, %v1739
    %1741 = vdwg.mxu0
    %v1742 = vadd.f32 %v1595, %v1667
    %v1743 = vadd.f32 %v1596, %v1669
    %v1744 = vadd.f32 %v1597, %v1738
    %v1745 = vadd.f32 %v1598, %v1740
    %v1746 = vxor.u32 %v1742, 2147483648
    %v1747 = vmul.f32 %v1746, 1.442695
    %v1748 = vpow.pop %v1747
    %v1749 = vadd.f32 %v1748, 1.0
    %v1750 = vrcp.pop %v1749
    %v1751 = vmul.f32 1.0, %v1750
    %v1752 = vxor.u32 %v1743, 2147483648
    %v1753 = vmul.f32 %v1752, 1.442695
    %v1754 = vpow.pop %v1753
    %v1755 = vadd.f32 %v1754, 1.0
    %v1756 = vrcp.pop %v1755
    %v1757 = vmul.f32 1.0, %v1756
    %v1758 = vtanh.pop %v1744
    %v1759 = vxor.u32 %v1745, 2147483648
    %v1760 = vmul.f32 %v1759, 1.442695
    %v1761 = vpow.pop %v1760
    %v1762 = vadd.f32 %v1761, 1.0
    %v1763 = vrcp.pop %v1762
    %v1764 = vmul.f32 1.0, %v1763
    %v1765 = vld [vmem:[#allocation5] sm:$0xff]
    %v1766 = vmul.f32 %v1757, %v1765
    %v1767 = vmul.f32 %v1751, %v1758
    %v1768 = vadd.f32 %v1766, %v1767
    %v1769 = vtanh.pop %v1768
    %v1770 = vmul.f32 %v1764, %v1769
    %1771 = vst [vmem:[#allocation5] sm:$0xff] %v1768
    %1772 = vst [vmem:[#allocation4] sm:$0xff] %v1770
    %s1773 = scalar_lea.vmem [#allocation2], 48
    %1774 = vst [vmem:[%s1773] sm:$0xff] %v1770
    %s1775 = scalar_lea.vmem [#allocation3], 224
    %v1776 = vld [vmem:[%s1775] sm:$0xff]
    %v1777 = vld [vmem:[%s1775 + $0x8] sm:$0xff]
    %v1778 = vld [vmem:[%s1775 + $0x10] sm:$0xff]
    %v1779 = vld [vmem:[%s1775 + $0x18] sm:$0xff]
    %v1780 = vld [vmem:[#allocation4] sm:$0xff]
    %1781 = vmatprep.subr.mxu0 %v157
    %1782 = vmatpush1.msra.mxu0 %v156
    %1783 = vmatprep.subr.mxu0 %v161
    %1784 = vmatpush1.msra.mxu0 %v160
    %1785 = vmatprep.subr.mxu0 %v165
    %1786 = vmatpush1.msra.mxu0 %v164
    %1787 = vmatprep.subr.mxu0 %v169
    %1788 = vmatpush1.msra.mxu0 %v168
    %1789 = vmatprep.subr.mxu0 %v173
    %1790 = vmatpush1.msra.mxu0 %v172
    %1791 = vmatprep.subr.mxu0 %v177
    %1792 = vmatpush1.msra.mxu0 %v176
    %1793 = vmatprep.subr.mxu0 %v181
    %1794 = vmatpush1.msra.mxu0 %v180
    %1795 = vmatprep.subr.mxu0 %v185
    %1796 = vmatpush1.msra.mxu0 %v184
    %1797 = vmatprep.subr.mxu0 %v189
    %1798 = vmatpush1.msra.mxu0 %v188
    %1799 = vmatprep.subr.mxu0 %v193
    %1800 = vmatpush1.msra.mxu0 %v192
    %1801 = vmatprep.subr.mxu0 %v197
    %1802 = vmatpush1.msra.mxu0 %v196
    %1803 = vmatprep.subr.mxu0 %v201
    %1804 = vmatpush1.msra.mxu0 %v200
    %1805 = vmatprep.subr.mxu0 %v205
    %1806 = vmatpush1.msra.mxu0 %v204
    %1807 = vmatprep.subr.mxu0 %v209
    %1808 = vmatpush1.msra.mxu0 %v208
    %1809 = vmatprep.subr.mxu0 %v213
    %1810 = vmatpush1.msra.mxu0 %v212
    %1811 = vmatprep.subr.mxu0 %v217
    %1812 = vmatpush1.msra.mxu0 %v216
    %1813 = vmatprep.subr.mxu0 0.0
    %1814 = vmatpush1.msra.mxu0 0.0
    %1815 = vmatprep.subr.mxu0 0.0
    %1816 = vmatpush1.msra.mxu0 0.0
    %1817 = vmatprep.subr.mxu0 0.0
    %1818 = vmatpush1.msra.mxu0 0.0
    %1819 = vmatprep.subr.mxu0 0.0
    %1820 = vmatpush1.msra.mxu0 0.0
    %1821 = vmatprep.subr.mxu0 0.0
    %1822 = vmatpush1.msra.mxu0 0.0
    %1823 = vmatprep.subr.mxu0 0.0
    %1824 = vmatpush1.msra.mxu0 0.0
    %1825 = vmatprep.subr.mxu0 0.0
    %1826 = vmatpush1.msra.mxu0 0.0
    %1827 = vmatprep.subr.mxu0 0.0
    %1828 = vmatpush1.msra.mxu0 0.0
    %1829 = vmatprep.subr.mxu0 0.0
    %1830 = vmatpush1.msra.mxu0 0.0
    %1831 = vmatprep.subr.mxu0 0.0
    %1832 = vmatpush1.msra.mxu0 0.0
    %1833 = vmatprep.subr.mxu0 0.0
    %1834 = vmatpush1.msra.mxu0 0.0
    %1835 = vmatprep.subr.mxu0 0.0
    %1836 = vmatpush1.msra.mxu0 0.0
    %1837 = vmatprep.subr.mxu0 0.0
    %1838 = vmatpush1.msra.mxu0 0.0
    %1839 = vmatprep.subr.mxu0 0.0
    %1840 = vmatpush1.msra.mxu0 0.0
    %1841 = vmatprep.subr.mxu0 0.0
    %1842 = vmatpush1.msra.mxu0 0.0
    %1843 = vmatprep.subr.mxu0 0.0
    %1844 = vmatpush1.msra.mxu0 0.0
    %1845 = vmatprep.mubr.f32.mxu0 0.0
    %1846 = vmatmul.mubr.f32.gmra.mrb[0].mxu0 %v1780
    %v1847 = vpop.f32.mrb[0].mxu0
    %v1848 = vadd.f32 0.0, %v1847
    %v1849 = vpop.f32.mrb[0].mxu0
    %v1850 = vadd.f32 0.0, %v1849
    %1851 = vdwg.mxu0
    %1852 = vmatprep.subr.mxu0 %v159
    %1853 = vmatpush1.msra.mxu0 %v158
    %1854 = vmatprep.subr.mxu0 %v163
    %1855 = vmatpush1.msra.mxu0 %v162
    %1856 = vmatprep.subr.mxu0 %v167
    %1857 = vmatpush1.msra.mxu0 %v166
    %1858 = vmatprep.subr.mxu0 %v171
    %1859 = vmatpush1.msra.mxu0 %v170
    %1860 = vmatprep.subr.mxu0 %v175
    %1861 = vmatpush1.msra.mxu0 %v174
    %1862 = vmatprep.subr.mxu0 %v179
    %1863 = vmatpush1.msra.mxu0 %v178
    %1864 = vmatprep.subr.mxu0 %v183
    %1865 = vmatpush1.msra.mxu0 %v182
    %1866 = vmatprep.subr.mxu0 %v187
    %1867 = vmatpush1.msra.mxu0 %v186
    %1868 = vmatprep.subr.mxu0 %v191
    %1869 = vmatpush1.msra.mxu0 %v190
    %1870 = vmatprep.subr.mxu0 %v195
    %1871 = vmatpush1.msra.mxu0 %v194
    %1872 = vmatprep.subr.mxu0 %v199
    %1873 = vmatpush1.msra.mxu0 %v198
    %1874 = vmatprep.subr.mxu0 %v203
    %1875 = vmatpush1.msra.mxu0 %v202
    %1876 = vmatprep.subr.mxu0 %v207
    %1877 = vmatpush1.msra.mxu0 %v206
    %1878 = vmatprep.subr.mxu0 %v211
    %1879 = vmatpush1.msra.mxu0 %v210
    %1880 = vmatprep.subr.mxu0 %v215
    %1881 = vmatpush1.msra.mxu0 %v214
    %1882 = vmatprep.subr.mxu0 %v219
    %1883 = vmatpush1.msra.mxu0 %v218
    %1884 = vmatprep.subr.mxu0 0.0
    %1885 = vmatpush1.msra.mxu0 0.0
    %1886 = vmatprep.subr.mxu0 0.0
    %1887 = vmatpush1.msra.mxu0 0.0
    %1888 = vmatprep.subr.mxu0 0.0
    %1889 = vmatpush1.msra.mxu0 0.0
    %1890 = vmatprep.subr.mxu0 0.0
    %1891 = vmatpush1.msra.mxu0 0.0
    %1892 = vmatprep.subr.mxu0 0.0
    %1893 = vmatpush1.msra.mxu0 0.0
    %1894 = vmatprep.subr.mxu0 0.0
    %1895 = vmatpush1.msra.mxu0 0.0
    %1896 = vmatprep.subr.mxu0 0.0
    %1897 = vmatpush1.msra.mxu0 0.0
    %1898 = vmatprep.subr.mxu0 0.0
    %1899 = vmatpush1.msra.mxu0 0.0
    %1900 = vmatprep.subr.mxu0 0.0
    %1901 = vmatpush1.msra.mxu0 0.0
    %1902 = vmatprep.subr.mxu0 0.0
    %1903 = vmatpush1.msra.mxu0 0.0
    %1904 = vmatprep.subr.mxu0 0.0
    %1905 = vmatpush1.msra.mxu0 0.0
    %1906 = vmatprep.subr.mxu0 0.0
    %1907 = vmatpush1.msra.mxu0 0.0
    %1908 = vmatprep.subr.mxu0 0.0
    %1909 = vmatpush1.msra.mxu0 0.0
    %1910 = vmatprep.subr.mxu0 0.0
    %1911 = vmatpush1.msra.mxu0 0.0
    %1912 = vmatprep.subr.mxu0 0.0
    %1913 = vmatpush1.msra.mxu0 0.0
    %1914 = vmatprep.subr.mxu0 0.0
    %1915 = vmatpush1.msra.mxu0 0.0
    %1916 = vmatprep.mubr.f32.mxu0 0.0
    %1917 = vmatmul.mubr.f32.gmra.mrb[0].mxu0 %v1780
    %v1918 = vpop.f32.mrb[0].mxu0
    %v1919 = vadd.f32 0.0, %v1918
    %v1920 = vpop.f32.mrb[0].mxu0
    %v1921 = vadd.f32 0.0, %v1920
    %1922 = vdwg.mxu0
    %v1923 = vadd.f32 %v1776, %v1848
    %v1924 = vadd.f32 %v1777, %v1850
    %v1925 = vadd.f32 %v1778, %v1919
    %v1926 = vadd.f32 %v1779, %v1921
    %v1927 = vxor.u32 %v1923, 2147483648
    %v1928 = vmul.f32 %v1927, 1.442695
    %v1929 = vpow.pop %v1928
    %v1930 = vadd.f32 %v1929, 1.0
    %v1931 = vrcp.pop %v1930
    %v1932 = vmul.f32 1.0, %v1931
    %v1933 = vxor.u32 %v1924, 2147483648
    %v1934 = vmul.f32 %v1933, 1.442695
    %v1935 = vpow.pop %v1934
    %v1936 = vadd.f32 %v1935, 1.0
    %v1937 = vrcp.pop %v1936
    %v1938 = vmul.f32 1.0, %v1937
    %v1939 = vtanh.pop %v1925
    %v1940 = vxor.u32 %v1926, 2147483648
    %v1941 = vmul.f32 %v1940, 1.442695
    %v1942 = vpow.pop %v1941
    %v1943 = vadd.f32 %v1942, 1.0
    %v1944 = vrcp.pop %v1943
    %v1945 = vmul.f32 1.0, %v1944
    %v1946 = vld [vmem:[#allocation5] sm:$0xff]
    %v1947 = vmul.f32 %v1938, %v1946
    %v1948 = vmul.f32 %v1932, %v1939
    %v1949 = vadd.f32 %v1947, %v1948
    %v1950 = vtanh.pop %v1949
    %v1951 = vmul.f32 %v1945, %v1950
    %1952 = vst [vmem:[#allocation5] sm:$0xff] %v1949
    %1953 = vst [vmem:[#allocation4] sm:$0xff] %v1951
    %s1954 = scalar_lea.vmem [#allocation2], 56
    %1955 = vst [vmem:[%s1954] sm:$0xff] %v1951
    %s1956 = scalar_lea.vmem [#allocation6], 512
    %v1957 = vld [vmem:[%s1956] sm:$0xff]
    %v1958 = vld [vmem:[%s1956 + $0x8] sm:$0xff]
    %v1959 = vld [vmem:[%s1956 + $0x10] sm:$0xff]
    %v1960 = vld [vmem:[%s1956 + $0x18] sm:$0xff]
    %v1961 = vld [vmem:[%s1956 + $0x20] sm:$0xff]
    %v1962 = vld [vmem:[%s1956 + $0x28] sm:$0xff]
    %v1963 = vld [vmem:[%s1956 + $0x30] sm:$0xff]
    %v1964 = vld [vmem:[%s1956 + $0x38] sm:$0xff]
    %v1965 = vld [vmem:[%s1956 + $0x40] sm:$0xff]
    %v1966 = vld [vmem:[%s1956 + $0x48] sm:$0xff]
    %v1967 = vld [vmem:[%s1956 + $0x50] sm:$0xff]
    %v1968 = vld [vmem:[%s1956 + $0x58] sm:$0xff]
    %v1969 = vld [vmem:[%s1956 + $0x60] sm:$0xff]
    %v1970 = vld [vmem:[%s1956 + $0x68] sm:$0xff]
    %v1971 = vld [vmem:[%s1956 + $0x70] sm:$0xff]
    %v1972 = vld [vmem:[%s1956 + $0x78] sm:$0xff]
    %v1973 = vld [vmem:[%s1956 + $0x80] sm:$0xff]
    %v1974 = vld [vmem:[%s1956 + $0x88] sm:$0xff]
    %v1975 = vld [vmem:[%s1956 + $0x90] sm:$0xff]
    %v1976 = vld [vmem:[%s1956 + $0x98] sm:$0xff]
    %v1977 = vld [vmem:[%s1956 + $0xa0] sm:$0xff]
    %v1978 = vld [vmem:[%s1956 + $0xa8] sm:$0xff]
    %v1979 = vld [vmem:[%s1956 + $0xb0] sm:$0xff]
    %v1980 = vld [vmem:[%s1956 + $0xb8] sm:$0xff]
    %v1981 = vld [vmem:[%s1956 + $0xc0] sm:$0xff]
    %v1982 = vld [vmem:[%s1956 + $0xc8] sm:$0xff]
    %v1983 = vld [vmem:[%s1956 + $0xd0] sm:$0xff]
    %v1984 = vld [vmem:[%s1956 + $0xd8] sm:$0xff]
    %v1985 = vld [vmem:[%s1956 + $0xe0] sm:$0xff]
    %v1986 = vld [vmem:[%s1956 + $0xe8] sm:$0xff]
    %v1987 = vld [vmem:[%s1956 + $0xf0] sm:$0xff]
    %v1988 = vld [vmem:[%s1956 + $0xf8] sm:$0xff]
    %v1989 = vld [vmem:[%s1956 + $0x100] sm:$0xff]
    %v1990 = vld [vmem:[%s1956 + $0x108] sm:$0xff]
    %v1991 = vld [vmem:[%s1956 + $0x110] sm:$0xff]
    %v1992 = vld [vmem:[%s1956 + $0x118] sm:$0xff]
    %v1993 = vld [vmem:[%s1956 + $0x120] sm:$0xff]
    %v1994 = vld [vmem:[%s1956 + $0x128] sm:$0xff]
    %v1995 = vld [vmem:[%s1956 + $0x130] sm:$0xff]
    %v1996 = vld [vmem:[%s1956 + $0x138] sm:$0xff]
    %v1997 = vld [vmem:[%s1956 + $0x140] sm:$0xff]
    %v1998 = vld [vmem:[%s1956 + $0x148] sm:$0xff]
    %v1999 = vld [vmem:[%s1956 + $0x150] sm:$0xff]
    %v2000 = vld [vmem:[%s1956 + $0x158] sm:$0xff]
    %v2001 = vld [vmem:[%s1956 + $0x160] sm:$0xff]
    %v2002 = vld [vmem:[%s1956 + $0x168] sm:$0xff]
    %v2003 = vld [vmem:[%s1956 + $0x170] sm:$0xff]
    %v2004 = vld [vmem:[%s1956 + $0x178] sm:$0xff]
    %v2005 = vld [vmem:[%s1956 + $0x180] sm:$0xff]
    %v2006 = vld [vmem:[%s1956 + $0x188] sm:$0xff]
    %v2007 = vld [vmem:[%s1956 + $0x190] sm:$0xff]
    %v2008 = vld [vmem:[%s1956 + $0x198] sm:$0xff]
    %v2009 = vld [vmem:[%s1956 + $0x1a0] sm:$0xff]
    %v2010 = vld [vmem:[%s1956 + $0x1a8] sm:$0xff]
    %v2011 = vld [vmem:[%s1956 + $0x1b0] sm:$0xff]
    %v2012 = vld [vmem:[%s1956 + $0x1b8] sm:$0xff]
    %v2013 = vld [vmem:[%s1956 + $0x1c0] sm:$0xff]
    %v2014 = vld [vmem:[%s1956 + $0x1c8] sm:$0xff]
    %v2015 = vld [vmem:[%s1956 + $0x1d0] sm:$0xff]
    %v2016 = vld [vmem:[%s1956 + $0x1d8] sm:$0xff]
    %v2017 = vld [vmem:[%s1956 + $0x1e0] sm:$0xff]
    %v2018 = vld [vmem:[%s1956 + $0x1e8] sm:$0xff]
    %v2019 = vld [vmem:[%s1956 + $0x1f0] sm:$0xff]
    %v2020 = vld [vmem:[%s1956 + $0x1f8] sm:$0xff]
    %s2021 = scalar_lea.vmem [#allocation8], 512
    %v2022 = vld [vmem:[%s2021] sm:$0xff]
    %v2023 = vld [vmem:[%s2021 + $0x8] sm:$0xff]
    %v2024 = vld [vmem:[%s2021 + $0x10] sm:$0xff]
    %v2025 = vld [vmem:[%s2021 + $0x18] sm:$0xff]
    %v2026 = vld [vmem:[%s2021 + $0x20] sm:$0xff]
    %v2027 = vld [vmem:[%s2021 + $0x28] sm:$0xff]
    %v2028 = vld [vmem:[%s2021 + $0x30] sm:$0xff]
    %v2029 = vld [vmem:[%s2021 + $0x38] sm:$0xff]
    %v2030 = vld [vmem:[%s2021 + $0x40] sm:$0xff]
    %v2031 = vld [vmem:[%s2021 + $0x48] sm:$0xff]
    %v2032 = vld [vmem:[%s2021 + $0x50] sm:$0xff]
    %v2033 = vld [vmem:[%s2021 + $0x58] sm:$0xff]
    %v2034 = vld [vmem:[%s2021 + $0x60] sm:$0xff]
    %v2035 = vld [vmem:[%s2021 + $0x68] sm:$0xff]
    %v2036 = vld [vmem:[%s2021 + $0x70] sm:$0xff]
    %v2037 = vld [vmem:[%s2021 + $0x78] sm:$0xff]
    %v2038 = vld [vmem:[%s2021 + $0x80] sm:$0xff]
    %v2039 = vld [vmem:[%s2021 + $0x88] sm:$0xff]
    %v2040 = vld [vmem:[%s2021 + $0x90] sm:$0xff]
    %v2041 = vld [vmem:[%s2021 + $0x98] sm:$0xff]
    %v2042 = vld [vmem:[%s2021 + $0xa0] sm:$0xff]
    %v2043 = vld [vmem:[%s2021 + $0xa8] sm:$0xff]
    %v2044 = vld [vmem:[%s2021 + $0xb0] sm:$0xff]
    %v2045 = vld [vmem:[%s2021 + $0xb8] sm:$0xff]
    %v2046 = vld [vmem:[%s2021 + $0xc0] sm:$0xff]
    %v2047 = vld [vmem:[%s2021 + $0xc8] sm:$0xff]
    %v2048 = vld [vmem:[%s2021 + $0xd0] sm:$0xff]
    %v2049 = vld [vmem:[%s2021 + $0xd8] sm:$0xff]
    %v2050 = vld [vmem:[%s2021 + $0xe0] sm:$0xff]
    %v2051 = vld [vmem:[%s2021 + $0xe8] sm:$0xff]
    %v2052 = vld [vmem:[%s2021 + $0xf0] sm:$0xff]
    %v2053 = vld [vmem:[%s2021 + $0xf8] sm:$0xff]
    %v2054 = vld [vmem:[%s2021 + $0x100] sm:$0xff]
    %v2055 = vld [vmem:[%s2021 + $0x108] sm:$0xff]
    %v2056 = vld [vmem:[%s2021 + $0x110] sm:$0xff]
    %v2057 = vld [vmem:[%s2021 + $0x118] sm:$0xff]
    %v2058 = vld [vmem:[%s2021 + $0x120] sm:$0xff]
    %v2059 = vld [vmem:[%s2021 + $0x128] sm:$0xff]
    %v2060 = vld [vmem:[%s2021 + $0x130] sm:$0xff]
    %v2061 = vld [vmem:[%s2021 + $0x138] sm:$0xff]
    %v2062 = vld [vmem:[%s2021 + $0x140] sm:$0xff]
    %v2063 = vld [vmem:[%s2021 + $0x148] sm:$0xff]
    %v2064 = vld [vmem:[%s2021 + $0x150] sm:$0xff]
    %v2065 = vld [vmem:[%s2021 + $0x158] sm:$0xff]
    %v2066 = vld [vmem:[%s2021 + $0x160] sm:$0xff]
    %v2067 = vld [vmem:[%s2021 + $0x168] sm:$0xff]
    %v2068 = vld [vmem:[%s2021 + $0x170] sm:$0xff]
    %v2069 = vld [vmem:[%s2021 + $0x178] sm:$0xff]
    %v2070 = vld [vmem:[%s2021 + $0x180] sm:$0xff]
    %v2071 = vld [vmem:[%s2021 + $0x188] sm:$0xff]
    %v2072 = vld [vmem:[%s2021 + $0x190] sm:$0xff]
    %v2073 = vld [vmem:[%s2021 + $0x198] sm:$0xff]
    %v2074 = vld [vmem:[%s2021 + $0x1a0] sm:$0xff]
    %v2075 = vld [vmem:[%s2021 + $0x1a8] sm:$0xff]
    %v2076 = vld [vmem:[%s2021 + $0x1b0] sm:$0xff]
    %v2077 = vld [vmem:[%s2021 + $0x1b8] sm:$0xff]
    %v2078 = vld [vmem:[%s2021 + $0x1c0] sm:$0xff]
    %v2079 = vld [vmem:[%s2021 + $0x1c8] sm:$0xff]
    %v2080 = vld [vmem:[%s2021 + $0x1d0] sm:$0xff]
    %v2081 = vld [vmem:[%s2021 + $0x1d8] sm:$0xff]
    %v2082 = vld [vmem:[%s2021 + $0x1e0] sm:$0xff]
    %v2083 = vld [vmem:[%s2021 + $0x1e8] sm:$0xff]
    %v2084 = vld [vmem:[%s2021 + $0x1f0] sm:$0xff]
    %v2085 = vld [vmem:[%s2021 + $0x1f8] sm:$0xff]
    %s2086 = scalar_lea.vmem [#allocation10], 4
    %v2087 = vld [vmem:[%s2086] sm:$0xf]
    %v2088 = vld [vmem:[#allocation2] sm:$0xff]
    %v2089 = vld [vmem:[#allocation2 + $0x8] sm:$0xff]
    %v2090 = vld [vmem:[#allocation2 + $0x10] sm:$0xff]
    %v2091 = vld [vmem:[#allocation2 + $0x18] sm:$0xff]
    %v2092 = vld [vmem:[#allocation2 + $0x20] sm:$0xff]
    %v2093 = vld [vmem:[#allocation2 + $0x28] sm:$0xff]
    %v2094 = vld [vmem:[#allocation2 + $0x30] sm:$0xff]
    %v2095 = vld [vmem:[#allocation2 + $0x38] sm:$0xff]
    %v2097 = vlaneseq
    %v2098 = vshrl.u32 %v2097, 7
    %v2099 = vsub.s32 0, %v2098
    %v2100 = vrot.slane %v2087, %v2099
    %v2101 = vlaneseq
    %v2102 = vshrl.u32 %v2101, 7
    %v2103 = vsub.s32 1, %v2102
    %v2104 = vrot.slane %v2087, %v2103
    %v2105 = vlaneseq
    %v2106 = vshrl.u32 %v2105, 7
    %v2107 = vsub.s32 2, %v2106
    %v2108 = vrot.slane %v2087, %v2107
    %v2109 = vlaneseq
    %v2110 = vshrl.u32 %v2109, 7
    %v2111 = vsub.s32 3, %v2110
    %v2112 = vrot.slane %v2087, %v2111
    %2117 = vmatprep.subr.mxu0 %v1958
    %2118 = vmatpush1.msra.mxu0 %v1957
    %2119 = vmatprep.subr.mxu0 %v1962
    %2120 = vmatpush1.msra.mxu0 %v1961
    %2121 = vmatprep.subr.mxu0 %v1966
    %2122 = vmatpush1.msra.mxu0 %v1965
    %2123 = vmatprep.subr.mxu0 %v1970
    %2124 = vmatpush1.msra.mxu0 %v1969
    %2125 = vmatprep.subr.mxu0 %v1974
    %2126 = vmatpush1.msra.mxu0 %v1973
    %2127 = vmatprep.subr.mxu0 %v1978
    %2128 = vmatpush1.msra.mxu0 %v1977
    %2129 = vmatprep.subr.mxu0 %v1982
    %2130 = vmatpush1.msra.mxu0 %v1981
    %2131 = vmatprep.subr.mxu0 %v1986
    %2132 = vmatpush1.msra.mxu0 %v1985
    %2133 = vmatprep.subr.mxu0 %v1990
    %2134 = vmatpush1.msra.mxu0 %v1989
    %2135 = vmatprep.subr.mxu0 %v1994
    %2136 = vmatpush1.msra.mxu0 %v1993
    %2137 = vmatprep.subr.mxu0 %v1998
    %2138 = vmatpush1.msra.mxu0 %v1997
    %2139 = vmatprep.subr.mxu0 %v2002
    %2140 = vmatpush1.msra.mxu0 %v2001
    %2141 = vmatprep.subr.mxu0 %v2006
    %2142 = vmatpush1.msra.mxu0 %v2005
    %2143 = vmatprep.subr.mxu0 %v2010
    %2144 = vmatpush1.msra.mxu0 %v2009
    %2145 = vmatprep.subr.mxu0 %v2014
    %2146 = vmatpush1.msra.mxu0 %v2013
    %2147 = vmatprep.subr.mxu0 %v2018
    %2148 = vmatpush1.msra.mxu0 %v2017
    %2149 = vmatprep.subr.mxu0 0.0
    %2150 = vmatpush1.msra.mxu0 0.0
    %2151 = vmatprep.subr.mxu0 0.0
    %2152 = vmatpush1.msra.mxu0 0.0
    %2153 = vmatprep.subr.mxu0 0.0
    %2154 = vmatpush1.msra.mxu0 0.0
    %2155 = vmatprep.subr.mxu0 0.0
    %2156 = vmatpush1.msra.mxu0 0.0
    %2157 = vmatprep.subr.mxu0 0.0
    %2158 = vmatpush1.msra.mxu0 0.0
    %2159 = vmatprep.subr.mxu0 0.0
    %2160 = vmatpush1.msra.mxu0 0.0
    %2161 = vmatprep.subr.mxu0 0.0
    %2162 = vmatpush1.msra.mxu0 0.0
    %2163 = vmatprep.subr.mxu0 0.0
    %2164 = vmatpush1.msra.mxu0 0.0
    %2165 = vmatprep.subr.mxu0 0.0
    %2166 = vmatpush1.msra.mxu0 0.0
    %2167 = vmatprep.subr.mxu0 0.0
    %2168 = vmatpush1.msra.mxu0 0.0
    %2169 = vmatprep.subr.mxu0 0.0
    %2170 = vmatpush1.msra.mxu0 0.0
    %2171 = vmatprep.subr.mxu0 0.0
    %2172 = vmatpush1.msra.mxu0 0.0
    %2173 = vmatprep.subr.mxu0 0.0
    %2174 = vmatpush1.msra.mxu0 0.0
    %2175 = vmatprep.subr.mxu0 0.0
    %2176 = vmatpush1.msra.mxu0 0.0
    %2177 = vmatprep.subr.mxu0 0.0
    %2178 = vmatpush1.msra.mxu0 0.0
    %2179 = vmatprep.subr.mxu0 0.0
    %2180 = vmatpush1.msra.mxu0 0.0
    %2181 = vmatprep.mubr.f32.mxu0 0.0
    %2182 = vmatmul.mubr.f32.gmra.mrb[0].mxu0 %v2088
    %v2183 = vpop.f32.mrb[0].mxu0
    %v2184 = vadd.f32 %v2100, %v2183
    %v2185 = vpop.f32.mrb[0].mxu0
    %v2186 = vadd.f32 %v2104, %v2185
    %2187 = vmatprep.mubr.f32.mxu0 0.0
    %2188 = vmatmul.mubr.f32.gmra.mrb[0].mxu0 %v2089
    %v2189 = vpop.f32.mrb[0].mxu0
    %v2190 = vadd.f32 %v2100, %v2189
    %v2191 = vpop.f32.mrb[0].mxu0
    %v2192 = vadd.f32 %v2104, %v2191
    %2193 = vmatprep.mubr.f32.mxu0 0.0
    %2194 = vmatmul.mubr.f32.gmra.mrb[0].mxu0 %v2090
    %v2195 = vpop.f32.mrb[0].mxu0
    %v2196 = vadd.f32 %v2100, %v2195
    %v2197 = vpop.f32.mrb[0].mxu0
    %v2198 = vadd.f32 %v2104, %v2197
    %2199 = vmatprep.mubr.f32.mxu0 0.0
    %2200 = vmatmul.mubr.f32.gmra.mrb[0].mxu0 %v2091
    %v2201 = vpop.f32.mrb[0].mxu0
    %v2202 = vadd.f32 %v2100, %v2201
    %v2203 = vpop.f32.mrb[0].mxu0
    %v2204 = vadd.f32 %v2104, %v2203
    %2205 = vmatprep.mubr.f32.mxu0 0.0
    %2206 = vmatmul.mubr.f32.gmra.mrb[0].mxu0 %v2092
    %v2207 = vpop.f32.mrb[0].mxu0
    %v2208 = vadd.f32 %v2100, %v2207
    %v2209 = vpop.f32.mrb[0].mxu0
    %v2210 = vadd.f32 %v2104, %v2209
    %2211 = vmatprep.mubr.f32.mxu0 0.0
    %2212 = vmatmul.mubr.f32.gmra.mrb[0].mxu0 %v2093
    %v2213 = vpop.f32.mrb[0].mxu0
    %v2214 = vadd.f32 %v2100, %v2213
    %v2215 = vpop.f32.mrb[0].mxu0
    %v2216 = vadd.f32 %v2104, %v2215
    %2217 = vmatprep.mubr.f32.mxu0 0.0
    %2218 = vmatmul.mubr.f32.gmra.mrb[0].mxu0 %v2094
    %v2219 = vpop.f32.mrb[0].mxu0
    %v2220 = vadd.f32 %v2100, %v2219
    %v2221 = vpop.f32.mrb[0].mxu0
    %v2222 = vadd.f32 %v2104, %v2221
    %2223 = vmatprep.mubr.f32.mxu0 0.0
    %2224 = vmatmul.mubr.f32.gmra.mrb[0].mxu0 %v2095
    %v2225 = vpop.f32.mrb[0].mxu0
    %v2226 = vadd.f32 %v2100, %v2225
    %v2227 = vpop.f32.mrb[0].mxu0
    %v2228 = vadd.f32 %v2104, %v2227
    %2229 = vdwg.mxu0
    %2230 = vmatprep.subr.mxu0 %v1960
    %2231 = vmatpush1.msra.mxu0 %v1959
    %2232 = vmatprep.subr.mxu0 %v1964
    %2233 = vmatpush1.msra.mxu0 %v1963
    %2234 = vmatprep.subr.mxu0 %v1968
    %2235 = vmatpush1.msra.mxu0 %v1967
    %2236 = vmatprep.subr.mxu0 %v1972
    %2237 = vmatpush1.msra.mxu0 %v1971
    %2238 = vmatprep.subr.mxu0 %v1976
    %2239 = vmatpush1.msra.mxu0 %v1975
    %2240 = vmatprep.subr.mxu0 %v1980
    %2241 = vmatpush1.msra.mxu0 %v1979
    %2242 = vmatprep.subr.mxu0 %v1984
    %2243 = vmatpush1.msra.mxu0 %v1983
    %2244 = vmatprep.subr.mxu0 %v1988
    %2245 = vmatpush1.msra.mxu0 %v1987
    %2246 = vmatprep.subr.mxu0 %v1992
    %2247 = vmatpush1.msra.mxu0 %v1991
    %2248 = vmatprep.subr.mxu0 %v1996
    %2249 = vmatpush1.msra.mxu0 %v1995
    %2250 = vmatprep.subr.mxu0 %v2000
    %2251 = vmatpush1.msra.mxu0 %v1999
    %2252 = vmatprep.subr.mxu0 %v2004
    %2253 = vmatpush1.msra.mxu0 %v2003
    %2254 = vmatprep.subr.mxu0 %v2008
    %2255 = vmatpush1.msra.mxu0 %v2007
    %2256 = vmatprep.subr.mxu0 %v2012
    %2257 = vmatpush1.msra.mxu0 %v2011
    %2258 = vmatprep.subr.mxu0 %v2016
    %2259 = vmatpush1.msra.mxu0 %v2015
    %2260 = vmatprep.subr.mxu0 %v2020
    %2261 = vmatpush1.msra.mxu0 %v2019
    %2262 = vmatprep.subr.mxu0 0.0
    %2263 = vmatpush1.msra.mxu0 0.0
    %2264 = vmatprep.subr.mxu0 0.0
    %2265 = vmatpush1.msra.mxu0 0.0
    %2266 = vmatprep.subr.mxu0 0.0
    %2267 = vmatpush1.msra.mxu0 0.0
    %2268 = vmatprep.subr.mxu0 0.0
    %2269 = vmatpush1.msra.mxu0 0.0
    %2270 = vmatprep.subr.mxu0 0.0
    %2271 = vmatpush1.msra.mxu0 0.0
    %2272 = vmatprep.subr.mxu0 0.0
    %2273 = vmatpush1.msra.mxu0 0.0
    %2274 = vmatprep.subr.mxu0 0.0
    %2275 = vmatpush1.msra.mxu0 0.0
    %2276 = vmatprep.subr.mxu0 0.0
    %2277 = vmatpush1.msra.mxu0 0.0
    %2278 = vmatprep.subr.mxu0 0.0
    %2279 = vmatpush1.msra.mxu0 0.0
    %2280 = vmatprep.subr.mxu0 0.0
    %2281 = vmatpush1.msra.mxu0 0.0
    %2282 = vmatprep.subr.mxu0 0.0
    %2283 = vmatpush1.msra.mxu0 0.0
    %2284 = vmatprep.subr.mxu0 0.0
    %2285 = vmatpush1.msra.mxu0 0.0
    %2286 = vmatprep.subr.mxu0 0.0
    %2287 = vmatpush1.msra.mxu0 0.0
    %2288 = vmatprep.subr.mxu0 0.0
    %2289 = vmatpush1.msra.mxu0 0.0
    %2290 = vmatprep.subr.mxu0 0.0
    %2291 = vmatpush1.msra.mxu0 0.0
    %2292 = vmatprep.subr.mxu0 0.0
    %2293 = vmatpush1.msra.mxu0 0.0
    %2294 = vmatprep.mubr.f32.mxu0 0.0
    %2295 = vmatmul.mubr.f32.gmra.mrb[0].mxu0 %v2088
    %v2296 = vpop.f32.mrb[0].mxu0
    %v2297 = vadd.f32 %v2108, %v2296
    %v2298 = vpop.f32.mrb[0].mxu0
    %v2299 = vadd.f32 %v2112, %v2298
    %2300 = vmatprep.mubr.f32.mxu0 0.0
    %2301 = vmatmul.mubr.f32.gmra.mrb[0].mxu0 %v2089
    %v2302 = vpop.f32.mrb[0].mxu0
    %v2303 = vadd.f32 %v2108, %v2302
    %v2304 = vpop.f32.mrb[0].mxu0
    %v2305 = vadd.f32 %v2112, %v2304
    %2306 = vmatprep.mubr.f32.mxu0 0.0
    %2307 = vmatmul.mubr.f32.gmra.mrb[0].mxu0 %v2090
    %v2308 = vpop.f32.mrb[0].mxu0
    %v2309 = vadd.f32 %v2108, %v2308
    %v2310 = vpop.f32.mrb[0].mxu0
    %v2311 = vadd.f32 %v2112, %v2310
    %2312 = vmatprep.mubr.f32.mxu0 0.0
    %2313 = vmatmul.mubr.f32.gmra.mrb[0].mxu0 %v2091
    %v2314 = vpop.f32.mrb[0].mxu0
    %v2315 = vadd.f32 %v2108, %v2314
    %v2316 = vpop.f32.mrb[0].mxu0
    %v2317 = vadd.f32 %v2112, %v2316
    %2318 = vmatprep.mubr.f32.mxu0 0.0
    %2319 = vmatmul.mubr.f32.gmra.mrb[0].mxu0 %v2092
    %v2320 = vpop.f32.mrb[0].mxu0
    %v2321 = vadd.f32 %v2108, %v2320
    %v2322 = vpop.f32.mrb[0].mxu0
    %v2323 = vadd.f32 %v2112, %v2322
    %2324 = vmatprep.mubr.f32.mxu0 0.0
    %2325 = vmatmul.mubr.f32.gmra.mrb[0].mxu0 %v2093
    %v2326 = vpop.f32.mrb[0].mxu0
    %v2327 = vadd.f32 %v2108, %v2326
    %v2328 = vpop.f32.mrb[0].mxu0
    %v2329 = vadd.f32 %v2112, %v2328
    %2330 = vmatprep.mubr.f32.mxu0 0.0
    %2331 = vmatmul.mubr.f32.gmra.mrb[0].mxu0 %v2094
    %v2332 = vpop.f32.mrb[0].mxu0
    %v2333 = vadd.f32 %v2108, %v2332
    %v2334 = vpop.f32.mrb[0].mxu0
    %v2335 = vadd.f32 %v2112, %v2334
    %2336 = vmatprep.mubr.f32.mxu0 0.0
    %2337 = vmatmul.mubr.f32.gmra.mrb[0].mxu0 %v2095
    %v2338 = vpop.f32.mrb[0].mxu0
    %v2339 = vadd.f32 %v2108, %v2338
    %v2340 = vpop.f32.mrb[0].mxu0
    %v2341 = vadd.f32 %v2112, %v2340
    %2342 = vdwg.mxu0
    %2343 = vst [vmem:[#allocation3] sm:$0xff] %v2184
    %2344 = vst [vmem:[#allocation3 + $0x8] sm:$0xff] %v2186
    %2345 = vst [vmem:[#allocation3 + $0x10] sm:$0xff] %v2297
    %2346 = vst [vmem:[#allocation3 + $0x18] sm:$0xff] %v2299
    %2347 = vst [vmem:[#allocation3 + $0x20] sm:$0xff] %v2190
    %2348 = vst [vmem:[#allocation3 + $0x28] sm:$0xff] %v2192
    %2349 = vst [vmem:[#allocation3 + $0x30] sm:$0xff] %v2303
    %2350 = vst [vmem:[#allocation3 + $0x38] sm:$0xff] %v2305
    %2351 = vst [vmem:[#allocation3 + $0x40] sm:$0xff] %v2196
    %2352 = vst [vmem:[#allocation3 + $0x48] sm:$0xff] %v2198
    %2353 = vst [vmem:[#allocation3 + $0x50] sm:$0xff] %v2309
    %2354 = vst [vmem:[#allocation3 + $0x58] sm:$0xff] %v2311
    %2355 = vst [vmem:[#allocation3 + $0x60] sm:$0xff] %v2202
    %2356 = vst [vmem:[#allocation3 + $0x68] sm:$0xff] %v2204
    %2357 = vst [vmem:[#allocation3 + $0x70] sm:$0xff] %v2315
    %2358 = vst [vmem:[#allocation3 + $0x78] sm:$0xff] %v2317
    %2359 = vst [vmem:[#allocation3 + $0x80] sm:$0xff] %v2208
    %2360 = vst [vmem:[#allocation3 + $0x88] sm:$0xff] %v2210
    %2361 = vst [vmem:[#allocation3 + $0x90] sm:$0xff] %v2321
    %2362 = vst [vmem:[#allocation3 + $0x98] sm:$0xff] %v2323
    %2363 = vst [vmem:[#allocation3 + $0xa0] sm:$0xff] %v2214
    %2364 = vst [vmem:[#allocation3 + $0xa8] sm:$0xff] %v2216
    %2365 = vst [vmem:[#allocation3 + $0xb0] sm:$0xff] %v2327
    %2366 = vst [vmem:[#allocation3 + $0xb8] sm:$0xff] %v2329
    %2367 = vst [vmem:[#allocation3 + $0xc0] sm:$0xff] %v2220
    %2368 = vst [vmem:[#allocation3 + $0xc8] sm:$0xff] %v2222
    %2369 = vst [vmem:[#allocation3 + $0xd0] sm:$0xff] %v2333
    %2370 = vst [vmem:[#allocation3 + $0xd8] sm:$0xff] %v2335
    %2371 = vst [vmem:[#allocation3 + $0xe0] sm:$0xff] %v2226
    %2372 = vst [vmem:[#allocation3 + $0xe8] sm:$0xff] %v2228
    %2373 = vst [vmem:[#allocation3 + $0xf0] sm:$0xff] %v2339
    %2374 = vst [vmem:[#allocation3 + $0xf8] sm:$0xff] %v2341
    %2375 = vst [vmem:[#allocation4] sm:$0xff] 0.0
    %2376 = vst [vmem:[#allocation5] sm:$0xff] 0.0
    %v2377 = vld [vmem:[#allocation3] sm:$0xff]
    %v2378 = vld [vmem:[#allocation3 + $0x8] sm:$0xff]
    %v2379 = vld [vmem:[#allocation3 + $0x10] sm:$0xff]
    %v2380 = vld [vmem:[#allocation3 + $0x18] sm:$0xff]
    %v2381 = vld [vmem:[#allocation4] sm:$0xff]
    %2382 = vmatprep.subr.mxu0 %v2023
    %2383 = vmatpush1.msra.mxu0 %v2022
    %2384 = vmatprep.subr.mxu0 %v2027
    %2385 = vmatpush1.msra.mxu0 %v2026
    %2386 = vmatprep.subr.mxu0 %v2031
    %2387 = vmatpush1.msra.mxu0 %v2030
    %2388 = vmatprep.subr.mxu0 %v2035
    %2389 = vmatpush1.msra.mxu0 %v2034
    %2390 = vmatprep.subr.mxu0 %v2039
    %2391 = vmatpush1.msra.mxu0 %v2038
    %2392 = vmatprep.subr.mxu0 %v2043
    %2393 = vmatpush1.msra.mxu0 %v2042
    %2394 = vmatprep.subr.mxu0 %v2047
    %2395 = vmatpush1.msra.mxu0 %v2046
    %2396 = vmatprep.subr.mxu0 %v2051
    %2397 = vmatpush1.msra.mxu0 %v2050
    %2398 = vmatprep.subr.mxu0 %v2055
    %2399 = vmatpush1.msra.mxu0 %v2054
    %2400 = vmatprep.subr.mxu0 %v2059
    %2401 = vmatpush1.msra.mxu0 %v2058
    %2402 = vmatprep.subr.mxu0 %v2063
    %2403 = vmatpush1.msra.mxu0 %v2062
    %2404 = vmatprep.subr.mxu0 %v2067
    %2405 = vmatpush1.msra.mxu0 %v2066
    %2406 = vmatprep.subr.mxu0 %v2071
    %2407 = vmatpush1.msra.mxu0 %v2070
    %2408 = vmatprep.subr.mxu0 %v2075
    %2409 = vmatpush1.msra.mxu0 %v2074
    %2410 = vmatprep.subr.mxu0 %v2079
    %2411 = vmatpush1.msra.mxu0 %v2078
    %2412 = vmatprep.subr.mxu0 %v2083
    %2413 = vmatpush1.msra.mxu0 %v2082
    %2414 = vmatprep.subr.mxu0 0.0
    %2415 = vmatpush1.msra.mxu0 0.0
    %2416 = vmatprep.subr.mxu0 0.0
    %2417 = vmatpush1.msra.mxu0 0.0
    %2418 = vmatprep.subr.mxu0 0.0
    %2419 = vmatpush1.msra.mxu0 0.0
    %2420 = vmatprep.subr.mxu0 0.0
    %2421 = vmatpush1.msra.mxu0 0.0
    %2422 = vmatprep.subr.mxu0 0.0
    %2423 = vmatpush1.msra.mxu0 0.0
    %2424 = vmatprep.subr.mxu0 0.0
    %2425 = vmatpush1.msra.mxu0 0.0
    %2426 = vmatprep.subr.mxu0 0.0
    %2427 = vmatpush1.msra.mxu0 0.0
    %2428 = vmatprep.subr.mxu0 0.0
    %2429 = vmatpush1.msra.mxu0 0.0
    %2430 = vmatprep.subr.mxu0 0.0
    %2431 = vmatpush1.msra.mxu0 0.0
    %2432 = vmatprep.subr.mxu0 0.0
    %2433 = vmatpush1.msra.mxu0 0.0
    %2434 = vmatprep.subr.mxu0 0.0
    %2435 = vmatpush1.msra.mxu0 0.0
    %2436 = vmatprep.subr.mxu0 0.0
    %2437 = vmatpush1.msra.mxu0 0.0
    %2438 = vmatprep.subr.mxu0 0.0
    %2439 = vmatpush1.msra.mxu0 0.0
    %2440 = vmatprep.subr.mxu0 0.0
    %2441 = vmatpush1.msra.mxu0 0.0
    %2442 = vmatprep.subr.mxu0 0.0
    %2443 = vmatpush1.msra.mxu0 0.0
    %2444 = vmatprep.subr.mxu0 0.0
    %2445 = vmatpush1.msra.mxu0 0.0
    %2446 = vmatprep.mubr.f32.mxu0 0.0
    %2447 = vmatmul.mubr.f32.gmra.mrb[0].mxu0 %v2381
    %v2448 = vpop.f32.mrb[0].mxu0
    %v2449 = vadd.f32 0.0, %v2448
    %v2450 = vpop.f32.mrb[0].mxu0
    %v2451 = vadd.f32 0.0, %v2450
    %2452 = vdwg.mxu0
    %2453 = vmatprep.subr.mxu0 %v2025
    %2454 = vmatpush1.msra.mxu0 %v2024
    %2455 = vmatprep.subr.mxu0 %v2029
    %2456 = vmatpush1.msra.mxu0 %v2028
    %2457 = vmatprep.subr.mxu0 %v2033
    %2458 = vmatpush1.msra.mxu0 %v2032
    %2459 = vmatprep.subr.mxu0 %v2037
    %2460 = vmatpush1.msra.mxu0 %v2036
    %2461 = vmatprep.subr.mxu0 %v2041
    %2462 = vmatpush1.msra.mxu0 %v2040
    %2463 = vmatprep.subr.mxu0 %v2045
    %2464 = vmatpush1.msra.mxu0 %v2044
    %2465 = vmatprep.subr.mxu0 %v2049
    %2466 = vmatpush1.msra.mxu0 %v2048
    %2467 = vmatprep.subr.mxu0 %v2053
    %2468 = vmatpush1.msra.mxu0 %v2052
    %2469 = vmatprep.subr.mxu0 %v2057
    %2470 = vmatpush1.msra.mxu0 %v2056
    %2471 = vmatprep.subr.mxu0 %v2061
    %2472 = vmatpush1.msra.mxu0 %v2060
    %2473 = vmatprep.subr.mxu0 %v2065
    %2474 = vmatpush1.msra.mxu0 %v2064
    %2475 = vmatprep.subr.mxu0 %v2069
    %2476 = vmatpush1.msra.mxu0 %v2068
    %2477 = vmatprep.subr.mxu0 %v2073
    %2478 = vmatpush1.msra.mxu0 %v2072
    %2479 = vmatprep.subr.mxu0 %v2077
    %2480 = vmatpush1.msra.mxu0 %v2076
    %2481 = vmatprep.subr.mxu0 %v2081
    %2482 = vmatpush1.msra.mxu0 %v2080
    %2483 = vmatprep.subr.mxu0 %v2085
    %2484 = vmatpush1.msra.mxu0 %v2084
    %2485 = vmatprep.subr.mxu0 0.0
    %2486 = vmatpush1.msra.mxu0 0.0
    %2487 = vmatprep.subr.mxu0 0.0
    %2488 = vmatpush1.msra.mxu0 0.0
    %2489 = vmatprep.subr.mxu0 0.0
    %2490 = vmatpush1.msra.mxu0 0.0
    %2491 = vmatprep.subr.mxu0 0.0
    %2492 = vmatpush1.msra.mxu0 0.0
    %2493 = vmatprep.subr.mxu0 0.0
    %2494 = vmatpush1.msra.mxu0 0.0
    %2495 = vmatprep.subr.mxu0 0.0
    %2496 = vmatpush1.msra.mxu0 0.0
    %2497 = vmatprep.subr.mxu0 0.0
    %2498 = vmatpush1.msra.mxu0 0.0
    %2499 = vmatprep.subr.mxu0 0.0
    %2500 = vmatpush1.msra.mxu0 0.0
    %2501 = vmatprep.subr.mxu0 0.0
    %2502 = vmatpush1.msra.mxu0 0.0
    %2503 = vmatprep.subr.mxu0 0.0
    %2504 = vmatpush1.msra.mxu0 0.0
    %2505 = vmatprep.subr.mxu0 0.0
    %2506 = vmatpush1.msra.mxu0 0.0
    %2507 = vmatprep.subr.mxu0 0.0
    %2508 = vmatpush1.msra.mxu0 0.0
    %2509 = vmatprep.subr.mxu0 0.0
    %2510 = vmatpush1.msra.mxu0 0.0
    %2511 = vmatprep.subr.mxu0 0.0
    %2512 = vmatpush1.msra.mxu0 0.0
    %2513 = vmatprep.subr.mxu0 0.0
    %2514 = vmatpush1.msra.mxu0 0.0
    %2515 = vmatprep.subr.mxu0 0.0
    %2516 = vmatpush1.msra.mxu0 0.0
    %2517 = vmatprep.mubr.f32.mxu0 0.0
    %2518 = vmatmul.mubr.f32.gmra.mrb[0].mxu0 %v2381
    %v2519 = vpop.f32.mrb[0].mxu0
    %v2520 = vadd.f32 0.0, %v2519
    %v2521 = vpop.f32.mrb[0].mxu0
    %v2522 = vadd.f32 0.0, %v2521
    %2523 = vdwg.mxu0
    %v2524 = vadd.f32 %v2377, %v2449
    %v2525 = vadd.f32 %v2378, %v2451
    %v2526 = vadd.f32 %v2379, %v2520
    %v2527 = vadd.f32 %v2380, %v2522
    %v2528 = vxor.u32 %v2524, 2147483648
    %v2529 = vmul.f32 %v2528, 1.442695
    %v2530 = vpow.pop %v2529
    %v2531 = vadd.f32 %v2530, 1.0
    %v2532 = vrcp.pop %v2531
    %v2533 = vmul.f32 1.0, %v2532
    %v2534 = vxor.u32 %v2525, 2147483648
    %v2535 = vmul.f32 %v2534, 1.442695
    %v2536 = vpow.pop %v2535
    %v2537 = vadd.f32 %v2536, 1.0
    %v2538 = vrcp.pop %v2537
    %v2539 = vmul.f32 1.0, %v2538
    %v2540 = vtanh.pop %v2526
    %v2541 = vxor.u32 %v2527, 2147483648
    %v2542 = vmul.f32 %v2541, 1.442695
    %v2543 = vpow.pop %v2542
    %v2544 = vadd.f32 %v2543, 1.0
    %v2545 = vrcp.pop %v2544
    %v2546 = vmul.f32 1.0, %v2545
    %v2547 = vld [vmem:[#allocation5] sm:$0xff]
    %v2548 = vmul.f32 %v2539, %v2547
    %v2549 = vmul.f32 %v2533, %v2540
    %v2550 = vadd.f32 %v2548, %v2549
    %v2551 = vtanh.pop %v2550
    %v2552 = vmul.f32 %v2546, %v2551
    %2553 = vst [vmem:[#allocation5] sm:$0xff] %v2550
    %2554 = vst [vmem:[#allocation4] sm:$0xff] %v2552
    %2555 = vst [vmem:[#allocation2] sm:$0xff] %v2552
    %v2556 = vld [vmem:[%s689] sm:$0xff]
    %v2557 = vld [vmem:[%s689 + $0x8] sm:$0xff]
    %v2558 = vld [vmem:[%s689 + $0x10] sm:$0xff]
    %v2559 = vld [vmem:[%s689 + $0x18] sm:$0xff]
    %v2560 = vld [vmem:[#allocation4] sm:$0xff]
    %2561 = vmatprep.subr.mxu0 %v2023
    %2562 = vmatpush1.msra.mxu0 %v2022
    %2563 = vmatprep.subr.mxu0 %v2027
    %2564 = vmatpush1.msra.mxu0 %v2026
    %2565 = vmatprep.subr.mxu0 %v2031
    %2566 = vmatpush1.msra.mxu0 %v2030
    %2567 = vmatprep.subr.mxu0 %v2035
    %2568 = vmatpush1.msra.mxu0 %v2034
    %2569 = vmatprep.subr.mxu0 %v2039
    %2570 = vmatpush1.msra.mxu0 %v2038
    %2571 = vmatprep.subr.mxu0 %v2043
    %2572 = vmatpush1.msra.mxu0 %v2042
    %2573 = vmatprep.subr.mxu0 %v2047
    %2574 = vmatpush1.msra.mxu0 %v2046
    %2575 = vmatprep.subr.mxu0 %v2051
    %2576 = vmatpush1.msra.mxu0 %v2050
    %2577 = vmatprep.subr.mxu0 %v2055
    %2578 = vmatpush1.msra.mxu0 %v2054
    %2579 = vmatprep.subr.mxu0 %v2059
    %2580 = vmatpush1.msra.mxu0 %v2058
    %2581 = vmatprep.subr.mxu0 %v2063
    %2582 = vmatpush1.msra.mxu0 %v2062
    %2583 = vmatprep.subr.mxu0 %v2067
    %2584 = vmatpush1.msra.mxu0 %v2066
    %2585 = vmatprep.subr.mxu0 %v2071
    %2586 = vmatpush1.msra.mxu0 %v2070
    %2587 = vmatprep.subr.mxu0 %v2075
    %2588 = vmatpush1.msra.mxu0 %v2074
    %2589 = vmatprep.subr.mxu0 %v2079
    %2590 = vmatpush1.msra.mxu0 %v2078
    %2591 = vmatprep.subr.mxu0 %v2083
    %2592 = vmatpush1.msra.mxu0 %v2082
    %2593 = vmatprep.subr.mxu0 0.0
    %2594 = vmatpush1.msra.mxu0 0.0
    %2595 = vmatprep.subr.mxu0 0.0
    %2596 = vmatpush1.msra.mxu0 0.0
    %2597 = vmatprep.subr.mxu0 0.0
    %2598 = vmatpush1.msra.mxu0 0.0
    %2599 = vmatprep.subr.mxu0 0.0
    %2600 = vmatpush1.msra.mxu0 0.0
    %2601 = vmatprep.subr.mxu0 0.0
    %2602 = vmatpush1.msra.mxu0 0.0
    %2603 = vmatprep.subr.mxu0 0.0
    %2604 = vmatpush1.msra.mxu0 0.0
    %2605 = vmatprep.subr.mxu0 0.0
    %2606 = vmatpush1.msra.mxu0 0.0
    %2607 = vmatprep.subr.mxu0 0.0
    %2608 = vmatpush1.msra.mxu0 0.0
    %2609 = vmatprep.subr.mxu0 0.0
    %2610 = vmatpush1.msra.mxu0 0.0
    %2611 = vmatprep.subr.mxu0 0.0
    %2612 = vmatpush1.msra.mxu0 0.0
    %2613 = vmatprep.subr.mxu0 0.0
    %2614 = vmatpush1.msra.mxu0 0.0
    %2615 = vmatprep.subr.mxu0 0.0
    %2616 = vmatpush1.msra.mxu0 0.0
    %2617 = vmatprep.subr.mxu0 0.0
    %2618 = vmatpush1.msra.mxu0 0.0
    %2619 = vmatprep.subr.mxu0 0.0
    %2620 = vmatpush1.msra.mxu0 0.0
    %2621 = vmatprep.subr.mxu0 0.0
    %2622 = vmatpush1.msra.mxu0 0.0
    %2623 = vmatprep.subr.mxu0 0.0
    %2624 = vmatpush1.msra.mxu0 0.0
    %2625 = vmatprep.mubr.f32.mxu0 0.0
    %2626 = vmatmul.mubr.f32.gmra.mrb[0].mxu0 %v2560
    %v2627 = vpop.f32.mrb[0].mxu0
    %v2628 = vadd.f32 0.0, %v2627
    %v2629 = vpop.f32.mrb[0].mxu0
    %v2630 = vadd.f32 0.0, %v2629
    %2631 = vdwg.mxu0
    %2632 = vmatprep.subr.mxu0 %v2025
    %2633 = vmatpush1.msra.mxu0 %v2024
    %2634 = vmatprep.subr.mxu0 %v2029
    %2635 = vmatpush1.msra.mxu0 %v2028
    %2636 = vmatprep.subr.mxu0 %v2033
    %2637 = vmatpush1.msra.mxu0 %v2032
    %2638 = vmatprep.subr.mxu0 %v2037
    %2639 = vmatpush1.msra.mxu0 %v2036
    %2640 = vmatprep.subr.mxu0 %v2041
    %2641 = vmatpush1.msra.mxu0 %v2040
    %2642 = vmatprep.subr.mxu0 %v2045
    %2643 = vmatpush1.msra.mxu0 %v2044
    %2644 = vmatprep.subr.mxu0 %v2049
    %2645 = vmatpush1.msra.mxu0 %v2048
    %2646 = vmatprep.subr.mxu0 %v2053
    %2647 = vmatpush1.msra.mxu0 %v2052
    %2648 = vmatprep.subr.mxu0 %v2057
    %2649 = vmatpush1.msra.mxu0 %v2056
    %2650 = vmatprep.subr.mxu0 %v2061
    %2651 = vmatpush1.msra.mxu0 %v2060
    %2652 = vmatprep.subr.mxu0 %v2065
    %2653 = vmatpush1.msra.mxu0 %v2064
    %2654 = vmatprep.subr.mxu0 %v2069
    %2655 = vmatpush1.msra.mxu0 %v2068
    %2656 = vmatprep.subr.mxu0 %v2073
    %2657 = vmatpush1.msra.mxu0 %v2072
    %2658 = vmatprep.subr.mxu0 %v2077
    %2659 = vmatpush1.msra.mxu0 %v2076
    %2660 = vmatprep.subr.mxu0 %v2081
    %2661 = vmatpush1.msra.mxu0 %v2080
    %2662 = vmatprep.subr.mxu0 %v2085
    %2663 = vmatpush1.msra.mxu0 %v2084
    %2664 = vmatprep.subr.mxu0 0.0
    %2665 = vmatpush1.msra.mxu0 0.0
    %2666 = vmatprep.subr.mxu0 0.0
    %2667 = vmatpush1.msra.mxu0 0.0
    %2668 = vmatprep.subr.mxu0 0.0
    %2669 = vmatpush1.msra.mxu0 0.0
    %2670 = vmatprep.subr.mxu0 0.0
    %2671 = vmatpush1.msra.mxu0 0.0
    %2672 = vmatprep.subr.mxu0 0.0
    %2673 = vmatpush1.msra.mxu0 0.0
    %2674 = vmatprep.subr.mxu0 0.0
    %2675 = vmatpush1.msra.mxu0 0.0
    %2676 = vmatprep.subr.mxu0 0.0
    %2677 = vmatpush1.msra.mxu0 0.0
    %2678 = vmatprep.subr.mxu0 0.0
    %2679 = vmatpush1.msra.mxu0 0.0
    %2680 = vmatprep.subr.mxu0 0.0
    %2681 = vmatpush1.msra.mxu0 0.0
    %2682 = vmatprep.subr.mxu0 0.0
    %2683 = vmatpush1.msra.mxu0 0.0
    %2684 = vmatprep.subr.mxu0 0.0
    %2685 = vmatpush1.msra.mxu0 0.0
    %2686 = vmatprep.subr.mxu0 0.0
    %2687 = vmatpush1.msra.mxu0 0.0
    %2688 = vmatprep.subr.mxu0 0.0
    %2689 = vmatpush1.msra.mxu0 0.0
    %2690 = vmatprep.subr.mxu0 0.0
    %2691 = vmatpush1.msra.mxu0 0.0
    %2692 = vmatprep.subr.mxu0 0.0
    %2693 = vmatpush1.msra.mxu0 0.0
    %2694 = vmatprep.subr.mxu0 0.0
    %2695 = vmatpush1.msra.mxu0 0.0
    %2696 = vmatprep.mubr.f32.mxu0 0.0
    %2697 = vmatmul.mubr.f32.gmra.mrb[0].mxu0 %v2560
    %v2698 = vpop.f32.mrb[0].mxu0
    %v2699 = vadd.f32 0.0, %v2698
    %v2700 = vpop.f32.mrb[0].mxu0
    %v2701 = vadd.f32 0.0, %v2700
    %2702 = vdwg.mxu0
    %v2703 = vadd.f32 %v2556, %v2628
    %v2704 = vadd.f32 %v2557, %v2630
    %v2705 = vadd.f32 %v2558, %v2699
    %v2706 = vadd.f32 %v2559, %v2701
    %v2707 = vxor.u32 %v2703, 2147483648
    %v2708 = vmul.f32 %v2707, 1.442695
    %v2709 = vpow.pop %v2708
    %v2710 = vadd.f32 %v2709, 1.0
    %v2711 = vrcp.pop %v2710
    %v2712 = vmul.f32 1.0, %v2711
    %v2713 = vxor.u32 %v2704, 2147483648
    %v2714 = vmul.f32 %v2713, 1.442695
    %v2715 = vpow.pop %v2714
    %v2716 = vadd.f32 %v2715, 1.0
    %v2717 = vrcp.pop %v2716
    %v2718 = vmul.f32 1.0, %v2717
    %v2719 = vtanh.pop %v2705
    %v2720 = vxor.u32 %v2706, 2147483648
    %v2721 = vmul.f32 %v2720, 1.442695
    %v2722 = vpow.pop %v2721
    %v2723 = vadd.f32 %v2722, 1.0
    %v2724 = vrcp.pop %v2723
    %v2725 = vmul.f32 1.0, %v2724
    %v2726 = vld [vmem:[#allocation5] sm:$0xff]
    %v2727 = vmul.f32 %v2718, %v2726
    %v2728 = vmul.f32 %v2712, %v2719
    %v2729 = vadd.f32 %v2727, %v2728
    %v2730 = vtanh.pop %v2729
    %v2731 = vmul.f32 %v2725, %v2730
    %2732 = vst [vmem:[#allocation5] sm:$0xff] %v2729
    %2733 = vst [vmem:[#allocation4] sm:$0xff] %v2731
    %2734 = vst [vmem:[%s868] sm:$0xff] %v2731
    %v2735 = vld [vmem:[%s870] sm:$0xff]
    %v2736 = vld [vmem:[%s870 + $0x8] sm:$0xff]
    %v2737 = vld [vmem:[%s870 + $0x10] sm:$0xff]
    %v2738 = vld [vmem:[%s870 + $0x18] sm:$0xff]
    %v2739 = vld [vmem:[#allocation4] sm:$0xff]
    %2740 = vmatprep.subr.mxu0 %v2023
    %2741 = vmatpush1.msra.mxu0 %v2022
    %2742 = vmatprep.subr.mxu0 %v2027
    %2743 = vmatpush1.msra.mxu0 %v2026
    %2744 = vmatprep.subr.mxu0 %v2031
    %2745 = vmatpush1.msra.mxu0 %v2030
    %2746 = vmatprep.subr.mxu0 %v2035
    %2747 = vmatpush1.msra.mxu0 %v2034
    %2748 = vmatprep.subr.mxu0 %v2039
    %2749 = vmatpush1.msra.mxu0 %v2038
    %2750 = vmatprep.subr.mxu0 %v2043
    %2751 = vmatpush1.msra.mxu0 %v2042
    %2752 = vmatprep.subr.mxu0 %v2047
    %2753 = vmatpush1.msra.mxu0 %v2046
    %2754 = vmatprep.subr.mxu0 %v2051
    %2755 = vmatpush1.msra.mxu0 %v2050
    %2756 = vmatprep.subr.mxu0 %v2055
    %2757 = vmatpush1.msra.mxu0 %v2054
    %2758 = vmatprep.subr.mxu0 %v2059
    %2759 = vmatpush1.msra.mxu0 %v2058
    %2760 = vmatprep.subr.mxu0 %v2063
    %2761 = vmatpush1.msra.mxu0 %v2062
    %2762 = vmatprep.subr.mxu0 %v2067
    %2763 = vmatpush1.msra.mxu0 %v2066
    %2764 = vmatprep.subr.mxu0 %v2071
    %2765 = vmatpush1.msra.mxu0 %v2070
    %2766 = vmatprep.subr.mxu0 %v2075
    %2767 = vmatpush1.msra.mxu0 %v2074
    %2768 = vmatprep.subr.mxu0 %v2079
    %2769 = vmatpush1.msra.mxu0 %v2078
    %2770 = vmatprep.subr.mxu0 %v2083
    %2771 = vmatpush1.msra.mxu0 %v2082
    %2772 = vmatprep.subr.mxu0 0.0
    %2773 = vmatpush1.msra.mxu0 0.0
    %2774 = vmatprep.subr.mxu0 0.0
    %2775 = vmatpush1.msra.mxu0 0.0
    %2776 = vmatprep.subr.mxu0 0.0
    %2777 = vmatpush1.msra.mxu0 0.0
    %2778 = vmatprep.subr.mxu0 0.0
    %2779 = vmatpush1.msra.mxu0 0.0
    %2780 = vmatprep.subr.mxu0 0.0
    %2781 = vmatpush1.msra.mxu0 0.0
    %2782 = vmatprep.subr.mxu0 0.0
    %2783 = vmatpush1.msra.mxu0 0.0
    %2784 = vmatprep.subr.mxu0 0.0
    %2785 = vmatpush1.msra.mxu0 0.0
    %2786 = vmatprep.subr.mxu0 0.0
    %2787 = vmatpush1.msra.mxu0 0.0
    %2788 = vmatprep.subr.mxu0 0.0
    %2789 = vmatpush1.msra.mxu0 0.0
    %2790 = vmatprep.subr.mxu0 0.0
    %2791 = vmatpush1.msra.mxu0 0.0
    %2792 = vmatprep.subr.mxu0 0.0
    %2793 = vmatpush1.msra.mxu0 0.0
    %2794 = vmatprep.subr.mxu0 0.0
    %2795 = vmatpush1.msra.mxu0 0.0
    %2796 = vmatprep.subr.mxu0 0.0
    %2797 = vmatpush1.msra.mxu0 0.0
    %2798 = vmatprep.subr.mxu0 0.0
    %2799 = vmatpush1.msra.mxu0 0.0
    %2800 = vmatprep.subr.mxu0 0.0
    %2801 = vmatpush1.msra.mxu0 0.0
    %2802 = vmatprep.subr.mxu0 0.0
    %2803 = vmatpush1.msra.mxu0 0.0
    %2804 = vmatprep.mubr.f32.mxu0 0.0
    %2805 = vmatmul.mubr.f32.gmra.mrb[0].mxu0 %v2739
    %v2806 = vpop.f32.mrb[0].mxu0
    %v2807 = vadd.f32 0.0, %v2806
    %v2808 = vpop.f32.mrb[0].mxu0
    %v2809 = vadd.f32 0.0, %v2808
    %2810 = vdwg.mxu0
    %2811 = vmatprep.subr.mxu0 %v2025
    %2812 = vmatpush1.msra.mxu0 %v2024
    %2813 = vmatprep.subr.mxu0 %v2029
    %2814 = vmatpush1.msra.mxu0 %v2028
    %2815 = vmatprep.subr.mxu0 %v2033
    %2816 = vmatpush1.msra.mxu0 %v2032
    %2817 = vmatprep.subr.mxu0 %v2037
    %2818 = vmatpush1.msra.mxu0 %v2036
    %2819 = vmatprep.subr.mxu0 %v2041
    %2820 = vmatpush1.msra.mxu0 %v2040
    %2821 = vmatprep.subr.mxu0 %v2045
    %2822 = vmatpush1.msra.mxu0 %v2044
    %2823 = vmatprep.subr.mxu0 %v2049
    %2824 = vmatpush1.msra.mxu0 %v2048
    %2825 = vmatprep.subr.mxu0 %v2053
    %2826 = vmatpush1.msra.mxu0 %v2052
    %2827 = vmatprep.subr.mxu0 %v2057
    %2828 = vmatpush1.msra.mxu0 %v2056
    %2829 = vmatprep.subr.mxu0 %v2061
    %2830 = vmatpush1.msra.mxu0 %v2060
    %2831 = vmatprep.subr.mxu0 %v2065
    %2832 = vmatpush1.msra.mxu0 %v2064
    %2833 = vmatprep.subr.mxu0 %v2069
    %2834 = vmatpush1.msra.mxu0 %v2068
    %2835 = vmatprep.subr.mxu0 %v2073
    %2836 = vmatpush1.msra.mxu0 %v2072
    %2837 = vmatprep.subr.mxu0 %v2077
    %2838 = vmatpush1.msra.mxu0 %v2076
    %2839 = vmatprep.subr.mxu0 %v2081
    %2840 = vmatpush1.msra.mxu0 %v2080
    %2841 = vmatprep.subr.mxu0 %v2085
    %2842 = vmatpush1.msra.mxu0 %v2084
    %2843 = vmatprep.subr.mxu0 0.0
    %2844 = vmatpush1.msra.mxu0 0.0
    %2845 = vmatprep.subr.mxu0 0.0
    %2846 = vmatpush1.msra.mxu0 0.0
    %2847 = vmatprep.subr.mxu0 0.0
    %2848 = vmatpush1.msra.mxu0 0.0
    %2849 = vmatprep.subr.mxu0 0.0
    %2850 = vmatpush1.msra.mxu0 0.0
    %2851 = vmatprep.subr.mxu0 0.0
    %2852 = vmatpush1.msra.mxu0 0.0
    %2853 = vmatprep.subr.mxu0 0.0
    %2854 = vmatpush1.msra.mxu0 0.0
    %2855 = vmatprep.subr.mxu0 0.0
    %2856 = vmatpush1.msra.mxu0 0.0
    %2857 = vmatprep.subr.mxu0 0.0
    %2858 = vmatpush1.msra.mxu0 0.0
    %2859 = vmatprep.subr.mxu0 0.0
    %2860 = vmatpush1.msra.mxu0 0.0
    %2861 = vmatprep.subr.mxu0 0.0
    %2862 = vmatpush1.msra.mxu0 0.0
    %2863 = vmatprep.subr.mxu0 0.0
    %2864 = vmatpush1.msra.mxu0 0.0
    %2865 = vmatprep.subr.mxu0 0.0
    %2866 = vmatpush1.msra.mxu0 0.0
    %2867 = vmatprep.subr.mxu0 0.0
    %2868 = vmatpush1.msra.mxu0 0.0
    %2869 = vmatprep.subr.mxu0 0.0
    %2870 = vmatpush1.msra.mxu0 0.0
    %2871 = vmatprep.subr.mxu0 0.0
    %2872 = vmatpush1.msra.mxu0 0.0
    %2873 = vmatprep.subr.mxu0 0.0
    %2874 = vmatpush1.msra.mxu0 0.0
    %2875 = vmatprep.mubr.f32.mxu0 0.0
    %2876 = vmatmul.mubr.f32.gmra.mrb[0].mxu0 %v2739
    %v2877 = vpop.f32.mrb[0].mxu0
    %v2878 = vadd.f32 0.0, %v2877
    %v2879 = vpop.f32.mrb[0].mxu0
    %v2880 = vadd.f32 0.0, %v2879
    %2881 = vdwg.mxu0
    %v2882 = vadd.f32 %v2735, %v2807
    %v2883 = vadd.f32 %v2736, %v2809
    %v2884 = vadd.f32 %v2737, %v2878
    %v2885 = vadd.f32 %v2738, %v2880
    %v2886 = vxor.u32 %v2882, 2147483648
    %v2887 = vmul.f32 %v2886, 1.442695
    %v2888 = vpow.pop %v2887
    %v2889 = vadd.f32 %v2888, 1.0
    %v2890 = vrcp.pop %v2889
    %v2891 = vmul.f32 1.0, %v2890
    %v2892 = vxor.u32 %v2883, 2147483648
    %v2893 = vmul.f32 %v2892, 1.442695
    %v2894 = vpow.pop %v2893
    %v2895 = vadd.f32 %v2894, 1.0
    %v2896 = vrcp.pop %v2895
    %v2897 = vmul.f32 1.0, %v2896
    %v2898 = vtanh.pop %v2884
    %v2899 = vxor.u32 %v2885, 2147483648
    %v2900 = vmul.f32 %v2899, 1.442695
    %v2901 = vpow.pop %v2900
    %v2902 = vadd.f32 %v2901, 1.0
    %v2903 = vrcp.pop %v2902
    %v2904 = vmul.f32 1.0, %v2903
    %v2905 = vld [vmem:[#allocation5] sm:$0xff]
    %v2906 = vmul.f32 %v2897, %v2905
    %v2907 = vmul.f32 %v2891, %v2898
    %v2908 = vadd.f32 %v2906, %v2907
    %v2909 = vtanh.pop %v2908
    %v2910 = vmul.f32 %v2904, %v2909
    %2911 = vst [vmem:[#allocation5] sm:$0xff] %v2908
    %2912 = vst [vmem:[#allocation4] sm:$0xff] %v2910
    %2913 = vst [vmem:[%s1049] sm:$0xff] %v2910
    %v2914 = vld [vmem:[%s1051] sm:$0xff]
    %v2915 = vld [vmem:[%s1051 + $0x8] sm:$0xff]
    %v2916 = vld [vmem:[%s1051 + $0x10] sm:$0xff]
    %v2917 = vld [vmem:[%s1051 + $0x18] sm:$0xff]
    %v2918 = vld [vmem:[#allocation4] sm:$0xff]
    %2919 = vmatprep.subr.mxu0 %v2023
    %2920 = vmatpush1.msra.mxu0 %v2022
    %2921 = vmatprep.subr.mxu0 %v2027
    %2922 = vmatpush1.msra.mxu0 %v2026
    %2923 = vmatprep.subr.mxu0 %v2031
    %2924 = vmatpush1.msra.mxu0 %v2030
    %2925 = vmatprep.subr.mxu0 %v2035
    %2926 = vmatpush1.msra.mxu0 %v2034
    %2927 = vmatprep.subr.mxu0 %v2039
    %2928 = vmatpush1.msra.mxu0 %v2038
    %2929 = vmatprep.subr.mxu0 %v2043
    %2930 = vmatpush1.msra.mxu0 %v2042
    %2931 = vmatprep.subr.mxu0 %v2047
    %2932 = vmatpush1.msra.mxu0 %v2046
    %2933 = vmatprep.subr.mxu0 %v2051
    %2934 = vmatpush1.msra.mxu0 %v2050
    %2935 = vmatprep.subr.mxu0 %v2055
    %2936 = vmatpush1.msra.mxu0 %v2054
    %2937 = vmatprep.subr.mxu0 %v2059
    %2938 = vmatpush1.msra.mxu0 %v2058
    %2939 = vmatprep.subr.mxu0 %v2063
    %2940 = vmatpush1.msra.mxu0 %v2062
    %2941 = vmatprep.subr.mxu0 %v2067
    %2942 = vmatpush1.msra.mxu0 %v2066
    %2943 = vmatprep.subr.mxu0 %v2071
    %2944 = vmatpush1.msra.mxu0 %v2070
    %2945 = vmatprep.subr.mxu0 %v2075
    %2946 = vmatpush1.msra.mxu0 %v2074
    %2947 = vmatprep.subr.mxu0 %v2079
    %2948 = vmatpush1.msra.mxu0 %v2078
    %2949 = vmatprep.subr.mxu0 %v2083
    %2950 = vmatpush1.msra.mxu0 %v2082
    %2951 = vmatprep.subr.mxu0 0.0
    %2952 = vmatpush1.msra.mxu0 0.0
    %2953 = vmatprep.subr.mxu0 0.0
    %2954 = vmatpush1.msra.mxu0 0.0
    %2955 = vmatprep.subr.mxu0 0.0
    %2956 = vmatpush1.msra.mxu0 0.0
    %2957 = vmatprep.subr.mxu0 0.0
    %2958 = vmatpush1.msra.mxu0 0.0
    %2959 = vmatprep.subr.mxu0 0.0
    %2960 = vmatpush1.msra.mxu0 0.0
    %2961 = vmatprep.subr.mxu0 0.0
    %2962 = vmatpush1.msra.mxu0 0.0
    %2963 = vmatprep.subr.mxu0 0.0
    %2964 = vmatpush1.msra.mxu0 0.0
    %2965 = vmatprep.subr.mxu0 0.0
    %2966 = vmatpush1.msra.mxu0 0.0
    %2967 = vmatprep.subr.mxu0 0.0
    %2968 = vmatpush1.msra.mxu0 0.0
    %2969 = vmatprep.subr.mxu0 0.0
    %2970 = vmatpush1.msra.mxu0 0.0
    %2971 = vmatprep.subr.mxu0 0.0
    %2972 = vmatpush1.msra.mxu0 0.0
    %2973 = vmatprep.subr.mxu0 0.0
    %2974 = vmatpush1.msra.mxu0 0.0
    %2975 = vmatprep.subr.mxu0 0.0
    %2976 = vmatpush1.msra.mxu0 0.0
    %2977 = vmatprep.subr.mxu0 0.0
    %2978 = vmatpush1.msra.mxu0 0.0
    %2979 = vmatprep.subr.mxu0 0.0
    %2980 = vmatpush1.msra.mxu0 0.0
    %2981 = vmatprep.subr.mxu0 0.0
    %2982 = vmatpush1.msra.mxu0 0.0
    %2983 = vmatprep.mubr.f32.mxu0 0.0
    %2984 = vmatmul.mubr.f32.gmra.mrb[0].mxu0 %v2918
    %v2985 = vpop.f32.mrb[0].mxu0
    %v2986 = vadd.f32 0.0, %v2985
    %v2987 = vpop.f32.mrb[0].mxu0
    %v2988 = vadd.f32 0.0, %v2987
    %2989 = vdwg.mxu0
    %2990 = vmatprep.subr.mxu0 %v2025
    %2991 = vmatpush1.msra.mxu0 %v2024
    %2992 = vmatprep.subr.mxu0 %v2029
    %2993 = vmatpush1.msra.mxu0 %v2028
    %2994 = vmatprep.subr.mxu0 %v2033
    %2995 = vmatpush1.msra.mxu0 %v2032
    %2996 = vmatprep.subr.mxu0 %v2037
    %2997 = vmatpush1.msra.mxu0 %v2036
    %2998 = vmatprep.subr.mxu0 %v2041
    %2999 = vmatpush1.msra.mxu0 %v2040
    %3000 = vmatprep.subr.mxu0 %v2045
    %3001 = vmatpush1.msra.mxu0 %v2044
    %3002 = vmatprep.subr.mxu0 %v2049
    %3003 = vmatpush1.msra.mxu0 %v2048
    %3004 = vmatprep.subr.mxu0 %v2053
    %3005 = vmatpush1.msra.mxu0 %v2052
    %3006 = vmatprep.subr.mxu0 %v2057
    %3007 = vmatpush1.msra.mxu0 %v2056
    %3008 = vmatprep.subr.mxu0 %v2061
    %3009 = vmatpush1.msra.mxu0 %v2060
    %3010 = vmatprep.subr.mxu0 %v2065
    %3011 = vmatpush1.msra.mxu0 %v2064
    %3012 = vmatprep.subr.mxu0 %v2069
    %3013 = vmatpush1.msra.mxu0 %v2068
    %3014 = vmatprep.subr.mxu0 %v2073
    %3015 = vmatpush1.msra.mxu0 %v2072
    %3016 = vmatprep.subr.mxu0 %v2077
    %3017 = vmatpush1.msra.mxu0 %v2076
    %3018 = vmatprep.subr.mxu0 %v2081
    %3019 = vmatpush1.msra.mxu0 %v2080
    %3020 = vmatprep.subr.mxu0 %v2085
    %3021 = vmatpush1.msra.mxu0 %v2084
    %3022 = vmatprep.subr.mxu0 0.0
    %3023 = vmatpush1.msra.mxu0 0.0
    %3024 = vmatprep.subr.mxu0 0.0
    %3025 = vmatpush1.msra.mxu0 0.0
    %3026 = vmatprep.subr.mxu0 0.0
    %3027 = vmatpush1.msra.mxu0 0.0
    %3028 = vmatprep.subr.mxu0 0.0
    %3029 = vmatpush1.msra.mxu0 0.0
    %3030 = vmatprep.subr.mxu0 0.0
    %3031 = vmatpush1.msra.mxu0 0.0
    %3032 = vmatprep.subr.mxu0 0.0
    %3033 = vmatpush1.msra.mxu0 0.0
    %3034 = vmatprep.subr.mxu0 0.0
    %3035 = vmatpush1.msra.mxu0 0.0
    %3036 = vmatprep.subr.mxu0 0.0
    %3037 = vmatpush1.msra.mxu0 0.0
    %3038 = vmatprep.subr.mxu0 0.0
    %3039 = vmatpush1.msra.mxu0 0.0
    %3040 = vmatprep.subr.mxu0 0.0
    %3041 = vmatpush1.msra.mxu0 0.0
    %3042 = vmatprep.subr.mxu0 0.0
    %3043 = vmatpush1.msra.mxu0 0.0
    %3044 = vmatprep.subr.mxu0 0.0
    %3045 = vmatpush1.msra.mxu0 0.0
    %3046 = vmatprep.subr.mxu0 0.0
    %3047 = vmatpush1.msra.mxu0 0.0
    %3048 = vmatprep.subr.mxu0 0.0
    %3049 = vmatpush1.msra.mxu0 0.0
    %3050 = vmatprep.subr.mxu0 0.0
    %3051 = vmatpush1.msra.mxu0 0.0
    %3052 = vmatprep.subr.mxu0 0.0
    %3053 = vmatpush1.msra.mxu0 0.0
    %3054 = vmatprep.mubr.f32.mxu0 0.0
    %3055 = vmatmul.mubr.f32.gmra.mrb[0].mxu0 %v2918
    %v3056 = vpop.f32.mrb[0].mxu0
    %v3057 = vadd.f32 0.0, %v3056
    %v3058 = vpop.f32.mrb[0].mxu0
    %v3059 = vadd.f32 0.0, %v3058
    %3060 = vdwg.mxu0
    %v3061 = vadd.f32 %v2914, %v2986
    %v3062 = vadd.f32 %v2915, %v2988
    %v3063 = vadd.f32 %v2916, %v3057
    %v3064 = vadd.f32 %v2917, %v3059
    %v3065 = vxor.u32 %v3061, 2147483648
    %v3066 = vmul.f32 %v3065, 1.442695
    %v3067 = vpow.pop %v3066
    %v3068 = vadd.f32 %v3067, 1.0
    %v3069 = vrcp.pop %v3068
    %v3070 = vmul.f32 1.0, %v3069
    %v3071 = vxor.u32 %v3062, 2147483648
    %v3072 = vmul.f32 %v3071, 1.442695
    %v3073 = vpow.pop %v3072
    %v3074 = vadd.f32 %v3073, 1.0
    %v3075 = vrcp.pop %v3074
    %v3076 = vmul.f32 1.0, %v3075
    %v3077 = vtanh.pop %v3063
    %v3078 = vxor.u32 %v3064, 2147483648
    %v3079 = vmul.f32 %v3078, 1.442695
    %v3080 = vpow.pop %v3079
    %v3081 = vadd.f32 %v3080, 1.0
    %v3082 = vrcp.pop %v3081
    %v3083 = vmul.f32 1.0, %v3082
    %v3084 = vld [vmem:[#allocation5] sm:$0xff]
    %v3085 = vmul.f32 %v3076, %v3084
    %v3086 = vmul.f32 %v3070, %v3077
    %v3087 = vadd.f32 %v3085, %v3086
    %v3088 = vtanh.pop %v3087
    %v3089 = vmul.f32 %v3083, %v3088
    %3090 = vst [vmem:[#allocation5] sm:$0xff] %v3087
    %3091 = vst [vmem:[#allocation4] sm:$0xff] %v3089
    %3092 = vst [vmem:[%s1230] sm:$0xff] %v3089
    %v3093 = vld [vmem:[%s1232] sm:$0xff]
    %v3094 = vld [vmem:[%s1232 + $0x8] sm:$0xff]
    %v3095 = vld [vmem:[%s1232 + $0x10] sm:$0xff]
    %v3096 = vld [vmem:[%s1232 + $0x18] sm:$0xff]
    %v3097 = vld [vmem:[#allocation4] sm:$0xff]
    %3098 = vmatprep.subr.mxu0 %v2023
    %3099 = vmatpush1.msra.mxu0 %v2022
    %3100 = vmatprep.subr.mxu0 %v2027
    %3101 = vmatpush1.msra.mxu0 %v2026
    %3102 = vmatprep.subr.mxu0 %v2031
    %3103 = vmatpush1.msra.mxu0 %v2030
    %3104 = vmatprep.subr.mxu0 %v2035
    %3105 = vmatpush1.msra.mxu0 %v2034
    %3106 = vmatprep.subr.mxu0 %v2039
    %3107 = vmatpush1.msra.mxu0 %v2038
    %3108 = vmatprep.subr.mxu0 %v2043
    %3109 = vmatpush1.msra.mxu0 %v2042
    %3110 = vmatprep.subr.mxu0 %v2047
    %3111 = vmatpush1.msra.mxu0 %v2046
    %3112 = vmatprep.subr.mxu0 %v2051
    %3113 = vmatpush1.msra.mxu0 %v2050
    %3114 = vmatprep.subr.mxu0 %v2055
    %3115 = vmatpush1.msra.mxu0 %v2054
    %3116 = vmatprep.subr.mxu0 %v2059
    %3117 = vmatpush1.msra.mxu0 %v2058
    %3118 = vmatprep.subr.mxu0 %v2063
    %3119 = vmatpush1.msra.mxu0 %v2062
    %3120 = vmatprep.subr.mxu0 %v2067
    %3121 = vmatpush1.msra.mxu0 %v2066
    %3122 = vmatprep.subr.mxu0 %v2071
    %3123 = vmatpush1.msra.mxu0 %v2070
    %3124 = vmatprep.subr.mxu0 %v2075
    %3125 = vmatpush1.msra.mxu0 %v2074
    %3126 = vmatprep.subr.mxu0 %v2079
    %3127 = vmatpush1.msra.mxu0 %v2078
    %3128 = vmatprep.subr.mxu0 %v2083
    %3129 = vmatpush1.msra.mxu0 %v2082
    %3130 = vmatprep.subr.mxu0 0.0
    %3131 = vmatpush1.msra.mxu0 0.0
    %3132 = vmatprep.subr.mxu0 0.0
    %3133 = vmatpush1.msra.mxu0 0.0
    %3134 = vmatprep.subr.mxu0 0.0
    %3135 = vmatpush1.msra.mxu0 0.0
    %3136 = vmatprep.subr.mxu0 0.0
    %3137 = vmatpush1.msra.mxu0 0.0
    %3138 = vmatprep.subr.mxu0 0.0
    %3139 = vmatpush1.msra.mxu0 0.0
    %3140 = vmatprep.subr.mxu0 0.0
    %3141 = vmatpush1.msra.mxu0 0.0
    %3142 = vmatprep.subr.mxu0 0.0
    %3143 = vmatpush1.msra.mxu0 0.0
    %3144 = vmatprep.subr.mxu0 0.0
    %3145 = vmatpush1.msra.mxu0 0.0
    %3146 = vmatprep.subr.mxu0 0.0
    %3147 = vmatpush1.msra.mxu0 0.0
    %3148 = vmatprep.subr.mxu0 0.0
    %3149 = vmatpush1.msra.mxu0 0.0
    %3150 = vmatprep.subr.mxu0 0.0
    %3151 = vmatpush1.msra.mxu0 0.0
    %3152 = vmatprep.subr.mxu0 0.0
    %3153 = vmatpush1.msra.mxu0 0.0
    %3154 = vmatprep.subr.mxu0 0.0
    %3155 = vmatpush1.msra.mxu0 0.0
    %3156 = vmatprep.subr.mxu0 0.0
    %3157 = vmatpush1.msra.mxu0 0.0
    %3158 = vmatprep.subr.mxu0 0.0
    %3159 = vmatpush1.msra.mxu0 0.0
    %3160 = vmatprep.subr.mxu0 0.0
    %3161 = vmatpush1.msra.mxu0 0.0
    %3162 = vmatprep.mubr.f32.mxu0 0.0
    %3163 = vmatmul.mubr.f32.gmra.mrb[0].mxu0 %v3097
    %v3164 = vpop.f32.mrb[0].mxu0
    %v3165 = vadd.f32 0.0, %v3164
    %v3166 = vpop.f32.mrb[0].mxu0
    %v3167 = vadd.f32 0.0, %v3166
    %3168 = vdwg.mxu0
    %3169 = vmatprep.subr.mxu0 %v2025
    %3170 = vmatpush1.msra.mxu0 %v2024
    %3171 = vmatprep.subr.mxu0 %v2029
    %3172 = vmatpush1.msra.mxu0 %v2028
    %3173 = vmatprep.subr.mxu0 %v2033
    %3174 = vmatpush1.msra.mxu0 %v2032
    %3175 = vmatprep.subr.mxu0 %v2037
    %3176 = vmatpush1.msra.mxu0 %v2036
    %3177 = vmatprep.subr.mxu0 %v2041
    %3178 = vmatpush1.msra.mxu0 %v2040
    %3179 = vmatprep.subr.mxu0 %v2045
    %3180 = vmatpush1.msra.mxu0 %v2044
    %3181 = vmatprep.subr.mxu0 %v2049
    %3182 = vmatpush1.msra.mxu0 %v2048
    %3183 = vmatprep.subr.mxu0 %v2053
    %3184 = vmatpush1.msra.mxu0 %v2052
    %3185 = vmatprep.subr.mxu0 %v2057
    %3186 = vmatpush1.msra.mxu0 %v2056
    %3187 = vmatprep.subr.mxu0 %v2061
    %3188 = vmatpush1.msra.mxu0 %v2060
    %3189 = vmatprep.subr.mxu0 %v2065
    %3190 = vmatpush1.msra.mxu0 %v2064
    %3191 = vmatprep.subr.mxu0 %v2069
    %3192 = vmatpush1.msra.mxu0 %v2068
    %3193 = vmatprep.subr.mxu0 %v2073
    %3194 = vmatpush1.msra.mxu0 %v2072
    %3195 = vmatprep.subr.mxu0 %v2077
    %3196 = vmatpush1.msra.mxu0 %v2076
    %3197 = vmatprep.subr.mxu0 %v2081
    %3198 = vmatpush1.msra.mxu0 %v2080
    %3199 = vmatprep.subr.mxu0 %v2085
    %3200 = vmatpush1.msra.mxu0 %v2084
    %3201 = vmatprep.subr.mxu0 0.0
    %3202 = vmatpush1.msra.mxu0 0.0
    %3203 = vmatprep.subr.mxu0 0.0
    %3204 = vmatpush1.msra.mxu0 0.0
    %3205 = vmatprep.subr.mxu0 0.0
    %3206 = vmatpush1.msra.mxu0 0.0
    %3207 = vmatprep.subr.mxu0 0.0
    %3208 = vmatpush1.msra.mxu0 0.0
    %3209 = vmatprep.subr.mxu0 0.0
    %3210 = vmatpush1.msra.mxu0 0.0
    %3211 = vmatprep.subr.mxu0 0.0
    %3212 = vmatpush1.msra.mxu0 0.0
    %3213 = vmatprep.subr.mxu0 0.0
    %3214 = vmatpush1.msra.mxu0 0.0
    %3215 = vmatprep.subr.mxu0 0.0
    %3216 = vmatpush1.msra.mxu0 0.0
    %3217 = vmatprep.subr.mxu0 0.0
    %3218 = vmatpush1.msra.mxu0 0.0
    %3219 = vmatprep.subr.mxu0 0.0
    %3220 = vmatpush1.msra.mxu0 0.0
    %3221 = vmatprep.subr.mxu0 0.0
    %3222 = vmatpush1.msra.mxu0 0.0
    %3223 = vmatprep.subr.mxu0 0.0
    %3224 = vmatpush1.msra.mxu0 0.0
    %3225 = vmatprep.subr.mxu0 0.0
    %3226 = vmatpush1.msra.mxu0 0.0
    %3227 = vmatprep.subr.mxu0 0.0
    %3228 = vmatpush1.msra.mxu0 0.0
    %3229 = vmatprep.subr.mxu0 0.0
    %3230 = vmatpush1.msra.mxu0 0.0
    %3231 = vmatprep.subr.mxu0 0.0
    %3232 = vmatpush1.msra.mxu0 0.0
    %3233 = vmatprep.mubr.f32.mxu0 0.0
    %3234 = vmatmul.mubr.f32.gmra.mrb[0].mxu0 %v3097
    %v3235 = vpop.f32.mrb[0].mxu0
    %v3236 = vadd.f32 0.0, %v3235
    %v3237 = vpop.f32.mrb[0].mxu0
    %v3238 = vadd.f32 0.0, %v3237
    %3239 = vdwg.mxu0
    %v3240 = vadd.f32 %v3093, %v3165
    %v3241 = vadd.f32 %v3094, %v3167
    %v3242 = vadd.f32 %v3095, %v3236
    %v3243 = vadd.f32 %v3096, %v3238
    %v3244 = vxor.u32 %v3240, 2147483648
    %v3245 = vmul.f32 %v3244, 1.442695
    %v3246 = vpow.pop %v3245
    %v3247 = vadd.f32 %v3246, 1.0
    %v3248 = vrcp.pop %v3247
    %v3249 = vmul.f32 1.0, %v3248
    %v3250 = vxor.u32 %v3241, 2147483648
    %v3251 = vmul.f32 %v3250, 1.442695
    %v3252 = vpow.pop %v3251
    %v3253 = vadd.f32 %v3252, 1.0
    %v3254 = vrcp.pop %v3253
    %v3255 = vmul.f32 1.0, %v3254
    %v3256 = vtanh.pop %v3242
    %v3257 = vxor.u32 %v3243, 2147483648
    %v3258 = vmul.f32 %v3257, 1.442695
    %v3259 = vpow.pop %v3258
    %v3260 = vadd.f32 %v3259, 1.0
    %v3261 = vrcp.pop %v3260
    %v3262 = vmul.f32 1.0, %v3261
    %v3263 = vld [vmem:[#allocation5] sm:$0xff]
    %v3264 = vmul.f32 %v3255, %v3263
    %v3265 = vmul.f32 %v3249, %v3256
    %v3266 = vadd.f32 %v3264, %v3265
    %v3267 = vtanh.pop %v3266
    %v3268 = vmul.f32 %v3262, %v3267
    %3269 = vst [vmem:[#allocation5] sm:$0xff] %v3266
    %3270 = vst [vmem:[#allocation4] sm:$0xff] %v3268
    %3271 = vst [vmem:[%s1411] sm:$0xff] %v3268
    %v3272 = vld [vmem:[%s1413] sm:$0xff]
    %v3273 = vld [vmem:[%s1413 + $0x8] sm:$0xff]
    %v3274 = vld [vmem:[%s1413 + $0x10] sm:$0xff]
    %v3275 = vld [vmem:[%s1413 + $0x18] sm:$0xff]
    %v3276 = vld [vmem:[#allocation4] sm:$0xff]
    %3277 = vmatprep.subr.mxu0 %v2023
    %3278 = vmatpush1.msra.mxu0 %v2022
    %3279 = vmatprep.subr.mxu0 %v2027
    %3280 = vmatpush1.msra.mxu0 %v2026
    %3281 = vmatprep.subr.mxu0 %v2031
    %3282 = vmatpush1.msra.mxu0 %v2030
    %3283 = vmatprep.subr.mxu0 %v2035
    %3284 = vmatpush1.msra.mxu0 %v2034
    %3285 = vmatprep.subr.mxu0 %v2039
    %3286 = vmatpush1.msra.mxu0 %v2038
    %3287 = vmatprep.subr.mxu0 %v2043
    %3288 = vmatpush1.msra.mxu0 %v2042
    %3289 = vmatprep.subr.mxu0 %v2047
    %3290 = vmatpush1.msra.mxu0 %v2046
    %3291 = vmatprep.subr.mxu0 %v2051
    %3292 = vmatpush1.msra.mxu0 %v2050
    %3293 = vmatprep.subr.mxu0 %v2055
    %3294 = vmatpush1.msra.mxu0 %v2054
    %3295 = vmatprep.subr.mxu0 %v2059
    %3296 = vmatpush1.msra.mxu0 %v2058
    %3297 = vmatprep.subr.mxu0 %v2063
    %3298 = vmatpush1.msra.mxu0 %v2062
    %3299 = vmatprep.subr.mxu0 %v2067
    %3300 = vmatpush1.msra.mxu0 %v2066
    %3301 = vmatprep.subr.mxu0 %v2071
    %3302 = vmatpush1.msra.mxu0 %v2070
    %3303 = vmatprep.subr.mxu0 %v2075
    %3304 = vmatpush1.msra.mxu0 %v2074
    %3305 = vmatprep.subr.mxu0 %v2079
    %3306 = vmatpush1.msra.mxu0 %v2078
    %3307 = vmatprep.subr.mxu0 %v2083
    %3308 = vmatpush1.msra.mxu0 %v2082
    %3309 = vmatprep.subr.mxu0 0.0
    %3310 = vmatpush1.msra.mxu0 0.0
    %3311 = vmatprep.subr.mxu0 0.0
    %3312 = vmatpush1.msra.mxu0 0.0
    %3313 = vmatprep.subr.mxu0 0.0
    %3314 = vmatpush1.msra.mxu0 0.0
    %3315 = vmatprep.subr.mxu0 0.0
    %3316 = vmatpush1.msra.mxu0 0.0
    %3317 = vmatprep.subr.mxu0 0.0
    %3318 = vmatpush1.msra.mxu0 0.0
    %3319 = vmatprep.subr.mxu0 0.0
    %3320 = vmatpush1.msra.mxu0 0.0
    %3321 = vmatprep.subr.mxu0 0.0
    %3322 = vmatpush1.msra.mxu0 0.0
    %3323 = vmatprep.subr.mxu0 0.0
    %3324 = vmatpush1.msra.mxu0 0.0
    %3325 = vmatprep.subr.mxu0 0.0
    %3326 = vmatpush1.msra.mxu0 0.0
    %3327 = vmatprep.subr.mxu0 0.0
    %3328 = vmatpush1.msra.mxu0 0.0
    %3329 = vmatprep.subr.mxu0 0.0
    %3330 = vmatpush1.msra.mxu0 0.0
    %3331 = vmatprep.subr.mxu0 0.0
    %3332 = vmatpush1.msra.mxu0 0.0
    %3333 = vmatprep.subr.mxu0 0.0
    %3334 = vmatpush1.msra.mxu0 0.0
    %3335 = vmatprep.subr.mxu0 0.0
    %3336 = vmatpush1.msra.mxu0 0.0
    %3337 = vmatprep.subr.mxu0 0.0
    %3338 = vmatpush1.msra.mxu0 0.0
    %3339 = vmatprep.subr.mxu0 0.0
    %3340 = vmatpush1.msra.mxu0 0.0
    %3341 = vmatprep.mubr.f32.mxu0 0.0
    %3342 = vmatmul.mubr.f32.gmra.mrb[0].mxu0 %v3276
    %v3343 = vpop.f32.mrb[0].mxu0
    %v3344 = vadd.f32 0.0, %v3343
    %v3345 = vpop.f32.mrb[0].mxu0
    %v3346 = vadd.f32 0.0, %v3345
    %3347 = vdwg.mxu0
    %3348 = vmatprep.subr.mxu0 %v2025
    %3349 = vmatpush1.msra.mxu0 %v2024
    %3350 = vmatprep.subr.mxu0 %v2029
    %3351 = vmatpush1.msra.mxu0 %v2028
    %3352 = vmatprep.subr.mxu0 %v2033
    %3353 = vmatpush1.msra.mxu0 %v2032
    %3354 = vmatprep.subr.mxu0 %v2037
    %3355 = vmatpush1.msra.mxu0 %v2036
    %3356 = vmatprep.subr.mxu0 %v2041
    %3357 = vmatpush1.msra.mxu0 %v2040
    %3358 = vmatprep.subr.mxu0 %v2045
    %3359 = vmatpush1.msra.mxu0 %v2044
    %3360 = vmatprep.subr.mxu0 %v2049
    %3361 = vmatpush1.msra.mxu0 %v2048
    %3362 = vmatprep.subr.mxu0 %v2053
    %3363 = vmatpush1.msra.mxu0 %v2052
    %3364 = vmatprep.subr.mxu0 %v2057
    %3365 = vmatpush1.msra.mxu0 %v2056
    %3366 = vmatprep.subr.mxu0 %v2061
    %3367 = vmatpush1.msra.mxu0 %v2060
    %3368 = vmatprep.subr.mxu0 %v2065
    %3369 = vmatpush1.msra.mxu0 %v2064
    %3370 = vmatprep.subr.mxu0 %v2069
    %3371 = vmatpush1.msra.mxu0 %v2068
    %3372 = vmatprep.subr.mxu0 %v2073
    %3373 = vmatpush1.msra.mxu0 %v2072
    %3374 = vmatprep.subr.mxu0 %v2077
    %3375 = vmatpush1.msra.mxu0 %v2076
    %3376 = vmatprep.subr.mxu0 %v2081
    %3377 = vmatpush1.msra.mxu0 %v2080
    %3378 = vmatprep.subr.mxu0 %v2085
    %3379 = vmatpush1.msra.mxu0 %v2084
    %3380 = vmatprep.subr.mxu0 0.0
    %3381 = vmatpush1.msra.mxu0 0.0
    %3382 = vmatprep.subr.mxu0 0.0
    %3383 = vmatpush1.msra.mxu0 0.0
    %3384 = vmatprep.subr.mxu0 0.0
    %3385 = vmatpush1.msra.mxu0 0.0
    %3386 = vmatprep.subr.mxu0 0.0
    %3387 = vmatpush1.msra.mxu0 0.0
    %3388 = vmatprep.subr.mxu0 0.0
    %3389 = vmatpush1.msra.mxu0 0.0
    %3390 = vmatprep.subr.mxu0 0.0
    %3391 = vmatpush1.msra.mxu0 0.0
    %3392 = vmatprep.subr.mxu0 0.0
    %3393 = vmatpush1.msra.mxu0 0.0
    %3394 = vmatprep.subr.mxu0 0.0
    %3395 = vmatpush1.msra.mxu0 0.0
    %3396 = vmatprep.subr.mxu0 0.0
    %3397 = vmatpush1.msra.mxu0 0.0
    %3398 = vmatprep.subr.mxu0 0.0
    %3399 = vmatpush1.msra.mxu0 0.0
    %3400 = vmatprep.subr.mxu0 0.0
    %3401 = vmatpush1.msra.mxu0 0.0
    %3402 = vmatprep.subr.mxu0 0.0
    %3403 = vmatpush1.msra.mxu0 0.0
    %3404 = vmatprep.subr.mxu0 0.0
    %3405 = vmatpush1.msra.mxu0 0.0
    %3406 = vmatprep.subr.mxu0 0.0
    %3407 = vmatpush1.msra.mxu0 0.0
    %3408 = vmatprep.subr.mxu0 0.0
    %3409 = vmatpush1.msra.mxu0 0.0
    %3410 = vmatprep.subr.mxu0 0.0
    %3411 = vmatpush1.msra.mxu0 0.0
    %3412 = vmatprep.mubr.f32.mxu0 0.0
    %3413 = vmatmul.mubr.f32.gmra.mrb[0].mxu0 %v3276
    %v3414 = vpop.f32.mrb[0].mxu0
    %v3415 = vadd.f32 0.0, %v3414
    %v3416 = vpop.f32.mrb[0].mxu0
    %v3417 = vadd.f32 0.0, %v3416
    %3418 = vdwg.mxu0
    %v3419 = vadd.f32 %v3272, %v3344
    %v3420 = vadd.f32 %v3273, %v3346
    %v3421 = vadd.f32 %v3274, %v3415
    %v3422 = vadd.f32 %v3275, %v3417
    %v3423 = vxor.u32 %v3419, 2147483648
    %v3424 = vmul.f32 %v3423, 1.442695
    %v3425 = vpow.pop %v3424
    %v3426 = vadd.f32 %v3425, 1.0
    %v3427 = vrcp.pop %v3426
    %v3428 = vmul.f32 1.0, %v3427
    %v3429 = vxor.u32 %v3420, 2147483648
    %v3430 = vmul.f32 %v3429, 1.442695
    %v3431 = vpow.pop %v3430
    %v3432 = vadd.f32 %v3431, 1.0
    %v3433 = vrcp.pop %v3432
    %v3434 = vmul.f32 1.0, %v3433
    %v3435 = vtanh.pop %v3421
    %v3436 = vxor.u32 %v3422, 2147483648
    %v3437 = vmul.f32 %v3436, 1.442695
    %v3438 = vpow.pop %v3437
    %v3439 = vadd.f32 %v3438, 1.0
    %v3440 = vrcp.pop %v3439
    %v3441 = vmul.f32 1.0, %v3440
    %v3442 = vld [vmem:[#allocation5] sm:$0xff]
    %v3443 = vmul.f32 %v3434, %v3442
    %v3444 = vmul.f32 %v3428, %v3435
    %v3445 = vadd.f32 %v3443, %v3444
    %v3446 = vtanh.pop %v3445
    %v3447 = vmul.f32 %v3441, %v3446
    %3448 = vst [vmem:[#allocation5] sm:$0xff] %v3445
    %3449 = vst [vmem:[#allocation4] sm:$0xff] %v3447
    %3450 = vst [vmem:[%s1592] sm:$0xff] %v3447
    %v3451 = vld [vmem:[%s1594] sm:$0xff]
    %v3452 = vld [vmem:[%s1594 + $0x8] sm:$0xff]
    %v3453 = vld [vmem:[%s1594 + $0x10] sm:$0xff]
    %v3454 = vld [vmem:[%s1594 + $0x18] sm:$0xff]
    %v3455 = vld [vmem:[#allocation4] sm:$0xff]
    %3456 = vmatprep.subr.mxu0 %v2023
    %3457 = vmatpush1.msra.mxu0 %v2022
    %3458 = vmatprep.subr.mxu0 %v2027
    %3459 = vmatpush1.msra.mxu0 %v2026
    %3460 = vmatprep.subr.mxu0 %v2031
    %3461 = vmatpush1.msra.mxu0 %v2030
    %3462 = vmatprep.subr.mxu0 %v2035
    %3463 = vmatpush1.msra.mxu0 %v2034
    %3464 = vmatprep.subr.mxu0 %v2039
    %3465 = vmatpush1.msra.mxu0 %v2038
    %3466 = vmatprep.subr.mxu0 %v2043
    %3467 = vmatpush1.msra.mxu0 %v2042
    %3468 = vmatprep.subr.mxu0 %v2047
    %3469 = vmatpush1.msra.mxu0 %v2046
    %3470 = vmatprep.subr.mxu0 %v2051
    %3471 = vmatpush1.msra.mxu0 %v2050
    %3472 = vmatprep.subr.mxu0 %v2055
    %3473 = vmatpush1.msra.mxu0 %v2054
    %3474 = vmatprep.subr.mxu0 %v2059
    %3475 = vmatpush1.msra.mxu0 %v2058
    %3476 = vmatprep.subr.mxu0 %v2063
    %3477 = vmatpush1.msra.mxu0 %v2062
    %3478 = vmatprep.subr.mxu0 %v2067
    %3479 = vmatpush1.msra.mxu0 %v2066
    %3480 = vmatprep.subr.mxu0 %v2071
    %3481 = vmatpush1.msra.mxu0 %v2070
    %3482 = vmatprep.subr.mxu0 %v2075
    %3483 = vmatpush1.msra.mxu0 %v2074
    %3484 = vmatprep.subr.mxu0 %v2079
    %3485 = vmatpush1.msra.mxu0 %v2078
    %3486 = vmatprep.subr.mxu0 %v2083
    %3487 = vmatpush1.msra.mxu0 %v2082
    %3488 = vmatprep.subr.mxu0 0.0
    %3489 = vmatpush1.msra.mxu0 0.0
    %3490 = vmatprep.subr.mxu0 0.0
    %3491 = vmatpush1.msra.mxu0 0.0
    %3492 = vmatprep.subr.mxu0 0.0
    %3493 = vmatpush1.msra.mxu0 0.0
    %3494 = vmatprep.subr.mxu0 0.0
    %3495 = vmatpush1.msra.mxu0 0.0
    %3496 = vmatprep.subr.mxu0 0.0
    %3497 = vmatpush1.msra.mxu0 0.0
    %3498 = vmatprep.subr.mxu0 0.0
    %3499 = vmatpush1.msra.mxu0 0.0
    %3500 = vmatprep.subr.mxu0 0.0
    %3501 = vmatpush1.msra.mxu0 0.0
    %3502 = vmatprep.subr.mxu0 0.0
    %3503 = vmatpush1.msra.mxu0 0.0
    %3504 = vmatprep.subr.mxu0 0.0
    %3505 = vmatpush1.msra.mxu0 0.0
    %3506 = vmatprep.subr.mxu0 0.0
    %3507 = vmatpush1.msra.mxu0 0.0
    %3508 = vmatprep.subr.mxu0 0.0
    %3509 = vmatpush1.msra.mxu0 0.0
    %3510 = vmatprep.subr.mxu0 0.0
    %3511 = vmatpush1.msra.mxu0 0.0
    %3512 = vmatprep.subr.mxu0 0.0
    %3513 = vmatpush1.msra.mxu0 0.0
    %3514 = vmatprep.subr.mxu0 0.0
    %3515 = vmatpush1.msra.mxu0 0.0
    %3516 = vmatprep.subr.mxu0 0.0
    %3517 = vmatpush1.msra.mxu0 0.0
    %3518 = vmatprep.subr.mxu0 0.0
    %3519 = vmatpush1.msra.mxu0 0.0
    %3520 = vmatprep.mubr.f32.mxu0 0.0
    %3521 = vmatmul.mubr.f32.gmra.mrb[0].mxu0 %v3455
    %v3522 = vpop.f32.mrb[0].mxu0
    %v3523 = vadd.f32 0.0, %v3522
    %v3524 = vpop.f32.mrb[0].mxu0
    %v3525 = vadd.f32 0.0, %v3524
    %3526 = vdwg.mxu0
    %3527 = vmatprep.subr.mxu0 %v2025
    %3528 = vmatpush1.msra.mxu0 %v2024
    %3529 = vmatprep.subr.mxu0 %v2029
    %3530 = vmatpush1.msra.mxu0 %v2028
    %3531 = vmatprep.subr.mxu0 %v2033
    %3532 = vmatpush1.msra.mxu0 %v2032
    %3533 = vmatprep.subr.mxu0 %v2037
    %3534 = vmatpush1.msra.mxu0 %v2036
    %3535 = vmatprep.subr.mxu0 %v2041
    %3536 = vmatpush1.msra.mxu0 %v2040
    %3537 = vmatprep.subr.mxu0 %v2045
    %3538 = vmatpush1.msra.mxu0 %v2044
    %3539 = vmatprep.subr.mxu0 %v2049
    %3540 = vmatpush1.msra.mxu0 %v2048
    %3541 = vmatprep.subr.mxu0 %v2053
    %3542 = vmatpush1.msra.mxu0 %v2052
    %3543 = vmatprep.subr.mxu0 %v2057
    %3544 = vmatpush1.msra.mxu0 %v2056
    %3545 = vmatprep.subr.mxu0 %v2061
    %3546 = vmatpush1.msra.mxu0 %v2060
    %3547 = vmatprep.subr.mxu0 %v2065
    %3548 = vmatpush1.msra.mxu0 %v2064
    %3549 = vmatprep.subr.mxu0 %v2069
    %3550 = vmatpush1.msra.mxu0 %v2068
    %3551 = vmatprep.subr.mxu0 %v2073
    %3552 = vmatpush1.msra.mxu0 %v2072
    %3553 = vmatprep.subr.mxu0 %v2077
    %3554 = vmatpush1.msra.mxu0 %v2076
    %3555 = vmatprep.subr.mxu0 %v2081
    %3556 = vmatpush1.msra.mxu0 %v2080
    %3557 = vmatprep.subr.mxu0 %v2085
    %3558 = vmatpush1.msra.mxu0 %v2084
    %3559 = vmatprep.subr.mxu0 0.0
    %3560 = vmatpush1.msra.mxu0 0.0
    %3561 = vmatprep.subr.mxu0 0.0
    %3562 = vmatpush1.msra.mxu0 0.0
    %3563 = vmatprep.subr.mxu0 0.0
    %3564 = vmatpush1.msra.mxu0 0.0
    %3565 = vmatprep.subr.mxu0 0.0
    %3566 = vmatpush1.msra.mxu0 0.0
    %3567 = vmatprep.subr.mxu0 0.0
    %3568 = vmatpush1.msra.mxu0 0.0
    %3569 = vmatprep.subr.mxu0 0.0
    %3570 = vmatpush1.msra.mxu0 0.0
    %3571 = vmatprep.subr.mxu0 0.0
    %3572 = vmatpush1.msra.mxu0 0.0
    %3573 = vmatprep.subr.mxu0 0.0
    %3574 = vmatpush1.msra.mxu0 0.0
    %3575 = vmatprep.subr.mxu0 0.0
    %3576 = vmatpush1.msra.mxu0 0.0
    %3577 = vmatprep.subr.mxu0 0.0
    %3578 = vmatpush1.msra.mxu0 0.0
    %3579 = vmatprep.subr.mxu0 0.0
    %3580 = vmatpush1.msra.mxu0 0.0
    %3581 = vmatprep.subr.mxu0 0.0
    %3582 = vmatpush1.msra.mxu0 0.0
    %3583 = vmatprep.subr.mxu0 0.0
    %3584 = vmatpush1.msra.mxu0 0.0
    %3585 = vmatprep.subr.mxu0 0.0
    %3586 = vmatpush1.msra.mxu0 0.0
    %3587 = vmatprep.subr.mxu0 0.0
    %3588 = vmatpush1.msra.mxu0 0.0
    %3589 = vmatprep.subr.mxu0 0.0
    %3590 = vmatpush1.msra.mxu0 0.0
    %3591 = vmatprep.mubr.f32.mxu0 0.0
    %3592 = vmatmul.mubr.f32.gmra.mrb[0].mxu0 %v3455
    %v3593 = vpop.f32.mrb[0].mxu0
    %v3594 = vadd.f32 0.0, %v3593
    %v3595 = vpop.f32.mrb[0].mxu0
    %v3596 = vadd.f32 0.0, %v3595
    %3597 = vdwg.mxu0
    %v3598 = vadd.f32 %v3451, %v3523
    %v3599 = vadd.f32 %v3452, %v3525
    %v3600 = vadd.f32 %v3453, %v3594
    %v3601 = vadd.f32 %v3454, %v3596
    %v3602 = vxor.u32 %v3598, 2147483648
    %v3603 = vmul.f32 %v3602, 1.442695
    %v3604 = vpow.pop %v3603
    %v3605 = vadd.f32 %v3604, 1.0
    %v3606 = vrcp.pop %v3605
    %v3607 = vmul.f32 1.0, %v3606
    %v3608 = vxor.u32 %v3599, 2147483648
    %v3609 = vmul.f32 %v3608, 1.442695
    %v3610 = vpow.pop %v3609
    %v3611 = vadd.f32 %v3610, 1.0
    %v3612 = vrcp.pop %v3611
    %v3613 = vmul.f32 1.0, %v3612
    %v3614 = vtanh.pop %v3600
    %v3615 = vxor.u32 %v3601, 2147483648
    %v3616 = vmul.f32 %v3615, 1.442695
    %v3617 = vpow.pop %v3616
    %v3618 = vadd.f32 %v3617, 1.0
    %v3619 = vrcp.pop %v3618
    %v3620 = vmul.f32 1.0, %v3619
    %v3621 = vld [vmem:[#allocation5] sm:$0xff]
    %v3622 = vmul.f32 %v3613, %v3621
    %v3623 = vmul.f32 %v3607, %v3614
    %v3624 = vadd.f32 %v3622, %v3623
    %v3625 = vtanh.pop %v3624
    %v3626 = vmul.f32 %v3620, %v3625
    %3627 = vst [vmem:[#allocation5] sm:$0xff] %v3624
    %3628 = vst [vmem:[#allocation4] sm:$0xff] %v3626
    %3629 = vst [vmem:[%s1773] sm:$0xff] %v3626
    %v3630 = vld [vmem:[%s1775] sm:$0xff]
    %v3631 = vld [vmem:[%s1775 + $0x8] sm:$0xff]
    %v3632 = vld [vmem:[%s1775 + $0x10] sm:$0xff]
    %v3633 = vld [vmem:[%s1775 + $0x18] sm:$0xff]
    %v3634 = vld [vmem:[#allocation4] sm:$0xff]
    %3635 = vmatprep.subr.mxu0 %v2023
    %3636 = vmatpush1.msra.mxu0 %v2022
    %3637 = vmatprep.subr.mxu0 %v2027
    %3638 = vmatpush1.msra.mxu0 %v2026
    %3639 = vmatprep.subr.mxu0 %v2031
    %3640 = vmatpush1.msra.mxu0 %v2030
    %3641 = vmatprep.subr.mxu0 %v2035
    %3642 = vmatpush1.msra.mxu0 %v2034
    %3643 = vmatprep.subr.mxu0 %v2039
    %3644 = vmatpush1.msra.mxu0 %v2038
    %3645 = vmatprep.subr.mxu0 %v2043
    %3646 = vmatpush1.msra.mxu0 %v2042
    %3647 = vmatprep.subr.mxu0 %v2047
    %3648 = vmatpush1.msra.mxu0 %v2046
    %3649 = vmatprep.subr.mxu0 %v2051
    %3650 = vmatpush1.msra.mxu0 %v2050
    %3651 = vmatprep.subr.mxu0 %v2055
    %3652 = vmatpush1.msra.mxu0 %v2054
    %3653 = vmatprep.subr.mxu0 %v2059
    %3654 = vmatpush1.msra.mxu0 %v2058
    %3655 = vmatprep.subr.mxu0 %v2063
    %3656 = vmatpush1.msra.mxu0 %v2062
    %3657 = vmatprep.subr.mxu0 %v2067
    %3658 = vmatpush1.msra.mxu0 %v2066
    %3659 = vmatprep.subr.mxu0 %v2071
    %3660 = vmatpush1.msra.mxu0 %v2070
    %3661 = vmatprep.subr.mxu0 %v2075
    %3662 = vmatpush1.msra.mxu0 %v2074
    %3663 = vmatprep.subr.mxu0 %v2079
    %3664 = vmatpush1.msra.mxu0 %v2078
    %3665 = vmatprep.subr.mxu0 %v2083
    %3666 = vmatpush1.msra.mxu0 %v2082
    %3667 = vmatprep.subr.mxu0 0.0
    %3668 = vmatpush1.msra.mxu0 0.0
    %3669 = vmatprep.subr.mxu0 0.0
    %3670 = vmatpush1.msra.mxu0 0.0
    %3671 = vmatprep.subr.mxu0 0.0
    %3672 = vmatpush1.msra.mxu0 0.0
    %3673 = vmatprep.subr.mxu0 0.0
    %3674 = vmatpush1.msra.mxu0 0.0
    %3675 = vmatprep.subr.mxu0 0.0
    %3676 = vmatpush1.msra.mxu0 0.0
    %3677 = vmatprep.subr.mxu0 0.0
    %3678 = vmatpush1.msra.mxu0 0.0
    %3679 = vmatprep.subr.mxu0 0.0
    %3680 = vmatpush1.msra.mxu0 0.0
    %3681 = vmatprep.subr.mxu0 0.0
    %3682 = vmatpush1.msra.mxu0 0.0
    %3683 = vmatprep.subr.mxu0 0.0
    %3684 = vmatpush1.msra.mxu0 0.0
    %3685 = vmatprep.subr.mxu0 0.0
    %3686 = vmatpush1.msra.mxu0 0.0
    %3687 = vmatprep.subr.mxu0 0.0
    %3688 = vmatpush1.msra.mxu0 0.0
    %3689 = vmatprep.subr.mxu0 0.0
    %3690 = vmatpush1.msra.mxu0 0.0
    %3691 = vmatprep.subr.mxu0 0.0
    %3692 = vmatpush1.msra.mxu0 0.0
    %3693 = vmatprep.subr.mxu0 0.0
    %3694 = vmatpush1.msra.mxu0 0.0
    %3695 = vmatprep.subr.mxu0 0.0
    %3696 = vmatpush1.msra.mxu0 0.0
    %3697 = vmatprep.subr.mxu0 0.0
    %3698 = vmatpush1.msra.mxu0 0.0
    %3699 = vmatprep.mubr.f32.mxu0 0.0
    %3700 = vmatmul.mubr.f32.gmra.mrb[0].mxu0 %v3634
    %v3701 = vpop.f32.mrb[0].mxu0
    %v3702 = vadd.f32 0.0, %v3701
    %v3703 = vpop.f32.mrb[0].mxu0
    %v3704 = vadd.f32 0.0, %v3703
    %3705 = vdwg.mxu0
    %3706 = vmatprep.subr.mxu0 %v2025
    %3707 = vmatpush1.msra.mxu0 %v2024
    %3708 = vmatprep.subr.mxu0 %v2029
    %3709 = vmatpush1.msra.mxu0 %v2028
    %3710 = vmatprep.subr.mxu0 %v2033
    %3711 = vmatpush1.msra.mxu0 %v2032
    %3712 = vmatprep.subr.mxu0 %v2037
    %3713 = vmatpush1.msra.mxu0 %v2036
    %3714 = vmatprep.subr.mxu0 %v2041
    %3715 = vmatpush1.msra.mxu0 %v2040
    %3716 = vmatprep.subr.mxu0 %v2045
    %3717 = vmatpush1.msra.mxu0 %v2044
    %3718 = vmatprep.subr.mxu0 %v2049
    %3719 = vmatpush1.msra.mxu0 %v2048
    %3720 = vmatprep.subr.mxu0 %v2053
    %3721 = vmatpush1.msra.mxu0 %v2052
    %3722 = vmatprep.subr.mxu0 %v2057
    %3723 = vmatpush1.msra.mxu0 %v2056
    %3724 = vmatprep.subr.mxu0 %v2061
    %3725 = vmatpush1.msra.mxu0 %v2060
    %3726 = vmatprep.subr.mxu0 %v2065
    %3727 = vmatpush1.msra.mxu0 %v2064
    %3728 = vmatprep.subr.mxu0 %v2069
    %3729 = vmatpush1.msra.mxu0 %v2068
    %3730 = vmatprep.subr.mxu0 %v2073
    %3731 = vmatpush1.msra.mxu0 %v2072
    %3732 = vmatprep.subr.mxu0 %v2077
    %3733 = vmatpush1.msra.mxu0 %v2076
    %3734 = vmatprep.subr.mxu0 %v2081
    %3735 = vmatpush1.msra.mxu0 %v2080
    %3736 = vmatprep.subr.mxu0 %v2085
    %3737 = vmatpush1.msra.mxu0 %v2084
    %3738 = vmatprep.subr.mxu0 0.0
    %3739 = vmatpush1.msra.mxu0 0.0
    %3740 = vmatprep.subr.mxu0 0.0
    %3741 = vmatpush1.msra.mxu0 0.0
    %3742 = vmatprep.subr.mxu0 0.0
    %3743 = vmatpush1.msra.mxu0 0.0
    %3744 = vmatprep.subr.mxu0 0.0
    %3745 = vmatpush1.msra.mxu0 0.0
    %3746 = vmatprep.subr.mxu0 0.0
    %3747 = vmatpush1.msra.mxu0 0.0
    %3748 = vmatprep.subr.mxu0 0.0
    %3749 = vmatpush1.msra.mxu0 0.0
    %3750 = vmatprep.subr.mxu0 0.0
    %3751 = vmatpush1.msra.mxu0 0.0
    %3752 = vmatprep.subr.mxu0 0.0
    %3753 = vmatpush1.msra.mxu0 0.0
    %3754 = vmatprep.subr.mxu0 0.0
    %3755 = vmatpush1.msra.mxu0 0.0
    %3756 = vmatprep.subr.mxu0 0.0
    %3757 = vmatpush1.msra.mxu0 0.0
    %3758 = vmatprep.subr.mxu0 0.0
    %3759 = vmatpush1.msra.mxu0 0.0
    %3760 = vmatprep.subr.mxu0 0.0
    %3761 = vmatpush1.msra.mxu0 0.0
    %3762 = vmatprep.subr.mxu0 0.0
    %3763 = vmatpush1.msra.mxu0 0.0
    %3764 = vmatprep.subr.mxu0 0.0
    %3765 = vmatpush1.msra.mxu0 0.0
    %3766 = vmatprep.subr.mxu0 0.0
    %3767 = vmatpush1.msra.mxu0 0.0
    %3768 = vmatprep.subr.mxu0 0.0
    %3769 = vmatpush1.msra.mxu0 0.0
    %3770 = vmatprep.mubr.f32.mxu0 0.0
    %3771 = vmatmul.mubr.f32.gmra.mrb[0].mxu0 %v3634
    %v3772 = vpop.f32.mrb[0].mxu0
    %v3773 = vadd.f32 0.0, %v3772
    %v3774 = vpop.f32.mrb[0].mxu0
    %v3775 = vadd.f32 0.0, %v3774
    %3776 = vdwg.mxu0
    %v3777 = vadd.f32 %v3630, %v3702
    %v3778 = vadd.f32 %v3631, %v3704
    %v3779 = vadd.f32 %v3632, %v3773
    %v3780 = vadd.f32 %v3633, %v3775
    %v3781 = vxor.u32 %v3777, 2147483648
    %v3782 = vmul.f32 %v3781, 1.442695
    %v3783 = vpow.pop %v3782
    %v3784 = vadd.f32 %v3783, 1.0
    %v3785 = vrcp.pop %v3784
    %v3786 = vmul.f32 1.0, %v3785
    %v3787 = vxor.u32 %v3778, 2147483648
    %v3788 = vmul.f32 %v3787, 1.442695
    %v3789 = vpow.pop %v3788
    %v3790 = vadd.f32 %v3789, 1.0
    %v3791 = vrcp.pop %v3790
    %v3792 = vmul.f32 1.0, %v3791
    %v3793 = vtanh.pop %v3779
    %v3794 = vxor.u32 %v3780, 2147483648
    %v3795 = vmul.f32 %v3794, 1.442695
    %v3796 = vpow.pop %v3795
    %v3797 = vadd.f32 %v3796, 1.0
    %v3798 = vrcp.pop %v3797
    %v3799 = vmul.f32 1.0, %v3798
    %v3800 = vld [vmem:[#allocation5] sm:$0xff]
    %v3801 = vmul.f32 %v3792, %v3800
    %v3802 = vmul.f32 %v3786, %v3793
    %v3803 = vadd.f32 %v3801, %v3802
    %v3804 = vtanh.pop %v3803
    %v3805 = vmul.f32 %v3799, %v3804
    %3806 = vst [vmem:[#allocation5] sm:$0xff] %v3803
    %3807 = vst [vmem:[#allocation4] sm:$0xff] %v3805
    %3808 = vst [vmem:[%s1954] sm:$0xff] %v3805
    %s3809 = scalar_lea.vmem [#allocation6], 1024
    %v3810 = vld [vmem:[%s3809] sm:$0xff]
    %v3811 = vld [vmem:[%s3809 + $0x8] sm:$0xff]
    %v3812 = vld [vmem:[%s3809 + $0x10] sm:$0xff]
    %v3813 = vld [vmem:[%s3809 + $0x18] sm:$0xff]
    %v3814 = vld [vmem:[%s3809 + $0x20] sm:$0xff]
    %v3815 = vld [vmem:[%s3809 + $0x28] sm:$0xff]
    %v3816 = vld [vmem:[%s3809 + $0x30] sm:$0xff]
    %v3817 = vld [vmem:[%s3809 + $0x38] sm:$0xff]
    %v3818 = vld [vmem:[%s3809 + $0x40] sm:$0xff]
    %v3819 = vld [vmem:[%s3809 + $0x48] sm:$0xff]
    %v3820 = vld [vmem:[%s3809 + $0x50] sm:$0xff]
    %v3821 = vld [vmem:[%s3809 + $0x58] sm:$0xff]
    %v3822 = vld [vmem:[%s3809 + $0x60] sm:$0xff]
    %v3823 = vld [vmem:[%s3809 + $0x68] sm:$0xff]
    %v3824 = vld [vmem:[%s3809 + $0x70] sm:$0xff]
    %v3825 = vld [vmem:[%s3809 + $0x78] sm:$0xff]
    %v3826 = vld [vmem:[%s3809 + $0x80] sm:$0xff]
    %v3827 = vld [vmem:[%s3809 + $0x88] sm:$0xff]
    %v3828 = vld [vmem:[%s3809 + $0x90] sm:$0xff]
    %v3829 = vld [vmem:[%s3809 + $0x98] sm:$0xff]
    %v3830 = vld [vmem:[%s3809 + $0xa0] sm:$0xff]
    %v3831 = vld [vmem:[%s3809 + $0xa8] sm:$0xff]
    %v3832 = vld [vmem:[%s3809 + $0xb0] sm:$0xff]
    %v3833 = vld [vmem:[%s3809 + $0xb8] sm:$0xff]
    %v3834 = vld [vmem:[%s3809 + $0xc0] sm:$0xff]
    %v3835 = vld [vmem:[%s3809 + $0xc8] sm:$0xff]
    %v3836 = vld [vmem:[%s3809 + $0xd0] sm:$0xff]
    %v3837 = vld [vmem:[%s3809 + $0xd8] sm:$0xff]
    %v3838 = vld [vmem:[%s3809 + $0xe0] sm:$0xff]
    %v3839 = vld [vmem:[%s3809 + $0xe8] sm:$0xff]
    %v3840 = vld [vmem:[%s3809 + $0xf0] sm:$0xff]
    %v3841 = vld [vmem:[%s3809 + $0xf8] sm:$0xff]
    %v3842 = vld [vmem:[%s3809 + $0x100] sm:$0xff]
    %v3843 = vld [vmem:[%s3809 + $0x108] sm:$0xff]
    %v3844 = vld [vmem:[%s3809 + $0x110] sm:$0xff]
    %v3845 = vld [vmem:[%s3809 + $0x118] sm:$0xff]
    %v3846 = vld [vmem:[%s3809 + $0x120] sm:$0xff]
    %v3847 = vld [vmem:[%s3809 + $0x128] sm:$0xff]
    %v3848 = vld [vmem:[%s3809 + $0x130] sm:$0xff]
    %v3849 = vld [vmem:[%s3809 + $0x138] sm:$0xff]
    %v3850 = vld [vmem:[%s3809 + $0x140] sm:$0xff]
    %v3851 = vld [vmem:[%s3809 + $0x148] sm:$0xff]
    %v3852 = vld [vmem:[%s3809 + $0x150] sm:$0xff]
    %v3853 = vld [vmem:[%s3809 + $0x158] sm:$0xff]
    %v3854 = vld [vmem:[%s3809 + $0x160] sm:$0xff]
    %v3855 = vld [vmem:[%s3809 + $0x168] sm:$0xff]
    %v3856 = vld [vmem:[%s3809 + $0x170] sm:$0xff]
    %v3857 = vld [vmem:[%s3809 + $0x178] sm:$0xff]
    %v3858 = vld [vmem:[%s3809 + $0x180] sm:$0xff]
    %v3859 = vld [vmem:[%s3809 + $0x188] sm:$0xff]
    %v3860 = vld [vmem:[%s3809 + $0x190] sm:$0xff]
    %v3861 = vld [vmem:[%s3809 + $0x198] sm:$0xff]
    %v3862 = vld [vmem:[%s3809 + $0x1a0] sm:$0xff]
    %v3863 = vld [vmem:[%s3809 + $0x1a8] sm:$0xff]
    %v3864 = vld [vmem:[%s3809 + $0x1b0] sm:$0xff]
    %v3865 = vld [vmem:[%s3809 + $0x1b8] sm:$0xff]
    %v3866 = vld [vmem:[%s3809 + $0x1c0] sm:$0xff]
    %v3867 = vld [vmem:[%s3809 + $0x1c8] sm:$0xff]
    %v3868 = vld [vmem:[%s3809 + $0x1d0] sm:$0xff]
    %v3869 = vld [vmem:[%s3809 + $0x1d8] sm:$0xff]
    %v3870 = vld [vmem:[%s3809 + $0x1e0] sm:$0xff]
    %v3871 = vld [vmem:[%s3809 + $0x1e8] sm:$0xff]
    %v3872 = vld [vmem:[%s3809 + $0x1f0] sm:$0xff]
    %v3873 = vld [vmem:[%s3809 + $0x1f8] sm:$0xff]
    %s3874 = scalar_lea.vmem [#allocation8], 1024
    %v3875 = vld [vmem:[%s3874] sm:$0xff]
    %v3876 = vld [vmem:[%s3874 + $0x8] sm:$0xff]
    %v3877 = vld [vmem:[%s3874 + $0x10] sm:$0xff]
    %v3878 = vld [vmem:[%s3874 + $0x18] sm:$0xff]
    %v3879 = vld [vmem:[%s3874 + $0x20] sm:$0xff]
    %v3880 = vld [vmem:[%s3874 + $0x28] sm:$0xff]
    %v3881 = vld [vmem:[%s3874 + $0x30] sm:$0xff]
    %v3882 = vld [vmem:[%s3874 + $0x38] sm:$0xff]
    %v3883 = vld [vmem:[%s3874 + $0x40] sm:$0xff]
    %v3884 = vld [vmem:[%s3874 + $0x48] sm:$0xff]
    %v3885 = vld [vmem:[%s3874 + $0x50] sm:$0xff]
    %v3886 = vld [vmem:[%s3874 + $0x58] sm:$0xff]
    %v3887 = vld [vmem:[%s3874 + $0x60] sm:$0xff]
    %v3888 = vld [vmem:[%s3874 + $0x68] sm:$0xff]
    %v3889 = vld [vmem:[%s3874 + $0x70] sm:$0xff]
    %v3890 = vld [vmem:[%s3874 + $0x78] sm:$0xff]
    %v3891 = vld [vmem:[%s3874 + $0x80] sm:$0xff]
    %v3892 = vld [vmem:[%s3874 + $0x88] sm:$0xff]
    %v3893 = vld [vmem:[%s3874 + $0x90] sm:$0xff]
    %v3894 = vld [vmem:[%s3874 + $0x98] sm:$0xff]
    %v3895 = vld [vmem:[%s3874 + $0xa0] sm:$0xff]
    %v3896 = vld [vmem:[%s3874 + $0xa8] sm:$0xff]
    %v3897 = vld [vmem:[%s3874 + $0xb0] sm:$0xff]
    %v3898 = vld [vmem:[%s3874 + $0xb8] sm:$0xff]
    %v3899 = vld [vmem:[%s3874 + $0xc0] sm:$0xff]
    %v3900 = vld [vmem:[%s3874 + $0xc8] sm:$0xff]
    %v3901 = vld [vmem:[%s3874 + $0xd0] sm:$0xff]
    %v3902 = vld [vmem:[%s3874 + $0xd8] sm:$0xff]
    %v3903 = vld [vmem:[%s3874 + $0xe0] sm:$0xff]
    %v3904 = vld [vmem:[%s3874 + $0xe8] sm:$0xff]
    %v3905 = vld [vmem:[%s3874 + $0xf0] sm:$0xff]
    %v3906 = vld [vmem:[%s3874 + $0xf8] sm:$0xff]
    %v3907 = vld [vmem:[%s3874 + $0x100] sm:$0xff]
    %v3908 = vld [vmem:[%s3874 + $0x108] sm:$0xff]
    %v3909 = vld [vmem:[%s3874 + $0x110] sm:$0xff]
    %v3910 = vld [vmem:[%s3874 + $0x118] sm:$0xff]
    %v3911 = vld [vmem:[%s3874 + $0x120] sm:$0xff]
    %v3912 = vld [vmem:[%s3874 + $0x128] sm:$0xff]
    %v3913 = vld [vmem:[%s3874 + $0x130] sm:$0xff]
    %v3914 = vld [vmem:[%s3874 + $0x138] sm:$0xff]
    %v3915 = vld [vmem:[%s3874 + $0x140] sm:$0xff]
    %v3916 = vld [vmem:[%s3874 + $0x148] sm:$0xff]
    %v3917 = vld [vmem:[%s3874 + $0x150] sm:$0xff]
    %v3918 = vld [vmem:[%s3874 + $0x158] sm:$0xff]
    %v3919 = vld [vmem:[%s3874 + $0x160] sm:$0xff]
    %v3920 = vld [vmem:[%s3874 + $0x168] sm:$0xff]
    %v3921 = vld [vmem:[%s3874 + $0x170] sm:$0xff]
    %v3922 = vld [vmem:[%s3874 + $0x178] sm:$0xff]
    %v3923 = vld [vmem:[%s3874 + $0x180] sm:$0xff]
    %v3924 = vld [vmem:[%s3874 + $0x188] sm:$0xff]
    %v3925 = vld [vmem:[%s3874 + $0x190] sm:$0xff]
    %v3926 = vld [vmem:[%s3874 + $0x198] sm:$0xff]
    %v3927 = vld [vmem:[%s3874 + $0x1a0] sm:$0xff]
    %v3928 = vld [vmem:[%s3874 + $0x1a8] sm:$0xff]
    %v3929 = vld [vmem:[%s3874 + $0x1b0] sm:$0xff]
    %v3930 = vld [vmem:[%s3874 + $0x1b8] sm:$0xff]
    %v3931 = vld [vmem:[%s3874 + $0x1c0] sm:$0xff]
    %v3932 = vld [vmem:[%s3874 + $0x1c8] sm:$0xff]
    %v3933 = vld [vmem:[%s3874 + $0x1d0] sm:$0xff]
    %v3934 = vld [vmem:[%s3874 + $0x1d8] sm:$0xff]
    %v3935 = vld [vmem:[%s3874 + $0x1e0] sm:$0xff]
    %v3936 = vld [vmem:[%s3874 + $0x1e8] sm:$0xff]
    %v3937 = vld [vmem:[%s3874 + $0x1f0] sm:$0xff]
    %v3938 = vld [vmem:[%s3874 + $0x1f8] sm:$0xff]
    %s3939 = scalar_lea.vmem [#allocation10], 8
    %v3940 = vld [vmem:[%s3939] sm:$0xf]
    %v3941 = vld [vmem:[#allocation2] sm:$0xff]
    %v3942 = vld [vmem:[#allocation2 + $0x8] sm:$0xff]
    %v3943 = vld [vmem:[#allocation2 + $0x10] sm:$0xff]
    %v3944 = vld [vmem:[#allocation2 + $0x18] sm:$0xff]
    %v3945 = vld [vmem:[#allocation2 + $0x20] sm:$0xff]
    %v3946 = vld [vmem:[#allocation2 + $0x28] sm:$0xff]
    %v3947 = vld [vmem:[#allocation2 + $0x30] sm:$0xff]
    %v3948 = vld [vmem:[#allocation2 + $0x38] sm:$0xff]
    %v3950 = vlaneseq
    %v3951 = vshrl.u32 %v3950, 7
    %v3952 = vsub.s32 0, %v3951
    %v3953 = vrot.slane %v3940, %v3952
    %v3954 = vlaneseq
    %v3955 = vshrl.u32 %v3954, 7
    %v3956 = vsub.s32 1, %v3955
    %v3957 = vrot.slane %v3940, %v3956
    %v3958 = vlaneseq
    %v3959 = vshrl.u32 %v3958, 7
    %v3960 = vsub.s32 2, %v3959
    %v3961 = vrot.slane %v3940, %v3960
    %v3962 = vlaneseq
    %v3963 = vshrl.u32 %v3962, 7
    %v3964 = vsub.s32 3, %v3963
    %v3965 = vrot.slane %v3940, %v3964
    %3970 = vmatprep.subr.mxu0 %v3811
    %3971 = vmatpush1.msra.mxu0 %v3810
    %3972 = vmatprep.subr.mxu0 %v3815
    %3973 = vmatpush1.msra.mxu0 %v3814
    %3974 = vmatprep.subr.mxu0 %v3819
    %3975 = vmatpush1.msra.mxu0 %v3818
    %3976 = vmatprep.subr.mxu0 %v3823
    %3977 = vmatpush1.msra.mxu0 %v3822
    %3978 = vmatprep.subr.mxu0 %v3827
    %3979 = vmatpush1.msra.mxu0 %v3826
    %3980 = vmatprep.subr.mxu0 %v3831
    %3981 = vmatpush1.msra.mxu0 %v3830
    %3982 = vmatprep.subr.mxu0 %v3835
    %3983 = vmatpush1.msra.mxu0 %v3834
    %3984 = vmatprep.subr.mxu0 %v3839
    %3985 = vmatpush1.msra.mxu0 %v3838
    %3986 = vmatprep.subr.mxu0 %v3843
    %3987 = vmatpush1.msra.mxu0 %v3842
    %3988 = vmatprep.subr.mxu0 %v3847
    %3989 = vmatpush1.msra.mxu0 %v3846
    %3990 = vmatprep.subr.mxu0 %v3851
    %3991 = vmatpush1.msra.mxu0 %v3850
    %3992 = vmatprep.subr.mxu0 %v3855
    %3993 = vmatpush1.msra.mxu0 %v3854
    %3994 = vmatprep.subr.mxu0 %v3859
    %3995 = vmatpush1.msra.mxu0 %v3858
    %3996 = vmatprep.subr.mxu0 %v3863
    %3997 = vmatpush1.msra.mxu0 %v3862
    %3998 = vmatprep.subr.mxu0 %v3867
    %3999 = vmatpush1.msra.mxu0 %v3866
    %4000 = vmatprep.subr.mxu0 %v3871
    %4001 = vmatpush1.msra.mxu0 %v3870
    %4002 = vmatprep.subr.mxu0 0.0
    %4003 = vmatpush1.msra.mxu0 0.0
    %4004 = vmatprep.subr.mxu0 0.0
    %4005 = vmatpush1.msra.mxu0 0.0
    %4006 = vmatprep.subr.mxu0 0.0
    %4007 = vmatpush1.msra.mxu0 0.0
    %4008 = vmatprep.subr.mxu0 0.0
    %4009 = vmatpush1.msra.mxu0 0.0
    %4010 = vmatprep.subr.mxu0 0.0
    %4011 = vmatpush1.msra.mxu0 0.0
    %4012 = vmatprep.subr.mxu0 0.0
    %4013 = vmatpush1.msra.mxu0 0.0
    %4014 = vmatprep.subr.mxu0 0.0
    %4015 = vmatpush1.msra.mxu0 0.0
    %4016 = vmatprep.subr.mxu0 0.0
    %4017 = vmatpush1.msra.mxu0 0.0
    %4018 = vmatprep.subr.mxu0 0.0
    %4019 = vmatpush1.msra.mxu0 0.0
    %4020 = vmatprep.subr.mxu0 0.0
    %4021 = vmatpush1.msra.mxu0 0.0
    %4022 = vmatprep.subr.mxu0 0.0
    %4023 = vmatpush1.msra.mxu0 0.0
    %4024 = vmatprep.subr.mxu0 0.0
    %4025 = vmatpush1.msra.mxu0 0.0
    %4026 = vmatprep.subr.mxu0 0.0
    %4027 = vmatpush1.msra.mxu0 0.0
    %4028 = vmatprep.subr.mxu0 0.0
    %4029 = vmatpush1.msra.mxu0 0.0
    %4030 = vmatprep.subr.mxu0 0.0
    %4031 = vmatpush1.msra.mxu0 0.0
    %4032 = vmatprep.subr.mxu0 0.0
    %4033 = vmatpush1.msra.mxu0 0.0
    %4034 = vmatprep.mubr.f32.mxu0 0.0
    %4035 = vmatmul.mubr.f32.gmra.mrb[0].mxu0 %v3941
    %v4036 = vpop.f32.mrb[0].mxu0
    %v4037 = vadd.f32 %v3953, %v4036
    %v4038 = vpop.f32.mrb[0].mxu0
    %v4039 = vadd.f32 %v3957, %v4038
    %4040 = vmatprep.mubr.f32.mxu0 0.0
    %4041 = vmatmul.mubr.f32.gmra.mrb[0].mxu0 %v3942
    %v4042 = vpop.f32.mrb[0].mxu0
    %v4043 = vadd.f32 %v3953, %v4042
    %v4044 = vpop.f32.mrb[0].mxu0
    %v4045 = vadd.f32 %v3957, %v4044
    %4046 = vmatprep.mubr.f32.mxu0 0.0
    %4047 = vmatmul.mubr.f32.gmra.mrb[0].mxu0 %v3943
    %v4048 = vpop.f32.mrb[0].mxu0
    %v4049 = vadd.f32 %v3953, %v4048
    %v4050 = vpop.f32.mrb[0].mxu0
    %v4051 = vadd.f32 %v3957, %v4050
    %4052 = vmatprep.mubr.f32.mxu0 0.0
    %4053 = vmatmul.mubr.f32.gmra.mrb[0].mxu0 %v3944
    %v4054 = vpop.f32.mrb[0].mxu0
    %v4055 = vadd.f32 %v3953, %v4054
    %v4056 = vpop.f32.mrb[0].mxu0
    %v4057 = vadd.f32 %v3957, %v4056
    %4058 = vmatprep.mubr.f32.mxu0 0.0
    %4059 = vmatmul.mubr.f32.gmra.mrb[0].mxu0 %v3945
    %v4060 = vpop.f32.mrb[0].mxu0
    %v4061 = vadd.f32 %v3953, %v4060
    %v4062 = vpop.f32.mrb[0].mxu0
    %v4063 = vadd.f32 %v3957, %v4062
    %4064 = vmatprep.mubr.f32.mxu0 0.0
    %4065 = vmatmul.mubr.f32.gmra.mrb[0].mxu0 %v3946
    %v4066 = vpop.f32.mrb[0].mxu0
    %v4067 = vadd.f32 %v3953, %v4066
    %v4068 = vpop.f32.mrb[0].mxu0
    %v4069 = vadd.f32 %v3957, %v4068
    %4070 = vmatprep.mubr.f32.mxu0 0.0
    %4071 = vmatmul.mubr.f32.gmra.mrb[0].mxu0 %v3947
    %v4072 = vpop.f32.mrb[0].mxu0
    %v4073 = vadd.f32 %v3953, %v4072
    %v4074 = vpop.f32.mrb[0].mxu0
    %v4075 = vadd.f32 %v3957, %v4074
    %4076 = vmatprep.mubr.f32.mxu0 0.0
    %4077 = vmatmul.mubr.f32.gmra.mrb[0].mxu0 %v3948
    %v4078 = vpop.f32.mrb[0].mxu0
    %v4079 = vadd.f32 %v3953, %v4078
    %v4080 = vpop.f32.mrb[0].mxu0
    %v4081 = vadd.f32 %v3957, %v4080
    %4082 = vdwg.mxu0
    %4083 = vmatprep.subr.mxu0 %v3813
    %4084 = vmatpush1.msra.mxu0 %v3812
    %4085 = vmatprep.subr.mxu0 %v3817
    %4086 = vmatpush1.msra.mxu0 %v3816
    %4087 = vmatprep.subr.mxu0 %v3821
    %4088 = vmatpush1.msra.mxu0 %v3820
    %4089 = vmatprep.subr.mxu0 %v3825
    %4090 = vmatpush1.msra.mxu0 %v3824
    %4091 = vmatprep.subr.mxu0 %v3829
    %4092 = vmatpush1.msra.mxu0 %v3828
    %4093 = vmatprep.subr.mxu0 %v3833
    %4094 = vmatpush1.msra.mxu0 %v3832
    %4095 = vmatprep.subr.mxu0 %v3837
    %4096 = vmatpush1.msra.mxu0 %v3836
    %4097 = vmatprep.subr.mxu0 %v3841
    %4098 = vmatpush1.msra.mxu0 %v3840
    %4099 = vmatprep.subr.mxu0 %v3845
    %4100 = vmatpush1.msra.mxu0 %v3844
    %4101 = vmatprep.subr.mxu0 %v3849
    %4102 = vmatpush1.msra.mxu0 %v3848
    %4103 = vmatprep.subr.mxu0 %v3853
    %4104 = vmatpush1.msra.mxu0 %v3852
    %4105 = vmatprep.subr.mxu0 %v3857
    %4106 = vmatpush1.msra.mxu0 %v3856
    %4107 = vmatprep.subr.mxu0 %v3861
    %4108 = vmatpush1.msra.mxu0 %v3860
    %4109 = vmatprep.subr.mxu0 %v3865
    %4110 = vmatpush1.msra.mxu0 %v3864
    %4111 = vmatprep.subr.mxu0 %v3869
    %4112 = vmatpush1.msra.mxu0 %v3868
    %4113 = vmatprep.subr.mxu0 %v3873
    %4114 = vmatpush1.msra.mxu0 %v3872
    %4115 = vmatprep.subr.mxu0 0.0
    %4116 = vmatpush1.msra.mxu0 0.0
    %4117 = vmatprep.subr.mxu0 0.0
    %4118 = vmatpush1.msra.mxu0 0.0
    %4119 = vmatprep.subr.mxu0 0.0
    %4120 = vmatpush1.msra.mxu0 0.0
    %4121 = vmatprep.subr.mxu0 0.0
    %4122 = vmatpush1.msra.mxu0 0.0
    %4123 = vmatprep.subr.mxu0 0.0
    %4124 = vmatpush1.msra.mxu0 0.0
    %4125 = vmatprep.subr.mxu0 0.0
    %4126 = vmatpush1.msra.mxu0 0.0
    %4127 = vmatprep.subr.mxu0 0.0
    %4128 = vmatpush1.msra.mxu0 0.0
    %4129 = vmatprep.subr.mxu0 0.0
    %4130 = vmatpush1.msra.mxu0 0.0
    %4131 = vmatprep.subr.mxu0 0.0
    %4132 = vmatpush1.msra.mxu0 0.0
    %4133 = vmatprep.subr.mxu0 0.0
    %4134 = vmatpush1.msra.mxu0 0.0
    %4135 = vmatprep.subr.mxu0 0.0
    %4136 = vmatpush1.msra.mxu0 0.0
    %4137 = vmatprep.subr.mxu0 0.0
    %4138 = vmatpush1.msra.mxu0 0.0
    %4139 = vmatprep.subr.mxu0 0.0
    %4140 = vmatpush1.msra.mxu0 0.0
    %4141 = vmatprep.subr.mxu0 0.0
    %4142 = vmatpush1.msra.mxu0 0.0
    %4143 = vmatprep.subr.mxu0 0.0
    %4144 = vmatpush1.msra.mxu0 0.0
    %4145 = vmatprep.subr.mxu0 0.0
    %4146 = vmatpush1.msra.mxu0 0.0
    %4147 = vmatprep.mubr.f32.mxu0 0.0
    %4148 = vmatmul.mubr.f32.gmra.mrb[0].mxu0 %v3941
    %v4149 = vpop.f32.mrb[0].mxu0
    %v4150 = vadd.f32 %v3961, %v4149
    %v4151 = vpop.f32.mrb[0].mxu0
    %v4152 = vadd.f32 %v3965, %v4151
    %4153 = vmatprep.mubr.f32.mxu0 0.0
    %4154 = vmatmul.mubr.f32.gmra.mrb[0].mxu0 %v3942
    %v4155 = vpop.f32.mrb[0].mxu0
    %v4156 = vadd.f32 %v3961, %v4155
    %v4157 = vpop.f32.mrb[0].mxu0
    %v4158 = vadd.f32 %v3965, %v4157
    %4159 = vmatprep.mubr.f32.mxu0 0.0
    %4160 = vmatmul.mubr.f32.gmra.mrb[0].mxu0 %v3943
    %v4161 = vpop.f32.mrb[0].mxu0
    %v4162 = vadd.f32 %v3961, %v4161
    %v4163 = vpop.f32.mrb[0].mxu0
    %v4164 = vadd.f32 %v3965, %v4163
    %4165 = vmatprep.mubr.f32.mxu0 0.0
    %4166 = vmatmul.mubr.f32.gmra.mrb[0].mxu0 %v3944
    %v4167 = vpop.f32.mrb[0].mxu0
    %v4168 = vadd.f32 %v3961, %v4167
    %v4169 = vpop.f32.mrb[0].mxu0
    %v4170 = vadd.f32 %v3965, %v4169
    %4171 = vmatprep.mubr.f32.mxu0 0.0
    %4172 = vmatmul.mubr.f32.gmra.mrb[0].mxu0 %v3945
    %v4173 = vpop.f32.mrb[0].mxu0
    %v4174 = vadd.f32 %v3961, %v4173
    %v4175 = vpop.f32.mrb[0].mxu0
    %v4176 = vadd.f32 %v3965, %v4175
    %4177 = vmatprep.mubr.f32.mxu0 0.0
    %4178 = vmatmul.mubr.f32.gmra.mrb[0].mxu0 %v3946
    %v4179 = vpop.f32.mrb[0].mxu0
    %v4180 = vadd.f32 %v3961, %v4179
    %v4181 = vpop.f32.mrb[0].mxu0
    %v4182 = vadd.f32 %v3965, %v4181
    %4183 = vmatprep.mubr.f32.mxu0 0.0
    %4184 = vmatmul.mubr.f32.gmra.mrb[0].mxu0 %v3947
    %v4185 = vpop.f32.mrb[0].mxu0
    %v4186 = vadd.f32 %v3961, %v4185
    %v4187 = vpop.f32.mrb[0].mxu0
    %v4188 = vadd.f32 %v3965, %v4187
    %4189 = vmatprep.mubr.f32.mxu0 0.0
    %4190 = vmatmul.mubr.f32.gmra.mrb[0].mxu0 %v3948
    %v4191 = vpop.f32.mrb[0].mxu0
    %v4192 = vadd.f32 %v3961, %v4191
    %v4193 = vpop.f32.mrb[0].mxu0
    %v4194 = vadd.f32 %v3965, %v4193
    %4195 = vdwg.mxu0
    %4196 = vst [vmem:[#allocation3] sm:$0xff] %v4037
    %4197 = vst [vmem:[#allocation3 + $0x8] sm:$0xff] %v4039
    %4198 = vst [vmem:[#allocation3 + $0x10] sm:$0xff] %v4150
    %4199 = vst [vmem:[#allocation3 + $0x18] sm:$0xff] %v4152
    %4200 = vst [vmem:[#allocation3 + $0x20] sm:$0xff] %v4043
    %4201 = vst [vmem:[#allocation3 + $0x28] sm:$0xff] %v4045
    %4202 = vst [vmem:[#allocation3 + $0x30] sm:$0xff] %v4156
    %4203 = vst [vmem:[#allocation3 + $0x38] sm:$0xff] %v4158
    %4204 = vst [vmem:[#allocation3 + $0x40] sm:$0xff] %v4049
    %4205 = vst [vmem:[#allocation3 + $0x48] sm:$0xff] %v4051
    %4206 = vst [vmem:[#allocation3 + $0x50] sm:$0xff] %v4162
    %4207 = vst [vmem:[#allocation3 + $0x58] sm:$0xff] %v4164
    %4208 = vst [vmem:[#allocation3 + $0x60] sm:$0xff] %v4055
    %4209 = vst [vmem:[#allocation3 + $0x68] sm:$0xff] %v4057
    %4210 = vst [vmem:[#allocation3 + $0x70] sm:$0xff] %v4168
    %4211 = vst [vmem:[#allocation3 + $0x78] sm:$0xff] %v4170
    %4212 = vst [vmem:[#allocation3 + $0x80] sm:$0xff] %v4061
    %4213 = vst [vmem:[#allocation3 + $0x88] sm:$0xff] %v4063
    %4214 = vst [vmem:[#allocation3 + $0x90] sm:$0xff] %v4174
    %4215 = vst [vmem:[#allocation3 + $0x98] sm:$0xff] %v4176
    %4216 = vst [vmem:[#allocation3 + $0xa0] sm:$0xff] %v4067
    %4217 = vst [vmem:[#allocation3 + $0xa8] sm:$0xff] %v4069
    %4218 = vst [vmem:[#allocation3 + $0xb0] sm:$0xff] %v4180
    %4219 = vst [vmem:[#allocation3 + $0xb8] sm:$0xff] %v4182
    %4220 = vst [vmem:[#allocation3 + $0xc0] sm:$0xff] %v4073
    %4221 = vst [vmem:[#allocation3 + $0xc8] sm:$0xff] %v4075
    %4222 = vst [vmem:[#allocation3 + $0xd0] sm:$0xff] %v4186
    %4223 = vst [vmem:[#allocation3 + $0xd8] sm:$0xff] %v4188
    %4224 = vst [vmem:[#allocation3 + $0xe0] sm:$0xff] %v4079
    %4225 = vst [vmem:[#allocation3 + $0xe8] sm:$0xff] %v4081
    %4226 = vst [vmem:[#allocation3 + $0xf0] sm:$0xff] %v4192
    %4227 = vst [vmem:[#allocation3 + $0xf8] sm:$0xff] %v4194
    %4228 = vst [vmem:[#allocation4] sm:$0xff] 0.0
    %4229 = vst [vmem:[#allocation5] sm:$0xff] 0.0
    %v4230 = vld [vmem:[#allocation3] sm:$0xff]
    %v4231 = vld [vmem:[#allocation3 + $0x8] sm:$0xff]
    %v4232 = vld [vmem:[#allocation3 + $0x10] sm:$0xff]
    %v4233 = vld [vmem:[#allocation3 + $0x18] sm:$0xff]
    %v4234 = vld [vmem:[#allocation4] sm:$0xff]
    %4235 = vmatprep.subr.mxu0 %v3876
    %4236 = vmatpush1.msra.mxu0 %v3875
    %4237 = vmatprep.subr.mxu0 %v3880
    %4238 = vmatpush1.msra.mxu0 %v3879
    %4239 = vmatprep.subr.mxu0 %v3884
    %4240 = vmatpush1.msra.mxu0 %v3883
    %4241 = vmatprep.subr.mxu0 %v3888
    %4242 = vmatpush1.msra.mxu0 %v3887
    %4243 = vmatprep.subr.mxu0 %v3892
    %4244 = vmatpush1.msra.mxu0 %v3891
    %4245 = vmatprep.subr.mxu0 %v3896
    %4246 = vmatpush1.msra.mxu0 %v3895
    %4247 = vmatprep.subr.mxu0 %v3900
    %4248 = vmatpush1.msra.mxu0 %v3899
    %4249 = vmatprep.subr.mxu0 %v3904
    %4250 = vmatpush1.msra.mxu0 %v3903
    %4251 = vmatprep.subr.mxu0 %v3908
    %4252 = vmatpush1.msra.mxu0 %v3907
    %4253 = vmatprep.subr.mxu0 %v3912
    %4254 = vmatpush1.msra.mxu0 %v3911
    %4255 = vmatprep.subr.mxu0 %v3916
    %4256 = vmatpush1.msra.mxu0 %v3915
    %4257 = vmatprep.subr.mxu0 %v3920
    %4258 = vmatpush1.msra.mxu0 %v3919
    %4259 = vmatprep.subr.mxu0 %v3924
    %4260 = vmatpush1.msra.mxu0 %v3923
    %4261 = vmatprep.subr.mxu0 %v3928
    %4262 = vmatpush1.msra.mxu0 %v3927
    %4263 = vmatprep.subr.mxu0 %v3932
    %4264 = vmatpush1.msra.mxu0 %v3931
    %4265 = vmatprep.subr.mxu0 %v3936
    %4266 = vmatpush1.msra.mxu0 %v3935
    %4267 = vmatprep.subr.mxu0 0.0
    %4268 = vmatpush1.msra.mxu0 0.0
    %4269 = vmatprep.subr.mxu0 0.0
    %4270 = vmatpush1.msra.mxu0 0.0
    %4271 = vmatprep.subr.mxu0 0.0
    %4272 = vmatpush1.msra.mxu0 0.0
    %4273 = vmatprep.subr.mxu0 0.0
    %4274 = vmatpush1.msra.mxu0 0.0
    %4275 = vmatprep.subr.mxu0 0.0
    %4276 = vmatpush1.msra.mxu0 0.0
    %4277 = vmatprep.subr.mxu0 0.0
    %4278 = vmatpush1.msra.mxu0 0.0
    %4279 = vmatprep.subr.mxu0 0.0
    %4280 = vmatpush1.msra.mxu0 0.0
    %4281 = vmatprep.subr.mxu0 0.0
    %4282 = vmatpush1.msra.mxu0 0.0
    %4283 = vmatprep.subr.mxu0 0.0
    %4284 = vmatpush1.msra.mxu0 0.0
    %4285 = vmatprep.subr.mxu0 0.0
    %4286 = vmatpush1.msra.mxu0 0.0
    %4287 = vmatprep.subr.mxu0 0.0
    %4288 = vmatpush1.msra.mxu0 0.0
    %4289 = vmatprep.subr.mxu0 0.0
    %4290 = vmatpush1.msra.mxu0 0.0
    %4291 = vmatprep.subr.mxu0 0.0
    %4292 = vmatpush1.msra.mxu0 0.0
    %4293 = vmatprep.subr.mxu0 0.0
    %4294 = vmatpush1.msra.mxu0 0.0
    %4295 = vmatprep.subr.mxu0 0.0
    %4296 = vmatpush1.msra.mxu0 0.0
    %4297 = vmatprep.subr.mxu0 0.0
    %4298 = vmatpush1.msra.mxu0 0.0
    %4299 = vmatprep.mubr.f32.mxu0 0.0
    %4300 = vmatmul.mubr.f32.gmra.mrb[0].mxu0 %v4234
    %v4301 = vpop.f32.mrb[0].mxu0
    %v4302 = vadd.f32 0.0, %v4301
    %v4303 = vpop.f32.mrb[0].mxu0
    %v4304 = vadd.f32 0.0, %v4303
    %4305 = vdwg.mxu0
    %4306 = vmatprep.subr.mxu0 %v3878
    %4307 = vmatpush1.msra.mxu0 %v3877
    %4308 = vmatprep.subr.mxu0 %v3882
    %4309 = vmatpush1.msra.mxu0 %v3881
    %4310 = vmatprep.subr.mxu0 %v3886
    %4311 = vmatpush1.msra.mxu0 %v3885
    %4312 = vmatprep.subr.mxu0 %v3890
    %4313 = vmatpush1.msra.mxu0 %v3889
    %4314 = vmatprep.subr.mxu0 %v3894
    %4315 = vmatpush1.msra.mxu0 %v3893
    %4316 = vmatprep.subr.mxu0 %v3898
    %4317 = vmatpush1.msra.mxu0 %v3897
    %4318 = vmatprep.subr.mxu0 %v3902
    %4319 = vmatpush1.msra.mxu0 %v3901
    %4320 = vmatprep.subr.mxu0 %v3906
    %4321 = vmatpush1.msra.mxu0 %v3905
    %4322 = vmatprep.subr.mxu0 %v3910
    %4323 = vmatpush1.msra.mxu0 %v3909
    %4324 = vmatprep.subr.mxu0 %v3914
    %4325 = vmatpush1.msra.mxu0 %v3913
    %4326 = vmatprep.subr.mxu0 %v3918
    %4327 = vmatpush1.msra.mxu0 %v3917
    %4328 = vmatprep.subr.mxu0 %v3922
    %4329 = vmatpush1.msra.mxu0 %v3921
    %4330 = vmatprep.subr.mxu0 %v3926
    %4331 = vmatpush1.msra.mxu0 %v3925
    %4332 = vmatprep.subr.mxu0 %v3930
    %4333 = vmatpush1.msra.mxu0 %v3929
    %4334 = vmatprep.subr.mxu0 %v3934
    %4335 = vmatpush1.msra.mxu0 %v3933
    %4336 = vmatprep.subr.mxu0 %v3938
    %4337 = vmatpush1.msra.mxu0 %v3937
    %4338 = vmatprep.subr.mxu0 0.0
    %4339 = vmatpush1.msra.mxu0 0.0
    %4340 = vmatprep.subr.mxu0 0.0
    %4341 = vmatpush1.msra.mxu0 0.0
    %4342 = vmatprep.subr.mxu0 0.0
    %4343 = vmatpush1.msra.mxu0 0.0
    %4344 = vmatprep.subr.mxu0 0.0
    %4345 = vmatpush1.msra.mxu0 0.0
    %4346 = vmatprep.subr.mxu0 0.0
    %4347 = vmatpush1.msra.mxu0 0.0
    %4348 = vmatprep.subr.mxu0 0.0
    %4349 = vmatpush1.msra.mxu0 0.0
    %4350 = vmatprep.subr.mxu0 0.0
    %4351 = vmatpush1.msra.mxu0 0.0
    %4352 = vmatprep.subr.mxu0 0.0
    %4353 = vmatpush1.msra.mxu0 0.0
    %4354 = vmatprep.subr.mxu0 0.0
    %4355 = vmatpush1.msra.mxu0 0.0
    %4356 = vmatprep.subr.mxu0 0.0
    %4357 = vmatpush1.msra.mxu0 0.0
    %4358 = vmatprep.subr.mxu0 0.0
    %4359 = vmatpush1.msra.mxu0 0.0
    %4360 = vmatprep.subr.mxu0 0.0
    %4361 = vmatpush1.msra.mxu0 0.0
    %4362 = vmatprep.subr.mxu0 0.0
    %4363 = vmatpush1.msra.mxu0 0.0
    %4364 = vmatprep.subr.mxu0 0.0
    %4365 = vmatpush1.msra.mxu0 0.0
    %4366 = vmatprep.subr.mxu0 0.0
    %4367 = vmatpush1.msra.mxu0 0.0
    %4368 = vmatprep.subr.mxu0 0.0
    %4369 = vmatpush1.msra.mxu0 0.0
    %4370 = vmatprep.mubr.f32.mxu0 0.0
    %4371 = vmatmul.mubr.f32.gmra.mrb[0].mxu0 %v4234
    %v4372 = vpop.f32.mrb[0].mxu0
    %v4373 = vadd.f32 0.0, %v4372
    %v4374 = vpop.f32.mrb[0].mxu0
    %v4375 = vadd.f32 0.0, %v4374
    %4376 = vdwg.mxu0
    %v4377 = vadd.f32 %v4230, %v4302
    %v4378 = vadd.f32 %v4231, %v4304
    %v4379 = vadd.f32 %v4232, %v4373
    %v4380 = vadd.f32 %v4233, %v4375
    %v4381 = vxor.u32 %v4377, 2147483648
    %v4382 = vmul.f32 %v4381, 1.442695
    %v4383 = vpow.pop %v4382
    %v4384 = vadd.f32 %v4383, 1.0
    %v4385 = vrcp.pop %v4384
    %v4386 = vmul.f32 1.0, %v4385
    %v4387 = vxor.u32 %v4378, 2147483648
    %v4388 = vmul.f32 %v4387, 1.442695
    %v4389 = vpow.pop %v4388
    %v4390 = vadd.f32 %v4389, 1.0
    %v4391 = vrcp.pop %v4390
    %v4392 = vmul.f32 1.0, %v4391
    %v4393 = vtanh.pop %v4379
    %v4394 = vxor.u32 %v4380, 2147483648
    %v4395 = vmul.f32 %v4394, 1.442695
    %v4396 = vpow.pop %v4395
    %v4397 = vadd.f32 %v4396, 1.0
    %v4398 = vrcp.pop %v4397
    %v4399 = vmul.f32 1.0, %v4398
    %v4400 = vld [vmem:[#allocation5] sm:$0xff]
    %v4401 = vmul.f32 %v4392, %v4400
    %v4402 = vmul.f32 %v4386, %v4393
    %v4403 = vadd.f32 %v4401, %v4402
    %v4404 = vtanh.pop %v4403
    %v4405 = vmul.f32 %v4399, %v4404
    %4406 = vst [vmem:[#allocation5] sm:$0xff] %v4403
    %4407 = vst [vmem:[#allocation4] sm:$0xff] %v4405
    %4408 = vst [vmem:[#allocation2] sm:$0xff] %v4405
    %v4409 = vld [vmem:[%s689] sm:$0xff]
    %v4410 = vld [vmem:[%s689 + $0x8] sm:$0xff]
    %v4411 = vld [vmem:[%s689 + $0x10] sm:$0xff]
    %v4412 = vld [vmem:[%s689 + $0x18] sm:$0xff]
    %v4413 = vld [vmem:[#allocation4] sm:$0xff]
    %4414 = vmatprep.subr.mxu0 %v3876
    %4415 = vmatpush1.msra.mxu0 %v3875
    %4416 = vmatprep.subr.mxu0 %v3880
    %4417 = vmatpush1.msra.mxu0 %v3879
    %4418 = vmatprep.subr.mxu0 %v3884
    %4419 = vmatpush1.msra.mxu0 %v3883
    %4420 = vmatprep.subr.mxu0 %v3888
    %4421 = vmatpush1.msra.mxu0 %v3887
    %4422 = vmatprep.subr.mxu0 %v3892
    %4423 = vmatpush1.msra.mxu0 %v3891
    %4424 = vmatprep.subr.mxu0 %v3896
    %4425 = vmatpush1.msra.mxu0 %v3895
    %4426 = vmatprep.subr.mxu0 %v3900
    %4427 = vmatpush1.msra.mxu0 %v3899
    %4428 = vmatprep.subr.mxu0 %v3904
    %4429 = vmatpush1.msra.mxu0 %v3903
    %4430 = vmatprep.subr.mxu0 %v3908
    %4431 = vmatpush1.msra.mxu0 %v3907
    %4432 = vmatprep.subr.mxu0 %v3912
    %4433 = vmatpush1.msra.mxu0 %v3911
    %4434 = vmatprep.subr.mxu0 %v3916
    %4435 = vmatpush1.msra.mxu0 %v3915
    %4436 = vmatprep.subr.mxu0 %v3920
    %4437 = vmatpush1.msra.mxu0 %v3919
    %4438 = vmatprep.subr.mxu0 %v3924
    %4439 = vmatpush1.msra.mxu0 %v3923
    %4440 = vmatprep.subr.mxu0 %v3928
    %4441 = vmatpush1.msra.mxu0 %v3927
    %4442 = vmatprep.subr.mxu0 %v3932
    %4443 = vmatpush1.msra.mxu0 %v3931
    %4444 = vmatprep.subr.mxu0 %v3936
    %4445 = vmatpush1.msra.mxu0 %v3935
    %4446 = vmatprep.subr.mxu0 0.0
    %4447 = vmatpush1.msra.mxu0 0.0
    %4448 = vmatprep.subr.mxu0 0.0
    %4449 = vmatpush1.msra.mxu0 0.0
    %4450 = vmatprep.subr.mxu0 0.0
    %4451 = vmatpush1.msra.mxu0 0.0
    %4452 = vmatprep.subr.mxu0 0.0
    %4453 = vmatpush1.msra.mxu0 0.0
    %4454 = vmatprep.subr.mxu0 0.0
    %4455 = vmatpush1.msra.mxu0 0.0
    %4456 = vmatprep.subr.mxu0 0.0
    %4457 = vmatpush1.msra.mxu0 0.0
    %4458 = vmatprep.subr.mxu0 0.0
    %4459 = vmatpush1.msra.mxu0 0.0
    %4460 = vmatprep.subr.mxu0 0.0
    %4461 = vmatpush1.msra.mxu0 0.0
    %4462 = vmatprep.subr.mxu0 0.0
    %4463 = vmatpush1.msra.mxu0 0.0
    %4464 = vmatprep.subr.mxu0 0.0
    %4465 = vmatpush1.msra.mxu0 0.0
    %4466 = vmatprep.subr.mxu0 0.0
    %4467 = vmatpush1.msra.mxu0 0.0
    %4468 = vmatprep.subr.mxu0 0.0
    %4469 = vmatpush1.msra.mxu0 0.0
    %4470 = vmatprep.subr.mxu0 0.0
    %4471 = vmatpush1.msra.mxu0 0.0
    %4472 = vmatprep.subr.mxu0 0.0
    %4473 = vmatpush1.msra.mxu0 0.0
    %4474 = vmatprep.subr.mxu0 0.0
    %4475 = vmatpush1.msra.mxu0 0.0
    %4476 = vmatprep.subr.mxu0 0.0
    %4477 = vmatpush1.msra.mxu0 0.0
    %4478 = vmatprep.mubr.f32.mxu0 0.0
    %4479 = vmatmul.mubr.f32.gmra.mrb[0].mxu0 %v4413
    %v4480 = vpop.f32.mrb[0].mxu0
    %v4481 = vadd.f32 0.0, %v4480
    %v4482 = vpop.f32.mrb[0].mxu0
    %v4483 = vadd.f32 0.0, %v4482
    %4484 = vdwg.mxu0
    %4485 = vmatprep.subr.mxu0 %v3878
    %4486 = vmatpush1.msra.mxu0 %v3877
    %4487 = vmatprep.subr.mxu0 %v3882
    %4488 = vmatpush1.msra.mxu0 %v3881
    %4489 = vmatprep.subr.mxu0 %v3886
    %4490 = vmatpush1.msra.mxu0 %v3885
    %4491 = vmatprep.subr.mxu0 %v3890
    %4492 = vmatpush1.msra.mxu0 %v3889
    %4493 = vmatprep.subr.mxu0 %v3894
    %4494 = vmatpush1.msra.mxu0 %v3893
    %4495 = vmatprep.subr.mxu0 %v3898
    %4496 = vmatpush1.msra.mxu0 %v3897
    %4497 = vmatprep.subr.mxu0 %v3902
    %4498 = vmatpush1.msra.mxu0 %v3901
    %4499 = vmatprep.subr.mxu0 %v3906
    %4500 = vmatpush1.msra.mxu0 %v3905
    %4501 = vmatprep.subr.mxu0 %v3910
    %4502 = vmatpush1.msra.mxu0 %v3909
    %4503 = vmatprep.subr.mxu0 %v3914
    %4504 = vmatpush1.msra.mxu0 %v3913
    %4505 = vmatprep.subr.mxu0 %v3918
    %4506 = vmatpush1.msra.mxu0 %v3917
    %4507 = vmatprep.subr.mxu0 %v3922
    %4508 = vmatpush1.msra.mxu0 %v3921
    %4509 = vmatprep.subr.mxu0 %v3926
    %4510 = vmatpush1.msra.mxu0 %v3925
    %4511 = vmatprep.subr.mxu0 %v3930
    %4512 = vmatpush1.msra.mxu0 %v3929
    %4513 = vmatprep.subr.mxu0 %v3934
    %4514 = vmatpush1.msra.mxu0 %v3933
    %4515 = vmatprep.subr.mxu0 %v3938
    %4516 = vmatpush1.msra.mxu0 %v3937
    %4517 = vmatprep.subr.mxu0 0.0
    %4518 = vmatpush1.msra.mxu0 0.0
    %4519 = vmatprep.subr.mxu0 0.0
    %4520 = vmatpush1.msra.mxu0 0.0
    %4521 = vmatprep.subr.mxu0 0.0
    %4522 = vmatpush1.msra.mxu0 0.0
    %4523 = vmatprep.subr.mxu0 0.0
    %4524 = vmatpush1.msra.mxu0 0.0
    %4525 = vmatprep.subr.mxu0 0.0
    %4526 = vmatpush1.msra.mxu0 0.0
    %4527 = vmatprep.subr.mxu0 0.0
    %4528 = vmatpush1.msra.mxu0 0.0
    %4529 = vmatprep.subr.mxu0 0.0
    %4530 = vmatpush1.msra.mxu0 0.0
    %4531 = vmatprep.subr.mxu0 0.0
    %4532 = vmatpush1.msra.mxu0 0.0
    %4533 = vmatprep.subr.mxu0 0.0
    %4534 = vmatpush1.msra.mxu0 0.0
    %4535 = vmatprep.subr.mxu0 0.0
    %4536 = vmatpush1.msra.mxu0 0.0
    %4537 = vmatprep.subr.mxu0 0.0
    %4538 = vmatpush1.msra.mxu0 0.0
    %4539 = vmatprep.subr.mxu0 0.0
    %4540 = vmatpush1.msra.mxu0 0.0
    %4541 = vmatprep.subr.mxu0 0.0
    %4542 = vmatpush1.msra.mxu0 0.0
    %4543 = vmatprep.subr.mxu0 0.0
    %4544 = vmatpush1.msra.mxu0 0.0
    %4545 = vmatprep.subr.mxu0 0.0
    %4546 = vmatpush1.msra.mxu0 0.0
    %4547 = vmatprep.subr.mxu0 0.0
    %4548 = vmatpush1.msra.mxu0 0.0
    %4549 = vmatprep.mubr.f32.mxu0 0.0
    %4550 = vmatmul.mubr.f32.gmra.mrb[0].mxu0 %v4413
    %v4551 = vpop.f32.mrb[0].mxu0
    %v4552 = vadd.f32 0.0, %v4551
    %v4553 = vpop.f32.mrb[0].mxu0
    %v4554 = vadd.f32 0.0, %v4553
    %4555 = vdwg.mxu0
    %v4556 = vadd.f32 %v4409, %v4481
    %v4557 = vadd.f32 %v4410, %v4483
    %v4558 = vadd.f32 %v4411, %v4552
    %v4559 = vadd.f32 %v4412, %v4554
    %v4560 = vxor.u32 %v4556, 2147483648
    %v4561 = vmul.f32 %v4560, 1.442695
    %v4562 = vpow.pop %v4561
    %v4563 = vadd.f32 %v4562, 1.0
    %v4564 = vrcp.pop %v4563
    %v4565 = vmul.f32 1.0, %v4564
    %v4566 = vxor.u32 %v4557, 2147483648
    %v4567 = vmul.f32 %v4566, 1.442695
    %v4568 = vpow.pop %v4567
    %v4569 = vadd.f32 %v4568, 1.0
    %v4570 = vrcp.pop %v4569
    %v4571 = vmul.f32 1.0, %v4570
    %v4572 = vtanh.pop %v4558
    %v4573 = vxor.u32 %v4559, 2147483648
    %v4574 = vmul.f32 %v4573, 1.442695
    %v4575 = vpow.pop %v4574
    %v4576 = vadd.f32 %v4575, 1.0
    %v4577 = vrcp.pop %v4576
    %v4578 = vmul.f32 1.0, %v4577
    %v4579 = vld [vmem:[#allocation5] sm:$0xff]
    %v4580 = vmul.f32 %v4571, %v4579
    %v4581 = vmul.f32 %v4565, %v4572
    %v4582 = vadd.f32 %v4580, %v4581
    %v4583 = vtanh.pop %v4582
    %v4584 = vmul.f32 %v4578, %v4583
    %4585 = vst [vmem:[#allocation5] sm:$0xff] %v4582
    %4586 = vst [vmem:[#allocation4] sm:$0xff] %v4584
    %4587 = vst [vmem:[%s868] sm:$0xff] %v4584
    %v4588 = vld [vmem:[%s870] sm:$0xff]
    %v4589 = vld [vmem:[%s870 + $0x8] sm:$0xff]
    %v4590 = vld [vmem:[%s870 + $0x10] sm:$0xff]
    %v4591 = vld [vmem:[%s870 + $0x18] sm:$0xff]
    %v4592 = vld [vmem:[#allocation4] sm:$0xff]
    %4593 = vmatprep.subr.mxu0 %v3876
    %4594 = vmatpush1.msra.mxu0 %v3875
    %4595 = vmatprep.subr.mxu0 %v3880
    %4596 = vmatpush1.msra.mxu0 %v3879
    %4597 = vmatprep.subr.mxu0 %v3884
    %4598 = vmatpush1.msra.mxu0 %v3883
    %4599 = vmatprep.subr.mxu0 %v3888
    %4600 = vmatpush1.msra.mxu0 %v3887
    %4601 = vmatprep.subr.mxu0 %v3892
    %4602 = vmatpush1.msra.mxu0 %v3891
    %4603 = vmatprep.subr.mxu0 %v3896
    %4604 = vmatpush1.msra.mxu0 %v3895
    %4605 = vmatprep.subr.mxu0 %v3900
    %4606 = vmatpush1.msra.mxu0 %v3899
    %4607 = vmatprep.subr.mxu0 %v3904
    %4608 = vmatpush1.msra.mxu0 %v3903
    %4609 = vmatprep.subr.mxu0 %v3908
    %4610 = vmatpush1.msra.mxu0 %v3907
    %4611 = vmatprep.subr.mxu0 %v3912
    %4612 = vmatpush1.msra.mxu0 %v3911
    %4613 = vmatprep.subr.mxu0 %v3916
    %4614 = vmatpush1.msra.mxu0 %v3915
    %4615 = vmatprep.subr.mxu0 %v3920
    %4616 = vmatpush1.msra.mxu0 %v3919
    %4617 = vmatprep.subr.mxu0 %v3924
    %4618 = vmatpush1.msra.mxu0 %v3923
    %4619 = vmatprep.subr.mxu0 %v3928
    %4620 = vmatpush1.msra.mxu0 %v3927
    %4621 = vmatprep.subr.mxu0 %v3932
    %4622 = vmatpush1.msra.mxu0 %v3931
    %4623 = vmatprep.subr.mxu0 %v3936
    %4624 = vmatpush1.msra.mxu0 %v3935
    %4625 = vmatprep.subr.mxu0 0.0
    %4626 = vmatpush1.msra.mxu0 0.0
    %4627 = vmatprep.subr.mxu0 0.0
    %4628 = vmatpush1.msra.mxu0 0.0
    %4629 = vmatprep.subr.mxu0 0.0
    %4630 = vmatpush1.msra.mxu0 0.0
    %4631 = vmatprep.subr.mxu0 0.0
    %4632 = vmatpush1.msra.mxu0 0.0
    %4633 = vmatprep.subr.mxu0 0.0
    %4634 = vmatpush1.msra.mxu0 0.0
    %4635 = vmatprep.subr.mxu0 0.0
    %4636 = vmatpush1.msra.mxu0 0.0
    %4637 = vmatprep.subr.mxu0 0.0
    %4638 = vmatpush1.msra.mxu0 0.0
    %4639 = vmatprep.subr.mxu0 0.0
    %4640 = vmatpush1.msra.mxu0 0.0
    %4641 = vmatprep.subr.mxu0 0.0
    %4642 = vmatpush1.msra.mxu0 0.0
    %4643 = vmatprep.subr.mxu0 0.0
    %4644 = vmatpush1.msra.mxu0 0.0
    %4645 = vmatprep.subr.mxu0 0.0
    %4646 = vmatpush1.msra.mxu0 0.0
    %4647 = vmatprep.subr.mxu0 0.0
    %4648 = vmatpush1.msra.mxu0 0.0
    %4649 = vmatprep.subr.mxu0 0.0
    %4650 = vmatpush1.msra.mxu0 0.0
    %4651 = vmatprep.subr.mxu0 0.0
    %4652 = vmatpush1.msra.mxu0 0.0
    %4653 = vmatprep.subr.mxu0 0.0
    %4654 = vmatpush1.msra.mxu0 0.0
    %4655 = vmatprep.subr.mxu0 0.0
    %4656 = vmatpush1.msra.mxu0 0.0
    %4657 = vmatprep.mubr.f32.mxu0 0.0
    %4658 = vmatmul.mubr.f32.gmra.mrb[0].mxu0 %v4592
    %v4659 = vpop.f32.mrb[0].mxu0
    %v4660 = vadd.f32 0.0, %v4659
    %v4661 = vpop.f32.mrb[0].mxu0
    %v4662 = vadd.f32 0.0, %v4661
    %4663 = vdwg.mxu0
    %4664 = vmatprep.subr.mxu0 %v3878
    %4665 = vmatpush1.msra.mxu0 %v3877
    %4666 = vmatprep.subr.mxu0 %v3882
    %4667 = vmatpush1.msra.mxu0 %v3881
    %4668 = vmatprep.subr.mxu0 %v3886
    %4669 = vmatpush1.msra.mxu0 %v3885
    %4670 = vmatprep.subr.mxu0 %v3890
    %4671 = vmatpush1.msra.mxu0 %v3889
    %4672 = vmatprep.subr.mxu0 %v3894
    %4673 = vmatpush1.msra.mxu0 %v3893
    %4674 = vmatprep.subr.mxu0 %v3898
    %4675 = vmatpush1.msra.mxu0 %v3897
    %4676 = vmatprep.subr.mxu0 %v3902
    %4677 = vmatpush1.msra.mxu0 %v3901
    %4678 = vmatprep.subr.mxu0 %v3906
    %4679 = vmatpush1.msra.mxu0 %v3905
    %4680 = vmatprep.subr.mxu0 %v3910
    %4681 = vmatpush1.msra.mxu0 %v3909
    %4682 = vmatprep.subr.mxu0 %v3914
    %4683 = vmatpush1.msra.mxu0 %v3913
    %4684 = vmatprep.subr.mxu0 %v3918
    %4685 = vmatpush1.msra.mxu0 %v3917
    %4686 = vmatprep.subr.mxu0 %v3922
    %4687 = vmatpush1.msra.mxu0 %v3921
    %4688 = vmatprep.subr.mxu0 %v3926
    %4689 = vmatpush1.msra.mxu0 %v3925
    %4690 = vmatprep.subr.mxu0 %v3930
    %4691 = vmatpush1.msra.mxu0 %v3929
    %4692 = vmatprep.subr.mxu0 %v3934
    %4693 = vmatpush1.msra.mxu0 %v3933
    %4694 = vmatprep.subr.mxu0 %v3938
    %4695 = vmatpush1.msra.mxu0 %v3937
    %4696 = vmatprep.subr.mxu0 0.0
    %4697 = vmatpush1.msra.mxu0 0.0
    %4698 = vmatprep.subr.mxu0 0.0
    %4699 = vmatpush1.msra.mxu0 0.0
    %4700 = vmatprep.subr.mxu0 0.0
    %4701 = vmatpush1.msra.mxu0 0.0
    %4702 = vmatprep.subr.mxu0 0.0
    %4703 = vmatpush1.msra.mxu0 0.0
    %4704 = vmatprep.subr.mxu0 0.0
    %4705 = vmatpush1.msra.mxu0 0.0
    %4706 = vmatprep.subr.mxu0 0.0
    %4707 = vmatpush1.msra.mxu0 0.0
    %4708 = vmatprep.subr.mxu0 0.0
    %4709 = vmatpush1.msra.mxu0 0.0
    %4710 = vmatprep.subr.mxu0 0.0
    %4711 = vmatpush1.msra.mxu0 0.0
    %4712 = vmatprep.subr.mxu0 0.0
    %4713 = vmatpush1.msra.mxu0 0.0
    %4714 = vmatprep.subr.mxu0 0.0
    %4715 = vmatpush1.msra.mxu0 0.0
    %4716 = vmatprep.subr.mxu0 0.0
    %4717 = vmatpush1.msra.mxu0 0.0
    %4718 = vmatprep.subr.mxu0 0.0
    %4719 = vmatpush1.msra.mxu0 0.0
    %4720 = vmatprep.subr.mxu0 0.0
    %4721 = vmatpush1.msra.mxu0 0.0
    %4722 = vmatprep.subr.mxu0 0.0
    %4723 = vmatpush1.msra.mxu0 0.0
    %4724 = vmatprep.subr.mxu0 0.0
    %4725 = vmatpush1.msra.mxu0 0.0
    %4726 = vmatprep.subr.mxu0 0.0
    %4727 = vmatpush1.msra.mxu0 0.0
    %4728 = vmatprep.mubr.f32.mxu0 0.0
    %4729 = vmatmul.mubr.f32.gmra.mrb[0].mxu0 %v4592
    %v4730 = vpop.f32.mrb[0].mxu0
    %v4731 = vadd.f32 0.0, %v4730
    %v4732 = vpop.f32.mrb[0].mxu0
    %v4733 = vadd.f32 0.0, %v4732
    %4734 = vdwg.mxu0
    %v4735 = vadd.f32 %v4588, %v4660
    %v4736 = vadd.f32 %v4589, %v4662
    %v4737 = vadd.f32 %v4590, %v4731
    %v4738 = vadd.f32 %v4591, %v4733
    %v4739 = vxor.u32 %v4735, 2147483648
    %v4740 = vmul.f32 %v4739, 1.442695
    %v4741 = vpow.pop %v4740
    %v4742 = vadd.f32 %v4741, 1.0
    %v4743 = vrcp.pop %v4742
    %v4744 = vmul.f32 1.0, %v4743
    %v4745 = vxor.u32 %v4736, 2147483648
    %v4746 = vmul.f32 %v4745, 1.442695
    %v4747 = vpow.pop %v4746
    %v4748 = vadd.f32 %v4747, 1.0
    %v4749 = vrcp.pop %v4748
    %v4750 = vmul.f32 1.0, %v4749
    %v4751 = vtanh.pop %v4737
    %v4752 = vxor.u32 %v4738, 2147483648
    %v4753 = vmul.f32 %v4752, 1.442695
    %v4754 = vpow.pop %v4753
    %v4755 = vadd.f32 %v4754, 1.0
    %v4756 = vrcp.pop %v4755
    %v4757 = vmul.f32 1.0, %v4756
    %v4758 = vld [vmem:[#allocation5] sm:$0xff]
    %v4759 = vmul.f32 %v4750, %v4758
    %v4760 = vmul.f32 %v4744, %v4751
    %v4761 = vadd.f32 %v4759, %v4760
    %v4762 = vtanh.pop %v4761
    %v4763 = vmul.f32 %v4757, %v4762
    %4764 = vst [vmem:[#allocation5] sm:$0xff] %v4761
    %4765 = vst [vmem:[#allocation4] sm:$0xff] %v4763
    %4766 = vst [vmem:[%s1049] sm:$0xff] %v4763
    %v4767 = vld [vmem:[%s1051] sm:$0xff]
    %v4768 = vld [vmem:[%s1051 + $0x8] sm:$0xff]
    %v4769 = vld [vmem:[%s1051 + $0x10] sm:$0xff]
    %v4770 = vld [vmem:[%s1051 + $0x18] sm:$0xff]
    %v4771 = vld [vmem:[#allocation4] sm:$0xff]
    %4772 = vmatprep.subr.mxu0 %v3876
    %4773 = vmatpush1.msra.mxu0 %v3875
    %4774 = vmatprep.subr.mxu0 %v3880
    %4775 = vmatpush1.msra.mxu0 %v3879
    %4776 = vmatprep.subr.mxu0 %v3884
    %4777 = vmatpush1.msra.mxu0 %v3883
    %4778 = vmatprep.subr.mxu0 %v3888
    %4779 = vmatpush1.msra.mxu0 %v3887
    %4780 = vmatprep.subr.mxu0 %v3892
    %4781 = vmatpush1.msra.mxu0 %v3891
    %4782 = vmatprep.subr.mxu0 %v3896
    %4783 = vmatpush1.msra.mxu0 %v3895
    %4784 = vmatprep.subr.mxu0 %v3900
    %4785 = vmatpush1.msra.mxu0 %v3899
    %4786 = vmatprep.subr.mxu0 %v3904
    %4787 = vmatpush1.msra.mxu0 %v3903
    %4788 = vmatprep.subr.mxu0 %v3908
    %4789 = vmatpush1.msra.mxu0 %v3907
    %4790 = vmatprep.subr.mxu0 %v3912
    %4791 = vmatpush1.msra.mxu0 %v3911
    %4792 = vmatprep.subr.mxu0 %v3916
    %4793 = vmatpush1.msra.mxu0 %v3915
    %4794 = vmatprep.subr.mxu0 %v3920
    %4795 = vmatpush1.msra.mxu0 %v3919
    %4796 = vmatprep.subr.mxu0 %v3924
    %4797 = vmatpush1.msra.mxu0 %v3923
    %4798 = vmatprep.subr.mxu0 %v3928
    %4799 = vmatpush1.msra.mxu0 %v3927
    %4800 = vmatprep.subr.mxu0 %v3932
    %4801 = vmatpush1.msra.mxu0 %v3931
    %4802 = vmatprep.subr.mxu0 %v3936
    %4803 = vmatpush1.msra.mxu0 %v3935
    %4804 = vmatprep.subr.mxu0 0.0
    %4805 = vmatpush1.msra.mxu0 0.0
    %4806 = vmatprep.subr.mxu0 0.0
    %4807 = vmatpush1.msra.mxu0 0.0
    %4808 = vmatprep.subr.mxu0 0.0
    %4809 = vmatpush1.msra.mxu0 0.0
    %4810 = vmatprep.subr.mxu0 0.0
    %4811 = vmatpush1.msra.mxu0 0.0
    %4812 = vmatprep.subr.mxu0 0.0
    %4813 = vmatpush1.msra.mxu0 0.0
    %4814 = vmatprep.subr.mxu0 0.0
    %4815 = vmatpush1.msra.mxu0 0.0
    %4816 = vmatprep.subr.mxu0 0.0
    %4817 = vmatpush1.msra.mxu0 0.0
    %4818 = vmatprep.subr.mxu0 0.0
    %4819 = vmatpush1.msra.mxu0 0.0
    %4820 = vmatprep.subr.mxu0 0.0
    %4821 = vmatpush1.msra.mxu0 0.0
    %4822 = vmatprep.subr.mxu0 0.0
    %4823 = vmatpush1.msra.mxu0 0.0
    %4824 = vmatprep.subr.mxu0 0.0
    %4825 = vmatpush1.msra.mxu0 0.0
    %4826 = vmatprep.subr.mxu0 0.0
    %4827 = vmatpush1.msra.mxu0 0.0
    %4828 = vmatprep.subr.mxu0 0.0
    %4829 = vmatpush1.msra.mxu0 0.0
    %4830 = vmatprep.subr.mxu0 0.0
    %4831 = vmatpush1.msra.mxu0 0.0
    %4832 = vmatprep.subr.mxu0 0.0
    %4833 = vmatpush1.msra.mxu0 0.0
    %4834 = vmatprep.subr.mxu0 0.0
    %4835 = vmatpush1.msra.mxu0 0.0
    %4836 = vmatprep.mubr.f32.mxu0 0.0
    %4837 = vmatmul.mubr.f32.gmra.mrb[0].mxu0 %v4771
    %v4838 = vpop.f32.mrb[0].mxu0
    %v4839 = vadd.f32 0.0, %v4838
    %v4840 = vpop.f32.mrb[0].mxu0
    %v4841 = vadd.f32 0.0, %v4840
    %4842 = vdwg.mxu0
    %4843 = vmatprep.subr.mxu0 %v3878
    %4844 = vmatpush1.msra.mxu0 %v3877
    %4845 = vmatprep.subr.mxu0 %v3882
    %4846 = vmatpush1.msra.mxu0 %v3881
    %4847 = vmatprep.subr.mxu0 %v3886
    %4848 = vmatpush1.msra.mxu0 %v3885
    %4849 = vmatprep.subr.mxu0 %v3890
    %4850 = vmatpush1.msra.mxu0 %v3889
    %4851 = vmatprep.subr.mxu0 %v3894
    %4852 = vmatpush1.msra.mxu0 %v3893
    %4853 = vmatprep.subr.mxu0 %v3898
    %4854 = vmatpush1.msra.mxu0 %v3897
    %4855 = vmatprep.subr.mxu0 %v3902
    %4856 = vmatpush1.msra.mxu0 %v3901
    %4857 = vmatprep.subr.mxu0 %v3906
    %4858 = vmatpush1.msra.mxu0 %v3905
    %4859 = vmatprep.subr.mxu0 %v3910
    %4860 = vmatpush1.msra.mxu0 %v3909
    %4861 = vmatprep.subr.mxu0 %v3914
    %4862 = vmatpush1.msra.mxu0 %v3913
    %4863 = vmatprep.subr.mxu0 %v3918
    %4864 = vmatpush1.msra.mxu0 %v3917
    %4865 = vmatprep.subr.mxu0 %v3922
    %4866 = vmatpush1.msra.mxu0 %v3921
    %4867 = vmatprep.subr.mxu0 %v3926
    %4868 = vmatpush1.msra.mxu0 %v3925
    %4869 = vmatprep.subr.mxu0 %v3930
    %4870 = vmatpush1.msra.mxu0 %v3929
    %4871 = vmatprep.subr.mxu0 %v3934
    %4872 = vmatpush1.msra.mxu0 %v3933
    %4873 = vmatprep.subr.mxu0 %v3938
    %4874 = vmatpush1.msra.mxu0 %v3937
    %4875 = vmatprep.subr.mxu0 0.0
    %4876 = vmatpush1.msra.mxu0 0.0
    %4877 = vmatprep.subr.mxu0 0.0
    %4878 = vmatpush1.msra.mxu0 0.0
    %4879 = vmatprep.subr.mxu0 0.0
    %4880 = vmatpush1.msra.mxu0 0.0
    %4881 = vmatprep.subr.mxu0 0.0
    %4882 = vmatpush1.msra.mxu0 0.0
    %4883 = vmatprep.subr.mxu0 0.0
    %4884 = vmatpush1.msra.mxu0 0.0
    %4885 = vmatprep.subr.mxu0 0.0
    %4886 = vmatpush1.msra.mxu0 0.0
    %4887 = vmatprep.subr.mxu0 0.0
    %4888 = vmatpush1.msra.mxu0 0.0
    %4889 = vmatprep.subr.mxu0 0.0
    %4890 = vmatpush1.msra.mxu0 0.0
    %4891 = vmatprep.subr.mxu0 0.0
    %4892 = vmatpush1.msra.mxu0 0.0
    %4893 = vmatprep.subr.mxu0 0.0
    %4894 = vmatpush1.msra.mxu0 0.0
    %4895 = vmatprep.subr.mxu0 0.0
    %4896 = vmatpush1.msra.mxu0 0.0
    %4897 = vmatprep.subr.mxu0 0.0
    %4898 = vmatpush1.msra.mxu0 0.0
    %4899 = vmatprep.subr.mxu0 0.0
    %4900 = vmatpush1.msra.mxu0 0.0
    %4901 = vmatprep.subr.mxu0 0.0
    %4902 = vmatpush1.msra.mxu0 0.0
    %4903 = vmatprep.subr.mxu0 0.0
    %4904 = vmatpush1.msra.mxu0 0.0
    %4905 = vmatprep.subr.mxu0 0.0
    %4906 = vmatpush1.msra.mxu0 0.0
    %4907 = vmatprep.mubr.f32.mxu0 0.0
    %4908 = vmatmul.mubr.f32.gmra.mrb[0].mxu0 %v4771
    %v4909 = vpop.f32.mrb[0].mxu0
    %v4910 = vadd.f32 0.0, %v4909
    %v4911 = vpop.f32.mrb[0].mxu0
    %v4912 = vadd.f32 0.0, %v4911
    %4913 = vdwg.mxu0
    %v4914 = vadd.f32 %v4767, %v4839
    %v4915 = vadd.f32 %v4768, %v4841
    %v4916 = vadd.f32 %v4769, %v4910
    %v4917 = vadd.f32 %v4770, %v4912
    %v4918 = vxor.u32 %v4914, 2147483648
    %v4919 = vmul.f32 %v4918, 1.442695
    %v4920 = vpow.pop %v4919
    %v4921 = vadd.f32 %v4920, 1.0
    %v4922 = vrcp.pop %v4921
    %v4923 = vmul.f32 1.0, %v4922
    %v4924 = vxor.u32 %v4915, 2147483648
    %v4925 = vmul.f32 %v4924, 1.442695
    %v4926 = vpow.pop %v4925
    %v4927 = vadd.f32 %v4926, 1.0
    %v4928 = vrcp.pop %v4927
    %v4929 = vmul.f32 1.0, %v4928
    %v4930 = vtanh.pop %v4916
    %v4931 = vxor.u32 %v4917, 2147483648
    %v4932 = vmul.f32 %v4931, 1.442695
    %v4933 = vpow.pop %v4932
    %v4934 = vadd.f32 %v4933, 1.0
    %v4935 = vrcp.pop %v4934
    %v4936 = vmul.f32 1.0, %v4935
    %v4937 = vld [vmem:[#allocation5] sm:$0xff]
    %v4938 = vmul.f32 %v4929, %v4937
    %v4939 = vmul.f32 %v4923, %v4930
    %v4940 = vadd.f32 %v4938, %v4939
    %v4941 = vtanh.pop %v4940
    %v4942 = vmul.f32 %v4936, %v4941
    %4943 = vst [vmem:[#allocation5] sm:$0xff] %v4940
    %4944 = vst [vmem:[#allocation4] sm:$0xff] %v4942
    %4945 = vst [vmem:[%s1230] sm:$0xff] %v4942
    %v4946 = vld [vmem:[%s1232] sm:$0xff]
    %v4947 = vld [vmem:[%s1232 + $0x8] sm:$0xff]
    %v4948 = vld [vmem:[%s1232 + $0x10] sm:$0xff]
    %v4949 = vld [vmem:[%s1232 + $0x18] sm:$0xff]
    %v4950 = vld [vmem:[#allocation4] sm:$0xff]
    %4951 = vmatprep.subr.mxu0 %v3876
    %4952 = vmatpush1.msra.mxu0 %v3875
    %4953 = vmatprep.subr.mxu0 %v3880
    %4954 = vmatpush1.msra.mxu0 %v3879
    %4955 = vmatprep.subr.mxu0 %v3884
    %4956 = vmatpush1.msra.mxu0 %v3883
    %4957 = vmatprep.subr.mxu0 %v3888
    %4958 = vmatpush1.msra.mxu0 %v3887
    %4959 = vmatprep.subr.mxu0 %v3892
    %4960 = vmatpush1.msra.mxu0 %v3891
    %4961 = vmatprep.subr.mxu0 %v3896
    %4962 = vmatpush1.msra.mxu0 %v3895
    %4963 = vmatprep.subr.mxu0 %v3900
    %4964 = vmatpush1.msra.mxu0 %v3899
    %4965 = vmatprep.subr.mxu0 %v3904
    %4966 = vmatpush1.msra.mxu0 %v3903
    %4967 = vmatprep.subr.mxu0 %v3908
    %4968 = vmatpush1.msra.mxu0 %v3907
    %4969 = vmatprep.subr.mxu0 %v3912
    %4970 = vmatpush1.msra.mxu0 %v3911
    %4971 = vmatprep.subr.mxu0 %v3916
    %4972 = vmatpush1.msra.mxu0 %v3915
    %4973 = vmatprep.subr.mxu0 %v3920
    %4974 = vmatpush1.msra.mxu0 %v3919
    %4975 = vmatprep.subr.mxu0 %v3924
    %4976 = vmatpush1.msra.mxu0 %v3923
    %4977 = vmatprep.subr.mxu0 %v3928
    %4978 = vmatpush1.msra.mxu0 %v3927
    %4979 = vmatprep.subr.mxu0 %v3932
    %4980 = vmatpush1.msra.mxu0 %v3931
    %4981 = vmatprep.subr.mxu0 %v3936
    %4982 = vmatpush1.msra.mxu0 %v3935
    %4983 = vmatprep.subr.mxu0 0.0
    %4984 = vmatpush1.msra.mxu0 0.0
    %4985 = vmatprep.subr.mxu0 0.0
    %4986 = vmatpush1.msra.mxu0 0.0
    %4987 = vmatprep.subr.mxu0 0.0
    %4988 = vmatpush1.msra.mxu0 0.0
    %4989 = vmatprep.subr.mxu0 0.0
    %4990 = vmatpush1.msra.mxu0 0.0
    %4991 = vmatprep.subr.mxu0 0.0
    %4992 = vmatpush1.msra.mxu0 0.0
    %4993 = vmatprep.subr.mxu0 0.0
    %4994 = vmatpush1.msra.mxu0 0.0
    %4995 = vmatprep.subr.mxu0 0.0
    %4996 = vmatpush1.msra.mxu0 0.0
    %4997 = vmatprep.subr.mxu0 0.0
    %4998 = vmatpush1.msra.mxu0 0.0
    %4999 = vmatprep.subr.mxu0 0.0
    %5000 = vmatpush1.msra.mxu0 0.0
    %5001 = vmatprep.subr.mxu0 0.0
    %5002 = vmatpush1.msra.mxu0 0.0
    %5003 = vmatprep.subr.mxu0 0.0
    %5004 = vmatpush1.msra.mxu0 0.0
    %5005 = vmatprep.subr.mxu0 0.0
    %5006 = vmatpush1.msra.mxu0 0.0
    %5007 = vmatprep.subr.mxu0 0.0
    %5008 = vmatpush1.msra.mxu0 0.0
    %5009 = vmatprep.subr.mxu0 0.0
    %5010 = vmatpush1.msra.mxu0 0.0
    %5011 = vmatprep.subr.mxu0 0.0
    %5012 = vmatpush1.msra.mxu0 0.0
    %5013 = vmatprep.subr.mxu0 0.0
    %5014 = vmatpush1.msra.mxu0 0.0
    %5015 = vmatprep.mubr.f32.mxu0 0.0
    %5016 = vmatmul.mubr.f32.gmra.mrb[0].mxu0 %v4950
    %v5017 = vpop.f32.mrb[0].mxu0
    %v5018 = vadd.f32 0.0, %v5017
    %v5019 = vpop.f32.mrb[0].mxu0
    %v5020 = vadd.f32 0.0, %v5019
    %5021 = vdwg.mxu0
    %5022 = vmatprep.subr.mxu0 %v3878
    %5023 = vmatpush1.msra.mxu0 %v3877
    %5024 = vmatprep.subr.mxu0 %v3882
    %5025 = vmatpush1.msra.mxu0 %v3881
    %5026 = vmatprep.subr.mxu0 %v3886
    %5027 = vmatpush1.msra.mxu0 %v3885
    %5028 = vmatprep.subr.mxu0 %v3890
    %5029 = vmatpush1.msra.mxu0 %v3889
    %5030 = vmatprep.subr.mxu0 %v3894
    %5031 = vmatpush1.msra.mxu0 %v3893
    %5032 = vmatprep.subr.mxu0 %v3898
    %5033 = vmatpush1.msra.mxu0 %v3897
    %5034 = vmatprep.subr.mxu0 %v3902
    %5035 = vmatpush1.msra.mxu0 %v3901
    %5036 = vmatprep.subr.mxu0 %v3906
    %5037 = vmatpush1.msra.mxu0 %v3905
    %5038 = vmatprep.subr.mxu0 %v3910
    %5039 = vmatpush1.msra.mxu0 %v3909
    %5040 = vmatprep.subr.mxu0 %v3914
    %5041 = vmatpush1.msra.mxu0 %v3913
    %5042 = vmatprep.subr.mxu0 %v3918
    %5043 = vmatpush1.msra.mxu0 %v3917
    %5044 = vmatprep.subr.mxu0 %v3922
    %5045 = vmatpush1.msra.mxu0 %v3921
    %5046 = vmatprep.subr.mxu0 %v3926
    %5047 = vmatpush1.msra.mxu0 %v3925
    %5048 = vmatprep.subr.mxu0 %v3930
    %5049 = vmatpush1.msra.mxu0 %v3929
    %5050 = vmatprep.subr.mxu0 %v3934
    %5051 = vmatpush1.msra.mxu0 %v3933
    %5052 = vmatprep.subr.mxu0 %v3938
    %5053 = vmatpush1.msra.mxu0 %v3937
    %5054 = vmatprep.subr.mxu0 0.0
    %5055 = vmatpush1.msra.mxu0 0.0
    %5056 = vmatprep.subr.mxu0 0.0
    %5057 = vmatpush1.msra.mxu0 0.0
    %5058 = vmatprep.subr.mxu0 0.0
    %5059 = vmatpush1.msra.mxu0 0.0
    %5060 = vmatprep.subr.mxu0 0.0
    %5061 = vmatpush1.msra.mxu0 0.0
    %5062 = vmatprep.subr.mxu0 0.0
    %5063 = vmatpush1.msra.mxu0 0.0
    %5064 = vmatprep.subr.mxu0 0.0
    %5065 = vmatpush1.msra.mxu0 0.0
    %5066 = vmatprep.subr.mxu0 0.0
    %5067 = vmatpush1.msra.mxu0 0.0
    %5068 = vmatprep.subr.mxu0 0.0
    %5069 = vmatpush1.msra.mxu0 0.0
    %5070 = vmatprep.subr.mxu0 0.0
    %5071 = vmatpush1.msra.mxu0 0.0
    %5072 = vmatprep.subr.mxu0 0.0
    %5073 = vmatpush1.msra.mxu0 0.0
    %5074 = vmatprep.subr.mxu0 0.0
    %5075 = vmatpush1.msra.mxu0 0.0
    %5076 = vmatprep.subr.mxu0 0.0
    %5077 = vmatpush1.msra.mxu0 0.0
    %5078 = vmatprep.subr.mxu0 0.0
    %5079 = vmatpush1.msra.mxu0 0.0
    %5080 = vmatprep.subr.mxu0 0.0
    %5081 = vmatpush1.msra.mxu0 0.0
    %5082 = vmatprep.subr.mxu0 0.0
    %5083 = vmatpush1.msra.mxu0 0.0
    %5084 = vmatprep.subr.mxu0 0.0
    %5085 = vmatpush1.msra.mxu0 0.0
    %5086 = vmatprep.mubr.f32.mxu0 0.0
    %5087 = vmatmul.mubr.f32.gmra.mrb[0].mxu0 %v4950
    %v5088 = vpop.f32.mrb[0].mxu0
    %v5089 = vadd.f32 0.0, %v5088
    %v5090 = vpop.f32.mrb[0].mxu0
    %v5091 = vadd.f32 0.0, %v5090
    %5092 = vdwg.mxu0
    %v5093 = vadd.f32 %v4946, %v5018
    %v5094 = vadd.f32 %v4947, %v5020
    %v5095 = vadd.f32 %v4948, %v5089
    %v5096 = vadd.f32 %v4949, %v5091
    %v5097 = vxor.u32 %v5093, 2147483648
    %v5098 = vmul.f32 %v5097, 1.442695
    %v5099 = vpow.pop %v5098
    %v5100 = vadd.f32 %v5099, 1.0
    %v5101 = vrcp.pop %v5100
    %v5102 = vmul.f32 1.0, %v5101
    %v5103 = vxor.u32 %v5094, 2147483648
    %v5104 = vmul.f32 %v5103, 1.442695
    %v5105 = vpow.pop %v5104
    %v5106 = vadd.f32 %v5105, 1.0
    %v5107 = vrcp.pop %v5106
    %v5108 = vmul.f32 1.0, %v5107
    %v5109 = vtanh.pop %v5095
    %v5110 = vxor.u32 %v5096, 2147483648
    %v5111 = vmul.f32 %v5110, 1.442695
    %v5112 = vpow.pop %v5111
    %v5113 = vadd.f32 %v5112, 1.0
    %v5114 = vrcp.pop %v5113
    %v5115 = vmul.f32 1.0, %v5114
    %v5116 = vld [vmem:[#allocation5] sm:$0xff]
    %v5117 = vmul.f32 %v5108, %v5116
    %v5118 = vmul.f32 %v5102, %v5109
    %v5119 = vadd.f32 %v5117, %v5118
    %v5120 = vtanh.pop %v5119
    %v5121 = vmul.f32 %v5115, %v5120
    %5122 = vst [vmem:[#allocation5] sm:$0xff] %v5119
    %5123 = vst [vmem:[#allocation4] sm:$0xff] %v5121
    %5124 = vst [vmem:[%s1411] sm:$0xff] %v5121
    %v5125 = vld [vmem:[%s1413] sm:$0xff]
    %v5126 = vld [vmem:[%s1413 + $0x8] sm:$0xff]
    %v5127 = vld [vmem:[%s1413 + $0x10] sm:$0xff]
    %v5128 = vld [vmem:[%s1413 + $0x18] sm:$0xff]
    %v5129 = vld [vmem:[#allocation4] sm:$0xff]
    %5130 = vmatprep.subr.mxu0 %v3876
    %5131 = vmatpush1.msra.mxu0 %v3875
    %5132 = vmatprep.subr.mxu0 %v3880
    %5133 = vmatpush1.msra.mxu0 %v3879
    %5134 = vmatprep.subr.mxu0 %v3884
    %5135 = vmatpush1.msra.mxu0 %v3883
    %5136 = vmatprep.subr.mxu0 %v3888
    %5137 = vmatpush1.msra.mxu0 %v3887
    %5138 = vmatprep.subr.mxu0 %v3892
    %5139 = vmatpush1.msra.mxu0 %v3891
    %5140 = vmatprep.subr.mxu0 %v3896
    %5141 = vmatpush1.msra.mxu0 %v3895
    %5142 = vmatprep.subr.mxu0 %v3900
    %5143 = vmatpush1.msra.mxu0 %v3899
    %5144 = vmatprep.subr.mxu0 %v3904
    %5145 = vmatpush1.msra.mxu0 %v3903
    %5146 = vmatprep.subr.mxu0 %v3908
    %5147 = vmatpush1.msra.mxu0 %v3907
    %5148 = vmatprep.subr.mxu0 %v3912
    %5149 = vmatpush1.msra.mxu0 %v3911
    %5150 = vmatprep.subr.mxu0 %v3916
    %5151 = vmatpush1.msra.mxu0 %v3915
    %5152 = vmatprep.subr.mxu0 %v3920
    %5153 = vmatpush1.msra.mxu0 %v3919
    %5154 = vmatprep.subr.mxu0 %v3924
    %5155 = vmatpush1.msra.mxu0 %v3923
    %5156 = vmatprep.subr.mxu0 %v3928
    %5157 = vmatpush1.msra.mxu0 %v3927
    %5158 = vmatprep.subr.mxu0 %v3932
    %5159 = vmatpush1.msra.mxu0 %v3931
    %5160 = vmatprep.subr.mxu0 %v3936
    %5161 = vmatpush1.msra.mxu0 %v3935
    %5162 = vmatprep.subr.mxu0 0.0
    %5163 = vmatpush1.msra.mxu0 0.0
    %5164 = vmatprep.subr.mxu0 0.0
    %5165 = vmatpush1.msra.mxu0 0.0
    %5166 = vmatprep.subr.mxu0 0.0
    %5167 = vmatpush1.msra.mxu0 0.0
    %5168 = vmatprep.subr.mxu0 0.0
    %5169 = vmatpush1.msra.mxu0 0.0
    %5170 = vmatprep.subr.mxu0 0.0
    %5171 = vmatpush1.msra.mxu0 0.0
    %5172 = vmatprep.subr.mxu0 0.0
    %5173 = vmatpush1.msra.mxu0 0.0
    %5174 = vmatprep.subr.mxu0 0.0
    %5175 = vmatpush1.msra.mxu0 0.0
    %5176 = vmatprep.subr.mxu0 0.0
    %5177 = vmatpush1.msra.mxu0 0.0
    %5178 = vmatprep.subr.mxu0 0.0
    %5179 = vmatpush1.msra.mxu0 0.0
    %5180 = vmatprep.subr.mxu0 0.0
    %5181 = vmatpush1.msra.mxu0 0.0
    %5182 = vmatprep.subr.mxu0 0.0
    %5183 = vmatpush1.msra.mxu0 0.0
    %5184 = vmatprep.subr.mxu0 0.0
    %5185 = vmatpush1.msra.mxu0 0.0
    %5186 = vmatprep.subr.mxu0 0.0
    %5187 = vmatpush1.msra.mxu0 0.0
    %5188 = vmatprep.subr.mxu0 0.0
    %5189 = vmatpush1.msra.mxu0 0.0
    %5190 = vmatprep.subr.mxu0 0.0
    %5191 = vmatpush1.msra.mxu0 0.0
    %5192 = vmatprep.subr.mxu0 0.0
    %5193 = vmatpush1.msra.mxu0 0.0
    %5194 = vmatprep.mubr.f32.mxu0 0.0
    %5195 = vmatmul.mubr.f32.gmra.mrb[0].mxu0 %v5129
    %v5196 = vpop.f32.mrb[0].mxu0
    %v5197 = vadd.f32 0.0, %v5196
    %v5198 = vpop.f32.mrb[0].mxu0
    %v5199 = vadd.f32 0.0, %v5198
    %5200 = vdwg.mxu0
    %5201 = vmatprep.subr.mxu0 %v3878
    %5202 = vmatpush1.msra.mxu0 %v3877
    %5203 = vmatprep.subr.mxu0 %v3882
    %5204 = vmatpush1.msra.mxu0 %v3881
    %5205 = vmatprep.subr.mxu0 %v3886
    %5206 = vmatpush1.msra.mxu0 %v3885
    %5207 = vmatprep.subr.mxu0 %v3890
    %5208 = vmatpush1.msra.mxu0 %v3889
    %5209 = vmatprep.subr.mxu0 %v3894
    %5210 = vmatpush1.msra.mxu0 %v3893
    %5211 = vmatprep.subr.mxu0 %v3898
    %5212 = vmatpush1.msra.mxu0 %v3897
    %5213 = vmatprep.subr.mxu0 %v3902
    %5214 = vmatpush1.msra.mxu0 %v3901
    %5215 = vmatprep.subr.mxu0 %v3906
    %5216 = vmatpush1.msra.mxu0 %v3905
    %5217 = vmatprep.subr.mxu0 %v3910
    %5218 = vmatpush1.msra.mxu0 %v3909
    %5219 = vmatprep.subr.mxu0 %v3914
    %5220 = vmatpush1.msra.mxu0 %v3913
    %5221 = vmatprep.subr.mxu0 %v3918
    %5222 = vmatpush1.msra.mxu0 %v3917
    %5223 = vmatprep.subr.mxu0 %v3922
    %5224 = vmatpush1.msra.mxu0 %v3921
    %5225 = vmatprep.subr.mxu0 %v3926
    %5226 = vmatpush1.msra.mxu0 %v3925
    %5227 = vmatprep.subr.mxu0 %v3930
    %5228 = vmatpush1.msra.mxu0 %v3929
    %5229 = vmatprep.subr.mxu0 %v3934
    %5230 = vmatpush1.msra.mxu0 %v3933
    %5231 = vmatprep.subr.mxu0 %v3938
    %5232 = vmatpush1.msra.mxu0 %v3937
    %5233 = vmatprep.subr.mxu0 0.0
    %5234 = vmatpush1.msra.mxu0 0.0
    %5235 = vmatprep.subr.mxu0 0.0
    %5236 = vmatpush1.msra.mxu0 0.0
    %5237 = vmatprep.subr.mxu0 0.0
    %5238 = vmatpush1.msra.mxu0 0.0
    %5239 = vmatprep.subr.mxu0 0.0
    %5240 = vmatpush1.msra.mxu0 0.0
    %5241 = vmatprep.subr.mxu0 0.0
    %5242 = vmatpush1.msra.mxu0 0.0
    %5243 = vmatprep.subr.mxu0 0.0
    %5244 = vmatpush1.msra.mxu0 0.0
    %5245 = vmatprep.subr.mxu0 0.0
    %5246 = vmatpush1.msra.mxu0 0.0
    %5247 = vmatprep.subr.mxu0 0.0
    %5248 = vmatpush1.msra.mxu0 0.0
    %5249 = vmatprep.subr.mxu0 0.0
    %5250 = vmatpush1.msra.mxu0 0.0
    %5251 = vmatprep.subr.mxu0 0.0
    %5252 = vmatpush1.msra.mxu0 0.0
    %5253 = vmatprep.subr.mxu0 0.0
    %5254 = vmatpush1.msra.mxu0 0.0
    %5255 = vmatprep.subr.mxu0 0.0
    %5256 = vmatpush1.msra.mxu0 0.0
    %5257 = vmatprep.subr.mxu0 0.0
    %5258 = vmatpush1.msra.mxu0 0.0
    %5259 = vmatprep.subr.mxu0 0.0
    %5260 = vmatpush1.msra.mxu0 0.0
    %5261 = vmatprep.subr.mxu0 0.0
    %5262 = vmatpush1.msra.mxu0 0.0
    %5263 = vmatprep.subr.mxu0 0.0
    %5264 = vmatpush1.msra.mxu0 0.0
    %5265 = vmatprep.mubr.f32.mxu0 0.0
    %5266 = vmatmul.mubr.f32.gmra.mrb[0].mxu0 %v5129
    %v5267 = vpop.f32.mrb[0].mxu0
    %v5268 = vadd.f32 0.0, %v5267
    %v5269 = vpop.f32.mrb[0].mxu0
    %v5270 = vadd.f32 0.0, %v5269
    %5271 = vdwg.mxu0
    %v5272 = vadd.f32 %v5125, %v5197
    %v5273 = vadd.f32 %v5126, %v5199
    %v5274 = vadd.f32 %v5127, %v5268
    %v5275 = vadd.f32 %v5128, %v5270
    %v5276 = vxor.u32 %v5272, 2147483648
    %v5277 = vmul.f32 %v5276, 1.442695
    %v5278 = vpow.pop %v5277
    %v5279 = vadd.f32 %v5278, 1.0
    %v5280 = vrcp.pop %v5279
    %v5281 = vmul.f32 1.0, %v5280
    %v5282 = vxor.u32 %v5273, 2147483648
    %v5283 = vmul.f32 %v5282, 1.442695
    %v5284 = vpow.pop %v5283
    %v5285 = vadd.f32 %v5284, 1.0
    %v5286 = vrcp.pop %v5285
    %v5287 = vmul.f32 1.0, %v5286
    %v5288 = vtanh.pop %v5274
    %v5289 = vxor.u32 %v5275, 2147483648
    %v5290 = vmul.f32 %v5289, 1.442695
    %v5291 = vpow.pop %v5290
    %v5292 = vadd.f32 %v5291, 1.0
    %v5293 = vrcp.pop %v5292
    %v5294 = vmul.f32 1.0, %v5293
    %v5295 = vld [vmem:[#allocation5] sm:$0xff]
    %v5296 = vmul.f32 %v5287, %v5295
    %v5297 = vmul.f32 %v5281, %v5288
    %v5298 = vadd.f32 %v5296, %v5297
    %v5299 = vtanh.pop %v5298
    %v5300 = vmul.f32 %v5294, %v5299
    %5301 = vst [vmem:[#allocation5] sm:$0xff] %v5298
    %5302 = vst [vmem:[#allocation4] sm:$0xff] %v5300
    %5303 = vst [vmem:[%s1592] sm:$0xff] %v5300
    %v5304 = vld [vmem:[%s1594] sm:$0xff]
    %v5305 = vld [vmem:[%s1594 + $0x8] sm:$0xff]
    %v5306 = vld [vmem:[%s1594 + $0x10] sm:$0xff]
    %v5307 = vld [vmem:[%s1594 + $0x18] sm:$0xff]
    %v5308 = vld [vmem:[#allocation4] sm:$0xff]
    %5309 = vmatprep.subr.mxu0 %v3876
    %5310 = vmatpush1.msra.mxu0 %v3875
    %5311 = vmatprep.subr.mxu0 %v3880
    %5312 = vmatpush1.msra.mxu0 %v3879
    %5313 = vmatprep.subr.mxu0 %v3884
    %5314 = vmatpush1.msra.mxu0 %v3883
    %5315 = vmatprep.subr.mxu0 %v3888
    %5316 = vmatpush1.msra.mxu0 %v3887
    %5317 = vmatprep.subr.mxu0 %v3892
    %5318 = vmatpush1.msra.mxu0 %v3891
    %5319 = vmatprep.subr.mxu0 %v3896
    %5320 = vmatpush1.msra.mxu0 %v3895
    %5321 = vmatprep.subr.mxu0 %v3900
    %5322 = vmatpush1.msra.mxu0 %v3899
    %5323 = vmatprep.subr.mxu0 %v3904
    %5324 = vmatpush1.msra.mxu0 %v3903
    %5325 = vmatprep.subr.mxu0 %v3908
    %5326 = vmatpush1.msra.mxu0 %v3907
    %5327 = vmatprep.subr.mxu0 %v3912
    %5328 = vmatpush1.msra.mxu0 %v3911
    %5329 = vmatprep.subr.mxu0 %v3916
    %5330 = vmatpush1.msra.mxu0 %v3915
    %5331 = vmatprep.subr.mxu0 %v3920
    %5332 = vmatpush1.msra.mxu0 %v3919
    %5333 = vmatprep.subr.mxu0 %v3924
    %5334 = vmatpush1.msra.mxu0 %v3923
    %5335 = vmatprep.subr.mxu0 %v3928
    %5336 = vmatpush1.msra.mxu0 %v3927
    %5337 = vmatprep.subr.mxu0 %v3932
    %5338 = vmatpush1.msra.mxu0 %v3931
    %5339 = vmatprep.subr.mxu0 %v3936
    %5340 = vmatpush1.msra.mxu0 %v3935
    %5341 = vmatprep.subr.mxu0 0.0
    %5342 = vmatpush1.msra.mxu0 0.0
    %5343 = vmatprep.subr.mxu0 0.0
    %5344 = vmatpush1.msra.mxu0 0.0
    %5345 = vmatprep.subr.mxu0 0.0
    %5346 = vmatpush1.msra.mxu0 0.0
    %5347 = vmatprep.subr.mxu0 0.0
    %5348 = vmatpush1.msra.mxu0 0.0
    %5349 = vmatprep.subr.mxu0 0.0
    %5350 = vmatpush1.msra.mxu0 0.0
    %5351 = vmatprep.subr.mxu0 0.0
    %5352 = vmatpush1.msra.mxu0 0.0
    %5353 = vmatprep.subr.mxu0 0.0
    %5354 = vmatpush1.msra.mxu0 0.0
    %5355 = vmatprep.subr.mxu0 0.0
    %5356 = vmatpush1.msra.mxu0 0.0
    %5357 = vmatprep.subr.mxu0 0.0
    %5358 = vmatpush1.msra.mxu0 0.0
    %5359 = vmatprep.subr.mxu0 0.0
    %5360 = vmatpush1.msra.mxu0 0.0
    %5361 = vmatprep.subr.mxu0 0.0
    %5362 = vmatpush1.msra.mxu0 0.0
    %5363 = vmatprep.subr.mxu0 0.0
    %5364 = vmatpush1.msra.mxu0 0.0
    %5365 = vmatprep.subr.mxu0 0.0
    %5366 = vmatpush1.msra.mxu0 0.0
    %5367 = vmatprep.subr.mxu0 0.0
    %5368 = vmatpush1.msra.mxu0 0.0
    %5369 = vmatprep.subr.mxu0 0.0
    %5370 = vmatpush1.msra.mxu0 0.0
    %5371 = vmatprep.subr.mxu0 0.0
    %5372 = vmatpush1.msra.mxu0 0.0
    %5373 = vmatprep.mubr.f32.mxu0 0.0
    %5374 = vmatmul.mubr.f32.gmra.mrb[0].mxu0 %v5308
    %v5375 = vpop.f32.mrb[0].mxu0
    %v5376 = vadd.f32 0.0, %v5375
    %v5377 = vpop.f32.mrb[0].mxu0
    %v5378 = vadd.f32 0.0, %v5377
    %5379 = vdwg.mxu0
    %5380 = vmatprep.subr.mxu0 %v3878
    %5381 = vmatpush1.msra.mxu0 %v3877
    %5382 = vmatprep.subr.mxu0 %v3882
    %5383 = vmatpush1.msra.mxu0 %v3881
    %5384 = vmatprep.subr.mxu0 %v3886
    %5385 = vmatpush1.msra.mxu0 %v3885
    %5386 = vmatprep.subr.mxu0 %v3890
    %5387 = vmatpush1.msra.mxu0 %v3889
    %5388 = vmatprep.subr.mxu0 %v3894
    %5389 = vmatpush1.msra.mxu0 %v3893
    %5390 = vmatprep.subr.mxu0 %v3898
    %5391 = vmatpush1.msra.mxu0 %v3897
    %5392 = vmatprep.subr.mxu0 %v3902
    %5393 = vmatpush1.msra.mxu0 %v3901
    %5394 = vmatprep.subr.mxu0 %v3906
    %5395 = vmatpush1.msra.mxu0 %v3905
    %5396 = vmatprep.subr.mxu0 %v3910
    %5397 = vmatpush1.msra.mxu0 %v3909
    %5398 = vmatprep.subr.mxu0 %v3914
    %5399 = vmatpush1.msra.mxu0 %v3913
    %5400 = vmatprep.subr.mxu0 %v3918
    %5401 = vmatpush1.msra.mxu0 %v3917
    %5402 = vmatprep.subr.mxu0 %v3922
    %5403 = vmatpush1.msra.mxu0 %v3921
    %5404 = vmatprep.subr.mxu0 %v3926
    %5405 = vmatpush1.msra.mxu0 %v3925
    %5406 = vmatprep.subr.mxu0 %v3930
    %5407 = vmatpush1.msra.mxu0 %v3929
    %5408 = vmatprep.subr.mxu0 %v3934
    %5409 = vmatpush1.msra.mxu0 %v3933
    %5410 = vmatprep.subr.mxu0 %v3938
    %5411 = vmatpush1.msra.mxu0 %v3937
    %5412 = vmatprep.subr.mxu0 0.0
    %5413 = vmatpush1.msra.mxu0 0.0
    %5414 = vmatprep.subr.mxu0 0.0
    %5415 = vmatpush1.msra.mxu0 0.0
    %5416 = vmatprep.subr.mxu0 0.0
    %5417 = vmatpush1.msra.mxu0 0.0
    %5418 = vmatprep.subr.mxu0 0.0
    %5419 = vmatpush1.msra.mxu0 0.0
    %5420 = vmatprep.subr.mxu0 0.0
    %5421 = vmatpush1.msra.mxu0 0.0
    %5422 = vmatprep.subr.mxu0 0.0
    %5423 = vmatpush1.msra.mxu0 0.0
    %5424 = vmatprep.subr.mxu0 0.0
    %5425 = vmatpush1.msra.mxu0 0.0
    %5426 = vmatprep.subr.mxu0 0.0
    %5427 = vmatpush1.msra.mxu0 0.0
    %5428 = vmatprep.subr.mxu0 0.0
    %5429 = vmatpush1.msra.mxu0 0.0
    %5430 = vmatprep.subr.mxu0 0.0
    %5431 = vmatpush1.msra.mxu0 0.0
    %5432 = vmatprep.subr.mxu0 0.0
    %5433 = vmatpush1.msra.mxu0 0.0
    %5434 = vmatprep.subr.mxu0 0.0
    %5435 = vmatpush1.msra.mxu0 0.0
    %5436 = vmatprep.subr.mxu0 0.0
    %5437 = vmatpush1.msra.mxu0 0.0
    %5438 = vmatprep.subr.mxu0 0.0
    %5439 = vmatpush1.msra.mxu0 0.0
    %5440 = vmatprep.subr.mxu0 0.0
    %5441 = vmatpush1.msra.mxu0 0.0
    %5442 = vmatprep.subr.mxu0 0.0
    %5443 = vmatpush1.msra.mxu0 0.0
    %5444 = vmatprep.mubr.f32.mxu0 0.0
    %5445 = vmatmul.mubr.f32.gmra.mrb[0].mxu0 %v5308
    %v5446 = vpop.f32.mrb[0].mxu0
    %v5447 = vadd.f32 0.0, %v5446
    %v5448 = vpop.f32.mrb[0].mxu0
    %v5449 = vadd.f32 0.0, %v5448
    %5450 = vdwg.mxu0
    %v5451 = vadd.f32 %v5304, %v5376
    %v5452 = vadd.f32 %v5305, %v5378
    %v5453 = vadd.f32 %v5306, %v5447
    %v5454 = vadd.f32 %v5307, %v5449
    %v5455 = vxor.u32 %v5451, 2147483648
    %v5456 = vmul.f32 %v5455, 1.442695
    %v5457 = vpow.pop %v5456
    %v5458 = vadd.f32 %v5457, 1.0
    %v5459 = vrcp.pop %v5458
    %v5460 = vmul.f32 1.0, %v5459
    %v5461 = vxor.u32 %v5452, 2147483648
    %v5462 = vmul.f32 %v5461, 1.442695
    %v5463 = vpow.pop %v5462
    %v5464 = vadd.f32 %v5463, 1.0
    %v5465 = vrcp.pop %v5464
    %v5466 = vmul.f32 1.0, %v5465
    %v5467 = vtanh.pop %v5453
    %v5468 = vxor.u32 %v5454, 2147483648
    %v5469 = vmul.f32 %v5468, 1.442695
    %v5470 = vpow.pop %v5469
    %v5471 = vadd.f32 %v5470, 1.0
    %v5472 = vrcp.pop %v5471
    %v5473 = vmul.f32 1.0, %v5472
    %v5474 = vld [vmem:[#allocation5] sm:$0xff]
    %v5475 = vmul.f32 %v5466, %v5474
    %v5476 = vmul.f32 %v5460, %v5467
    %v5477 = vadd.f32 %v5475, %v5476
    %v5478 = vtanh.pop %v5477
    %v5479 = vmul.f32 %v5473, %v5478
    %5480 = vst [vmem:[#allocation5] sm:$0xff] %v5477
    %5481 = vst [vmem:[#allocation4] sm:$0xff] %v5479
    %5482 = vst [vmem:[%s1773] sm:$0xff] %v5479
    %v5483 = vld [vmem:[%s1775] sm:$0xff]
    %v5484 = vld [vmem:[%s1775 + $0x8] sm:$0xff]
    %v5485 = vld [vmem:[%s1775 + $0x10] sm:$0xff]
    %v5486 = vld [vmem:[%s1775 + $0x18] sm:$0xff]
    %v5487 = vld [vmem:[#allocation4] sm:$0xff]
    %5488 = vmatprep.subr.mxu0 %v3876
    %5489 = vmatpush1.msra.mxu0 %v3875
    %5490 = vmatprep.subr.mxu0 %v3880
    %5491 = vmatpush1.msra.mxu0 %v3879
    %5492 = vmatprep.subr.mxu0 %v3884
    %5493 = vmatpush1.msra.mxu0 %v3883
    %5494 = vmatprep.subr.mxu0 %v3888
    %5495 = vmatpush1.msra.mxu0 %v3887
    %5496 = vmatprep.subr.mxu0 %v3892
    %5497 = vmatpush1.msra.mxu0 %v3891
    %5498 = vmatprep.subr.mxu0 %v3896
    %5499 = vmatpush1.msra.mxu0 %v3895
    %5500 = vmatprep.subr.mxu0 %v3900
    %5501 = vmatpush1.msra.mxu0 %v3899
    %5502 = vmatprep.subr.mxu0 %v3904
    %5503 = vmatpush1.msra.mxu0 %v3903
    %5504 = vmatprep.subr.mxu0 %v3908
    %5505 = vmatpush1.msra.mxu0 %v3907
    %5506 = vmatprep.subr.mxu0 %v3912
    %5507 = vmatpush1.msra.mxu0 %v3911
    %5508 = vmatprep.subr.mxu0 %v3916
    %5509 = vmatpush1.msra.mxu0 %v3915
    %5510 = vmatprep.subr.mxu0 %v3920
    %5511 = vmatpush1.msra.mxu0 %v3919
    %5512 = vmatprep.subr.mxu0 %v3924
    %5513 = vmatpush1.msra.mxu0 %v3923
    %5514 = vmatprep.subr.mxu0 %v3928
    %5515 = vmatpush1.msra.mxu0 %v3927
    %5516 = vmatprep.subr.mxu0 %v3932
    %5517 = vmatpush1.msra.mxu0 %v3931
    %5518 = vmatprep.subr.mxu0 %v3936
    %5519 = vmatpush1.msra.mxu0 %v3935
    %5520 = vmatprep.subr.mxu0 0.0
    %5521 = vmatpush1.msra.mxu0 0.0
    %5522 = vmatprep.subr.mxu0 0.0
    %5523 = vmatpush1.msra.mxu0 0.0
    %5524 = vmatprep.subr.mxu0 0.0
    %5525 = vmatpush1.msra.mxu0 0.0
    %5526 = vmatprep.subr.mxu0 0.0
    %5527 = vmatpush1.msra.mxu0 0.0
    %5528 = vmatprep.subr.mxu0 0.0
    %5529 = vmatpush1.msra.mxu0 0.0
    %5530 = vmatprep.subr.mxu0 0.0
    %5531 = vmatpush1.msra.mxu0 0.0
    %5532 = vmatprep.subr.mxu0 0.0
    %5533 = vmatpush1.msra.mxu0 0.0
    %5534 = vmatprep.subr.mxu0 0.0
    %5535 = vmatpush1.msra.mxu0 0.0
    %5536 = vmatprep.subr.mxu0 0.0
    %5537 = vmatpush1.msra.mxu0 0.0
    %5538 = vmatprep.subr.mxu0 0.0
    %5539 = vmatpush1.msra.mxu0 0.0
    %5540 = vmatprep.subr.mxu0 0.0
    %5541 = vmatpush1.msra.mxu0 0.0
    %5542 = vmatprep.subr.mxu0 0.0
    %5543 = vmatpush1.msra.mxu0 0.0
    %5544 = vmatprep.subr.mxu0 0.0
    %5545 = vmatpush1.msra.mxu0 0.0
    %5546 = vmatprep.subr.mxu0 0.0
    %5547 = vmatpush1.msra.mxu0 0.0
    %5548 = vmatprep.subr.mxu0 0.0
    %5549 = vmatpush1.msra.mxu0 0.0
    %5550 = vmatprep.subr.mxu0 0.0
    %5551 = vmatpush1.msra.mxu0 0.0
    %5552 = vmatprep.mubr.f32.mxu0 0.0
    %5553 = vmatmul.mubr.f32.gmra.mrb[0].mxu0 %v5487
    %v5554 = vpop.f32.mrb[0].mxu0
    %v5555 = vadd.f32 0.0, %v5554
    %v5556 = vpop.f32.mrb[0].mxu0
    %v5557 = vadd.f32 0.0, %v5556
    %5558 = vdwg.mxu0
    %5559 = vmatprep.subr.mxu0 %v3878
    %5560 = vmatpush1.msra.mxu0 %v3877
    %5561 = vmatprep.subr.mxu0 %v3882
    %5562 = vmatpush1.msra.mxu0 %v3881
    %5563 = vmatprep.subr.mxu0 %v3886
    %5564 = vmatpush1.msra.mxu0 %v3885
    %5565 = vmatprep.subr.mxu0 %v3890
    %5566 = vmatpush1.msra.mxu0 %v3889
    %5567 = vmatprep.subr.mxu0 %v3894
    %5568 = vmatpush1.msra.mxu0 %v3893
    %5569 = vmatprep.subr.mxu0 %v3898
    %5570 = vmatpush1.msra.mxu0 %v3897
    %5571 = vmatprep.subr.mxu0 %v3902
    %5572 = vmatpush1.msra.mxu0 %v3901
    %5573 = vmatprep.subr.mxu0 %v3906
    %5574 = vmatpush1.msra.mxu0 %v3905
    %5575 = vmatprep.subr.mxu0 %v3910
    %5576 = vmatpush1.msra.mxu0 %v3909
    %5577 = vmatprep.subr.mxu0 %v3914
    %5578 = vmatpush1.msra.mxu0 %v3913
    %5579 = vmatprep.subr.mxu0 %v3918
    %5580 = vmatpush1.msra.mxu0 %v3917
    %5581 = vmatprep.subr.mxu0 %v3922
    %5582 = vmatpush1.msra.mxu0 %v3921
    %5583 = vmatprep.subr.mxu0 %v3926
    %5584 = vmatpush1.msra.mxu0 %v3925
    %5585 = vmatprep.subr.mxu0 %v3930
    %5586 = vmatpush1.msra.mxu0 %v3929
    %5587 = vmatprep.subr.mxu0 %v3934
    %5588 = vmatpush1.msra.mxu0 %v3933
    %5589 = vmatprep.subr.mxu0 %v3938
    %5590 = vmatpush1.msra.mxu0 %v3937
    %5591 = vmatprep.subr.mxu0 0.0
    %5592 = vmatpush1.msra.mxu0 0.0
    %5593 = vmatprep.subr.mxu0 0.0
    %5594 = vmatpush1.msra.mxu0 0.0
    %5595 = vmatprep.subr.mxu0 0.0
    %5596 = vmatpush1.msra.mxu0 0.0
    %5597 = vmatprep.subr.mxu0 0.0
    %5598 = vmatpush1.msra.mxu0 0.0
    %5599 = vmatprep.subr.mxu0 0.0
    %5600 = vmatpush1.msra.mxu0 0.0
    %5601 = vmatprep.subr.mxu0 0.0
    %5602 = vmatpush1.msra.mxu0 0.0
    %5603 = vmatprep.subr.mxu0 0.0
    %5604 = vmatpush1.msra.mxu0 0.0
    %5605 = vmatprep.subr.mxu0 0.0
    %5606 = vmatpush1.msra.mxu0 0.0
    %5607 = vmatprep.subr.mxu0 0.0
    %5608 = vmatpush1.msra.mxu0 0.0
    %5609 = vmatprep.subr.mxu0 0.0
    %5610 = vmatpush1.msra.mxu0 0.0
    %5611 = vmatprep.subr.mxu0 0.0
    %5612 = vmatpush1.msra.mxu0 0.0
    %5613 = vmatprep.subr.mxu0 0.0
    %5614 = vmatpush1.msra.mxu0 0.0
    %5615 = vmatprep.subr.mxu0 0.0
    %5616 = vmatpush1.msra.mxu0 0.0
    %5617 = vmatprep.subr.mxu0 0.0
    %5618 = vmatpush1.msra.mxu0 0.0
    %5619 = vmatprep.subr.mxu0 0.0
    %5620 = vmatpush1.msra.mxu0 0.0
    %5621 = vmatprep.subr.mxu0 0.0
    %5622 = vmatpush1.msra.mxu0 0.0
    %5623 = vmatprep.mubr.f32.mxu0 0.0
    %5624 = vmatmul.mubr.f32.gmra.mrb[0].mxu0 %v5487
    %v5625 = vpop.f32.mrb[0].mxu0
    %v5626 = vadd.f32 0.0, %v5625
    %v5627 = vpop.f32.mrb[0].mxu0
    %v5628 = vadd.f32 0.0, %v5627
    %5629 = vdwg.mxu0
    %v5630 = vadd.f32 %v5483, %v5555
    %v5631 = vadd.f32 %v5484, %v5557
    %v5632 = vadd.f32 %v5485, %v5626
    %v5633 = vadd.f32 %v5486, %v5628
    %v5634 = vxor.u32 %v5630, 2147483648
    %v5635 = vmul.f32 %v5634, 1.442695
    %v5636 = vpow.pop %v5635
    %v5637 = vadd.f32 %v5636, 1.0
    %v5638 = vrcp.pop %v5637
    %v5639 = vmul.f32 1.0, %v5638
    %v5640 = vxor.u32 %v5631, 2147483648
    %v5641 = vmul.f32 %v5640, 1.442695
    %v5642 = vpow.pop %v5641
    %v5643 = vadd.f32 %v5642, 1.0
    %v5644 = vrcp.pop %v5643
    %v5645 = vmul.f32 1.0, %v5644
    %v5646 = vtanh.pop %v5632
    %v5647 = vxor.u32 %v5633, 2147483648
    %v5648 = vmul.f32 %v5647, 1.442695
    %v5649 = vpow.pop %v5648
    %v5650 = vadd.f32 %v5649, 1.0
    %v5651 = vrcp.pop %v5650
    %v5652 = vmul.f32 1.0, %v5651
    %v5653 = vld [vmem:[#allocation5] sm:$0xff]
    %v5654 = vmul.f32 %v5645, %v5653
    %v5655 = vmul.f32 %v5639, %v5646
    %v5656 = vadd.f32 %v5654, %v5655
    %v5657 = vtanh.pop %v5656
    %v5658 = vmul.f32 %v5652, %v5657
    %5659 = vst [vmem:[#allocation5] sm:$0xff] %v5656
    %5660 = vst [vmem:[#allocation4] sm:$0xff] %v5658
    %5661 = vst [vmem:[%s1954] sm:$0xff] %v5658
    %s5662 = scalar_lea.vmem [#allocation6], 1536
    %v5663 = vld [vmem:[%s5662] sm:$0xff]
    %v5664 = vld [vmem:[%s5662 + $0x8] sm:$0xff]
    %v5665 = vld [vmem:[%s5662 + $0x10] sm:$0xff]
    %v5666 = vld [vmem:[%s5662 + $0x18] sm:$0xff]
    %v5667 = vld [vmem:[%s5662 + $0x20] sm:$0xff]
    %v5668 = vld [vmem:[%s5662 + $0x28] sm:$0xff]
    %v5669 = vld [vmem:[%s5662 + $0x30] sm:$0xff]
    %v5670 = vld [vmem:[%s5662 + $0x38] sm:$0xff]
    %v5671 = vld [vmem:[%s5662 + $0x40] sm:$0xff]
    %v5672 = vld [vmem:[%s5662 + $0x48] sm:$0xff]
    %v5673 = vld [vmem:[%s5662 + $0x50] sm:$0xff]
    %v5674 = vld [vmem:[%s5662 + $0x58] sm:$0xff]
    %v5675 = vld [vmem:[%s5662 + $0x60] sm:$0xff]
    %v5676 = vld [vmem:[%s5662 + $0x68] sm:$0xff]
    %v5677 = vld [vmem:[%s5662 + $0x70] sm:$0xff]
    %v5678 = vld [vmem:[%s5662 + $0x78] sm:$0xff]
    %v5679 = vld [vmem:[%s5662 + $0x80] sm:$0xff]
    %v5680 = vld [vmem:[%s5662 + $0x88] sm:$0xff]
    %v5681 = vld [vmem:[%s5662 + $0x90] sm:$0xff]
    %v5682 = vld [vmem:[%s5662 + $0x98] sm:$0xff]
    %v5683 = vld [vmem:[%s5662 + $0xa0] sm:$0xff]
    %v5684 = vld [vmem:[%s5662 + $0xa8] sm:$0xff]
    %v5685 = vld [vmem:[%s5662 + $0xb0] sm:$0xff]
    %v5686 = vld [vmem:[%s5662 + $0xb8] sm:$0xff]
    %v5687 = vld [vmem:[%s5662 + $0xc0] sm:$0xff]
    %v5688 = vld [vmem:[%s5662 + $0xc8] sm:$0xff]
    %v5689 = vld [vmem:[%s5662 + $0xd0] sm:$0xff]
    %v5690 = vld [vmem:[%s5662 + $0xd8] sm:$0xff]
    %v5691 = vld [vmem:[%s5662 + $0xe0] sm:$0xff]
    %v5692 = vld [vmem:[%s5662 + $0xe8] sm:$0xff]
    %v5693 = vld [vmem:[%s5662 + $0xf0] sm:$0xff]
    %v5694 = vld [vmem:[%s5662 + $0xf8] sm:$0xff]
    %v5695 = vld [vmem:[%s5662 + $0x100] sm:$0xff]
    %v5696 = vld [vmem:[%s5662 + $0x108] sm:$0xff]
    %v5697 = vld [vmem:[%s5662 + $0x110] sm:$0xff]
    %v5698 = vld [vmem:[%s5662 + $0x118] sm:$0xff]
    %v5699 = vld [vmem:[%s5662 + $0x120] sm:$0xff]
    %v5700 = vld [vmem:[%s5662 + $0x128] sm:$0xff]
    %v5701 = vld [vmem:[%s5662 + $0x130] sm:$0xff]
    %v5702 = vld [vmem:[%s5662 + $0x138] sm:$0xff]
    %v5703 = vld [vmem:[%s5662 + $0x140] sm:$0xff]
    %v5704 = vld [vmem:[%s5662 + $0x148] sm:$0xff]
    %v5705 = vld [vmem:[%s5662 + $0x150] sm:$0xff]
    %v5706 = vld [vmem:[%s5662 + $0x158] sm:$0xff]
    %v5707 = vld [vmem:[%s5662 + $0x160] sm:$0xff]
    %v5708 = vld [vmem:[%s5662 + $0x168] sm:$0xff]
    %v5709 = vld [vmem:[%s5662 + $0x170] sm:$0xff]
    %v5710 = vld [vmem:[%s5662 + $0x178] sm:$0xff]
    %v5711 = vld [vmem:[%s5662 + $0x180] sm:$0xff]
    %v5712 = vld [vmem:[%s5662 + $0x188] sm:$0xff]
    %v5713 = vld [vmem:[%s5662 + $0x190] sm:$0xff]
    %v5714 = vld [vmem:[%s5662 + $0x198] sm:$0xff]
    %v5715 = vld [vmem:[%s5662 + $0x1a0] sm:$0xff]
    %v5716 = vld [vmem:[%s5662 + $0x1a8] sm:$0xff]
    %v5717 = vld [vmem:[%s5662 + $0x1b0] sm:$0xff]
    %v5718 = vld [vmem:[%s5662 + $0x1b8] sm:$0xff]
    %v5719 = vld [vmem:[%s5662 + $0x1c0] sm:$0xff]
    %v5720 = vld [vmem:[%s5662 + $0x1c8] sm:$0xff]
    %v5721 = vld [vmem:[%s5662 + $0x1d0] sm:$0xff]
    %v5722 = vld [vmem:[%s5662 + $0x1d8] sm:$0xff]
    %v5723 = vld [vmem:[%s5662 + $0x1e0] sm:$0xff]
    %v5724 = vld [vmem:[%s5662 + $0x1e8] sm:$0xff]
    %v5725 = vld [vmem:[%s5662 + $0x1f0] sm:$0xff]
    %v5726 = vld [vmem:[%s5662 + $0x1f8] sm:$0xff]
    %s5727 = scalar_lea.vmem [#allocation8], 1536
    %v5728 = vld [vmem:[%s5727] sm:$0xff]
    %v5729 = vld [vmem:[%s5727 + $0x8] sm:$0xff]
    %v5730 = vld [vmem:[%s5727 + $0x10] sm:$0xff]
    %v5731 = vld [vmem:[%s5727 + $0x18] sm:$0xff]
    %v5732 = vld [vmem:[%s5727 + $0x20] sm:$0xff]
    %v5733 = vld [vmem:[%s5727 + $0x28] sm:$0xff]
    %v5734 = vld [vmem:[%s5727 + $0x30] sm:$0xff]
    %v5735 = vld [vmem:[%s5727 + $0x38] sm:$0xff]
    %v5736 = vld [vmem:[%s5727 + $0x40] sm:$0xff]
    %v5737 = vld [vmem:[%s5727 + $0x48] sm:$0xff]
    %v5738 = vld [vmem:[%s5727 + $0x50] sm:$0xff]
    %v5739 = vld [vmem:[%s5727 + $0x58] sm:$0xff]
    %v5740 = vld [vmem:[%s5727 + $0x60] sm:$0xff]
    %v5741 = vld [vmem:[%s5727 + $0x68] sm:$0xff]
    %v5742 = vld [vmem:[%s5727 + $0x70] sm:$0xff]
    %v5743 = vld [vmem:[%s5727 + $0x78] sm:$0xff]
    %v5744 = vld [vmem:[%s5727 + $0x80] sm:$0xff]
    %v5745 = vld [vmem:[%s5727 + $0x88] sm:$0xff]
    %v5746 = vld [vmem:[%s5727 + $0x90] sm:$0xff]
    %v5747 = vld [vmem:[%s5727 + $0x98] sm:$0xff]
    %v5748 = vld [vmem:[%s5727 + $0xa0] sm:$0xff]
    %v5749 = vld [vmem:[%s5727 + $0xa8] sm:$0xff]
    %v5750 = vld [vmem:[%s5727 + $0xb0] sm:$0xff]
    %v5751 = vld [vmem:[%s5727 + $0xb8] sm:$0xff]
    %v5752 = vld [vmem:[%s5727 + $0xc0] sm:$0xff]
    %v5753 = vld [vmem:[%s5727 + $0xc8] sm:$0xff]
    %v5754 = vld [vmem:[%s5727 + $0xd0] sm:$0xff]
    %v5755 = vld [vmem:[%s5727 + $0xd8] sm:$0xff]
    %v5756 = vld [vmem:[%s5727 + $0xe0] sm:$0xff]
    %v5757 = vld [vmem:[%s5727 + $0xe8] sm:$0xff]
    %v5758 = vld [vmem:[%s5727 + $0xf0] sm:$0xff]
    %v5759 = vld [vmem:[%s5727 + $0xf8] sm:$0xff]
    %v5760 = vld [vmem:[%s5727 + $0x100] sm:$0xff]
    %v5761 = vld [vmem:[%s5727 + $0x108] sm:$0xff]
    %v5762 = vld [vmem:[%s5727 + $0x110] sm:$0xff]
    %v5763 = vld [vmem:[%s5727 + $0x118] sm:$0xff]
    %v5764 = vld [vmem:[%s5727 + $0x120] sm:$0xff]
    %v5765 = vld [vmem:[%s5727 + $0x128] sm:$0xff]
    %v5766 = vld [vmem:[%s5727 + $0x130] sm:$0xff]
    %v5767 = vld [vmem:[%s5727 + $0x138] sm:$0xff]
    %v5768 = vld [vmem:[%s5727 + $0x140] sm:$0xff]
    %v5769 = vld [vmem:[%s5727 + $0x148] sm:$0xff]
    %v5770 = vld [vmem:[%s5727 + $0x150] sm:$0xff]
    %v5771 = vld [vmem:[%s5727 + $0x158] sm:$0xff]
    %v5772 = vld [vmem:[%s5727 + $0x160] sm:$0xff]
    %v5773 = vld [vmem:[%s5727 + $0x168] sm:$0xff]
    %v5774 = vld [vmem:[%s5727 + $0x170] sm:$0xff]
    %v5775 = vld [vmem:[%s5727 + $0x178] sm:$0xff]
    %v5776 = vld [vmem:[%s5727 + $0x180] sm:$0xff]
    %v5777 = vld [vmem:[%s5727 + $0x188] sm:$0xff]
    %v5778 = vld [vmem:[%s5727 + $0x190] sm:$0xff]
    %v5779 = vld [vmem:[%s5727 + $0x198] sm:$0xff]
    %v5780 = vld [vmem:[%s5727 + $0x1a0] sm:$0xff]
    %v5781 = vld [vmem:[%s5727 + $0x1a8] sm:$0xff]
    %v5782 = vld [vmem:[%s5727 + $0x1b0] sm:$0xff]
    %v5783 = vld [vmem:[%s5727 + $0x1b8] sm:$0xff]
    %v5784 = vld [vmem:[%s5727 + $0x1c0] sm:$0xff]
    %v5785 = vld [vmem:[%s5727 + $0x1c8] sm:$0xff]
    %v5786 = vld [vmem:[%s5727 + $0x1d0] sm:$0xff]
    %v5787 = vld [vmem:[%s5727 + $0x1d8] sm:$0xff]
    %v5788 = vld [vmem:[%s5727 + $0x1e0] sm:$0xff]
    %v5789 = vld [vmem:[%s5727 + $0x1e8] sm:$0xff]
    %v5790 = vld [vmem:[%s5727 + $0x1f0] sm:$0xff]
    %v5791 = vld [vmem:[%s5727 + $0x1f8] sm:$0xff]
    %s5792 = scalar_lea.vmem [#allocation10], 12
    %v5793 = vld [vmem:[%s5792] sm:$0xf]
    %v5794 = vld [vmem:[#allocation2] sm:$0xff]
    %v5795 = vld [vmem:[#allocation2 + $0x8] sm:$0xff]
    %v5796 = vld [vmem:[#allocation2 + $0x10] sm:$0xff]
    %v5797 = vld [vmem:[#allocation2 + $0x18] sm:$0xff]
    %v5798 = vld [vmem:[#allocation2 + $0x20] sm:$0xff]
    %v5799 = vld [vmem:[#allocation2 + $0x28] sm:$0xff]
    %v5800 = vld [vmem:[#allocation2 + $0x30] sm:$0xff]
    %v5801 = vld [vmem:[#allocation2 + $0x38] sm:$0xff]
    %v5803 = vlaneseq
    %v5804 = vshrl.u32 %v5803, 7
    %v5805 = vsub.s32 0, %v5804
    %v5806 = vrot.slane %v5793, %v5805
    %v5807 = vlaneseq
    %v5808 = vshrl.u32 %v5807, 7
    %v5809 = vsub.s32 1, %v5808
    %v5810 = vrot.slane %v5793, %v5809
    %v5811 = vlaneseq
    %v5812 = vshrl.u32 %v5811, 7
    %v5813 = vsub.s32 2, %v5812
    %v5814 = vrot.slane %v5793, %v5813
    %v5815 = vlaneseq
    %v5816 = vshrl.u32 %v5815, 7
    %v5817 = vsub.s32 3, %v5816
    %v5818 = vrot.slane %v5793, %v5817
    %5823 = vmatprep.subr.mxu0 %v5664
    %5824 = vmatpush1.msra.mxu0 %v5663
    %5825 = vmatprep.subr.mxu0 %v5668
    %5826 = vmatpush1.msra.mxu0 %v5667
    %5827 = vmatprep.subr.mxu0 %v5672
    %5828 = vmatpush1.msra.mxu0 %v5671
    %5829 = vmatprep.subr.mxu0 %v5676
    %5830 = vmatpush1.msra.mxu0 %v5675
    %5831 = vmatprep.subr.mxu0 %v5680
    %5832 = vmatpush1.msra.mxu0 %v5679
    %5833 = vmatprep.subr.mxu0 %v5684
    %5834 = vmatpush1.msra.mxu0 %v5683
    %5835 = vmatprep.subr.mxu0 %v5688
    %5836 = vmatpush1.msra.mxu0 %v5687
    %5837 = vmatprep.subr.mxu0 %v5692
    %5838 = vmatpush1.msra.mxu0 %v5691
    %5839 = vmatprep.subr.mxu0 %v5696
    %5840 = vmatpush1.msra.mxu0 %v5695
    %5841 = vmatprep.subr.mxu0 %v5700
    %5842 = vmatpush1.msra.mxu0 %v5699
    %5843 = vmatprep.subr.mxu0 %v5704
    %5844 = vmatpush1.msra.mxu0 %v5703
    %5845 = vmatprep.subr.mxu0 %v5708
    %5846 = vmatpush1.msra.mxu0 %v5707
    %5847 = vmatprep.subr.mxu0 %v5712
    %5848 = vmatpush1.msra.mxu0 %v5711
    %5849 = vmatprep.subr.mxu0 %v5716
    %5850 = vmatpush1.msra.mxu0 %v5715
    %5851 = vmatprep.subr.mxu0 %v5720
    %5852 = vmatpush1.msra.mxu0 %v5719
    %5853 = vmatprep.subr.mxu0 %v5724
    %5854 = vmatpush1.msra.mxu0 %v5723
    %5855 = vmatprep.subr.mxu0 0.0
    %5856 = vmatpush1.msra.mxu0 0.0
    %5857 = vmatprep.subr.mxu0 0.0
    %5858 = vmatpush1.msra.mxu0 0.0
    %5859 = vmatprep.subr.mxu0 0.0
    %5860 = vmatpush1.msra.mxu0 0.0
    %5861 = vmatprep.subr.mxu0 0.0
    %5862 = vmatpush1.msra.mxu0 0.0
    %5863 = vmatprep.subr.mxu0 0.0
    %5864 = vmatpush1.msra.mxu0 0.0
    %5865 = vmatprep.subr.mxu0 0.0
    %5866 = vmatpush1.msra.mxu0 0.0
    %5867 = vmatprep.subr.mxu0 0.0
    %5868 = vmatpush1.msra.mxu0 0.0
    %5869 = vmatprep.subr.mxu0 0.0
    %5870 = vmatpush1.msra.mxu0 0.0
    %5871 = vmatprep.subr.mxu0 0.0
    %5872 = vmatpush1.msra.mxu0 0.0
    %5873 = vmatprep.subr.mxu0 0.0
    %5874 = vmatpush1.msra.mxu0 0.0
    %5875 = vmatprep.subr.mxu0 0.0
    %5876 = vmatpush1.msra.mxu0 0.0
    %5877 = vmatprep.subr.mxu0 0.0
    %5878 = vmatpush1.msra.mxu0 0.0
    %5879 = vmatprep.subr.mxu0 0.0
    %5880 = vmatpush1.msra.mxu0 0.0
    %5881 = vmatprep.subr.mxu0 0.0
    %5882 = vmatpush1.msra.mxu0 0.0
    %5883 = vmatprep.subr.mxu0 0.0
    %5884 = vmatpush1.msra.mxu0 0.0
    %5885 = vmatprep.subr.mxu0 0.0
    %5886 = vmatpush1.msra.mxu0 0.0
    %5887 = vmatprep.mubr.f32.mxu0 0.0
    %5888 = vmatmul.mubr.f32.gmra.mrb[0].mxu0 %v5794
    %v5889 = vpop.f32.mrb[0].mxu0
    %v5890 = vadd.f32 %v5806, %v5889
    %v5891 = vpop.f32.mrb[0].mxu0
    %v5892 = vadd.f32 %v5810, %v5891
    %5893 = vmatprep.mubr.f32.mxu0 0.0
    %5894 = vmatmul.mubr.f32.gmra.mrb[0].mxu0 %v5795
    %v5895 = vpop.f32.mrb[0].mxu0
    %v5896 = vadd.f32 %v5806, %v5895
    %v5897 = vpop.f32.mrb[0].mxu0
    %v5898 = vadd.f32 %v5810, %v5897
    %5899 = vmatprep.mubr.f32.mxu0 0.0
    %5900 = vmatmul.mubr.f32.gmra.mrb[0].mxu0 %v5796
    %v5901 = vpop.f32.mrb[0].mxu0
    %v5902 = vadd.f32 %v5806, %v5901
    %v5903 = vpop.f32.mrb[0].mxu0
    %v5904 = vadd.f32 %v5810, %v5903
    %5905 = vmatprep.mubr.f32.mxu0 0.0
    %5906 = vmatmul.mubr.f32.gmra.mrb[0].mxu0 %v5797
    %v5907 = vpop.f32.mrb[0].mxu0
    %v5908 = vadd.f32 %v5806, %v5907
    %v5909 = vpop.f32.mrb[0].mxu0
    %v5910 = vadd.f32 %v5810, %v5909
    %5911 = vmatprep.mubr.f32.mxu0 0.0
    %5912 = vmatmul.mubr.f32.gmra.mrb[0].mxu0 %v5798
    %v5913 = vpop.f32.mrb[0].mxu0
    %v5914 = vadd.f32 %v5806, %v5913
    %v5915 = vpop.f32.mrb[0].mxu0
    %v5916 = vadd.f32 %v5810, %v5915
    %5917 = vmatprep.mubr.f32.mxu0 0.0
    %5918 = vmatmul.mubr.f32.gmra.mrb[0].mxu0 %v5799
    %v5919 = vpop.f32.mrb[0].mxu0
    %v5920 = vadd.f32 %v5806, %v5919
    %v5921 = vpop.f32.mrb[0].mxu0
    %v5922 = vadd.f32 %v5810, %v5921
    %5923 = vmatprep.mubr.f32.mxu0 0.0
    %5924 = vmatmul.mubr.f32.gmra.mrb[0].mxu0 %v5800
    %v5925 = vpop.f32.mrb[0].mxu0
    %v5926 = vadd.f32 %v5806, %v5925
    %v5927 = vpop.f32.mrb[0].mxu0
    %v5928 = vadd.f32 %v5810, %v5927
    %5929 = vmatprep.mubr.f32.mxu0 0.0
    %5930 = vmatmul.mubr.f32.gmra.mrb[0].mxu0 %v5801
    %v5931 = vpop.f32.mrb[0].mxu0
    %v5932 = vadd.f32 %v5806, %v5931
    %v5933 = vpop.f32.mrb[0].mxu0
    %v5934 = vadd.f32 %v5810, %v5933
    %5935 = vdwg.mxu0
    %5936 = vmatprep.subr.mxu0 %v5666
    %5937 = vmatpush1.msra.mxu0 %v5665
    %5938 = vmatprep.subr.mxu0 %v5670
    %5939 = vmatpush1.msra.mxu0 %v5669
    %5940 = vmatprep.subr.mxu0 %v5674
    %5941 = vmatpush1.msra.mxu0 %v5673
    %5942 = vmatprep.subr.mxu0 %v5678
    %5943 = vmatpush1.msra.mxu0 %v5677
    %5944 = vmatprep.subr.mxu0 %v5682
    %5945 = vmatpush1.msra.mxu0 %v5681
    %5946 = vmatprep.subr.mxu0 %v5686
    %5947 = vmatpush1.msra.mxu0 %v5685
    %5948 = vmatprep.subr.mxu0 %v5690
    %5949 = vmatpush1.msra.mxu0 %v5689
    %5950 = vmatprep.subr.mxu0 %v5694
    %5951 = vmatpush1.msra.mxu0 %v5693
    %5952 = vmatprep.subr.mxu0 %v5698
    %5953 = vmatpush1.msra.mxu0 %v5697
    %5954 = vmatprep.subr.mxu0 %v5702
    %5955 = vmatpush1.msra.mxu0 %v5701
    %5956 = vmatprep.subr.mxu0 %v5706
    %5957 = vmatpush1.msra.mxu0 %v5705
    %5958 = vmatprep.subr.mxu0 %v5710
    %5959 = vmatpush1.msra.mxu0 %v5709
    %5960 = vmatprep.subr.mxu0 %v5714
    %5961 = vmatpush1.msra.mxu0 %v5713
    %5962 = vmatprep.subr.mxu0 %v5718
    %5963 = vmatpush1.msra.mxu0 %v5717
    %5964 = vmatprep.subr.mxu0 %v5722
    %5965 = vmatpush1.msra.mxu0 %v5721
    %5966 = vmatprep.subr.mxu0 %v5726
    %5967 = vmatpush1.msra.mxu0 %v5725
    %5968 = vmatprep.subr.mxu0 0.0
    %5969 = vmatpush1.msra.mxu0 0.0
    %5970 = vmatprep.subr.mxu0 0.0
    %5971 = vmatpush1.msra.mxu0 0.0
    %5972 = vmatprep.subr.mxu0 0.0
    %5973 = vmatpush1.msra.mxu0 0.0
    %5974 = vmatprep.subr.mxu0 0.0
    %5975 = vmatpush1.msra.mxu0 0.0
    %5976 = vmatprep.subr.mxu0 0.0
    %5977 = vmatpush1.msra.mxu0 0.0
    %5978 = vmatprep.subr.mxu0 0.0
    %5979 = vmatpush1.msra.mxu0 0.0
    %5980 = vmatprep.subr.mxu0 0.0
    %5981 = vmatpush1.msra.mxu0 0.0
    %5982 = vmatprep.subr.mxu0 0.0
    %5983 = vmatpush1.msra.mxu0 0.0
    %5984 = vmatprep.subr.mxu0 0.0
    %5985 = vmatpush1.msra.mxu0 0.0
    %5986 = vmatprep.subr.mxu0 0.0
    %5987 = vmatpush1.msra.mxu0 0.0
    %5988 = vmatprep.subr.mxu0 0.0
    %5989 = vmatpush1.msra.mxu0 0.0
    %5990 = vmatprep.subr.mxu0 0.0
    %5991 = vmatpush1.msra.mxu0 0.0
    %5992 = vmatprep.subr.mxu0 0.0
    %5993 = vmatpush1.msra.mxu0 0.0
    %5994 = vmatprep.subr.mxu0 0.0
    %5995 = vmatpush1.msra.mxu0 0.0
    %5996 = vmatprep.subr.mxu0 0.0
    %5997 = vmatpush1.msra.mxu0 0.0
    %5998 = vmatprep.subr.mxu0 0.0
    %5999 = vmatpush1.msra.mxu0 0.0
    %6000 = vmatprep.mubr.f32.mxu0 0.0
    %6001 = vmatmul.mubr.f32.gmra.mrb[0].mxu0 %v5794
    %v6002 = vpop.f32.mrb[0].mxu0
    %v6003 = vadd.f32 %v5814, %v6002
    %v6004 = vpop.f32.mrb[0].mxu0
    %v6005 = vadd.f32 %v5818, %v6004
    %6006 = vmatprep.mubr.f32.mxu0 0.0
    %6007 = vmatmul.mubr.f32.gmra.mrb[0].mxu0 %v5795
    %v6008 = vpop.f32.mrb[0].mxu0
    %v6009 = vadd.f32 %v5814, %v6008
    %v6010 = vpop.f32.mrb[0].mxu0
    %v6011 = vadd.f32 %v5818, %v6010
    %6012 = vmatprep.mubr.f32.mxu0 0.0
    %6013 = vmatmul.mubr.f32.gmra.mrb[0].mxu0 %v5796
    %v6014 = vpop.f32.mrb[0].mxu0
    %v6015 = vadd.f32 %v5814, %v6014
    %v6016 = vpop.f32.mrb[0].mxu0
    %v6017 = vadd.f32 %v5818, %v6016
    %6018 = vmatprep.mubr.f32.mxu0 0.0
    %6019 = vmatmul.mubr.f32.gmra.mrb[0].mxu0 %v5797
    %v6020 = vpop.f32.mrb[0].mxu0
    %v6021 = vadd.f32 %v5814, %v6020
    %v6022 = vpop.f32.mrb[0].mxu0
    %v6023 = vadd.f32 %v5818, %v6022
    %6024 = vmatprep.mubr.f32.mxu0 0.0
    %6025 = vmatmul.mubr.f32.gmra.mrb[0].mxu0 %v5798
    %v6026 = vpop.f32.mrb[0].mxu0
    %v6027 = vadd.f32 %v5814, %v6026
    %v6028 = vpop.f32.mrb[0].mxu0
    %v6029 = vadd.f32 %v5818, %v6028
    %6030 = vmatprep.mubr.f32.mxu0 0.0
    %6031 = vmatmul.mubr.f32.gmra.mrb[0].mxu0 %v5799
    %v6032 = vpop.f32.mrb[0].mxu0
    %v6033 = vadd.f32 %v5814, %v6032
    %v6034 = vpop.f32.mrb[0].mxu0
    %v6035 = vadd.f32 %v5818, %v6034
    %6036 = vmatprep.mubr.f32.mxu0 0.0
    %6037 = vmatmul.mubr.f32.gmra.mrb[0].mxu0 %v5800
    %v6038 = vpop.f32.mrb[0].mxu0
    %v6039 = vadd.f32 %v5814, %v6038
    %v6040 = vpop.f32.mrb[0].mxu0
    %v6041 = vadd.f32 %v5818, %v6040
    %6042 = vmatprep.mubr.f32.mxu0 0.0
    %6043 = vmatmul.mubr.f32.gmra.mrb[0].mxu0 %v5801
    %v6044 = vpop.f32.mrb[0].mxu0
    %v6045 = vadd.f32 %v5814, %v6044
    %v6046 = vpop.f32.mrb[0].mxu0
    %v6047 = vadd.f32 %v5818, %v6046
    %6048 = vdwg.mxu0
    %6049 = vst [vmem:[#allocation3] sm:$0xff] %v5890
    %6050 = vst [vmem:[#allocation3 + $0x8] sm:$0xff] %v5892
    %6051 = vst [vmem:[#allocation3 + $0x10] sm:$0xff] %v6003
    %6052 = vst [vmem:[#allocation3 + $0x18] sm:$0xff] %v6005
    %6053 = vst [vmem:[#allocation3 + $0x20] sm:$0xff] %v5896
    %6054 = vst [vmem:[#allocation3 + $0x28] sm:$0xff] %v5898
    %6055 = vst [vmem:[#allocation3 + $0x30] sm:$0xff] %v6009
    %6056 = vst [vmem:[#allocation3 + $0x38] sm:$0xff] %v6011
    %6057 = vst [vmem:[#allocation3 + $0x40] sm:$0xff] %v5902
    %6058 = vst [vmem:[#allocation3 + $0x48] sm:$0xff] %v5904
    %6059 = vst [vmem:[#allocation3 + $0x50] sm:$0xff] %v6015
    %6060 = vst [vmem:[#allocation3 + $0x58] sm:$0xff] %v6017
    %6061 = vst [vmem:[#allocation3 + $0x60] sm:$0xff] %v5908
    %6062 = vst [vmem:[#allocation3 + $0x68] sm:$0xff] %v5910
    %6063 = vst [vmem:[#allocation3 + $0x70] sm:$0xff] %v6021
    %6064 = vst [vmem:[#allocation3 + $0x78] sm:$0xff] %v6023
    %6065 = vst [vmem:[#allocation3 + $0x80] sm:$0xff] %v5914
    %6066 = vst [vmem:[#allocation3 + $0x88] sm:$0xff] %v5916
    %6067 = vst [vmem:[#allocation3 + $0x90] sm:$0xff] %v6027
    %6068 = vst [vmem:[#allocation3 + $0x98] sm:$0xff] %v6029
    %6069 = vst [vmem:[#allocation3 + $0xa0] sm:$0xff] %v5920
    %6070 = vst [vmem:[#allocation3 + $0xa8] sm:$0xff] %v5922
    %6071 = vst [vmem:[#allocation3 + $0xb0] sm:$0xff] %v6033
    %6072 = vst [vmem:[#allocation3 + $0xb8] sm:$0xff] %v6035
    %6073 = vst [vmem:[#allocation3 + $0xc0] sm:$0xff] %v5926
    %6074 = vst [vmem:[#allocation3 + $0xc8] sm:$0xff] %v5928
    %6075 = vst [vmem:[#allocation3 + $0xd0] sm:$0xff] %v6039
    %6076 = vst [vmem:[#allocation3 + $0xd8] sm:$0xff] %v6041
    %6077 = vst [vmem:[#allocation3 + $0xe0] sm:$0xff] %v5932
    %6078 = vst [vmem:[#allocation3 + $0xe8] sm:$0xff] %v5934
    %6079 = vst [vmem:[#allocation3 + $0xf0] sm:$0xff] %v6045
    %6080 = vst [vmem:[#allocation3 + $0xf8] sm:$0xff] %v6047
    %6081 = vst [vmem:[#allocation4] sm:$0xff] 0.0
    %6082 = vst [vmem:[#allocation5] sm:$0xff] 0.0
    %v6083 = vld [vmem:[#allocation3] sm:$0xff]
    %v6084 = vld [vmem:[#allocation3 + $0x8] sm:$0xff]
    %v6085 = vld [vmem:[#allocation3 + $0x10] sm:$0xff]
    %v6086 = vld [vmem:[#allocation3 + $0x18] sm:$0xff]
    %v6087 = vld [vmem:[#allocation4] sm:$0xff]
    %6088 = vmatprep.subr.mxu0 %v5729
    %6089 = vmatpush1.msra.mxu0 %v5728
    %6090 = vmatprep.subr.mxu0 %v5733
    %6091 = vmatpush1.msra.mxu0 %v5732
    %6092 = vmatprep.subr.mxu0 %v5737
    %6093 = vmatpush1.msra.mxu0 %v5736
    %6094 = vmatprep.subr.mxu0 %v5741
    %6095 = vmatpush1.msra.mxu0 %v5740
    %6096 = vmatprep.subr.mxu0 %v5745
    %6097 = vmatpush1.msra.mxu0 %v5744
    %6098 = vmatprep.subr.mxu0 %v5749
    %6099 = vmatpush1.msra.mxu0 %v5748
    %6100 = vmatprep.subr.mxu0 %v5753
    %6101 = vmatpush1.msra.mxu0 %v5752
    %6102 = vmatprep.subr.mxu0 %v5757
    %6103 = vmatpush1.msra.mxu0 %v5756
    %6104 = vmatprep.subr.mxu0 %v5761
    %6105 = vmatpush1.msra.mxu0 %v5760
    %6106 = vmatprep.subr.mxu0 %v5765
    %6107 = vmatpush1.msra.mxu0 %v5764
    %6108 = vmatprep.subr.mxu0 %v5769
    %6109 = vmatpush1.msra.mxu0 %v5768
    %6110 = vmatprep.subr.mxu0 %v5773
    %6111 = vmatpush1.msra.mxu0 %v5772
    %6112 = vmatprep.subr.mxu0 %v5777
    %6113 = vmatpush1.msra.mxu0 %v5776
    %6114 = vmatprep.subr.mxu0 %v5781
    %6115 = vmatpush1.msra.mxu0 %v5780
    %6116 = vmatprep.subr.mxu0 %v5785
    %6117 = vmatpush1.msra.mxu0 %v5784
    %6118 = vmatprep.subr.mxu0 %v5789
    %6119 = vmatpush1.msra.mxu0 %v5788
    %6120 = vmatprep.subr.mxu0 0.0
    %6121 = vmatpush1.msra.mxu0 0.0
    %6122 = vmatprep.subr.mxu0 0.0
    %6123 = vmatpush1.msra.mxu0 0.0
    %6124 = vmatprep.subr.mxu0 0.0
    %6125 = vmatpush1.msra.mxu0 0.0
    %6126 = vmatprep.subr.mxu0 0.0
    %6127 = vmatpush1.msra.mxu0 0.0
    %6128 = vmatprep.subr.mxu0 0.0
    %6129 = vmatpush1.msra.mxu0 0.0
    %6130 = vmatprep.subr.mxu0 0.0
    %6131 = vmatpush1.msra.mxu0 0.0
    %6132 = vmatprep.subr.mxu0 0.0
    %6133 = vmatpush1.msra.mxu0 0.0
    %6134 = vmatprep.subr.mxu0 0.0
    %6135 = vmatpush1.msra.mxu0 0.0
    %6136 = vmatprep.subr.mxu0 0.0
    %6137 = vmatpush1.msra.mxu0 0.0
    %6138 = vmatprep.subr.mxu0 0.0
    %6139 = vmatpush1.msra.mxu0 0.0
    %6140 = vmatprep.subr.mxu0 0.0
    %6141 = vmatpush1.msra.mxu0 0.0
    %6142 = vmatprep.subr.mxu0 0.0
    %6143 = vmatpush1.msra.mxu0 0.0
    %6144 = vmatprep.subr.mxu0 0.0
    %6145 = vmatpush1.msra.mxu0 0.0
    %6146 = vmatprep.subr.mxu0 0.0
    %6147 = vmatpush1.msra.mxu0 0.0
    %6148 = vmatprep.subr.mxu0 0.0
    %6149 = vmatpush1.msra.mxu0 0.0
    %6150 = vmatprep.subr.mxu0 0.0
    %6151 = vmatpush1.msra.mxu0 0.0
    %6152 = vmatprep.mubr.f32.mxu0 0.0
    %6153 = vmatmul.mubr.f32.gmra.mrb[0].mxu0 %v6087
    %v6154 = vpop.f32.mrb[0].mxu0
    %v6155 = vadd.f32 0.0, %v6154
    %v6156 = vpop.f32.mrb[0].mxu0
    %v6157 = vadd.f32 0.0, %v6156
    %6158 = vdwg.mxu0
    %6159 = vmatprep.subr.mxu0 %v5731
    %6160 = vmatpush1.msra.mxu0 %v5730
    %6161 = vmatprep.subr.mxu0 %v5735
    %6162 = vmatpush1.msra.mxu0 %v5734
    %6163 = vmatprep.subr.mxu0 %v5739
    %6164 = vmatpush1.msra.mxu0 %v5738
    %6165 = vmatprep.subr.mxu0 %v5743
    %6166 = vmatpush1.msra.mxu0 %v5742
    %6167 = vmatprep.subr.mxu0 %v5747
    %6168 = vmatpush1.msra.mxu0 %v5746
    %6169 = vmatprep.subr.mxu0 %v5751
    %6170 = vmatpush1.msra.mxu0 %v5750
    %6171 = vmatprep.subr.mxu0 %v5755
    %6172 = vmatpush1.msra.mxu0 %v5754
    %6173 = vmatprep.subr.mxu0 %v5759
    %6174 = vmatpush1.msra.mxu0 %v5758
    %6175 = vmatprep.subr.mxu0 %v5763
    %6176 = vmatpush1.msra.mxu0 %v5762
    %6177 = vmatprep.subr.mxu0 %v5767
    %6178 = vmatpush1.msra.mxu0 %v5766
    %6179 = vmatprep.subr.mxu0 %v5771
    %6180 = vmatpush1.msra.mxu0 %v5770
    %6181 = vmatprep.subr.mxu0 %v5775
    %6182 = vmatpush1.msra.mxu0 %v5774
    %6183 = vmatprep.subr.mxu0 %v5779
    %6184 = vmatpush1.msra.mxu0 %v5778
    %6185 = vmatprep.subr.mxu0 %v5783
    %6186 = vmatpush1.msra.mxu0 %v5782
    %6187 = vmatprep.subr.mxu0 %v5787
    %6188 = vmatpush1.msra.mxu0 %v5786
    %6189 = vmatprep.subr.mxu0 %v5791
    %6190 = vmatpush1.msra.mxu0 %v5790
    %6191 = vmatprep.subr.mxu0 0.0
    %6192 = vmatpush1.msra.mxu0 0.0
    %6193 = vmatprep.subr.mxu0 0.0
    %6194 = vmatpush1.msra.mxu0 0.0
    %6195 = vmatprep.subr.mxu0 0.0
    %6196 = vmatpush1.msra.mxu0 0.0
    %6197 = vmatprep.subr.mxu0 0.0
    %6198 = vmatpush1.msra.mxu0 0.0
    %6199 = vmatprep.subr.mxu0 0.0
    %6200 = vmatpush1.msra.mxu0 0.0
    %6201 = vmatprep.subr.mxu0 0.0
    %6202 = vmatpush1.msra.mxu0 0.0
    %6203 = vmatprep.subr.mxu0 0.0
    %6204 = vmatpush1.msra.mxu0 0.0
    %6205 = vmatprep.subr.mxu0 0.0
    %6206 = vmatpush1.msra.mxu0 0.0
    %6207 = vmatprep.subr.mxu0 0.0
    %6208 = vmatpush1.msra.mxu0 0.0
    %6209 = vmatprep.subr.mxu0 0.0
    %6210 = vmatpush1.msra.mxu0 0.0
    %6211 = vmatprep.subr.mxu0 0.0
    %6212 = vmatpush1.msra.mxu0 0.0
    %6213 = vmatprep.subr.mxu0 0.0
    %6214 = vmatpush1.msra.mxu0 0.0
    %6215 = vmatprep.subr.mxu0 0.0
    %6216 = vmatpush1.msra.mxu0 0.0
    %6217 = vmatprep.subr.mxu0 0.0
    %6218 = vmatpush1.msra.mxu0 0.0
    %6219 = vmatprep.subr.mxu0 0.0
    %6220 = vmatpush1.msra.mxu0 0.0
    %6221 = vmatprep.subr.mxu0 0.0
    %6222 = vmatpush1.msra.mxu0 0.0
    %6223 = vmatprep.mubr.f32.mxu0 0.0
    %6224 = vmatmul.mubr.f32.gmra.mrb[0].mxu0 %v6087
    %v6225 = vpop.f32.mrb[0].mxu0
    %v6226 = vadd.f32 0.0, %v6225
    %v6227 = vpop.f32.mrb[0].mxu0
    %v6228 = vadd.f32 0.0, %v6227
    %6229 = vdwg.mxu0
    %v6230 = vadd.f32 %v6083, %v6155
    %v6231 = vadd.f32 %v6084, %v6157
    %v6232 = vadd.f32 %v6085, %v6226
    %v6233 = vadd.f32 %v6086, %v6228
    %v6234 = vxor.u32 %v6230, 2147483648
    %v6235 = vmul.f32 %v6234, 1.442695
    %v6236 = vpow.pop %v6235
    %v6237 = vadd.f32 %v6236, 1.0
    %v6238 = vrcp.pop %v6237
    %v6239 = vmul.f32 1.0, %v6238
    %v6240 = vxor.u32 %v6231, 2147483648
    %v6241 = vmul.f32 %v6240, 1.442695
    %v6242 = vpow.pop %v6241
    %v6243 = vadd.f32 %v6242, 1.0
    %v6244 = vrcp.pop %v6243
    %v6245 = vmul.f32 1.0, %v6244
    %v6246 = vtanh.pop %v6232
    %v6247 = vxor.u32 %v6233, 2147483648
    %v6248 = vmul.f32 %v6247, 1.442695
    %v6249 = vpow.pop %v6248
    %v6250 = vadd.f32 %v6249, 1.0
    %v6251 = vrcp.pop %v6250
    %v6252 = vmul.f32 1.0, %v6251
    %v6253 = vld [vmem:[#allocation5] sm:$0xff]
    %v6254 = vmul.f32 %v6245, %v6253
    %v6255 = vmul.f32 %v6239, %v6246
    %v6256 = vadd.f32 %v6254, %v6255
    %v6257 = vtanh.pop %v6256
    %v6258 = vmul.f32 %v6252, %v6257
    %6259 = vst [vmem:[#allocation5] sm:$0xff] %v6256
    %6260 = vst [vmem:[#allocation4] sm:$0xff] %v6258
    %6261 = vst [vmem:[#allocation2] sm:$0xff] %v6258
    %v6262 = vld [vmem:[%s689] sm:$0xff]
    %v6263 = vld [vmem:[%s689 + $0x8] sm:$0xff]
    %v6264 = vld [vmem:[%s689 + $0x10] sm:$0xff]
    %v6265 = vld [vmem:[%s689 + $0x18] sm:$0xff]
    %v6266 = vld [vmem:[#allocation4] sm:$0xff]
    %6267 = vmatprep.subr.mxu0 %v5729
    %6268 = vmatpush1.msra.mxu0 %v5728
    %6269 = vmatprep.subr.mxu0 %v5733
    %6270 = vmatpush1.msra.mxu0 %v5732
    %6271 = vmatprep.subr.mxu0 %v5737
    %6272 = vmatpush1.msra.mxu0 %v5736
    %6273 = vmatprep.subr.mxu0 %v5741
    %6274 = vmatpush1.msra.mxu0 %v5740
    %6275 = vmatprep.subr.mxu0 %v5745
    %6276 = vmatpush1.msra.mxu0 %v5744
    %6277 = vmatprep.subr.mxu0 %v5749
    %6278 = vmatpush1.msra.mxu0 %v5748
    %6279 = vmatprep.subr.mxu0 %v5753
    %6280 = vmatpush1.msra.mxu0 %v5752
    %6281 = vmatprep.subr.mxu0 %v5757
    %6282 = vmatpush1.msra.mxu0 %v5756
    %6283 = vmatprep.subr.mxu0 %v5761
    %6284 = vmatpush1.msra.mxu0 %v5760
    %6285 = vmatprep.subr.mxu0 %v5765
    %6286 = vmatpush1.msra.mxu0 %v5764
    %6287 = vmatprep.subr.mxu0 %v5769
    %6288 = vmatpush1.msra.mxu0 %v5768
    %6289 = vmatprep.subr.mxu0 %v5773
    %6290 = vmatpush1.msra.mxu0 %v5772
    %6291 = vmatprep.subr.mxu0 %v5777
    %6292 = vmatpush1.msra.mxu0 %v5776
    %6293 = vmatprep.subr.mxu0 %v5781
    %6294 = vmatpush1.msra.mxu0 %v5780
    %6295 = vmatprep.subr.mxu0 %v5785
    %6296 = vmatpush1.msra.mxu0 %v5784
    %6297 = vmatprep.subr.mxu0 %v5789
    %6298 = vmatpush1.msra.mxu0 %v5788
    %6299 = vmatprep.subr.mxu0 0.0
    %6300 = vmatpush1.msra.mxu0 0.0
    %6301 = vmatprep.subr.mxu0 0.0
    %6302 = vmatpush1.msra.mxu0 0.0
    %6303 = vmatprep.subr.mxu0 0.0
    %6304 = vmatpush1.msra.mxu0 0.0
    %6305 = vmatprep.subr.mxu0 0.0
    %6306 = vmatpush1.msra.mxu0 0.0
    %6307 = vmatprep.subr.mxu0 0.0
    %6308 = vmatpush1.msra.mxu0 0.0
    %6309 = vmatprep.subr.mxu0 0.0
    %6310 = vmatpush1.msra.mxu0 0.0
    %6311 = vmatprep.subr.mxu0 0.0
    %6312 = vmatpush1.msra.mxu0 0.0
    %6313 = vmatprep.subr.mxu0 0.0
    %6314 = vmatpush1.msra.mxu0 0.0
    %6315 = vmatprep.subr.mxu0 0.0
    %6316 = vmatpush1.msra.mxu0 0.0
    %6317 = vmatprep.subr.mxu0 0.0
    %6318 = vmatpush1.msra.mxu0 0.0
    %6319 = vmatprep.subr.mxu0 0.0
    %6320 = vmatpush1.msra.mxu0 0.0
    %6321 = vmatprep.subr.mxu0 0.0
    %6322 = vmatpush1.msra.mxu0 0.0
    %6323 = vmatprep.subr.mxu0 0.0
    %6324 = vmatpush1.msra.mxu0 0.0
    %6325 = vmatprep.subr.mxu0 0.0
    %6326 = vmatpush1.msra.mxu0 0.0
    %6327 = vmatprep.subr.mxu0 0.0
    %6328 = vmatpush1.msra.mxu0 0.0
    %6329 = vmatprep.subr.mxu0 0.0
    %6330 = vmatpush1.msra.mxu0 0.0
    %6331 = vmatprep.mubr.f32.mxu0 0.0
    %6332 = vmatmul.mubr.f32.gmra.mrb[0].mxu0 %v6266
    %v6333 = vpop.f32.mrb[0].mxu0
    %v6334 = vadd.f32 0.0, %v6333
    %v6335 = vpop.f32.mrb[0].mxu0
    %v6336 = vadd.f32 0.0, %v6335
    %6337 = vdwg.mxu0
    %6338 = vmatprep.subr.mxu0 %v5731
    %6339 = vmatpush1.msra.mxu0 %v5730
    %6340 = vmatprep.subr.mxu0 %v5735
    %6341 = vmatpush1.msra.mxu0 %v5734
    %6342 = vmatprep.subr.mxu0 %v5739
    %6343 = vmatpush1.msra.mxu0 %v5738
    %6344 = vmatprep.subr.mxu0 %v5743
    %6345 = vmatpush1.msra.mxu0 %v5742
    %6346 = vmatprep.subr.mxu0 %v5747
    %6347 = vmatpush1.msra.mxu0 %v5746
    %6348 = vmatprep.subr.mxu0 %v5751
    %6349 = vmatpush1.msra.mxu0 %v5750
    %6350 = vmatprep.subr.mxu0 %v5755
    %6351 = vmatpush1.msra.mxu0 %v5754
    %6352 = vmatprep.subr.mxu0 %v5759
    %6353 = vmatpush1.msra.mxu0 %v5758
    %6354 = vmatprep.subr.mxu0 %v5763
    %6355 = vmatpush1.msra.mxu0 %v5762
    %6356 = vmatprep.subr.mxu0 %v5767
    %6357 = vmatpush1.msra.mxu0 %v5766
    %6358 = vmatprep.subr.mxu0 %v5771
    %6359 = vmatpush1.msra.mxu0 %v5770
    %6360 = vmatprep.subr.mxu0 %v5775
    %6361 = vmatpush1.msra.mxu0 %v5774
    %6362 = vmatprep.subr.mxu0 %v5779
    %6363 = vmatpush1.msra.mxu0 %v5778
    %6364 = vmatprep.subr.mxu0 %v5783
    %6365 = vmatpush1.msra.mxu0 %v5782
    %6366 = vmatprep.subr.mxu0 %v5787
    %6367 = vmatpush1.msra.mxu0 %v5786
    %6368 = vmatprep.subr.mxu0 %v5791
    %6369 = vmatpush1.msra.mxu0 %v5790
    %6370 = vmatprep.subr.mxu0 0.0
    %6371 = vmatpush1.msra.mxu0 0.0
    %6372 = vmatprep.subr.mxu0 0.0
    %6373 = vmatpush1.msra.mxu0 0.0
    %6374 = vmatprep.subr.mxu0 0.0
    %6375 = vmatpush1.msra.mxu0 0.0
    %6376 = vmatprep.subr.mxu0 0.0
    %6377 = vmatpush1.msra.mxu0 0.0
    %6378 = vmatprep.subr.mxu0 0.0
    %6379 = vmatpush1.msra.mxu0 0.0
    %6380 = vmatprep.subr.mxu0 0.0
    %6381 = vmatpush1.msra.mxu0 0.0
    %6382 = vmatprep.subr.mxu0 0.0
    %6383 = vmatpush1.msra.mxu0 0.0
    %6384 = vmatprep.subr.mxu0 0.0
    %6385 = vmatpush1.msra.mxu0 0.0
    %6386 = vmatprep.subr.mxu0 0.0
    %6387 = vmatpush1.msra.mxu0 0.0
    %6388 = vmatprep.subr.mxu0 0.0
    %6389 = vmatpush1.msra.mxu0 0.0
    %6390 = vmatprep.subr.mxu0 0.0
    %6391 = vmatpush1.msra.mxu0 0.0
    %6392 = vmatprep.subr.mxu0 0.0
    %6393 = vmatpush1.msra.mxu0 0.0
    %6394 = vmatprep.subr.mxu0 0.0
    %6395 = vmatpush1.msra.mxu0 0.0
    %6396 = vmatprep.subr.mxu0 0.0
    %6397 = vmatpush1.msra.mxu0 0.0
    %6398 = vmatprep.subr.mxu0 0.0
    %6399 = vmatpush1.msra.mxu0 0.0
    %6400 = vmatprep.subr.mxu0 0.0
    %6401 = vmatpush1.msra.mxu0 0.0
    %6402 = vmatprep.mubr.f32.mxu0 0.0
    %6403 = vmatmul.mubr.f32.gmra.mrb[0].mxu0 %v6266
    %v6404 = vpop.f32.mrb[0].mxu0
    %v6405 = vadd.f32 0.0, %v6404
    %v6406 = vpop.f32.mrb[0].mxu0
    %v6407 = vadd.f32 0.0, %v6406
    %6408 = vdwg.mxu0
    %v6409 = vadd.f32 %v6262, %v6334
    %v6410 = vadd.f32 %v6263, %v6336
    %v6411 = vadd.f32 %v6264, %v6405
    %v6412 = vadd.f32 %v6265, %v6407
    %v6413 = vxor.u32 %v6409, 2147483648
    %v6414 = vmul.f32 %v6413, 1.442695
    %v6415 = vpow.pop %v6414
    %v6416 = vadd.f32 %v6415, 1.0
    %v6417 = vrcp.pop %v6416
    %v6418 = vmul.f32 1.0, %v6417
    %v6419 = vxor.u32 %v6410, 2147483648
    %v6420 = vmul.f32 %v6419, 1.442695
    %v6421 = vpow.pop %v6420
    %v6422 = vadd.f32 %v6421, 1.0
    %v6423 = vrcp.pop %v6422
    %v6424 = vmul.f32 1.0, %v6423
    %v6425 = vtanh.pop %v6411
    %v6426 = vxor.u32 %v6412, 2147483648
    %v6427 = vmul.f32 %v6426, 1.442695
    %v6428 = vpow.pop %v6427
    %v6429 = vadd.f32 %v6428, 1.0
    %v6430 = vrcp.pop %v6429
    %v6431 = vmul.f32 1.0, %v6430
    %v6432 = vld [vmem:[#allocation5] sm:$0xff]
    %v6433 = vmul.f32 %v6424, %v6432
    %v6434 = vmul.f32 %v6418, %v6425
    %v6435 = vadd.f32 %v6433, %v6434
    %v6436 = vtanh.pop %v6435
    %v6437 = vmul.f32 %v6431, %v6436
    %6438 = vst [vmem:[#allocation5] sm:$0xff] %v6435
    %6439 = vst [vmem:[#allocation4] sm:$0xff] %v6437
    %6440 = vst [vmem:[%s868] sm:$0xff] %v6437
    %v6441 = vld [vmem:[%s870] sm:$0xff]
    %v6442 = vld [vmem:[%s870 + $0x8] sm:$0xff]
    %v6443 = vld [vmem:[%s870 + $0x10] sm:$0xff]
    %v6444 = vld [vmem:[%s870 + $0x18] sm:$0xff]
    %v6445 = vld [vmem:[#allocation4] sm:$0xff]
    %6446 = vmatprep.subr.mxu0 %v5729
    %6447 = vmatpush1.msra.mxu0 %v5728
    %6448 = vmatprep.subr.mxu0 %v5733
    %6449 = vmatpush1.msra.mxu0 %v5732
    %6450 = vmatprep.subr.mxu0 %v5737
    %6451 = vmatpush1.msra.mxu0 %v5736
    %6452 = vmatprep.subr.mxu0 %v5741
    %6453 = vmatpush1.msra.mxu0 %v5740
    %6454 = vmatprep.subr.mxu0 %v5745
    %6455 = vmatpush1.msra.mxu0 %v5744
    %6456 = vmatprep.subr.mxu0 %v5749
    %6457 = vmatpush1.msra.mxu0 %v5748
    %6458 = vmatprep.subr.mxu0 %v5753
    %6459 = vmatpush1.msra.mxu0 %v5752
    %6460 = vmatprep.subr.mxu0 %v5757
    %6461 = vmatpush1.msra.mxu0 %v5756
    %6462 = vmatprep.subr.mxu0 %v5761
    %6463 = vmatpush1.msra.mxu0 %v5760
    %6464 = vmatprep.subr.mxu0 %v5765
    %6465 = vmatpush1.msra.mxu0 %v5764
    %6466 = vmatprep.subr.mxu0 %v5769
    %6467 = vmatpush1.msra.mxu0 %v5768
    %6468 = vmatprep.subr.mxu0 %v5773
    %6469 = vmatpush1.msra.mxu0 %v5772
    %6470 = vmatprep.subr.mxu0 %v5777
    %6471 = vmatpush1.msra.mxu0 %v5776
    %6472 = vmatprep.subr.mxu0 %v5781
    %6473 = vmatpush1.msra.mxu0 %v5780
    %6474 = vmatprep.subr.mxu0 %v5785
    %6475 = vmatpush1.msra.mxu0 %v5784
    %6476 = vmatprep.subr.mxu0 %v5789
    %6477 = vmatpush1.msra.mxu0 %v5788
    %6478 = vmatprep.subr.mxu0 0.0
    %6479 = vmatpush1.msra.mxu0 0.0
    %6480 = vmatprep.subr.mxu0 0.0
    %6481 = vmatpush1.msra.mxu0 0.0
    %6482 = vmatprep.subr.mxu0 0.0
    %6483 = vmatpush1.msra.mxu0 0.0
    %6484 = vmatprep.subr.mxu0 0.0
    %6485 = vmatpush1.msra.mxu0 0.0
    %6486 = vmatprep.subr.mxu0 0.0
    %6487 = vmatpush1.msra.mxu0 0.0
    %6488 = vmatprep.subr.mxu0 0.0
    %6489 = vmatpush1.msra.mxu0 0.0
    %6490 = vmatprep.subr.mxu0 0.0
    %6491 = vmatpush1.msra.mxu0 0.0
    %6492 = vmatprep.subr.mxu0 0.0
    %6493 = vmatpush1.msra.mxu0 0.0
    %6494 = vmatprep.subr.mxu0 0.0
    %6495 = vmatpush1.msra.mxu0 0.0
    %6496 = vmatprep.subr.mxu0 0.0
    %6497 = vmatpush1.msra.mxu0 0.0
    %6498 = vmatprep.subr.mxu0 0.0
    %6499 = vmatpush1.msra.mxu0 0.0
    %6500 = vmatprep.subr.mxu0 0.0
    %6501 = vmatpush1.msra.mxu0 0.0
    %6502 = vmatprep.subr.mxu0 0.0
    %6503 = vmatpush1.msra.mxu0 0.0
    %6504 = vmatprep.subr.mxu0 0.0
    %6505 = vmatpush1.msra.mxu0 0.0
    %6506 = vmatprep.subr.mxu0 0.0
    %6507 = vmatpush1.msra.mxu0 0.0
    %6508 = vmatprep.subr.mxu0 0.0
    %6509 = vmatpush1.msra.mxu0 0.0
    %6510 = vmatprep.mubr.f32.mxu0 0.0
    %6511 = vmatmul.mubr.f32.gmra.mrb[0].mxu0 %v6445
    %v6512 = vpop.f32.mrb[0].mxu0
    %v6513 = vadd.f32 0.0, %v6512
    %v6514 = vpop.f32.mrb[0].mxu0
    %v6515 = vadd.f32 0.0, %v6514
    %6516 = vdwg.mxu0
    %6517 = vmatprep.subr.mxu0 %v5731
    %6518 = vmatpush1.msra.mxu0 %v5730
    %6519 = vmatprep.subr.mxu0 %v5735
    %6520 = vmatpush1.msra.mxu0 %v5734
    %6521 = vmatprep.subr.mxu0 %v5739
    %6522 = vmatpush1.msra.mxu0 %v5738
    %6523 = vmatprep.subr.mxu0 %v5743
    %6524 = vmatpush1.msra.mxu0 %v5742
    %6525 = vmatprep.subr.mxu0 %v5747
    %6526 = vmatpush1.msra.mxu0 %v5746
    %6527 = vmatprep.subr.mxu0 %v5751
    %6528 = vmatpush1.msra.mxu0 %v5750
    %6529 = vmatprep.subr.mxu0 %v5755
    %6530 = vmatpush1.msra.mxu0 %v5754
    %6531 = vmatprep.subr.mxu0 %v5759
    %6532 = vmatpush1.msra.mxu0 %v5758
    %6533 = vmatprep.subr.mxu0 %v5763
    %6534 = vmatpush1.msra.mxu0 %v5762
    %6535 = vmatprep.subr.mxu0 %v5767
    %6536 = vmatpush1.msra.mxu0 %v5766
    %6537 = vmatprep.subr.mxu0 %v5771
    %6538 = vmatpush1.msra.mxu0 %v5770
    %6539 = vmatprep.subr.mxu0 %v5775
    %6540 = vmatpush1.msra.mxu0 %v5774
    %6541 = vmatprep.subr.mxu0 %v5779
    %6542 = vmatpush1.msra.mxu0 %v5778
    %6543 = vmatprep.subr.mxu0 %v5783
    %6544 = vmatpush1.msra.mxu0 %v5782
    %6545 = vmatprep.subr.mxu0 %v5787
    %6546 = vmatpush1.msra.mxu0 %v5786
    %6547 = vmatprep.subr.mxu0 %v5791
    %6548 = vmatpush1.msra.mxu0 %v5790
    %6549 = vmatprep.subr.mxu0 0.0
    %6550 = vmatpush1.msra.mxu0 0.0
    %6551 = vmatprep.subr.mxu0 0.0
    %6552 = vmatpush1.msra.mxu0 0.0
    %6553 = vmatprep.subr.mxu0 0.0
    %6554 = vmatpush1.msra.mxu0 0.0
    %6555 = vmatprep.subr.mxu0 0.0
    %6556 = vmatpush1.msra.mxu0 0.0
    %6557 = vmatprep.subr.mxu0 0.0
    %6558 = vmatpush1.msra.mxu0 0.0
    %6559 = vmatprep.subr.mxu0 0.0
    %6560 = vmatpush1.msra.mxu0 0.0
    %6561 = vmatprep.subr.mxu0 0.0
    %6562 = vmatpush1.msra.mxu0 0.0
    %6563 = vmatprep.subr.mxu0 0.0
    %6564 = vmatpush1.msra.mxu0 0.0
    %6565 = vmatprep.subr.mxu0 0.0
    %6566 = vmatpush1.msra.mxu0 0.0
    %6567 = vmatprep.subr.mxu0 0.0
    %6568 = vmatpush1.msra.mxu0 0.0
    %6569 = vmatprep.subr.mxu0 0.0
    %6570 = vmatpush1.msra.mxu0 0.0
    %6571 = vmatprep.subr.mxu0 0.0
    %6572 = vmatpush1.msra.mxu0 0.0
    %6573 = vmatprep.subr.mxu0 0.0
    %6574 = vmatpush1.msra.mxu0 0.0
    %6575 = vmatprep.subr.mxu0 0.0
    %6576 = vmatpush1.msra.mxu0 0.0
    %6577 = vmatprep.subr.mxu0 0.0
    %6578 = vmatpush1.msra.mxu0 0.0
    %6579 = vmatprep.subr.mxu0 0.0
    %6580 = vmatpush1.msra.mxu0 0.0
    %6581 = vmatprep.mubr.f32.mxu0 0.0
    %6582 = vmatmul.mubr.f32.gmra.mrb[0].mxu0 %v6445
    %v6583 = vpop.f32.mrb[0].mxu0
    %v6584 = vadd.f32 0.0, %v6583
    %v6585 = vpop.f32.mrb[0].mxu0
    %v6586 = vadd.f32 0.0, %v6585
    %6587 = vdwg.mxu0
    %v6588 = vadd.f32 %v6441, %v6513
    %v6589 = vadd.f32 %v6442, %v6515
    %v6590 = vadd.f32 %v6443, %v6584
    %v6591 = vadd.f32 %v6444, %v6586
    %v6592 = vxor.u32 %v6588, 2147483648
    %v6593 = vmul.f32 %v6592, 1.442695
    %v6594 = vpow.pop %v6593
    %v6595 = vadd.f32 %v6594, 1.0
    %v6596 = vrcp.pop %v6595
    %v6597 = vmul.f32 1.0, %v6596
    %v6598 = vxor.u32 %v6589, 2147483648
    %v6599 = vmul.f32 %v6598, 1.442695
    %v6600 = vpow.pop %v6599
    %v6601 = vadd.f32 %v6600, 1.0
    %v6602 = vrcp.pop %v6601
    %v6603 = vmul.f32 1.0, %v6602
    %v6604 = vtanh.pop %v6590
    %v6605 = vxor.u32 %v6591, 2147483648
    %v6606 = vmul.f32 %v6605, 1.442695
    %v6607 = vpow.pop %v6606
    %v6608 = vadd.f32 %v6607, 1.0
    %v6609 = vrcp.pop %v6608
    %v6610 = vmul.f32 1.0, %v6609
    %v6611 = vld [vmem:[#allocation5] sm:$0xff]
    %v6612 = vmul.f32 %v6603, %v6611
    %v6613 = vmul.f32 %v6597, %v6604
    %v6614 = vadd.f32 %v6612, %v6613
    %v6615 = vtanh.pop %v6614
    %v6616 = vmul.f32 %v6610, %v6615
    %6617 = vst [vmem:[#allocation5] sm:$0xff] %v6614
    %6618 = vst [vmem:[#allocation4] sm:$0xff] %v6616
    %6619 = vst [vmem:[%s1049] sm:$0xff] %v6616
    %v6620 = vld [vmem:[%s1051] sm:$0xff]
    %v6621 = vld [vmem:[%s1051 + $0x8] sm:$0xff]
    %v6622 = vld [vmem:[%s1051 + $0x10] sm:$0xff]
    %v6623 = vld [vmem:[%s1051 + $0x18] sm:$0xff]
    %v6624 = vld [vmem:[#allocation4] sm:$0xff]
    %6625 = vmatprep.subr.mxu0 %v5729
    %6626 = vmatpush1.msra.mxu0 %v5728
    %6627 = vmatprep.subr.mxu0 %v5733
    %6628 = vmatpush1.msra.mxu0 %v5732
    %6629 = vmatprep.subr.mxu0 %v5737
    %6630 = vmatpush1.msra.mxu0 %v5736
    %6631 = vmatprep.subr.mxu0 %v5741
    %6632 = vmatpush1.msra.mxu0 %v5740
    %6633 = vmatprep.subr.mxu0 %v5745
    %6634 = vmatpush1.msra.mxu0 %v5744
    %6635 = vmatprep.subr.mxu0 %v5749
    %6636 = vmatpush1.msra.mxu0 %v5748
    %6637 = vmatprep.subr.mxu0 %v5753
    %6638 = vmatpush1.msra.mxu0 %v5752
    %6639 = vmatprep.subr.mxu0 %v5757
    %6640 = vmatpush1.msra.mxu0 %v5756
    %6641 = vmatprep.subr.mxu0 %v5761
    %6642 = vmatpush1.msra.mxu0 %v5760
    %6643 = vmatprep.subr.mxu0 %v5765
    %6644 = vmatpush1.msra.mxu0 %v5764
    %6645 = vmatprep.subr.mxu0 %v5769
    %6646 = vmatpush1.msra.mxu0 %v5768
    %6647 = vmatprep.subr.mxu0 %v5773
    %6648 = vmatpush1.msra.mxu0 %v5772
    %6649 = vmatprep.subr.mxu0 %v5777
    %6650 = vmatpush1.msra.mxu0 %v5776
    %6651 = vmatprep.subr.mxu0 %v5781
    %6652 = vmatpush1.msra.mxu0 %v5780
    %6653 = vmatprep.subr.mxu0 %v5785
    %6654 = vmatpush1.msra.mxu0 %v5784
    %6655 = vmatprep.subr.mxu0 %v5789
    %6656 = vmatpush1.msra.mxu0 %v5788
    %6657 = vmatprep.subr.mxu0 0.0
    %6658 = vmatpush1.msra.mxu0 0.0
    %6659 = vmatprep.subr.mxu0 0.0
    %6660 = vmatpush1.msra.mxu0 0.0
    %6661 = vmatprep.subr.mxu0 0.0
    %6662 = vmatpush1.msra.mxu0 0.0
    %6663 = vmatprep.subr.mxu0 0.0
    %6664 = vmatpush1.msra.mxu0 0.0
    %6665 = vmatprep.subr.mxu0 0.0
    %6666 = vmatpush1.msra.mxu0 0.0
    %6667 = vmatprep.subr.mxu0 0.0
    %6668 = vmatpush1.msra.mxu0 0.0
    %6669 = vmatprep.subr.mxu0 0.0
    %6670 = vmatpush1.msra.mxu0 0.0
    %6671 = vmatprep.subr.mxu0 0.0
    %6672 = vmatpush1.msra.mxu0 0.0
    %6673 = vmatprep.subr.mxu0 0.0
    %6674 = vmatpush1.msra.mxu0 0.0
    %6675 = vmatprep.subr.mxu0 0.0
    %6676 = vmatpush1.msra.mxu0 0.0
    %6677 = vmatprep.subr.mxu0 0.0
    %6678 = vmatpush1.msra.mxu0 0.0
    %6679 = vmatprep.subr.mxu0 0.0
    %6680 = vmatpush1.msra.mxu0 0.0
    %6681 = vmatprep.subr.mxu0 0.0
    %6682 = vmatpush1.msra.mxu0 0.0
    %6683 = vmatprep.subr.mxu0 0.0
    %6684 = vmatpush1.msra.mxu0 0.0
    %6685 = vmatprep.subr.mxu0 0.0
    %6686 = vmatpush1.msra.mxu0 0.0
    %6687 = vmatprep.subr.mxu0 0.0
    %6688 = vmatpush1.msra.mxu0 0.0
    %6689 = vmatprep.mubr.f32.mxu0 0.0
    %6690 = vmatmul.mubr.f32.gmra.mrb[0].mxu0 %v6624
    %v6691 = vpop.f32.mrb[0].mxu0
    %v6692 = vadd.f32 0.0, %v6691
    %v6693 = vpop.f32.mrb[0].mxu0
    %v6694 = vadd.f32 0.0, %v6693
    %6695 = vdwg.mxu0
    %6696 = vmatprep.subr.mxu0 %v5731
    %6697 = vmatpush1.msra.mxu0 %v5730
    %6698 = vmatprep.subr.mxu0 %v5735
    %6699 = vmatpush1.msra.mxu0 %v5734
    %6700 = vmatprep.subr.mxu0 %v5739
    %6701 = vmatpush1.msra.mxu0 %v5738
    %6702 = vmatprep.subr.mxu0 %v5743
    %6703 = vmatpush1.msra.mxu0 %v5742
    %6704 = vmatprep.subr.mxu0 %v5747
    %6705 = vmatpush1.msra.mxu0 %v5746
    %6706 = vmatprep.subr.mxu0 %v5751
    %6707 = vmatpush1.msra.mxu0 %v5750
    %6708 = vmatprep.subr.mxu0 %v5755
    %6709 = vmatpush1.msra.mxu0 %v5754
    %6710 = vmatprep.subr.mxu0 %v5759
    %6711 = vmatpush1.msra.mxu0 %v5758
    %6712 = vmatprep.subr.mxu0 %v5763
    %6713 = vmatpush1.msra.mxu0 %v5762
    %6714 = vmatprep.subr.mxu0 %v5767
    %6715 = vmatpush1.msra.mxu0 %v5766
    %6716 = vmatprep.subr.mxu0 %v5771
    %6717 = vmatpush1.msra.mxu0 %v5770
    %6718 = vmatprep.subr.mxu0 %v5775
    %6719 = vmatpush1.msra.mxu0 %v5774
    %6720 = vmatprep.subr.mxu0 %v5779
    %6721 = vmatpush1.msra.mxu0 %v5778
    %6722 = vmatprep.subr.mxu0 %v5783
    %6723 = vmatpush1.msra.mxu0 %v5782
    %6724 = vmatprep.subr.mxu0 %v5787
    %6725 = vmatpush1.msra.mxu0 %v5786
    %6726 = vmatprep.subr.mxu0 %v5791
    %6727 = vmatpush1.msra.mxu0 %v5790
    %6728 = vmatprep.subr.mxu0 0.0
    %6729 = vmatpush1.msra.mxu0 0.0
    %6730 = vmatprep.subr.mxu0 0.0
    %6731 = vmatpush1.msra.mxu0 0.0
    %6732 = vmatprep.subr.mxu0 0.0
    %6733 = vmatpush1.msra.mxu0 0.0
    %6734 = vmatprep.subr.mxu0 0.0
    %6735 = vmatpush1.msra.mxu0 0.0
    %6736 = vmatprep.subr.mxu0 0.0
    %6737 = vmatpush1.msra.mxu0 0.0
    %6738 = vmatprep.subr.mxu0 0.0
    %6739 = vmatpush1.msra.mxu0 0.0
    %6740 = vmatprep.subr.mxu0 0.0
    %6741 = vmatpush1.msra.mxu0 0.0
    %6742 = vmatprep.subr.mxu0 0.0
    %6743 = vmatpush1.msra.mxu0 0.0
    %6744 = vmatprep.subr.mxu0 0.0
    %6745 = vmatpush1.msra.mxu0 0.0
    %6746 = vmatprep.subr.mxu0 0.0
    %6747 = vmatpush1.msra.mxu0 0.0
    %6748 = vmatprep.subr.mxu0 0.0
    %6749 = vmatpush1.msra.mxu0 0.0
    %6750 = vmatprep.subr.mxu0 0.0
    %6751 = vmatpush1.msra.mxu0 0.0
    %6752 = vmatprep.subr.mxu0 0.0
    %6753 = vmatpush1.msra.mxu0 0.0
    %6754 = vmatprep.subr.mxu0 0.0
    %6755 = vmatpush1.msra.mxu0 0.0
    %6756 = vmatprep.subr.mxu0 0.0
    %6757 = vmatpush1.msra.mxu0 0.0
    %6758 = vmatprep.subr.mxu0 0.0
    %6759 = vmatpush1.msra.mxu0 0.0
    %6760 = vmatprep.mubr.f32.mxu0 0.0
    %6761 = vmatmul.mubr.f32.gmra.mrb[0].mxu0 %v6624
    %v6762 = vpop.f32.mrb[0].mxu0
    %v6763 = vadd.f32 0.0, %v6762
    %v6764 = vpop.f32.mrb[0].mxu0
    %v6765 = vadd.f32 0.0, %v6764
    %6766 = vdwg.mxu0
    %v6767 = vadd.f32 %v6620, %v6692
    %v6768 = vadd.f32 %v6621, %v6694
    %v6769 = vadd.f32 %v6622, %v6763
    %v6770 = vadd.f32 %v6623, %v6765
    %v6771 = vxor.u32 %v6767, 2147483648
    %v6772 = vmul.f32 %v6771, 1.442695
    %v6773 = vpow.pop %v6772
    %v6774 = vadd.f32 %v6773, 1.0
    %v6775 = vrcp.pop %v6774
    %v6776 = vmul.f32 1.0, %v6775
    %v6777 = vxor.u32 %v6768, 2147483648
    %v6778 = vmul.f32 %v6777, 1.442695
    %v6779 = vpow.pop %v6778
    %v6780 = vadd.f32 %v6779, 1.0
    %v6781 = vrcp.pop %v6780
    %v6782 = vmul.f32 1.0, %v6781
    %v6783 = vtanh.pop %v6769
    %v6784 = vxor.u32 %v6770, 2147483648
    %v6785 = vmul.f32 %v6784, 1.442695
    %v6786 = vpow.pop %v6785
    %v6787 = vadd.f32 %v6786, 1.0
    %v6788 = vrcp.pop %v6787
    %v6789 = vmul.f32 1.0, %v6788
    %v6790 = vld [vmem:[#allocation5] sm:$0xff]
    %v6791 = vmul.f32 %v6782, %v6790
    %v6792 = vmul.f32 %v6776, %v6783
    %v6793 = vadd.f32 %v6791, %v6792
    %v6794 = vtanh.pop %v6793
    %v6795 = vmul.f32 %v6789, %v6794
    %6796 = vst [vmem:[#allocation5] sm:$0xff] %v6793
    %6797 = vst [vmem:[#allocation4] sm:$0xff] %v6795
    %6798 = vst [vmem:[%s1230] sm:$0xff] %v6795
    %v6799 = vld [vmem:[%s1232] sm:$0xff]
    %v6800 = vld [vmem:[%s1232 + $0x8] sm:$0xff]
    %v6801 = vld [vmem:[%s1232 + $0x10] sm:$0xff]
    %v6802 = vld [vmem:[%s1232 + $0x18] sm:$0xff]
    %v6803 = vld [vmem:[#allocation4] sm:$0xff]
    %6804 = vmatprep.subr.mxu0 %v5729
    %6805 = vmatpush1.msra.mxu0 %v5728
    %6806 = vmatprep.subr.mxu0 %v5733
    %6807 = vmatpush1.msra.mxu0 %v5732
    %6808 = vmatprep.subr.mxu0 %v5737
    %6809 = vmatpush1.msra.mxu0 %v5736
    %6810 = vmatprep.subr.mxu0 %v5741
    %6811 = vmatpush1.msra.mxu0 %v5740
    %6812 = vmatprep.subr.mxu0 %v5745
    %6813 = vmatpush1.msra.mxu0 %v5744
    %6814 = vmatprep.subr.mxu0 %v5749
    %6815 = vmatpush1.msra.mxu0 %v5748
    %6816 = vmatprep.subr.mxu0 %v5753
    %6817 = vmatpush1.msra.mxu0 %v5752
    %6818 = vmatprep.subr.mxu0 %v5757
    %6819 = vmatpush1.msra.mxu0 %v5756
    %6820 = vmatprep.subr.mxu0 %v5761
    %6821 = vmatpush1.msra.mxu0 %v5760
    %6822 = vmatprep.subr.mxu0 %v5765
    %6823 = vmatpush1.msra.mxu0 %v5764
    %6824 = vmatprep.subr.mxu0 %v5769
    %6825 = vmatpush1.msra.mxu0 %v5768
    %6826 = vmatprep.subr.mxu0 %v5773
    %6827 = vmatpush1.msra.mxu0 %v5772
    %6828 = vmatprep.subr.mxu0 %v5777
    %6829 = vmatpush1.msra.mxu0 %v5776
    %6830 = vmatprep.subr.mxu0 %v5781
    %6831 = vmatpush1.msra.mxu0 %v5780
    %6832 = vmatprep.subr.mxu0 %v5785
    %6833 = vmatpush1.msra.mxu0 %v5784
    %6834 = vmatprep.subr.mxu0 %v5789
    %6835 = vmatpush1.msra.mxu0 %v5788
    %6836 = vmatprep.subr.mxu0 0.0
    %6837 = vmatpush1.msra.mxu0 0.0
    %6838 = vmatprep.subr.mxu0 0.0
    %6839 = vmatpush1.msra.mxu0 0.0
    %6840 = vmatprep.subr.mxu0 0.0
    %6841 = vmatpush1.msra.mxu0 0.0
    %6842 = vmatprep.subr.mxu0 0.0
    %6843 = vmatpush1.msra.mxu0 0.0
    %6844 = vmatprep.subr.mxu0 0.0
    %6845 = vmatpush1.msra.mxu0 0.0
    %6846 = vmatprep.subr.mxu0 0.0
    %6847 = vmatpush1.msra.mxu0 0.0
    %6848 = vmatprep.subr.mxu0 0.0
    %6849 = vmatpush1.msra.mxu0 0.0
    %6850 = vmatprep.subr.mxu0 0.0
    %6851 = vmatpush1.msra.mxu0 0.0
    %6852 = vmatprep.subr.mxu0 0.0
    %6853 = vmatpush1.msra.mxu0 0.0
    %6854 = vmatprep.subr.mxu0 0.0
    %6855 = vmatpush1.msra.mxu0 0.0
    %6856 = vmatprep.subr.mxu0 0.0
    %6857 = vmatpush1.msra.mxu0 0.0
    %6858 = vmatprep.subr.mxu0 0.0
    %6859 = vmatpush1.msra.mxu0 0.0
    %6860 = vmatprep.subr.mxu0 0.0
    %6861 = vmatpush1.msra.mxu0 0.0
    %6862 = vmatprep.subr.mxu0 0.0
    %6863 = vmatpush1.msra.mxu0 0.0
    %6864 = vmatprep.subr.mxu0 0.0
    %6865 = vmatpush1.msra.mxu0 0.0
    %6866 = vmatprep.subr.mxu0 0.0
    %6867 = vmatpush1.msra.mxu0 0.0
    %6868 = vmatprep.mubr.f32.mxu0 0.0
    %6869 = vmatmul.mubr.f32.gmra.mrb[0].mxu0 %v6803
    %v6870 = vpop.f32.mrb[0].mxu0
    %v6871 = vadd.f32 0.0, %v6870
    %v6872 = vpop.f32.mrb[0].mxu0
    %v6873 = vadd.f32 0.0, %v6872
    %6874 = vdwg.mxu0
    %6875 = vmatprep.subr.mxu0 %v5731
    %6876 = vmatpush1.msra.mxu0 %v5730
    %6877 = vmatprep.subr.mxu0 %v5735
    %6878 = vmatpush1.msra.mxu0 %v5734
    %6879 = vmatprep.subr.mxu0 %v5739
    %6880 = vmatpush1.msra.mxu0 %v5738
    %6881 = vmatprep.subr.mxu0 %v5743
    %6882 = vmatpush1.msra.mxu0 %v5742
    %6883 = vmatprep.subr.mxu0 %v5747
    %6884 = vmatpush1.msra.mxu0 %v5746
    %6885 = vmatprep.subr.mxu0 %v5751
    %6886 = vmatpush1.msra.mxu0 %v5750
    %6887 = vmatprep.subr.mxu0 %v5755
    %6888 = vmatpush1.msra.mxu0 %v5754
    %6889 = vmatprep.subr.mxu0 %v5759
    %6890 = vmatpush1.msra.mxu0 %v5758
    %6891 = vmatprep.subr.mxu0 %v5763
    %6892 = vmatpush1.msra.mxu0 %v5762
    %6893 = vmatprep.subr.mxu0 %v5767
    %6894 = vmatpush1.msra.mxu0 %v5766
    %6895 = vmatprep.subr.mxu0 %v5771
    %6896 = vmatpush1.msra.mxu0 %v5770
    %6897 = vmatprep.subr.mxu0 %v5775
    %6898 = vmatpush1.msra.mxu0 %v5774
    %6899 = vmatprep.subr.mxu0 %v5779
    %6900 = vmatpush1.msra.mxu0 %v5778
    %6901 = vmatprep.subr.mxu0 %v5783
    %6902 = vmatpush1.msra.mxu0 %v5782
    %6903 = vmatprep.subr.mxu0 %v5787
    %6904 = vmatpush1.msra.mxu0 %v5786
    %6905 = vmatprep.subr.mxu0 %v5791
    %6906 = vmatpush1.msra.mxu0 %v5790
    %6907 = vmatprep.subr.mxu0 0.0
    %6908 = vmatpush1.msra.mxu0 0.0
    %6909 = vmatprep.subr.mxu0 0.0
    %6910 = vmatpush1.msra.mxu0 0.0
    %6911 = vmatprep.subr.mxu0 0.0
    %6912 = vmatpush1.msra.mxu0 0.0
    %6913 = vmatprep.subr.mxu0 0.0
    %6914 = vmatpush1.msra.mxu0 0.0
    %6915 = vmatprep.subr.mxu0 0.0
    %6916 = vmatpush1.msra.mxu0 0.0
    %6917 = vmatprep.subr.mxu0 0.0
    %6918 = vmatpush1.msra.mxu0 0.0
    %6919 = vmatprep.subr.mxu0 0.0
    %6920 = vmatpush1.msra.mxu0 0.0
    %6921 = vmatprep.subr.mxu0 0.0
    %6922 = vmatpush1.msra.mxu0 0.0
    %6923 = vmatprep.subr.mxu0 0.0
    %6924 = vmatpush1.msra.mxu0 0.0
    %6925 = vmatprep.subr.mxu0 0.0
    %6926 = vmatpush1.msra.mxu0 0.0
    %6927 = vmatprep.subr.mxu0 0.0
    %6928 = vmatpush1.msra.mxu0 0.0
    %6929 = vmatprep.subr.mxu0 0.0
    %6930 = vmatpush1.msra.mxu0 0.0
    %6931 = vmatprep.subr.mxu0 0.0
    %6932 = vmatpush1.msra.mxu0 0.0
    %6933 = vmatprep.subr.mxu0 0.0
    %6934 = vmatpush1.msra.mxu0 0.0
    %6935 = vmatprep.subr.mxu0 0.0
    %6936 = vmatpush1.msra.mxu0 0.0
    %6937 = vmatprep.subr.mxu0 0.0
    %6938 = vmatpush1.msra.mxu0 0.0
    %6939 = vmatprep.mubr.f32.mxu0 0.0
    %6940 = vmatmul.mubr.f32.gmra.mrb[0].mxu0 %v6803
    %v6941 = vpop.f32.mrb[0].mxu0
    %v6942 = vadd.f32 0.0, %v6941
    %v6943 = vpop.f32.mrb[0].mxu0
    %v6944 = vadd.f32 0.0, %v6943
    %6945 = vdwg.mxu0
    %v6946 = vadd.f32 %v6799, %v6871
    %v6947 = vadd.f32 %v6800, %v6873
    %v6948 = vadd.f32 %v6801, %v6942
    %v6949 = vadd.f32 %v6802, %v6944
    %v6950 = vxor.u32 %v6946, 2147483648
    %v6951 = vmul.f32 %v6950, 1.442695
    %v6952 = vpow.pop %v6951
    %v6953 = vadd.f32 %v6952, 1.0
    %v6954 = vrcp.pop %v6953
    %v6955 = vmul.f32 1.0, %v6954
    %v6956 = vxor.u32 %v6947, 2147483648
    %v6957 = vmul.f32 %v6956, 1.442695
    %v6958 = vpow.pop %v6957
    %v6959 = vadd.f32 %v6958, 1.0
    %v6960 = vrcp.pop %v6959
    %v6961 = vmul.f32 1.0, %v6960
    %v6962 = vtanh.pop %v6948
    %v6963 = vxor.u32 %v6949, 2147483648
    %v6964 = vmul.f32 %v6963, 1.442695
    %v6965 = vpow.pop %v6964
    %v6966 = vadd.f32 %v6965, 1.0
    %v6967 = vrcp.pop %v6966
    %v6968 = vmul.f32 1.0, %v6967
    %v6969 = vld [vmem:[#allocation5] sm:$0xff]
    %v6970 = vmul.f32 %v6961, %v6969
    %v6971 = vmul.f32 %v6955, %v6962
    %v6972 = vadd.f32 %v6970, %v6971
    %v6973 = vtanh.pop %v6972
    %v6974 = vmul.f32 %v6968, %v6973
    %6975 = vst [vmem:[#allocation5] sm:$0xff] %v6972
    %6976 = vst [vmem:[#allocation4] sm:$0xff] %v6974
    %6977 = vst [vmem:[%s1411] sm:$0xff] %v6974
    %v6978 = vld [vmem:[%s1413] sm:$0xff]
    %v6979 = vld [vmem:[%s1413 + $0x8] sm:$0xff]
    %v6980 = vld [vmem:[%s1413 + $0x10] sm:$0xff]
    %v6981 = vld [vmem:[%s1413 + $0x18] sm:$0xff]
    %v6982 = vld [vmem:[#allocation4] sm:$0xff]
    %6983 = vmatprep.subr.mxu0 %v5729
    %6984 = vmatpush1.msra.mxu0 %v5728
    %6985 = vmatprep.subr.mxu0 %v5733
    %6986 = vmatpush1.msra.mxu0 %v5732
    %6987 = vmatprep.subr.mxu0 %v5737
    %6988 = vmatpush1.msra.mxu0 %v5736
    %6989 = vmatprep.subr.mxu0 %v5741
    %6990 = vmatpush1.msra.mxu0 %v5740
    %6991 = vmatprep.subr.mxu0 %v5745
    %6992 = vmatpush1.msra.mxu0 %v5744
    %6993 = vmatprep.subr.mxu0 %v5749
    %6994 = vmatpush1.msra.mxu0 %v5748
    %6995 = vmatprep.subr.mxu0 %v5753
    %6996 = vmatpush1.msra.mxu0 %v5752
    %6997 = vmatprep.subr.mxu0 %v5757
    %6998 = vmatpush1.msra.mxu0 %v5756
    %6999 = vmatprep.subr.mxu0 %v5761
    %7000 = vmatpush1.msra.mxu0 %v5760
    %7001 = vmatprep.subr.mxu0 %v5765
    %7002 = vmatpush1.msra.mxu0 %v5764
    %7003 = vmatprep.subr.mxu0 %v5769
    %7004 = vmatpush1.msra.mxu0 %v5768
    %7005 = vmatprep.subr.mxu0 %v5773
    %7006 = vmatpush1.msra.mxu0 %v5772
    %7007 = vmatprep.subr.mxu0 %v5777
    %7008 = vmatpush1.msra.mxu0 %v5776
    %7009 = vmatprep.subr.mxu0 %v5781
    %7010 = vmatpush1.msra.mxu0 %v5780
    %7011 = vmatprep.subr.mxu0 %v5785
    %7012 = vmatpush1.msra.mxu0 %v5784
    %7013 = vmatprep.subr.mxu0 %v5789
    %7014 = vmatpush1.msra.mxu0 %v5788
    %7015 = vmatprep.subr.mxu0 0.0
    %7016 = vmatpush1.msra.mxu0 0.0
    %7017 = vmatprep.subr.mxu0 0.0
    %7018 = vmatpush1.msra.mxu0 0.0
    %7019 = vmatprep.subr.mxu0 0.0
    %7020 = vmatpush1.msra.mxu0 0.0
    %7021 = vmatprep.subr.mxu0 0.0
    %7022 = vmatpush1.msra.mxu0 0.0
    %7023 = vmatprep.subr.mxu0 0.0
    %7024 = vmatpush1.msra.mxu0 0.0
    %7025 = vmatprep.subr.mxu0 0.0
    %7026 = vmatpush1.msra.mxu0 0.0
    %7027 = vmatprep.subr.mxu0 0.0
    %7028 = vmatpush1.msra.mxu0 0.0
    %7029 = vmatprep.subr.mxu0 0.0
    %7030 = vmatpush1.msra.mxu0 0.0
    %7031 = vmatprep.subr.mxu0 0.0
    %7032 = vmatpush1.msra.mxu0 0.0
    %7033 = vmatprep.subr.mxu0 0.0
    %7034 = vmatpush1.msra.mxu0 0.0
    %7035 = vmatprep.subr.mxu0 0.0
    %7036 = vmatpush1.msra.mxu0 0.0
    %7037 = vmatprep.subr.mxu0 0.0
    %7038 = vmatpush1.msra.mxu0 0.0
    %7039 = vmatprep.subr.mxu0 0.0
    %7040 = vmatpush1.msra.mxu0 0.0
    %7041 = vmatprep.subr.mxu0 0.0
    %7042 = vmatpush1.msra.mxu0 0.0
    %7043 = vmatprep.subr.mxu0 0.0
    %7044 = vmatpush1.msra.mxu0 0.0
    %7045 = vmatprep.subr.mxu0 0.0
    %7046 = vmatpush1.msra.mxu0 0.0
    %7047 = vmatprep.mubr.f32.mxu0 0.0
    %7048 = vmatmul.mubr.f32.gmra.mrb[0].mxu0 %v6982
    %v7049 = vpop.f32.mrb[0].mxu0
    %v7050 = vadd.f32 0.0, %v7049
    %v7051 = vpop.f32.mrb[0].mxu0
    %v7052 = vadd.f32 0.0, %v7051
    %7053 = vdwg.mxu0
    %7054 = vmatprep.subr.mxu0 %v5731
    %7055 = vmatpush1.msra.mxu0 %v5730
    %7056 = vmatprep.subr.mxu0 %v5735
    %7057 = vmatpush1.msra.mxu0 %v5734
    %7058 = vmatprep.subr.mxu0 %v5739
    %7059 = vmatpush1.msra.mxu0 %v5738
    %7060 = vmatprep.subr.mxu0 %v5743
    %7061 = vmatpush1.msra.mxu0 %v5742
    %7062 = vmatprep.subr.mxu0 %v5747
    %7063 = vmatpush1.msra.mxu0 %v5746
    %7064 = vmatprep.subr.mxu0 %v5751
    %7065 = vmatpush1.msra.mxu0 %v5750
    %7066 = vmatprep.subr.mxu0 %v5755
    %7067 = vmatpush1.msra.mxu0 %v5754
    %7068 = vmatprep.subr.mxu0 %v5759
    %7069 = vmatpush1.msra.mxu0 %v5758
    %7070 = vmatprep.subr.mxu0 %v5763
    %7071 = vmatpush1.msra.mxu0 %v5762
    %7072 = vmatprep.subr.mxu0 %v5767
    %7073 = vmatpush1.msra.mxu0 %v5766
    %7074 = vmatprep.subr.mxu0 %v5771
    %7075 = vmatpush1.msra.mxu0 %v5770
    %7076 = vmatprep.subr.mxu0 %v5775
    %7077 = vmatpush1.msra.mxu0 %v5774
    %7078 = vmatprep.subr.mxu0 %v5779
    %7079 = vmatpush1.msra.mxu0 %v5778
    %7080 = vmatprep.subr.mxu0 %v5783
    %7081 = vmatpush1.msra.mxu0 %v5782
    %7082 = vmatprep.subr.mxu0 %v5787
    %7083 = vmatpush1.msra.mxu0 %v5786
    %7084 = vmatprep.subr.mxu0 %v5791
    %7085 = vmatpush1.msra.mxu0 %v5790
    %7086 = vmatprep.subr.mxu0 0.0
    %7087 = vmatpush1.msra.mxu0 0.0
    %7088 = vmatprep.subr.mxu0 0.0
    %7089 = vmatpush1.msra.mxu0 0.0
    %7090 = vmatprep.subr.mxu0 0.0
    %7091 = vmatpush1.msra.mxu0 0.0
    %7092 = vmatprep.subr.mxu0 0.0
    %7093 = vmatpush1.msra.mxu0 0.0
    %7094 = vmatprep.subr.mxu0 0.0
    %7095 = vmatpush1.msra.mxu0 0.0
    %7096 = vmatprep.subr.mxu0 0.0
    %7097 = vmatpush1.msra.mxu0 0.0
    %7098 = vmatprep.subr.mxu0 0.0
    %7099 = vmatpush1.msra.mxu0 0.0
    %7100 = vmatprep.subr.mxu0 0.0
    %7101 = vmatpush1.msra.mxu0 0.0
    %7102 = vmatprep.subr.mxu0 0.0
    %7103 = vmatpush1.msra.mxu0 0.0
    %7104 = vmatprep.subr.mxu0 0.0
    %7105 = vmatpush1.msra.mxu0 0.0
    %7106 = vmatprep.subr.mxu0 0.0
    %7107 = vmatpush1.msra.mxu0 0.0
    %7108 = vmatprep.subr.mxu0 0.0
    %7109 = vmatpush1.msra.mxu0 0.0
    %7110 = vmatprep.subr.mxu0 0.0
    %7111 = vmatpush1.msra.mxu0 0.0
    %7112 = vmatprep.subr.mxu0 0.0
    %7113 = vmatpush1.msra.mxu0 0.0
    %7114 = vmatprep.subr.mxu0 0.0
    %7115 = vmatpush1.msra.mxu0 0.0
    %7116 = vmatprep.subr.mxu0 0.0
    %7117 = vmatpush1.msra.mxu0 0.0
    %7118 = vmatprep.mubr.f32.mxu0 0.0
    %7119 = vmatmul.mubr.f32.gmra.mrb[0].mxu0 %v6982
    %v7120 = vpop.f32.mrb[0].mxu0
    %v7121 = vadd.f32 0.0, %v7120
    %v7122 = vpop.f32.mrb[0].mxu0
    %v7123 = vadd.f32 0.0, %v7122
    %7124 = vdwg.mxu0
    %v7125 = vadd.f32 %v6978, %v7050
    %v7126 = vadd.f32 %v6979, %v7052
    %v7127 = vadd.f32 %v6980, %v7121
    %v7128 = vadd.f32 %v6981, %v7123
    %v7129 = vxor.u32 %v7125, 2147483648
    %v7130 = vmul.f32 %v7129, 1.442695
    %v7131 = vpow.pop %v7130
    %v7132 = vadd.f32 %v7131, 1.0
    %v7133 = vrcp.pop %v7132
    %v7134 = vmul.f32 1.0, %v7133
    %v7135 = vxor.u32 %v7126, 2147483648
    %v7136 = vmul.f32 %v7135, 1.442695
    %v7137 = vpow.pop %v7136
    %v7138 = vadd.f32 %v7137, 1.0
    %v7139 = vrcp.pop %v7138
    %v7140 = vmul.f32 1.0, %v7139
    %v7141 = vtanh.pop %v7127
    %v7142 = vxor.u32 %v7128, 2147483648
    %v7143 = vmul.f32 %v7142, 1.442695
    %v7144 = vpow.pop %v7143
    %v7145 = vadd.f32 %v7144, 1.0
    %v7146 = vrcp.pop %v7145
    %v7147 = vmul.f32 1.0, %v7146
    %v7148 = vld [vmem:[#allocation5] sm:$0xff]
    %v7149 = vmul.f32 %v7140, %v7148
    %v7150 = vmul.f32 %v7134, %v7141
    %v7151 = vadd.f32 %v7149, %v7150
    %v7152 = vtanh.pop %v7151
    %v7153 = vmul.f32 %v7147, %v7152
    %7154 = vst [vmem:[#allocation5] sm:$0xff] %v7151
    %7155 = vst [vmem:[#allocation4] sm:$0xff] %v7153
    %7156 = vst [vmem:[%s1592] sm:$0xff] %v7153
    %v7157 = vld [vmem:[%s1594] sm:$0xff]
    %v7158 = vld [vmem:[%s1594 + $0x8] sm:$0xff]
    %v7159 = vld [vmem:[%s1594 + $0x10] sm:$0xff]
    %v7160 = vld [vmem:[%s1594 + $0x18] sm:$0xff]
    %v7161 = vld [vmem:[#allocation4] sm:$0xff]
    %7162 = vmatprep.subr.mxu0 %v5729
    %7163 = vmatpush1.msra.mxu0 %v5728
    %7164 = vmatprep.subr.mxu0 %v5733
    %7165 = vmatpush1.msra.mxu0 %v5732
    %7166 = vmatprep.subr.mxu0 %v5737
    %7167 = vmatpush1.msra.mxu0 %v5736
    %7168 = vmatprep.subr.mxu0 %v5741
    %7169 = vmatpush1.msra.mxu0 %v5740
    %7170 = vmatprep.subr.mxu0 %v5745
    %7171 = vmatpush1.msra.mxu0 %v5744
    %7172 = vmatprep.subr.mxu0 %v5749
    %7173 = vmatpush1.msra.mxu0 %v5748
    %7174 = vmatprep.subr.mxu0 %v5753
    %7175 = vmatpush1.msra.mxu0 %v5752
    %7176 = vmatprep.subr.mxu0 %v5757
    %7177 = vmatpush1.msra.mxu0 %v5756
    %7178 = vmatprep.subr.mxu0 %v5761
    %7179 = vmatpush1.msra.mxu0 %v5760
    %7180 = vmatprep.subr.mxu0 %v5765
    %7181 = vmatpush1.msra.mxu0 %v5764
    %7182 = vmatprep.subr.mxu0 %v5769
    %7183 = vmatpush1.msra.mxu0 %v5768
    %7184 = vmatprep.subr.mxu0 %v5773
    %7185 = vmatpush1.msra.mxu0 %v5772
    %7186 = vmatprep.subr.mxu0 %v5777
    %7187 = vmatpush1.msra.mxu0 %v5776
    %7188 = vmatprep.subr.mxu0 %v5781
    %7189 = vmatpush1.msra.mxu0 %v5780
    %7190 = vmatprep.subr.mxu0 %v5785
    %7191 = vmatpush1.msra.mxu0 %v5784
    %7192 = vmatprep.subr.mxu0 %v5789
    %7193 = vmatpush1.msra.mxu0 %v5788
    %7194 = vmatprep.subr.mxu0 0.0
    %7195 = vmatpush1.msra.mxu0 0.0
    %7196 = vmatprep.subr.mxu0 0.0
    %7197 = vmatpush1.msra.mxu0 0.0
    %7198 = vmatprep.subr.mxu0 0.0
    %7199 = vmatpush1.msra.mxu0 0.0
    %7200 = vmatprep.subr.mxu0 0.0
    %7201 = vmatpush1.msra.mxu0 0.0
    %7202 = vmatprep.subr.mxu0 0.0
    %7203 = vmatpush1.msra.mxu0 0.0
    %7204 = vmatprep.subr.mxu0 0.0
    %7205 = vmatpush1.msra.mxu0 0.0
    %7206 = vmatprep.subr.mxu0 0.0
    %7207 = vmatpush1.msra.mxu0 0.0
    %7208 = vmatprep.subr.mxu0 0.0
    %7209 = vmatpush1.msra.mxu0 0.0
    %7210 = vmatprep.subr.mxu0 0.0
    %7211 = vmatpush1.msra.mxu0 0.0
    %7212 = vmatprep.subr.mxu0 0.0
    %7213 = vmatpush1.msra.mxu0 0.0
    %7214 = vmatprep.subr.mxu0 0.0
    %7215 = vmatpush1.msra.mxu0 0.0
    %7216 = vmatprep.subr.mxu0 0.0
    %7217 = vmatpush1.msra.mxu0 0.0
    %7218 = vmatprep.subr.mxu0 0.0
    %7219 = vmatpush1.msra.mxu0 0.0
    %7220 = vmatprep.subr.mxu0 0.0
    %7221 = vmatpush1.msra.mxu0 0.0
    %7222 = vmatprep.subr.mxu0 0.0
    %7223 = vmatpush1.msra.mxu0 0.0
    %7224 = vmatprep.subr.mxu0 0.0
    %7225 = vmatpush1.msra.mxu0 0.0
    %7226 = vmatprep.mubr.f32.mxu0 0.0
    %7227 = vmatmul.mubr.f32.gmra.mrb[0].mxu0 %v7161
    %v7228 = vpop.f32.mrb[0].mxu0
    %v7229 = vadd.f32 0.0, %v7228
    %v7230 = vpop.f32.mrb[0].mxu0
    %v7231 = vadd.f32 0.0, %v7230
    %7232 = vdwg.mxu0
    %7233 = vmatprep.subr.mxu0 %v5731
    %7234 = vmatpush1.msra.mxu0 %v5730
    %7235 = vmatprep.subr.mxu0 %v5735
    %7236 = vmatpush1.msra.mxu0 %v5734
    %7237 = vmatprep.subr.mxu0 %v5739
    %7238 = vmatpush1.msra.mxu0 %v5738
    %7239 = vmatprep.subr.mxu0 %v5743
    %7240 = vmatpush1.msra.mxu0 %v5742
    %7241 = vmatprep.subr.mxu0 %v5747
    %7242 = vmatpush1.msra.mxu0 %v5746
    %7243 = vmatprep.subr.mxu0 %v5751
    %7244 = vmatpush1.msra.mxu0 %v5750
    %7245 = vmatprep.subr.mxu0 %v5755
    %7246 = vmatpush1.msra.mxu0 %v5754
    %7247 = vmatprep.subr.mxu0 %v5759
    %7248 = vmatpush1.msra.mxu0 %v5758
    %7249 = vmatprep.subr.mxu0 %v5763
    %7250 = vmatpush1.msra.mxu0 %v5762
    %7251 = vmatprep.subr.mxu0 %v5767
    %7252 = vmatpush1.msra.mxu0 %v5766
    %7253 = vmatprep.subr.mxu0 %v5771
    %7254 = vmatpush1.msra.mxu0 %v5770
    %7255 = vmatprep.subr.mxu0 %v5775
    %7256 = vmatpush1.msra.mxu0 %v5774
    %7257 = vmatprep.subr.mxu0 %v5779
    %7258 = vmatpush1.msra.mxu0 %v5778
    %7259 = vmatprep.subr.mxu0 %v5783
    %7260 = vmatpush1.msra.mxu0 %v5782
    %7261 = vmatprep.subr.mxu0 %v5787
    %7262 = vmatpush1.msra.mxu0 %v5786
    %7263 = vmatprep.subr.mxu0 %v5791
    %7264 = vmatpush1.msra.mxu0 %v5790
    %7265 = vmatprep.subr.mxu0 0.0
    %7266 = vmatpush1.msra.mxu0 0.0
    %7267 = vmatprep.subr.mxu0 0.0
    %7268 = vmatpush1.msra.mxu0 0.0
    %7269 = vmatprep.subr.mxu0 0.0
    %7270 = vmatpush1.msra.mxu0 0.0
    %7271 = vmatprep.subr.mxu0 0.0
    %7272 = vmatpush1.msra.mxu0 0.0
    %7273 = vmatprep.subr.mxu0 0.0
    %7274 = vmatpush1.msra.mxu0 0.0
    %7275 = vmatprep.subr.mxu0 0.0
    %7276 = vmatpush1.msra.mxu0 0.0
    %7277 = vmatprep.subr.mxu0 0.0
    %7278 = vmatpush1.msra.mxu0 0.0
    %7279 = vmatprep.subr.mxu0 0.0
    %7280 = vmatpush1.msra.mxu0 0.0
    %7281 = vmatprep.subr.mxu0 0.0
    %7282 = vmatpush1.msra.mxu0 0.0
    %7283 = vmatprep.subr.mxu0 0.0
    %7284 = vmatpush1.msra.mxu0 0.0
    %7285 = vmatprep.subr.mxu0 0.0
    %7286 = vmatpush1.msra.mxu0 0.0
    %7287 = vmatprep.subr.mxu0 0.0
    %7288 = vmatpush1.msra.mxu0 0.0
    %7289 = vmatprep.subr.mxu0 0.0
    %7290 = vmatpush1.msra.mxu0 0.0
    %7291 = vmatprep.subr.mxu0 0.0
    %7292 = vmatpush1.msra.mxu0 0.0
    %7293 = vmatprep.subr.mxu0 0.0
    %7294 = vmatpush1.msra.mxu0 0.0
    %7295 = vmatprep.subr.mxu0 0.0
    %7296 = vmatpush1.msra.mxu0 0.0
    %7297 = vmatprep.mubr.f32.mxu0 0.0
    %7298 = vmatmul.mubr.f32.gmra.mrb[0].mxu0 %v7161
    %v7299 = vpop.f32.mrb[0].mxu0
    %v7300 = vadd.f32 0.0, %v7299
    %v7301 = vpop.f32.mrb[0].mxu0
    %v7302 = vadd.f32 0.0, %v7301
    %7303 = vdwg.mxu0
    %v7304 = vadd.f32 %v7157, %v7229
    %v7305 = vadd.f32 %v7158, %v7231
    %v7306 = vadd.f32 %v7159, %v7300
    %v7307 = vadd.f32 %v7160, %v7302
    %v7308 = vxor.u32 %v7304, 2147483648
    %v7309 = vmul.f32 %v7308, 1.442695
    %v7310 = vpow.pop %v7309
    %v7311 = vadd.f32 %v7310, 1.0
    %v7312 = vrcp.pop %v7311
    %v7313 = vmul.f32 1.0, %v7312
    %v7314 = vxor.u32 %v7305, 2147483648
    %v7315 = vmul.f32 %v7314, 1.442695
    %v7316 = vpow.pop %v7315
    %v7317 = vadd.f32 %v7316, 1.0
    %v7318 = vrcp.pop %v7317
    %v7319 = vmul.f32 1.0, %v7318
    %v7320 = vtanh.pop %v7306
    %v7321 = vxor.u32 %v7307, 2147483648
    %v7322 = vmul.f32 %v7321, 1.442695
    %v7323 = vpow.pop %v7322
    %v7324 = vadd.f32 %v7323, 1.0
    %v7325 = vrcp.pop %v7324
    %v7326 = vmul.f32 1.0, %v7325
    %v7327 = vld [vmem:[#allocation5] sm:$0xff]
    %v7328 = vmul.f32 %v7319, %v7327
    %v7329 = vmul.f32 %v7313, %v7320
    %v7330 = vadd.f32 %v7328, %v7329
    %v7331 = vtanh.pop %v7330
    %v7332 = vmul.f32 %v7326, %v7331
    %7333 = vst [vmem:[#allocation5] sm:$0xff] %v7330
    %7334 = vst [vmem:[#allocation4] sm:$0xff] %v7332
    %7335 = vst [vmem:[%s1773] sm:$0xff] %v7332
    %v7336 = vld [vmem:[%s1775] sm:$0xff]
    %v7337 = vld [vmem:[%s1775 + $0x8] sm:$0xff]
    %v7338 = vld [vmem:[%s1775 + $0x10] sm:$0xff]
    %v7339 = vld [vmem:[%s1775 + $0x18] sm:$0xff]
    %v7340 = vld [vmem:[#allocation4] sm:$0xff]
    %7341 = vmatprep.subr.mxu0 %v5729
    %7342 = vmatpush1.msra.mxu0 %v5728
    %7343 = vmatprep.subr.mxu0 %v5733
    %7344 = vmatpush1.msra.mxu0 %v5732
    %7345 = vmatprep.subr.mxu0 %v5737
    %7346 = vmatpush1.msra.mxu0 %v5736
    %7347 = vmatprep.subr.mxu0 %v5741
    %7348 = vmatpush1.msra.mxu0 %v5740
    %7349 = vmatprep.subr.mxu0 %v5745
    %7350 = vmatpush1.msra.mxu0 %v5744
    %7351 = vmatprep.subr.mxu0 %v5749
    %7352 = vmatpush1.msra.mxu0 %v5748
    %7353 = vmatprep.subr.mxu0 %v5753
    %7354 = vmatpush1.msra.mxu0 %v5752
    %7355 = vmatprep.subr.mxu0 %v5757
    %7356 = vmatpush1.msra.mxu0 %v5756
    %7357 = vmatprep.subr.mxu0 %v5761
    %7358 = vmatpush1.msra.mxu0 %v5760
    %7359 = vmatprep.subr.mxu0 %v5765
    %7360 = vmatpush1.msra.mxu0 %v5764
    %7361 = vmatprep.subr.mxu0 %v5769
    %7362 = vmatpush1.msra.mxu0 %v5768
    %7363 = vmatprep.subr.mxu0 %v5773
    %7364 = vmatpush1.msra.mxu0 %v5772
    %7365 = vmatprep.subr.mxu0 %v5777
    %7366 = vmatpush1.msra.mxu0 %v5776
    %7367 = vmatprep.subr.mxu0 %v5781
    %7368 = vmatpush1.msra.mxu0 %v5780
    %7369 = vmatprep.subr.mxu0 %v5785
    %7370 = vmatpush1.msra.mxu0 %v5784
    %7371 = vmatprep.subr.mxu0 %v5789
    %7372 = vmatpush1.msra.mxu0 %v5788
    %7373 = vmatprep.subr.mxu0 0.0
    %7374 = vmatpush1.msra.mxu0 0.0
    %7375 = vmatprep.subr.mxu0 0.0
    %7376 = vmatpush1.msra.mxu0 0.0
    %7377 = vmatprep.subr.mxu0 0.0
    %7378 = vmatpush1.msra.mxu0 0.0
    %7379 = vmatprep.subr.mxu0 0.0
    %7380 = vmatpush1.msra.mxu0 0.0
    %7381 = vmatprep.subr.mxu0 0.0
    %7382 = vmatpush1.msra.mxu0 0.0
    %7383 = vmatprep.subr.mxu0 0.0
    %7384 = vmatpush1.msra.mxu0 0.0
    %7385 = vmatprep.subr.mxu0 0.0
    %7386 = vmatpush1.msra.mxu0 0.0
    %7387 = vmatprep.subr.mxu0 0.0
    %7388 = vmatpush1.msra.mxu0 0.0
    %7389 = vmatprep.subr.mxu0 0.0
    %7390 = vmatpush1.msra.mxu0 0.0
    %7391 = vmatprep.subr.mxu0 0.0
    %7392 = vmatpush1.msra.mxu0 0.0
    %7393 = vmatprep.subr.mxu0 0.0
    %7394 = vmatpush1.msra.mxu0 0.0
    %7395 = vmatprep.subr.mxu0 0.0
    %7396 = vmatpush1.msra.mxu0 0.0
    %7397 = vmatprep.subr.mxu0 0.0
    %7398 = vmatpush1.msra.mxu0 0.0
    %7399 = vmatprep.subr.mxu0 0.0
    %7400 = vmatpush1.msra.mxu0 0.0
    %7401 = vmatprep.subr.mxu0 0.0
    %7402 = vmatpush1.msra.mxu0 0.0
    %7403 = vmatprep.subr.mxu0 0.0
    %7404 = vmatpush1.msra.mxu0 0.0
    %7405 = vmatprep.mubr.f32.mxu0 0.0
    %7406 = vmatmul.mubr.f32.gmra.mrb[0].mxu0 %v7340
    %v7407 = vpop.f32.mrb[0].mxu0
    %v7408 = vadd.f32 0.0, %v7407
    %v7409 = vpop.f32.mrb[0].mxu0
    %v7410 = vadd.f32 0.0, %v7409
    %7411 = vdwg.mxu0
    %7412 = vmatprep.subr.mxu0 %v5731
    %7413 = vmatpush1.msra.mxu0 %v5730
    %7414 = vmatprep.subr.mxu0 %v5735
    %7415 = vmatpush1.msra.mxu0 %v5734
    %7416 = vmatprep.subr.mxu0 %v5739
    %7417 = vmatpush1.msra.mxu0 %v5738
    %7418 = vmatprep.subr.mxu0 %v5743
    %7419 = vmatpush1.msra.mxu0 %v5742
    %7420 = vmatprep.subr.mxu0 %v5747
    %7421 = vmatpush1.msra.mxu0 %v5746
    %7422 = vmatprep.subr.mxu0 %v5751
    %7423 = vmatpush1.msra.mxu0 %v5750
    %7424 = vmatprep.subr.mxu0 %v5755
    %7425 = vmatpush1.msra.mxu0 %v5754
    %7426 = vmatprep.subr.mxu0 %v5759
    %7427 = vmatpush1.msra.mxu0 %v5758
    %7428 = vmatprep.subr.mxu0 %v5763
    %7429 = vmatpush1.msra.mxu0 %v5762
    %7430 = vmatprep.subr.mxu0 %v5767
    %7431 = vmatpush1.msra.mxu0 %v5766
    %7432 = vmatprep.subr.mxu0 %v5771
    %7433 = vmatpush1.msra.mxu0 %v5770
    %7434 = vmatprep.subr.mxu0 %v5775
    %7435 = vmatpush1.msra.mxu0 %v5774
    %7436 = vmatprep.subr.mxu0 %v5779
    %7437 = vmatpush1.msra.mxu0 %v5778
    %7438 = vmatprep.subr.mxu0 %v5783
    %7439 = vmatpush1.msra.mxu0 %v5782
    %7440 = vmatprep.subr.mxu0 %v5787
    %7441 = vmatpush1.msra.mxu0 %v5786
    %7442 = vmatprep.subr.mxu0 %v5791
    %7443 = vmatpush1.msra.mxu0 %v5790
    %7444 = vmatprep.subr.mxu0 0.0
    %7445 = vmatpush1.msra.mxu0 0.0
    %7446 = vmatprep.subr.mxu0 0.0
    %7447 = vmatpush1.msra.mxu0 0.0
    %7448 = vmatprep.subr.mxu0 0.0
    %7449 = vmatpush1.msra.mxu0 0.0
    %7450 = vmatprep.subr.mxu0 0.0
    %7451 = vmatpush1.msra.mxu0 0.0
    %7452 = vmatprep.subr.mxu0 0.0
    %7453 = vmatpush1.msra.mxu0 0.0
    %7454 = vmatprep.subr.mxu0 0.0
    %7455 = vmatpush1.msra.mxu0 0.0
    %7456 = vmatprep.subr.mxu0 0.0
    %7457 = vmatpush1.msra.mxu0 0.0
    %7458 = vmatprep.subr.mxu0 0.0
    %7459 = vmatpush1.msra.mxu0 0.0
    %7460 = vmatprep.subr.mxu0 0.0
    %7461 = vmatpush1.msra.mxu0 0.0
    %7462 = vmatprep.subr.mxu0 0.0
    %7463 = vmatpush1.msra.mxu0 0.0
    %7464 = vmatprep.subr.mxu0 0.0
    %7465 = vmatpush1.msra.mxu0 0.0
    %7466 = vmatprep.subr.mxu0 0.0
    %7467 = vmatpush1.msra.mxu0 0.0
    %7468 = vmatprep.subr.mxu0 0.0
    %7469 = vmatpush1.msra.mxu0 0.0
    %7470 = vmatprep.subr.mxu0 0.0
    %7471 = vmatpush1.msra.mxu0 0.0
    %7472 = vmatprep.subr.mxu0 0.0
    %7473 = vmatpush1.msra.mxu0 0.0
    %7474 = vmatprep.subr.mxu0 0.0
    %7475 = vmatpush1.msra.mxu0 0.0
    %7476 = vmatprep.mubr.f32.mxu0 0.0
    %7477 = vmatmul.mubr.f32.gmra.mrb[0].mxu0 %v7340
    %v7478 = vpop.f32.mrb[0].mxu0
    %v7479 = vadd.f32 0.0, %v7478
    %v7480 = vpop.f32.mrb[0].mxu0
    %v7481 = vadd.f32 0.0, %v7480
    %7482 = vdwg.mxu0
    %v7483 = vadd.f32 %v7336, %v7408
    %v7484 = vadd.f32 %v7337, %v7410
    %v7485 = vadd.f32 %v7338, %v7479
    %v7486 = vadd.f32 %v7339, %v7481
    %v7487 = vxor.u32 %v7483, 2147483648
    %v7488 = vmul.f32 %v7487, 1.442695
    %v7489 = vpow.pop %v7488
    %v7490 = vadd.f32 %v7489, 1.0
    %v7491 = vrcp.pop %v7490
    %v7492 = vmul.f32 1.0, %v7491
    %v7493 = vxor.u32 %v7484, 2147483648
    %v7494 = vmul.f32 %v7493, 1.442695
    %v7495 = vpow.pop %v7494
    %v7496 = vadd.f32 %v7495, 1.0
    %v7497 = vrcp.pop %v7496
    %v7498 = vmul.f32 1.0, %v7497
    %v7499 = vtanh.pop %v7485
    %v7500 = vxor.u32 %v7486, 2147483648
    %v7501 = vmul.f32 %v7500, 1.442695
    %v7502 = vpow.pop %v7501
    %v7503 = vadd.f32 %v7502, 1.0
    %v7504 = vrcp.pop %v7503
    %v7505 = vmul.f32 1.0, %v7504
    %v7506 = vld [vmem:[#allocation5] sm:$0xff]
    %v7507 = vmul.f32 %v7498, %v7506
    %v7508 = vmul.f32 %v7492, %v7499
    %v7509 = vadd.f32 %v7507, %v7508
    %v7510 = vtanh.pop %v7509
    %v7511 = vmul.f32 %v7505, %v7510
    %7512 = vst [vmem:[#allocation5] sm:$0xff] %v7509
    %7513 = vst [vmem:[#allocation4] sm:$0xff] %v7511
    %7514 = vst [vmem:[%s1954] sm:$0xff] %v7511
    %v7515 = vld [vmem:[#allocation2] sm:$0xff]
    %v7516 = vld [vmem:[#allocation2 + $0x8] sm:$0xff]
    %v7517 = vld [vmem:[#allocation2 + $0x10] sm:$0xff]
    %v7518 = vld [vmem:[#allocation2 + $0x18] sm:$0xff]
    %v7519 = vld [vmem:[#allocation2 + $0x20] sm:$0xff]
    %v7520 = vld [vmem:[#allocation2 + $0x28] sm:$0xff]
    %v7521 = vld [vmem:[#allocation2 + $0x30] sm:$0xff]
    %v7522 = vld [vmem:[#allocation2 + $0x38] sm:$0xff]
    %v7523 = vld [vmem:[%s1] sm:$0xff]
    %v7524 = vlaneseq
    %v7525 = vshrl.u32 %v7524, 7
    %v7526 = vsub.s32 0, %v7525
    %v7527 = vrot.slane %v7523, %v7526
    %7529 = vbcast.lane.b32.xlu0 %v7527, 256
    %v7530 = vpop.permute.xlu0 %7529
    %v7531 = vlaneseq
    %v7532 = vshrl.u32 %v7531, 7
    %v7533 = vsub.s32 1, %v7532
    %v7534 = vrot.slane %v7523, %v7533
    %7536 = vbcast.lane.b32.xlu0 %v7534, 256
    %v7537 = vpop.permute.xlu0 %7536
    %v7538 = vlaneseq
    %v7539 = vshrl.u32 %v7538, 7
    %v7540 = vsub.s32 2, %v7539
    %v7541 = vrot.slane %v7523, %v7540
    %7543 = vbcast.lane.b32.xlu0 %v7541, 256
    %v7544 = vpop.permute.xlu0 %7543
    %v7545 = vlaneseq
    %v7546 = vshrl.u32 %v7545, 7
    %v7547 = vsub.s32 3, %v7546
    %v7548 = vrot.slane %v7523, %v7547
    %7550 = vbcast.lane.b32.xlu0 %v7548, 256
    %v7551 = vpop.permute.xlu0 %7550
    %v7552 = vlaneseq
    %v7553 = vshrl.u32 %v7552, 7
    %v7554 = vsub.s32 4, %v7553
    %v7555 = vrot.slane %v7523, %v7554
    %7557 = vbcast.lane.b32.xlu0 %v7555, 256
    %v7558 = vpop.permute.xlu0 %7557
    %v7559 = vlaneseq
    %v7560 = vshrl.u32 %v7559, 7
    %v7561 = vsub.s32 5, %v7560
    %v7562 = vrot.slane %v7523, %v7561
    %7564 = vbcast.lane.b32.xlu0 %v7562, 256
    %v7565 = vpop.permute.xlu0 %7564
    %v7566 = vlaneseq
    %v7567 = vshrl.u32 %v7566, 7
    %v7568 = vsub.s32 6, %v7567
    %v7569 = vrot.slane %v7523, %v7568
    %7571 = vbcast.lane.b32.xlu0 %v7569, 256
    %v7572 = vpop.permute.xlu0 %7571
    %v7573 = vlaneseq
    %v7574 = vshrl.u32 %v7573, 7
    %v7575 = vsub.s32 7, %v7574
    %v7576 = vrot.slane %v7523, %v7575
    %7578 = vbcast.lane.b32.xlu0 %v7576, 256
    %v7579 = vpop.permute.xlu0 %7578
    %v7580 = vmul.f32 %v7515, %v7530
    %v7581 = vmul.f32 %v7516, %v7537
    %v7582 = vmul.f32 %v7517, %v7544
    %v7583 = vmul.f32 %v7518, %v7551
    %v7584 = vmul.f32 %v7519, %v7558
    %v7585 = vmul.f32 %v7520, %v7565
    %v7586 = vmul.f32 %v7521, %v7572
    %v7587 = vmul.f32 %v7522, %v7579
    %v7588 = vld [vmem:[#allocation11] sm:$0xff]
    %v7589 = vld [vmem:[#allocation11 + $0x8] sm:$0xff]
    %v7590 = vld [vmem:[#allocation11 + $0x10] sm:$0xff]
    %v7591 = vld [vmem:[#allocation11 + $0x18] sm:$0xff]
    %v7592 = vld [vmem:[#allocation11 + $0x20] sm:$0xff]
    %v7593 = vld [vmem:[#allocation11 + $0x28] sm:$0xff]
    %v7594 = vld [vmem:[#allocation11 + $0x30] sm:$0xff]
    %v7595 = vld [vmem:[#allocation11 + $0x38] sm:$0xff]
    %v7596 = vld [vmem:[#allocation11 + $0x40] sm:$0xff]
    %v7597 = vld [vmem:[#allocation11 + $0x48] sm:$0xff]
    %v7598 = vld [vmem:[#allocation11 + $0x50] sm:$0xff]
    %v7599 = vld [vmem:[#allocation11 + $0x58] sm:$0xff]
    %v7600 = vld [vmem:[#allocation11 + $0x60] sm:$0xff]
    %v7601 = vld [vmem:[#allocation11 + $0x68] sm:$0xff]
    %v7602 = vld [vmem:[#allocation11 + $0x70] sm:$0xff]
    %v7603 = vld [vmem:[#allocation11 + $0x78] sm:$0xff]
    %v7604 = vld [vmem:[#allocation13] sm:$0x1]
    %v7606 = vlaneseq
    %v7607 = vshrl.u32 %v7606, 7
    %v7608 = vsub.s32 0, %v7607
    %v7609 = vrot.slane %v7604, %v7608
    %7611 = vmatprep.subr.mxu0 0.0
    %7612 = vmatpush1.msra.mxu0 %v7588
    %7613 = vmatprep.subr.mxu0 0.0
    %7614 = vmatpush1.msra.mxu0 %v7589
    %7615 = vmatprep.subr.mxu0 0.0
    %7616 = vmatpush1.msra.mxu0 %v7590
    %7617 = vmatprep.subr.mxu0 0.0
    %7618 = vmatpush1.msra.mxu0 %v7591
    %7619 = vmatprep.subr.mxu0 0.0
    %7620 = vmatpush1.msra.mxu0 %v7592
    %7621 = vmatprep.subr.mxu0 0.0
    %7622 = vmatpush1.msra.mxu0 %v7593
    %7623 = vmatprep.subr.mxu0 0.0
    %7624 = vmatpush1.msra.mxu0 %v7594
    %7625 = vmatprep.subr.mxu0 0.0
    %7626 = vmatpush1.msra.mxu0 %v7595
    %7627 = vmatprep.subr.mxu0 0.0
    %7628 = vmatpush1.msra.mxu0 %v7596
    %7629 = vmatprep.subr.mxu0 0.0
    %7630 = vmatpush1.msra.mxu0 %v7597
    %7631 = vmatprep.subr.mxu0 0.0
    %7632 = vmatpush1.msra.mxu0 %v7598
    %7633 = vmatprep.subr.mxu0 0.0
    %7634 = vmatpush1.msra.mxu0 %v7599
    %7635 = vmatprep.subr.mxu0 0.0
    %7636 = vmatpush1.msra.mxu0 %v7600
    %7637 = vmatprep.subr.mxu0 0.0
    %7638 = vmatpush1.msra.mxu0 %v7601
    %7639 = vmatprep.subr.mxu0 0.0
    %7640 = vmatpush1.msra.mxu0 %v7602
    %7641 = vmatprep.subr.mxu0 0.0
    %7642 = vmatpush1.msra.mxu0 %v7603
    %7643 = vmatprep.subr.mxu0 0.0
    %7644 = vmatpush1.msra.mxu0 0.0
    %7645 = vmatprep.subr.mxu0 0.0
    %7646 = vmatpush1.msra.mxu0 0.0
    %7647 = vmatprep.subr.mxu0 0.0
    %7648 = vmatpush1.msra.mxu0 0.0
    %7649 = vmatprep.subr.mxu0 0.0
    %7650 = vmatpush1.msra.mxu0 0.0
    %7651 = vmatprep.subr.mxu0 0.0
    %7652 = vmatpush1.msra.mxu0 0.0
    %7653 = vmatprep.subr.mxu0 0.0
    %7654 = vmatpush1.msra.mxu0 0.0
    %7655 = vmatprep.subr.mxu0 0.0
    %7656 = vmatpush1.msra.mxu0 0.0
    %7657 = vmatprep.subr.mxu0 0.0
    %7658 = vmatpush1.msra.mxu0 0.0
    %7659 = vmatprep.subr.mxu0 0.0
    %7660 = vmatpush1.msra.mxu0 0.0
    %7661 = vmatprep.subr.mxu0 0.0
    %7662 = vmatpush1.msra.mxu0 0.0
    %7663 = vmatprep.subr.mxu0 0.0
    %7664 = vmatpush1.msra.mxu0 0.0
    %7665 = vmatprep.subr.mxu0 0.0
    %7666 = vmatpush1.msra.mxu0 0.0
    %7667 = vmatprep.subr.mxu0 0.0
    %7668 = vmatpush1.msra.mxu0 0.0
    %7669 = vmatprep.subr.mxu0 0.0
    %7670 = vmatpush1.msra.mxu0 0.0
    %7671 = vmatprep.subr.mxu0 0.0
    %7672 = vmatpush1.msra.mxu0 0.0
    %7673 = vmatprep.subr.mxu0 0.0
    %7674 = vmatpush1.msra.mxu0 0.0
    %7675 = vmatprep.mubr.f32.mxu0 0.0
    %7676 = vmatmul.mubr.f32.gmra.mrb[0].mxu0 %v7580
    %v7677 = vpop.f32.mrb[0].mxu0
    %v7678 = vadd.f32 %v7609, %v7677
    %v7679 = vpop.f32.mrb[0].mxu0
    %7680 = vmatprep.mubr.f32.mxu0 0.0
    %7681 = vmatmul.mubr.f32.gmra.mrb[0].mxu0 %v7581
    %v7682 = vpop.f32.mrb[0].mxu0
    %v7683 = vadd.f32 %v7609, %v7682
    %v7684 = vpop.f32.mrb[0].mxu0
    %7685 = vmatprep.mubr.f32.mxu0 0.0
    %7686 = vmatmul.mubr.f32.gmra.mrb[0].mxu0 %v7582
    %v7687 = vpop.f32.mrb[0].mxu0
    %v7688 = vadd.f32 %v7609, %v7687
    %v7689 = vpop.f32.mrb[0].mxu0
    %7690 = vmatprep.mubr.f32.mxu0 0.0
    %7691 = vmatmul.mubr.f32.gmra.mrb[0].mxu0 %v7583
    %v7692 = vpop.f32.mrb[0].mxu0
    %v7693 = vadd.f32 %v7609, %v7692
    %v7694 = vpop.f32.mrb[0].mxu0
    %7695 = vmatprep.mubr.f32.mxu0 0.0
    %7696 = vmatmul.mubr.f32.gmra.mrb[0].mxu0 %v7584
    %v7697 = vpop.f32.mrb[0].mxu0
    %v7698 = vadd.f32 %v7609, %v7697
    %v7699 = vpop.f32.mrb[0].mxu0
    %7700 = vmatprep.mubr.f32.mxu0 0.0
    %7701 = vmatmul.mubr.f32.gmra.mrb[0].mxu0 %v7585
    %v7702 = vpop.f32.mrb[0].mxu0
    %v7703 = vadd.f32 %v7609, %v7702
    %v7704 = vpop.f32.mrb[0].mxu0
    %7705 = vmatprep.mubr.f32.mxu0 0.0
    %7706 = vmatmul.mubr.f32.gmra.mrb[0].mxu0 %v7586
    %v7707 = vpop.f32.mrb[0].mxu0
    %v7708 = vadd.f32 %v7609, %v7707
    %v7709 = vpop.f32.mrb[0].mxu0
    %7710 = vmatprep.mubr.f32.mxu0 0.0
    %7711 = vmatmul.mubr.f32.gmra.mrb[0].mxu0 %v7587
    %v7712 = vpop.f32.mrb[0].mxu0
    %v7713 = vadd.f32 %v7609, %v7712
    %v7714 = vpop.f32.mrb[0].mxu0
    %7715 = vdwg.mxu0
    %7716 = vst [vmem:[%s7] sm:$0xff] %v7678
    %7717 = vst [vmem:[%s7 + $0x8] sm:$0xff] %v7683
    %7718 = vst [vmem:[%s7 + $0x10] sm:$0xff] %v7688
    %7719 = vst [vmem:[%s7 + $0x18] sm:$0xff] %v7693
    %7720 = vst [vmem:[%s7 + $0x20] sm:$0xff] %v7698
    %7721 = vst [vmem:[%s7 + $0x28] sm:$0xff] %v7703
    %7722 = vst [vmem:[%s7 + $0x30] sm:$0xff] %v7708
    %7723 = vst [vmem:[%s7 + $0x38] sm:$0xff] %v7713
    // Predicated region
    $region50: #{custom_lstm_forward.1} parent=1 // pred_check
      _
    $region51: #{custom_lstm_forward.1} parent=1 // pred_check_branch
      %7725 = sbr.rel (0) target = $region53
    $region52: #{custom_lstm_forward.1} parent=1 // pred_region
      _
    $region53: #{custom_lstm_forward.1} parent=1 // pred_fallthru
      _
    // Predicated region
    $region54: #{custom_lstm_forward.1} parent=1 // pred_check
      _
    $region55: #{custom_lstm_forward.1} parent=1 // pred_check_branch
      %7727 = sbr.rel (0) target = $region57
    $region56: #{custom_lstm_forward.1} parent=1 // pred_region
      _
    $region57: #{custom_lstm_forward.1} parent=1 // pred_fallthru
      _
    %7728 = vsyncpa [#allocation7], 1
    %7729 = vsyncpa [#allocation9], 1
    %7730 = vsyncpa [#allocation12], 1

</llo_original>
